<compile_context>
chip_gen: v7x
topology: tpu7x:2x2x1
jax: 0.10.0
libtpu: 0.0.40
codegen_flags: <defaults>
</compile_context>

<pallas_src>
import math

import jax
import jax.numpy as jnp
from jax import lax
from jax.experimental import pallas as pl
from jax.experimental.pallas import tpu as pltpu


# ------------------------------- fused forward kernel -------------------------------
def cnn_kernel(x_ref, w1b_ref, b1_ref, w2b_ref, b2_ref,
               w1m_ref, fb1_ref, w2p_ref, fb2_ref, o_ref):
    # x_ref   : (28, TB, 28)       input rows; batch in sublanes, width in lanes
    # w1b_ref : (3, 28, 1024) bf16 conv1 banded weights; lanes [0:416]=even output cols,
    #                              [512:928]=odd output cols (index w*32+c), zero-padded halves
    # b1_ref  : (1, 512)           conv1 bias tiled over pooled width, zero-padded
    # w2b_ref : (3, 512, 768) bf16 conv2 banded weights; rows k*32+ci (padded 416->512),
    #                              lanes [0:320]=even, [384:704]=odd (index w*64+c)
    # b2_ref  : (1, 384)           conv2 bias tiled over pooled width, zero-padded
    # w1m_ref : (5, 384, 128) bf16 fc1 with the PyTorch (C,H,W) flatten folded in (rows padded)
    # w2p_ref : (128, 128)   bf16  fc2 zero-padded to 128 output lanes (lane-dense store)
    # o_ref   : (TB, 128)
    TB = x_ref.shape[1]
    f32 = jnp.float32
    bf16 = jnp.bfloat16

    # ---- conv1 (3x3, 1->32): 3 banded dots, M = 26*TB; width pool = aligned lane-half max ----
    acc1 = None
    for dh in range(3):
        lhs = x_ref[dh:dh + 26].reshape(26 * TB, 28).astype(bf16)
        t = jnp.dot(lhs, w1b_ref[dh], preferred_element_type=f32)
        acc1 = t if acc1 is None else acc1 + t                       # (26*TB, 1024)
    cm1 = jnp.maximum(acc1[:, :512], acc1[:, 512:])                  # width pool  (26*TB, 512)
    cm1 = cm1.reshape(13, 2 * TB, 512)
    p1 = jnp.maximum(cm1[:, :TB, :], cm1[:, TB:, :])                 # height pool (13, TB, 512)
    p1 = jnp.maximum(p1 + b1_ref[...], 0.0)                          # bias+ReLU (commute w/ max)

    # ---- conv2 (3x3, 32->64): 3 banded dots, M = 11*TB ----
    acc2 = None
    for dh in range(3):
        lhs2 = p1[dh:dh + 11].reshape(11 * TB, 512).astype(bf16)
        t = jnp.dot(lhs2, w2b_ref[dh], preferred_element_type=f32)
        acc2 = t if acc2 is None else acc2 + t                       # (11*TB, 768)
    cm2 = jnp.maximum(acc2[:, :384], acc2[:, 384:])                  # width pool  (11*TB, 384)
    cm2 = cm2[:10 * TB].reshape(5, 2 * TB, 384)                      # drop last (odd) row
    p2 = jnp.maximum(cm2[:, :TB, :], cm2[:, TB:, :])                 # height pool (5, TB, 384)
    p2 = jnp.maximum(p2 + b2_ref[...], 0.0)                          # (5, TB, 384), HWC features

    # ---- fc1 (1600->128): 5 accumulated (TB,384)x(384,128) dots, batch in MXU M dim ----
    acc3 = fb1_ref[...]                                              # (1, 128) broadcasts
    for r in range(5):
        acc3 = acc3 + jnp.dot(p2[r].astype(bf16), w1m_ref[r], preferred_element_type=f32)
    hid = jnp.maximum(acc3, 0.0).astype(bf16)                        # (TB, 128)

    # ---- fc2 (128 -> padded 128), lane-dense store; sliced to num_classes outside ----
    o_ref[...] = jnp.dot(hid, w2p_ref[...], preferred_element_type=f32) + fb2_ref[...]


# --------------------------- one-time weight preparation ----------------------------
def prepare_params(params):
    """Fold convs into banded matmul weights, fold the (C,H,W) flatten into fc1,
    pad fc2 to 128 lanes, cast all matmul weights to bf16.  Run ONCE (inference-time
    weight transform) — not inside the per-step jitted forward."""
    w1, b1, w2, b2, fw1, fb1, fw2, fb2 = params
    f32, bf16 = jnp.float32, jnp.bfloat16
    nc = fw2.shape[0]

    dw3 = jnp.arange(3)[None, None, :]

    # conv1 banded weights: col = w*32 + c; even/odd output columns in separate lane halves.
    k28 = jnp.arange(28)[:, None, None]
    w13 = jnp.arange(13)[None, :, None]
    sel1e = (k28 == 2 * w13 + dw3).astype(f32)                       # (28, 13, 3)
    sel1o = (k28 == 2 * w13 + 1 + dw3).astype(f32)
    w1t = jnp.transpose(w1[:, 0], (1, 2, 0))                         # (3, 3, 32)
    w1be = jnp.einsum('kwd,hdc->hkwc', sel1e, w1t).reshape(3, 28, 416)
    w1bo = jnp.einsum('kwd,hdc->hkwc', sel1o, w1t).reshape(3, 28, 416)
    w1b = jnp.concatenate([jnp.pad(w1be, ((0, 0), (0, 0), (0, 96))),
                           jnp.pad(w1bo, ((0, 0), (0, 0), (0, 96)))], axis=-1).astype(bf16)

    # conv2 banded weights: row = k*32 + ci (padded 416->512), col = w*64 + co (even/odd halves).
    k13 = jnp.arange(13)[:, None, None]
    w5 = jnp.arange(5)[None, :, None]
    sel2e = (k13 == 2 * w5 + dw3).astype(f32)                        # (13, 5, 3)
    sel2o = (k13 == 2 * w5 + 1 + dw3).astype(f32)
    w2t = jnp.transpose(w2, (2, 3, 1, 0))                            # (3, 3, 32, 64)
    w2be = jnp.einsum('kwd,hdio->hkiwo', sel2e, w2t).reshape(3, 416, 320)
    w2bo = jnp.einsum('kwd,hdio->hkiwo', sel2o, w2t).reshape(3, 416, 320)
    w2b = jnp.concatenate([jnp.pad(w2be, ((0, 0), (0, 96), (0, 64))),
                           jnp.pad(w2bo, ((0, 0), (0, 96), (0, 64)))], axis=-1).astype(bf16)

    # Biases broadcast over pooled width positions; zero-padded to the lane widths above.
    b1p = jnp.pad(jnp.tile(b1, 13), (0, 96))[None, :].astype(f32)    # (1, 512)
    b2p = jnp.pad(jnp.tile(b2, 5), (0, 64))[None, :].astype(f32)     # (1, 384)

    # fc1 with the PyTorch (C,H,W) flatten permutation folded in; K rows padded 320 -> 384.
    w1m = jnp.transpose(fw1.reshape(128, 64, 5, 5), (2, 3, 1, 0)).reshape(5, 320, 128)
    w1m = jnp.pad(w1m, ((0, 0), (0, 64), (0, 0))).astype(bf16)       # (5, 384, 128)
    fb1p = fb1[None, :].astype(f32)                                  # (1, 128)

    # fc2 zero-padded to 128 output lanes.
    w2p = jnp.pad(fw2.T, ((0, 0), (0, 128 - nc))).astype(bf16)       # (128, 128)
    fb2p = jnp.pad(fb2, (0, 128 - nc))[None, :].astype(f32)          # (1, 128)

    return (w1b, b1p, w2b, b2p, w1m, fb1p, w2p, fb2p)


# ----------------------------------- full forward -----------------------------------
@jax.jit
def _forward_padded(x, w1b, b1p, w2b, b2p, w1m, fb1p, w2p, fb2p):
    f32 = jnp.float32
    B = x.shape[0]
    TB = min(32, ((B + 7) // 8) * 8)          # batch tile (multiple of 8)
    Bp = ((B + TB - 1) // TB) * TB

    x_hw = x[:, 0, :, :].astype(f32)          # (B, 28, 28)
    if Bp != B:
        x_hw = jnp.pad(x_hw, ((0, Bp - B), (0, 0), (0, 0)))
    x_t = jnp.transpose(x_hw, (1, 0, 2))      # (28, Bp, 28): h-outer, batch in sublanes

    def full(shape):
        return pl.BlockSpec(shape, lambda i, _n=len(shape): (0,) * _n)

    out = pl.pallas_call(
        cnn_kernel,
        out_shape=jax.ShapeDtypeStruct((Bp, 128), f32),
        grid=(Bp // TB,),
        in_specs=[
            pl.BlockSpec((28, TB, 28), lambda i: (0, i, 0)),
            full((3, 28, 1024)), full((1, 512)),
            full((3, 512, 768)), full((1, 384)),
            full((5, 384, 128)), full((1, 128)),
            full((128, 128)), full((1, 128)),
        ],
        out_specs=pl.BlockSpec((TB, 128), lambda i: (i, 0)),
        compiler_params=pltpu.CompilerParams(
            dimension_semantics=("parallel",),
            vmem_limit_bytes=48 * 1024 * 1024,
        ),
    )(x_t, w1b, b1p, w2b, b2p, w1m, fb1p, w2p, fb2p)
    return out


def basic_cnn_forward(x, prepped, num_classes=10):
    out = _forward_padded(x, *prepped)
    return out[:x.shape[0], :num_classes]


# --------------------------------- plain-JAX reference ------------------------------
def reference_forward(x, params):
    w1, b1, w2, b2, fw1, fb1, fw2, fb2 = params
    dn = ("NCHW", "OIHW", "NCHW")
    hi = lax.Precision.HIGHEST
    y = lax.conv_general_dilated(x, w1, (1, 1), "VALID", dimension_numbers=dn, precision=hi)
    y = jnp.maximum(y + b1[None, :, None, None], 0.0)
    y = lax.reduce_window(y, -jnp.inf, lax.max, (1, 1, 2, 2), (1, 1, 2, 2), "VALID")
    y = lax.conv_general_dilated(y, w2, (1, 1), "VALID", dimension_numbers=dn, precision=hi)
    y = jnp.maximum(y + b2[None, :, None, None], 0.0)
    y = lax.reduce_window(y, -jnp.inf, lax.max, (1, 1, 2, 2), (1, 1, 2, 2), "VALID")
    y = y.reshape(y.shape[0], -1)
    y = jnp.maximum(jnp.dot(y, fw1.T, precision=hi) + fb1, 0.0)
    return jnp.dot(y, fw2.T, precision=hi) + fb2


def init_params(key):
    ks = jax.random.split(key, 8)

    def u(k, shape, fan_in):
        bound = 1.0 / math.sqrt(fan_in)
        return jax.random.uniform(k, shape, jnp.float32, -bound, bound)

    w1 = u(ks[0], (32, 1, 3, 3), 1 * 9)     # Conv2d(1, 32, 3)
    b1 = u(ks[1], (32,), 1 * 9)
    w2 = u(ks[2], (64, 32, 3, 3), 32 * 9)   # Conv2d(32, 64, 3)
    b2 = u(ks[3], (64,), 32 * 9)
    fw1 = u(ks[4], (128, 1600), 1600)       # Linear(1600, 128)
    fb1 = u(ks[5], (128,), 1600)
    fw2 = u(ks[6], (10, 128), 128)          # Linear(128, 10)
    fb2 = u(ks[7], (10,), 128)
    return (w1, b1, w2, b2, fw1, fb1, fw2, fb2)


if __name__ == "__main__":
    key = jax.random.PRNGKey(0)
    kx, kp = jax.random.split(key)
    # Linear(1600, 128) implies a 28x28 single-channel input (MNIST-style); batch = 2.
    x = jax.random.normal(kx, (2, 1, 28, 28), jnp.float32)
    params = init_params(kp)

    prepped = jax.block_until_ready(prepare_params(params))   # one-time weight transform
    out = jax.block_until_ready(basic_cnn_forward(x, prepped, 10))
    assert out.shape == (2, 10) and out.dtype == jnp.float32

    ref = jax.block_until_ready(reference_forward(x, params))
    max_diff = float(jnp.max(jnp.abs(out - ref)))
    assert max_diff < 2e-2, f"mismatch vs reference: {max_diff}"

    print("KERNEL_OK")
</pallas_src>

<mosaic_0001>
module attributes {stable_mosaic.version = 11 : i64} {
  func.func @cnn_kernel(%arg0: i32, %arg1: memref<28x8x28xf32, #tpu.memory_space<vmem>>, %arg2: memref<3x28x1024xbf16, #tpu.memory_space<vmem>>, %arg3: memref<1x512xf32, #tpu.memory_space<vmem>>, %arg4: memref<3x512x768xbf16, #tpu.memory_space<vmem>>, %arg5: memref<1x384xf32, #tpu.memory_space<vmem>>, %arg6: memref<5x384x128xbf16, #tpu.memory_space<vmem>>, %arg7: memref<1x128xf32, #tpu.memory_space<vmem>>, %arg8: memref<128x128xbf16, #tpu.memory_space<vmem>>, %arg9: memref<1x128xf32, #tpu.memory_space<vmem>>, %arg10: memref<8x128xf32, #tpu.memory_space<vmem>>) attributes {dimension_semantics = [#tpu.dimension_semantics<parallel>], iteration_bounds = array<i64: 1>, scalar_prefetch = 0 : i64, scratch_operands = 0 : i64, tpu.core_type = #tpu.core_type<tc>, window_params = [{transform_indices = @transform_0, window_bounds = array<i64: 28, 8, 28>}, {pipeline_mode = #tpu.pipeline_mode<synchronous>, transform_indices = @transform_1, window_bounds = array<i64: 3, 28, 1024>}, {pipeline_mode = #tpu.pipeline_mode<synchronous>, transform_indices = @transform_2, window_bounds = array<i64: 1, 512>}, {pipeline_mode = #tpu.pipeline_mode<synchronous>, transform_indices = @transform_3, window_bounds = array<i64: 3, 512, 768>}, {pipeline_mode = #tpu.pipeline_mode<synchronous>, transform_indices = @transform_4, window_bounds = array<i64: 1, 384>}, {pipeline_mode = #tpu.pipeline_mode<synchronous>, transform_indices = @transform_5, window_bounds = array<i64: 5, 384, 128>}, {pipeline_mode = #tpu.pipeline_mode<synchronous>, transform_indices = @transform_6, window_bounds = array<i64: 1, 128>}, {pipeline_mode = #tpu.pipeline_mode<synchronous>, transform_indices = @transform_7, window_bounds = array<i64: 128, 128>}, {pipeline_mode = #tpu.pipeline_mode<synchronous>, transform_indices = @transform_8, window_bounds = array<i64: 1, 128>}, {transform_indices = @transform_9, window_bounds = array<i64: 8, 128>}]} {
    %c0 = arith.constant 0 : index
    %c0_0 = arith.constant 0 : index
    %c0_1 = arith.constant 0 : index
    %0 = vector.load %arg1[%c0, %c0_0, %c0_1] : memref<28x8x28xf32, #tpu.memory_space<vmem>>, vector<26x8x28xf32>
    %1 = vector.shape_cast %0 : vector<26x8x28xf32> to vector<208x28xf32>
    %2 = arith.truncf %1 : vector<208x28xf32> to vector<208x28xbf16>
    %c0_2 = arith.constant 0 : index
    %c0_3 = arith.constant 0 : index
    %c0_4 = arith.constant 0 : index
    %3 = vector.load %arg2[%c0_2, %c0_3, %c0_4] : memref<3x28x1024xbf16, #tpu.memory_space<vmem>>, vector<1x28x1024xbf16>
    %4 = vector.shape_cast %3 : vector<1x28x1024xbf16> to vector<28x1024xbf16>
    %cst = arith.constant dense<0.000000e+00> : vector<208x1024xf32>
    %5 = tpu.matmul %2, %4, %cst {dimension_numbers = #tpu.dot_dimension_numbers<[1], [0], [0], [1], [0, 0, 1, 1], [], []>} : vector<208x28xbf16>, vector<28x1024xbf16>, vector<208x1024xf32> -> vector<208x1024xf32>
    %c1 = arith.constant 1 : index
    %c0_5 = arith.constant 0 : index
    %c0_6 = arith.constant 0 : index
    %6 = vector.load %arg1[%c1, %c0_5, %c0_6] : memref<28x8x28xf32, #tpu.memory_space<vmem>>, vector<26x8x28xf32>
    %7 = vector.shape_cast %6 : vector<26x8x28xf32> to vector<208x28xf32>
    %8 = arith.truncf %7 : vector<208x28xf32> to vector<208x28xbf16>
    %c1_7 = arith.constant 1 : index
    %c0_8 = arith.constant 0 : index
    %c0_9 = arith.constant 0 : index
    %9 = vector.load %arg2[%c1_7, %c0_8, %c0_9] : memref<3x28x1024xbf16, #tpu.memory_space<vmem>>, vector<1x28x1024xbf16>
    %10 = vector.shape_cast %9 : vector<1x28x1024xbf16> to vector<28x1024xbf16>
    %cst_10 = arith.constant dense<0.000000e+00> : vector<208x1024xf32>
    %11 = tpu.matmul %8, %10, %cst_10 {dimension_numbers = #tpu.dot_dimension_numbers<[1], [0], [0], [1], [0, 0, 1, 1], [], []>} : vector<208x28xbf16>, vector<28x1024xbf16>, vector<208x1024xf32> -> vector<208x1024xf32>
    %12 = arith.addf %5, %11 : vector<208x1024xf32>
    %c2 = arith.constant 2 : index
    %c0_11 = arith.constant 0 : index
    %c0_12 = arith.constant 0 : index
    %13 = vector.load %arg1[%c2, %c0_11, %c0_12] : memref<28x8x28xf32, #tpu.memory_space<vmem>>, vector<26x8x28xf32>
    %14 = vector.shape_cast %13 : vector<26x8x28xf32> to vector<208x28xf32>
    %15 = arith.truncf %14 : vector<208x28xf32> to vector<208x28xbf16>
    %c2_13 = arith.constant 2 : index
    %c0_14 = arith.constant 0 : index
    %c0_15 = arith.constant 0 : index
    %16 = vector.load %arg2[%c2_13, %c0_14, %c0_15] : memref<3x28x1024xbf16, #tpu.memory_space<vmem>>, vector<1x28x1024xbf16>
    %17 = vector.shape_cast %16 : vector<1x28x1024xbf16> to vector<28x1024xbf16>
    %cst_16 = arith.constant dense<0.000000e+00> : vector<208x1024xf32>
    %18 = tpu.matmul %15, %17, %cst_16 {dimension_numbers = #tpu.dot_dimension_numbers<[1], [0], [0], [1], [0, 0, 1, 1], [], []>} : vector<208x28xbf16>, vector<28x1024xbf16>, vector<208x1024xf32> -> vector<208x1024xf32>
    %19 = arith.addf %12, %18 : vector<208x1024xf32>
    %20 = vector.extract_strided_slice %19 {offsets = [0, 0], sizes = [208, 512], strides = [1, 1]} : vector<208x1024xf32> to vector<208x512xf32>
    %21 = vector.extract_strided_slice %19 {offsets = [0, 512], sizes = [208, 512], strides = [1, 1]} : vector<208x1024xf32> to vector<208x512xf32>
    %22 = arith.maximumf %20, %21 : vector<208x512xf32>
    %23 = vector.shape_cast %22 : vector<208x512xf32> to vector<13x16x512xf32>
    %24 = vector.extract_strided_slice %23 {offsets = [0, 0, 0], sizes = [13, 8, 512], strides = [1, 1, 1]} : vector<13x16x512xf32> to vector<13x8x512xf32>
    %25 = vector.extract_strided_slice %23 {offsets = [0, 8, 0], sizes = [13, 8, 512], strides = [1, 1, 1]} : vector<13x16x512xf32> to vector<13x8x512xf32>
    %26 = arith.maximumf %24, %25 : vector<13x8x512xf32>
    %c0_17 = arith.constant 0 : index
    %c0_18 = arith.constant 0 : index
    %27 = vector.load %arg3[%c0_17, %c0_18] : memref<1x512xf32, #tpu.memory_space<vmem>>, vector<1x512xf32>
    %28 = vector.shape_cast %27 : vector<1x512xf32> to vector<1x1x512xf32>
    %29 = vector.broadcast %28 : vector<1x1x512xf32> to vector<13x8x512xf32>
    %30 = arith.addf %26, %29 : vector<13x8x512xf32>
    %cst_19 = arith.constant 0.000000e+00 : f32
    %31 = vector.broadcast %cst_19 : f32 to vector<13x8x512xf32>
    %32 = arith.maximumf %30, %31 : vector<13x8x512xf32>
    %33 = vector.extract_strided_slice %32 {offsets = [0, 0, 0], sizes = [11, 8, 512], strides = [1, 1, 1]} : vector<13x8x512xf32> to vector<11x8x512xf32>
    %34 = vector.shape_cast %33 : vector<11x8x512xf32> to vector<88x512xf32>
    %35 = arith.truncf %34 : vector<88x512xf32> to vector<88x512xbf16>
    %c0_20 = arith.constant 0 : index
    %c0_21 = arith.constant 0 : index
    %c0_22 = arith.constant 0 : index
    %36 = vector.load %arg4[%c0_20, %c0_21, %c0_22] : memref<3x512x768xbf16, #tpu.memory_space<vmem>>, vector<1x512x768xbf16>
    %37 = vector.shape_cast %36 : vector<1x512x768xbf16> to vector<512x768xbf16>
    %cst_23 = arith.constant dense<0.000000e+00> : vector<88x768xf32>
    %38 = tpu.matmul %35, %37, %cst_23 {dimension_numbers = #tpu.dot_dimension_numbers<[1], [0], [0], [1], [0, 0, 1, 1], [], []>} : vector<88x512xbf16>, vector<512x768xbf16>, vector<88x768xf32> -> vector<88x768xf32>
    %39 = vector.extract_strided_slice %32 {offsets = [1, 0, 0], sizes = [11, 8, 512], strides = [1, 1, 1]} : vector<13x8x512xf32> to vector<11x8x512xf32>
    %40 = vector.shape_cast %39 : vector<11x8x512xf32> to vector<88x512xf32>
    %41 = arith.truncf %40 : vector<88x512xf32> to vector<88x512xbf16>
    %c1_24 = arith.constant 1 : index
    %c0_25 = arith.constant 0 : index
    %c0_26 = arith.constant 0 : index
    %42 = vector.load %arg4[%c1_24, %c0_25, %c0_26] : memref<3x512x768xbf16, #tpu.memory_space<vmem>>, vector<1x512x768xbf16>
    %43 = vector.shape_cast %42 : vector<1x512x768xbf16> to vector<512x768xbf16>
    %cst_27 = arith.constant dense<0.000000e+00> : vector<88x768xf32>
    %44 = tpu.matmul %41, %43, %cst_27 {dimension_numbers = #tpu.dot_dimension_numbers<[1], [0], [0], [1], [0, 0, 1, 1], [], []>} : vector<88x512xbf16>, vector<512x768xbf16>, vector<88x768xf32> -> vector<88x768xf32>
    %45 = arith.addf %38, %44 : vector<88x768xf32>
    %46 = vector.extract_strided_slice %32 {offsets = [2, 0, 0], sizes = [11, 8, 512], strides = [1, 1, 1]} : vector<13x8x512xf32> to vector<11x8x512xf32>
    %47 = vector.shape_cast %46 : vector<11x8x512xf32> to vector<88x512xf32>
    %48 = arith.truncf %47 : vector<88x512xf32> to vector<88x512xbf16>
    %c2_28 = arith.constant 2 : index
    %c0_29 = arith.constant 0 : index
    %c0_30 = arith.constant 0 : index
    %49 = vector.load %arg4[%c2_28, %c0_29, %c0_30] : memref<3x512x768xbf16, #tpu.memory_space<vmem>>, vector<1x512x768xbf16>
    %50 = vector.shape_cast %49 : vector<1x512x768xbf16> to vector<512x768xbf16>
    %cst_31 = arith.constant dense<0.000000e+00> : vector<88x768xf32>
    %51 = tpu.matmul %48, %50, %cst_31 {dimension_numbers = #tpu.dot_dimension_numbers<[1], [0], [0], [1], [0, 0, 1, 1], [], []>} : vector<88x512xbf16>, vector<512x768xbf16>, vector<88x768xf32> -> vector<88x768xf32>
    %52 = arith.addf %45, %51 : vector<88x768xf32>
    %53 = vector.extract_strided_slice %52 {offsets = [0, 0], sizes = [88, 384], strides = [1, 1]} : vector<88x768xf32> to vector<88x384xf32>
    %54 = vector.extract_strided_slice %52 {offsets = [0, 384], sizes = [88, 384], strides = [1, 1]} : vector<88x768xf32> to vector<88x384xf32>
    %55 = arith.maximumf %53, %54 : vector<88x384xf32>
    %56 = vector.extract_strided_slice %55 {offsets = [0, 0], sizes = [80, 384], strides = [1, 1]} : vector<88x384xf32> to vector<80x384xf32>
    %57 = vector.shape_cast %56 : vector<80x384xf32> to vector<5x16x384xf32>
    %58 = vector.extract_strided_slice %57 {offsets = [0, 0, 0], sizes = [5, 8, 384], strides = [1, 1, 1]} : vector<5x16x384xf32> to vector<5x8x384xf32>
    %59 = vector.extract_strided_slice %57 {offsets = [0, 8, 0], sizes = [5, 8, 384], strides = [1, 1, 1]} : vector<5x16x384xf32> to vector<5x8x384xf32>
    %60 = arith.maximumf %58, %59 : vector<5x8x384xf32>
    %c0_32 = arith.constant 0 : index
    %c0_33 = arith.constant 0 : index
    %61 = vector.load %arg5[%c0_32, %c0_33] : memref<1x384xf32, #tpu.memory_space<vmem>>, vector<1x384xf32>
    %62 = vector.shape_cast %61 : vector<1x384xf32> to vector<1x1x384xf32>
    %63 = vector.broadcast %62 : vector<1x1x384xf32> to vector<5x8x384xf32>
    %64 = arith.addf %60, %63 : vector<5x8x384xf32>
    %cst_34 = arith.constant 0.000000e+00 : f32
    %65 = vector.broadcast %cst_34 : f32 to vector<5x8x384xf32>
    %66 = arith.maximumf %64, %65 : vector<5x8x384xf32>
    %c0_35 = arith.constant 0 : index
    %c0_36 = arith.constant 0 : index
    %67 = vector.load %arg7[%c0_35, %c0_36] : memref<1x128xf32, #tpu.memory_space<vmem>>, vector<1x128xf32>
    %68 = vector.extract_strided_slice %66 {offsets = [0, 0, 0], sizes = [1, 8, 384], strides = [1, 1, 1]} : vector<5x8x384xf32> to vector<1x8x384xf32>
    %69 = vector.shape_cast %68 : vector<1x8x384xf32> to vector<8x384xf32>
    %70 = arith.truncf %69 : vector<8x384xf32> to vector<8x384xbf16>
    %c0_37 = arith.constant 0 : index
    %c0_38 = arith.constant 0 : index
    %c0_39 = arith.constant 0 : index
    %71 = vector.load %arg6[%c0_37, %c0_38, %c0_39] : memref<5x384x128xbf16, #tpu.memory_space<vmem>>, vector<1x384x128xbf16>
    %72 = vector.shape_cast %71 : vector<1x384x128xbf16> to vector<384x128xbf16>
    %cst_40 = arith.constant dense<0.000000e+00> : vector<8x128xf32>
    %73 = tpu.matmul %70, %72, %cst_40 {dimension_numbers = #tpu.dot_dimension_numbers<[1], [0], [0], [1], [0, 0, 1, 1], [], []>} : vector<8x384xbf16>, vector<384x128xbf16>, vector<8x128xf32> -> vector<8x128xf32>
    %74 = vector.broadcast %67 : vector<1x128xf32> to vector<8x128xf32>
    %75 = arith.addf %74, %73 : vector<8x128xf32>
    %76 = vector.extract_strided_slice %66 {offsets = [1, 0, 0], sizes = [1, 8, 384], strides = [1, 1, 1]} : vector<5x8x384xf32> to vector<1x8x384xf32>
    %77 = vector.shape_cast %76 : vector<1x8x384xf32> to vector<8x384xf32>
    %78 = arith.truncf %77 : vector<8x384xf32> to vector<8x384xbf16>
    %c1_41 = arith.constant 1 : index
    %c0_42 = arith.constant 0 : index
    %c0_43 = arith.constant 0 : index
    %79 = vector.load %arg6[%c1_41, %c0_42, %c0_43] : memref<5x384x128xbf16, #tpu.memory_space<vmem>>, vector<1x384x128xbf16>
    %80 = vector.shape_cast %79 : vector<1x384x128xbf16> to vector<384x128xbf16>
    %cst_44 = arith.constant dense<0.000000e+00> : vector<8x128xf32>
    %81 = tpu.matmul %78, %80, %cst_44 {dimension_numbers = #tpu.dot_dimension_numbers<[1], [0], [0], [1], [0, 0, 1, 1], [], []>} : vector<8x384xbf16>, vector<384x128xbf16>, vector<8x128xf32> -> vector<8x128xf32>
    %82 = arith.addf %75, %81 : vector<8x128xf32>
    %83 = vector.extract_strided_slice %66 {offsets = [2, 0, 0], sizes = [1, 8, 384], strides = [1, 1, 1]} : vector<5x8x384xf32> to vector<1x8x384xf32>
    %84 = vector.shape_cast %83 : vector<1x8x384xf32> to vector<8x384xf32>
    %85 = arith.truncf %84 : vector<8x384xf32> to vector<8x384xbf16>
    %c2_45 = arith.constant 2 : index
    %c0_46 = arith.constant 0 : index
    %c0_47 = arith.constant 0 : index
    %86 = vector.load %arg6[%c2_45, %c0_46, %c0_47] : memref<5x384x128xbf16, #tpu.memory_space<vmem>>, vector<1x384x128xbf16>
    %87 = vector.shape_cast %86 : vector<1x384x128xbf16> to vector<384x128xbf16>
    %cst_48 = arith.constant dense<0.000000e+00> : vector<8x128xf32>
    %88 = tpu.matmul %85, %87, %cst_48 {dimension_numbers = #tpu.dot_dimension_numbers<[1], [0], [0], [1], [0, 0, 1, 1], [], []>} : vector<8x384xbf16>, vector<384x128xbf16>, vector<8x128xf32> -> vector<8x128xf32>
    %89 = arith.addf %82, %88 : vector<8x128xf32>
    %90 = vector.extract_strided_slice %66 {offsets = [3, 0, 0], sizes = [1, 8, 384], strides = [1, 1, 1]} : vector<5x8x384xf32> to vector<1x8x384xf32>
    %91 = vector.shape_cast %90 : vector<1x8x384xf32> to vector<8x384xf32>
    %92 = arith.truncf %91 : vector<8x384xf32> to vector<8x384xbf16>
    %c3 = arith.constant 3 : index
    %c0_49 = arith.constant 0 : index
    %c0_50 = arith.constant 0 : index
    %93 = vector.load %arg6[%c3, %c0_49, %c0_50] : memref<5x384x128xbf16, #tpu.memory_space<vmem>>, vector<1x384x128xbf16>
    %94 = vector.shape_cast %93 : vector<1x384x128xbf16> to vector<384x128xbf16>
    %cst_51 = arith.constant dense<0.000000e+00> : vector<8x128xf32>
    %95 = tpu.matmul %92, %94, %cst_51 {dimension_numbers = #tpu.dot_dimension_numbers<[1], [0], [0], [1], [0, 0, 1, 1], [], []>} : vector<8x384xbf16>, vector<384x128xbf16>, vector<8x128xf32> -> vector<8x128xf32>
    %96 = arith.addf %89, %95 : vector<8x128xf32>
    %97 = vector.extract_strided_slice %66 {offsets = [4, 0, 0], sizes = [1, 8, 384], strides = [1, 1, 1]} : vector<5x8x384xf32> to vector<1x8x384xf32>
    %98 = vector.shape_cast %97 : vector<1x8x384xf32> to vector<8x384xf32>
    %99 = arith.truncf %98 : vector<8x384xf32> to vector<8x384xbf16>
    %c4 = arith.constant 4 : index
    %c0_52 = arith.constant 0 : index
    %c0_53 = arith.constant 0 : index
    %100 = vector.load %arg6[%c4, %c0_52, %c0_53] : memref<5x384x128xbf16, #tpu.memory_space<vmem>>, vector<1x384x128xbf16>
    %101 = vector.shape_cast %100 : vector<1x384x128xbf16> to vector<384x128xbf16>
    %cst_54 = arith.constant dense<0.000000e+00> : vector<8x128xf32>
    %102 = tpu.matmul %99, %101, %cst_54 {dimension_numbers = #tpu.dot_dimension_numbers<[1], [0], [0], [1], [0, 0, 1, 1], [], []>} : vector<8x384xbf16>, vector<384x128xbf16>, vector<8x128xf32> -> vector<8x128xf32>
    %103 = arith.addf %96, %102 : vector<8x128xf32>
    %cst_55 = arith.constant 0.000000e+00 : f32
    %104 = vector.broadcast %cst_55 : f32 to vector<8x128xf32>
    %105 = arith.maximumf %103, %104 : vector<8x128xf32>
    %106 = arith.truncf %105 : vector<8x128xf32> to vector<8x128xbf16>
    %c0_56 = arith.constant 0 : index
    %c0_57 = arith.constant 0 : index
    %107 = vector.load %arg8[%c0_56, %c0_57] : memref<128x128xbf16, #tpu.memory_space<vmem>>, vector<128x128xbf16>
    %cst_58 = arith.constant dense<0.000000e+00> : vector<8x128xf32>
    %108 = tpu.matmul %106, %107, %cst_58 {dimension_numbers = #tpu.dot_dimension_numbers<[1], [0], [0], [1], [0, 0, 1, 1], [], []>} : vector<8x128xbf16>, vector<128x128xbf16>, vector<8x128xf32> -> vector<8x128xf32>
    %c0_59 = arith.constant 0 : index
    %c0_60 = arith.constant 0 : index
    %109 = vector.load %arg9[%c0_59, %c0_60] : memref<1x128xf32, #tpu.memory_space<vmem>>, vector<1x128xf32>
    %110 = vector.broadcast %109 : vector<1x128xf32> to vector<8x128xf32>
    %111 = arith.addf %108, %110 : vector<8x128xf32>
    %c0_61 = arith.constant 0 : index
    %c0_62 = arith.constant 0 : index
    %112 = vector.load %arg10[%c0_61, %c0_62] : memref<8x128xf32, #tpu.memory_space<vmem>>, vector<8x128xf32>
    tpu.vector_store %arg10[%c0_61, %c0_62], %111 {strides = array<i32>} : memref<8x128xf32, #tpu.memory_space<vmem>>, vector<8x128xf32>,
    return
  }
  func.func @transform_0(%arg0: i32) -> (i32, i32, i32) {
    %c0_i32 = arith.constant 0 : i32
    %c0_i32_0 = arith.constant 0 : i32
    %c0_i32_1 = arith.constant 0 : i32
    return %c0_i32, %arg0, %c0_i32_0 : i32, i32, i32
  }
  func.func @transform_1(%arg0: i32) -> (i32, i32, i32) {
    %c0_i32 = arith.constant 0 : i32
    %c0_i32_0 = arith.constant 0 : i32
    %c0_i32_1 = arith.constant 0 : i32
    %c0_i32_2 = arith.constant 0 : i32
    return %c0_i32, %c0_i32_0, %c0_i32_1 : i32, i32, i32
  }
  func.func @transform_2(%arg0: i32) -> (i32, i32) {
    %c0_i32 = arith.constant 0 : i32
    %c0_i32_0 = arith.constant 0 : i32
    %c0_i32_1 = arith.constant 0 : i32
    return %c0_i32, %c0_i32_0 : i32, i32
  }
  func.func @transform_3(%arg0: i32) -> (i32, i32, i32) {
    %c0_i32 = arith.constant 0 : i32
    %c0_i32_0 = arith.constant 0 : i32
    %c0_i32_1 = arith.constant 0 : i32
    %c0_i32_2 = arith.constant 0 : i32
    return %c0_i32, %c0_i32_0, %c0_i32_1 : i32, i32, i32
  }
  func.func @transform_4(%arg0: i32) -> (i32, i32) {
    %c0_i32 = arith.constant 0 : i32
    %c0_i32_0 = arith.constant 0 : i32
    %c0_i32_1 = arith.constant 0 : i32
    return %c0_i32, %c0_i32_0 : i32, i32
  }
  func.func @transform_5(%arg0: i32) -> (i32, i32, i32) {
    %c0_i32 = arith.constant 0 : i32
    %c0_i32_0 = arith.constant 0 : i32
    %c0_i32_1 = arith.constant 0 : i32
    %c0_i32_2 = arith.constant 0 : i32
    return %c0_i32, %c0_i32_0, %c0_i32_1 : i32, i32, i32
  }
  func.func @transform_6(%arg0: i32) -> (i32, i32) {
    %c0_i32 = arith.constant 0 : i32
    %c0_i32_0 = arith.constant 0 : i32
    %c0_i32_1 = arith.constant 0 : i32
    return %c0_i32, %c0_i32_0 : i32, i32
  }
  func.func @transform_7(%arg0: i32) -> (i32, i32) {
    %c0_i32 = arith.constant 0 : i32
    %c0_i32_0 = arith.constant 0 : i32
    %c0_i32_1 = arith.constant 0 : i32
    return %c0_i32, %c0_i32_0 : i32, i32
  }
  func.func @transform_8(%arg0: i32) -> (i32, i32) {
    %c0_i32 = arith.constant 0 : i32
    %c0_i32_0 = arith.constant 0 : i32
    %c0_i32_1 = arith.constant 0 : i32
    return %c0_i32, %c0_i32_0 : i32, i32
  }
  func.func @transform_9(%arg0: i32) -> (i32, i32) {
    %c0_i32 = arith.constant 0 : i32
    %c0_i32_0 = arith.constant 0 : i32
    return %arg0, %c0_i32 : i32, i32
  }
}

</mosaic_0001>

<llo_original>
// kernel: _forward_padded.1
$region0: #{_forward_padded.1}
  #allocation0 [shape = 'u32[]', space=smem, size = 0x4, offset = 0x4, fixed_abs, tag = 'smem constant byte address 0x4 - core index']
  #allocation1 [shape = 'u32[144,128]{1,0:T(1,128)}', space=vmem, size = 0x12000, scoped, tag = 'internal scratch']
  %s0 = inlined_call_operand.vmem [shape: f32[28,8,28], index: 0, kind: input, shape index: {}]
  %s1 = inlined_call_operand.hbm [shape: bf16[3,28,1024], index: 1, kind: input, shape index: {}]
  %s2 = inlined_call_operand.hbm [shape: f32[1,512], index: 2, kind: input, shape index: {}]
  %s3 = inlined_call_operand.hbm [shape: bf16[3,512,768], index: 3, kind: input, shape index: {}]
  %s4 = inlined_call_operand.hbm [shape: f32[1,384], index: 4, kind: input, shape index: {}]
  %s5 = inlined_call_operand.hbm [shape: bf16[5,384,128], index: 5, kind: input, shape index: {}]
  %s6 = inlined_call_operand.hbm [shape: f32[1,128], index: 6, kind: input, shape index: {}]
  %s7 = inlined_call_operand.hbm [shape: bf16[128,128], index: 7, kind: input, shape index: {}]
  %s8 = inlined_call_operand.hbm [shape: f32[1,128], index: 8, kind: input, shape index: {}]
  %s9 = inlined_call_operand.hbm [shape: f32[8,128], index: 9, kind: output, shape index: {}]
  %s10 = sld [smem:[#allocation0]]
  $region78: #{_forward_padded.1} parent=0
    _
  %s12 = ssub.s32 1, %s10
  %s13 = scalar_select 0, %s12, %s10
  $region1: #{_forward_padded.1} parent=0
    #allocation2 [shape = 'u8[196608]{0}', space=vmem, size = 0x30000, scoped, tag = 'input window, operand 1, single buffered']
    #allocation3 [shape = 's32[1]{0}', space=sflag, size = 0x4, scoped, tag = 'scoped memory for _forward_padded.1']
    #allocation4 [shape = 's32[1]{0}', space=sflag, size = 0x4, scoped, tag = 'scoped memory for _forward_padded.1']
    #allocation5 [shape = 'u8[2048]{0}', space=vmem, size = 0x800, scoped, tag = 'input window, operand 2, single buffered']
    #allocation6 [shape = 's32[1]{0}', space=sflag, size = 0x4, scoped, tag = 'scoped memory for _forward_padded.1']
    #allocation7 [shape = 'u8[2359296]{0}', space=vmem, size = 0x240000, scoped, tag = 'input window, operand 3, single buffered']
    #allocation8 [shape = 'u8[1536]{0}', space=vmem, size = 0x800, scoped, tag = 'input window, operand 4, single buffered']
    #allocation9 [shape = 's32[1]{0}', space=sflag, size = 0x4, scoped, tag = 'scoped memory for _forward_padded.1']
    #allocation10 [shape = 'u8[491520]{0}', space=vmem, size = 0x78000, scoped, tag = 'input window, operand 5, single buffered']
    #allocation11 [shape = 'u8[512]{0}', space=vmem, size = 0x400, scoped, tag = 'input window, operand 6, single buffered']
    #allocation12 [shape = 's32[1]{0}', space=sflag, size = 0x4, scoped, tag = 'scoped memory for _forward_padded.1']
    #allocation13 [shape = 'u8[32768]{0}', space=vmem, size = 0x8000, scoped, tag = 'input window, operand 7, single buffered']
    #allocation14 [shape = 'u8[512]{0}', space=vmem, size = 0x400, scoped, tag = 'input window, operand 8, single buffered']
    #allocation15 [shape = 's32[1]{0}', space=sflag, size = 0x4, scoped, tag = 'scoped memory for _forward_padded.1']
    #allocation16 [shape = 'u8[4096]{0}', space=vmem, size = 0x1000, scoped, tag = 'output window, operand 0, single buffered']
    %14 = vsyncpa [#allocation3], 0
    %15 = vsyncpa [#allocation6], 0
    %16 = vsyncpa [#allocation9], 0
    %17 = vsyncpa [#allocation12], 0
    %18 = vsyncpa [#allocation15], 0
    %19 = vsyncpa [#allocation4], 0
    // Predicated region
    $region2: #{_forward_padded.1} parent=1 // pred_check
      _
    $region3: #{_forward_padded.1} parent=1 // pred_check_branch
      %21 = sbr.rel (0) target = $region5
    $region4: #{_forward_padded.1} parent=1 // pred_region
      _
    $region5: #{_forward_padded.1} parent=1 // pred_fallthru
      _
    // Predicated region
    $region6: #{_forward_padded.1} parent=1 // pred_check
      _
    $region7: #{_forward_padded.1} parent=1 // pred_check_branch
      %23 = sbr.rel (0) target = $region9
    $region8: #{_forward_padded.1} parent=1 // pred_region
      %s25 = ssub.s32 6144, 6144
      %26 = vsyncadd [#allocation3], %s25
      %s27 = sshll.u32 [#allocation2], 4
      %s28 = int_to_ptr.vmem [resolvable:$true] %s27
      %33 = dma.hbm_to_vmem [thread:$0]  %s1, 6144, %s28, [#allocation3], 512, 512, 32
    $region9: #{_forward_padded.1} parent=1 // pred_fallthru
      _
    // Predicated region
    $region10: #{_forward_padded.1} parent=1 // pred_check
      _
    $region11: #{_forward_padded.1} parent=1 // pred_check_branch
      %35 = sbr.rel (0) target = $region13
    $region12: #{_forward_padded.1} parent=1 // pred_region
      %s37 = ssub.s32 64, 64
      %38 = vsyncadd [#allocation6], %s37
      %s40 = sshll.u32 [#allocation5], 4
      %s41 = int_to_ptr.vmem [resolvable:$true] %s40
      %43 = dma.hbm_to_vmem [thread:$0]  %s2, 64, %s41, [#allocation6]
    $region13: #{_forward_padded.1} parent=1 // pred_fallthru
      _
    // Predicated region
    $region14: #{_forward_padded.1} parent=1 // pred_check
      _
    $region15: #{_forward_padded.1} parent=1 // pred_check_branch
      %45 = sbr.rel (0) target = $region17
    $region16: #{_forward_padded.1} parent=1 // pred_region
      %s47 = ssub.s32 73728, 73728
      %48 = vsyncadd [#allocation6], %s47
      %s49 = sshll.u32 [#allocation7], 4
      %s50 = int_to_ptr.vmem [resolvable:$true] %s49
      %55 = dma.hbm_to_vmem [thread:$0]  %s3, 73728, %s50, [#allocation6], 384, 384, 24
    $region17: #{_forward_padded.1} parent=1 // pred_fallthru
      _
    // Predicated region
    $region18: #{_forward_padded.1} parent=1 // pred_check
      _
    $region19: #{_forward_padded.1} parent=1 // pred_check_branch
      %57 = sbr.rel (0) target = $region21
    $region20: #{_forward_padded.1} parent=1 // pred_region
      %s59 = ssub.s32 48, 48
      %60 = vsyncadd [#allocation9], %s59
      %s62 = sshll.u32 [#allocation8], 4
      %s63 = int_to_ptr.vmem [resolvable:$true] %s62
      %65 = dma.hbm_to_vmem [thread:$0]  %s4, 48, %s63, [#allocation9]
    $region21: #{_forward_padded.1} parent=1 // pred_fallthru
      _
    // Predicated region
    $region22: #{_forward_padded.1} parent=1 // pred_check
      _
    $region23: #{_forward_padded.1} parent=1 // pred_check_branch
      %67 = sbr.rel (0) target = $region25
    $region24: #{_forward_padded.1} parent=1 // pred_region
      %s69 = ssub.s32 15360, 15360
      %70 = vsyncadd [#allocation9], %s69
      %s71 = sshll.u32 [#allocation10], 4
      %s72 = int_to_ptr.vmem [resolvable:$true] %s71
      %77 = dma.hbm_to_vmem [thread:$0]  %s5, 15360, %s72, [#allocation9], 64, 64, 4
    $region25: #{_forward_padded.1} parent=1 // pred_fallthru
      _
    // Predicated region
    $region26: #{_forward_padded.1} parent=1 // pred_check
      _
    $region27: #{_forward_padded.1} parent=1 // pred_check_branch
      %79 = sbr.rel (0) target = $region29
    $region28: #{_forward_padded.1} parent=1 // pred_region
      %s81 = ssub.s32 16, 16
      %82 = vsyncadd [#allocation12], %s81
      %s84 = sshll.u32 [#allocation11], 4
      %s85 = int_to_ptr.vmem [resolvable:$true] %s84
      %87 = dma.hbm_to_vmem [thread:$0]  %s6, 16, %s85, [#allocation12]
    $region29: #{_forward_padded.1} parent=1 // pred_fallthru
      _
    // Predicated region
    $region30: #{_forward_padded.1} parent=1 // pred_check
      _
    $region31: #{_forward_padded.1} parent=1 // pred_check_branch
      %89 = sbr.rel (0) target = $region33
    $region32: #{_forward_padded.1} parent=1 // pred_region
      %s91 = ssub.s32 1024, 1024
      %92 = vsyncadd [#allocation12], %s91
      %s93 = sshll.u32 [#allocation13], 4
      %s94 = int_to_ptr.vmem [resolvable:$true] %s93
      %99 = dma.hbm_to_vmem [thread:$0]  %s7, 1024, %s94, [#allocation12], 64, 64, 4
    $region33: #{_forward_padded.1} parent=1 // pred_fallthru
      _
    // Predicated region
    $region34: #{_forward_padded.1} parent=1 // pred_check
      _
    $region35: #{_forward_padded.1} parent=1 // pred_check_branch
      %101 = sbr.rel (0) target = $region37
    $region36: #{_forward_padded.1} parent=1 // pred_region
      %s103 = ssub.s32 16, 16
      %104 = vsyncadd [#allocation15], %s103
      %s106 = sshll.u32 [#allocation14], 4
      %s107 = int_to_ptr.vmem [resolvable:$true] %s106
      %109 = dma.hbm_to_vmem [thread:$0]  %s8, 16, %s107, [#allocation15]
    $region37: #{_forward_padded.1} parent=1 // pred_fallthru
      _
    // Predicated region
    $region38: #{_forward_padded.1} parent=1 // pred_check
      _
    $region39: #{_forward_padded.1} parent=1 // pred_check_branch
      %111 = sbr.rel (0) target = $region41
    $region40: #{_forward_padded.1} parent=1 // pred_region
      %112 = dma.done [#allocation3], 6144
    $region41: #{_forward_padded.1} parent=1 // pred_fallthru
      _
    // Predicated region
    $region42: #{_forward_padded.1} parent=1 // pred_check
      _
    $region43: #{_forward_padded.1} parent=1 // pred_check_branch
      %114 = sbr.rel (0) target = $region45
    $region44: #{_forward_padded.1} parent=1 // pred_region
      %115 = dma.done [#allocation6], 64
    $region45: #{_forward_padded.1} parent=1 // pred_fallthru
      _
    // Predicated region
    $region46: #{_forward_padded.1} parent=1 // pred_check
      _
    $region47: #{_forward_padded.1} parent=1 // pred_check_branch
      %117 = sbr.rel (0) target = $region49
    $region48: #{_forward_padded.1} parent=1 // pred_region
      %118 = dma.done [#allocation6], 73728
    $region49: #{_forward_padded.1} parent=1 // pred_fallthru
      _
    // Predicated region
    $region50: #{_forward_padded.1} parent=1 // pred_check
      _
    $region51: #{_forward_padded.1} parent=1 // pred_check_branch
      %120 = sbr.rel (0) target = $region53
    $region52: #{_forward_padded.1} parent=1 // pred_region
      %121 = dma.done [#allocation9], 48
    $region53: #{_forward_padded.1} parent=1 // pred_fallthru
      _
    // Predicated region
    $region54: #{_forward_padded.1} parent=1 // pred_check
      _
    $region55: #{_forward_padded.1} parent=1 // pred_check_branch
      %123 = sbr.rel (0) target = $region57
    $region56: #{_forward_padded.1} parent=1 // pred_region
      %124 = dma.done [#allocation9], 15360
    $region57: #{_forward_padded.1} parent=1 // pred_fallthru
      _
    // Predicated region
    $region58: #{_forward_padded.1} parent=1 // pred_check
      _
    $region59: #{_forward_padded.1} parent=1 // pred_check_branch
      %126 = sbr.rel (0) target = $region61
    $region60: #{_forward_padded.1} parent=1 // pred_region
      %127 = dma.done [#allocation12], 16
    $region61: #{_forward_padded.1} parent=1 // pred_fallthru
      _
    // Predicated region
    $region62: #{_forward_padded.1} parent=1 // pred_check
      _
    $region63: #{_forward_padded.1} parent=1 // pred_check_branch
      %129 = sbr.rel (0) target = $region65
    $region64: #{_forward_padded.1} parent=1 // pred_region
      %130 = dma.done [#allocation12], 1024
    $region65: #{_forward_padded.1} parent=1 // pred_fallthru
      _
    // Predicated region
    $region66: #{_forward_padded.1} parent=1 // pred_check
      _
    $region67: #{_forward_padded.1} parent=1 // pred_check_branch
      %132 = sbr.rel (0) target = $region69
    $region68: #{_forward_padded.1} parent=1 // pred_region
      %133 = dma.done [#allocation15], 16
    $region69: #{_forward_padded.1} parent=1 // pred_fallthru
      _
    %v135 = vld [vmem:[%s0] sm:$0xff]
    %v136 = vld [vmem:[%s0 + $0x8] sm:$0xff]
    %v137 = vld [vmem:[%s0 + $0x10] sm:$0xff]
    %v138 = vld [vmem:[%s0 + $0x18] sm:$0xff]
    %v139 = vld [vmem:[%s0 + $0x20] sm:$0xff]
    %v140 = vld [vmem:[%s0 + $0x28] sm:$0xff]
    %v141 = vld [vmem:[%s0 + $0x30] sm:$0xff]
    %v142 = vld [vmem:[%s0 + $0x38] sm:$0xff]
    %v143 = vld [vmem:[%s0 + $0x40] sm:$0xff]
    %v144 = vld [vmem:[%s0 + $0x48] sm:$0xff]
    %v145 = vld [vmem:[%s0 + $0x50] sm:$0xff]
    %v146 = vld [vmem:[%s0 + $0x58] sm:$0xff]
    %v147 = vld [vmem:[%s0 + $0x60] sm:$0xff]
    %v148 = vld [vmem:[%s0 + $0x68] sm:$0xff]
    %v149 = vld [vmem:[%s0 + $0x70] sm:$0xff]
    %v150 = vld [vmem:[%s0 + $0x78] sm:$0xff]
    %v151 = vld [vmem:[%s0 + $0x80] sm:$0xff]
    %v152 = vld [vmem:[%s0 + $0x88] sm:$0xff]
    %v153 = vld [vmem:[%s0 + $0x90] sm:$0xff]
    %v154 = vld [vmem:[%s0 + $0x98] sm:$0xff]
    %v155 = vld [vmem:[%s0 + $0xa0] sm:$0xff]
    %v156 = vld [vmem:[%s0 + $0xa8] sm:$0xff]
    %v157 = vld [vmem:[%s0 + $0xb0] sm:$0xff]
    %v158 = vld [vmem:[%s0 + $0xb8] sm:$0xff]
    %v159 = vld [vmem:[%s0 + $0xc0] sm:$0xff]
    %v160 = vld [vmem:[%s0 + $0xc8] sm:$0xff]
    %v161 = vpack.c.bf16 %v136, %v135
    %v162 = vpack.c.bf16 %v138, %v137
    %v163 = vpack.c.bf16 %v140, %v139
    %v164 = vpack.c.bf16 %v142, %v141
    %v165 = vpack.c.bf16 %v144, %v143
    %v166 = vpack.c.bf16 %v146, %v145
    %v167 = vpack.c.bf16 %v148, %v147
    %v168 = vpack.c.bf16 %v150, %v149
    %v169 = vpack.c.bf16 %v152, %v151
    %v170 = vpack.c.bf16 %v154, %v153
    %v171 = vpack.c.bf16 %v156, %v155
    %v172 = vpack.c.bf16 %v158, %v157
    %v173 = vpack.c.bf16 %v160, %v159
    %v174 = vld [vmem:[#allocation2] sm:$0xff]
    %v175 = vld [vmem:[#allocation2 + $0x8] sm:$0xff]
    %v176 = vld [vmem:[#allocation2 + $0x10] sm:$0xff]
    %v177 = vld [vmem:[#allocation2 + $0x18] sm:$0xff]
    %v178 = vld [vmem:[#allocation2 + $0x20] sm:$0xff]
    %v179 = vld [vmem:[#allocation2 + $0x28] sm:$0xff]
    %v180 = vld [vmem:[#allocation2 + $0x30] sm:$0xff]
    %v181 = vld [vmem:[#allocation2 + $0x38] sm:$0xff]
    %v182 = vld [vmem:[#allocation2 + $0x40] sm:$0xff]
    %v183 = vld [vmem:[#allocation2 + $0x48] sm:$0xff]
    %v184 = vld [vmem:[#allocation2 + $0x50] sm:$0xff]
    %v185 = vld [vmem:[#allocation2 + $0x58] sm:$0xff]
    %v186 = vld [vmem:[#allocation2 + $0x60] sm:$0x33]
    %v187 = vld [vmem:[#allocation2 + $0x68] sm:$0x33]
    %v188 = vld [vmem:[#allocation2 + $0x70] sm:$0x33]
    %v189 = vld [vmem:[#allocation2 + $0x78] sm:$0x33]
    %s190 = scalar_lea.vmem %s0, 8
    %v191 = vld [vmem:[%s190] sm:$0xff]
    %v192 = vld [vmem:[%s190 + $0x8] sm:$0xff]
    %v193 = vld [vmem:[%s190 + $0x10] sm:$0xff]
    %v194 = vld [vmem:[%s190 + $0x18] sm:$0xff]
    %v195 = vld [vmem:[%s190 + $0x20] sm:$0xff]
    %v196 = vld [vmem:[%s190 + $0x28] sm:$0xff]
    %v197 = vld [vmem:[%s190 + $0x30] sm:$0xff]
    %v198 = vld [vmem:[%s190 + $0x38] sm:$0xff]
    %v199 = vld [vmem:[%s190 + $0x40] sm:$0xff]
    %v200 = vld [vmem:[%s190 + $0x48] sm:$0xff]
    %v201 = vld [vmem:[%s190 + $0x50] sm:$0xff]
    %v202 = vld [vmem:[%s190 + $0x58] sm:$0xff]
    %v203 = vld [vmem:[%s190 + $0x60] sm:$0xff]
    %v204 = vld [vmem:[%s190 + $0x68] sm:$0xff]
    %v205 = vld [vmem:[%s190 + $0x70] sm:$0xff]
    %v206 = vld [vmem:[%s190 + $0x78] sm:$0xff]
    %v207 = vld [vmem:[%s190 + $0x80] sm:$0xff]
    %v208 = vld [vmem:[%s190 + $0x88] sm:$0xff]
    %v209 = vld [vmem:[%s190 + $0x90] sm:$0xff]
    %v210 = vld [vmem:[%s190 + $0x98] sm:$0xff]
    %v211 = vld [vmem:[%s190 + $0xa0] sm:$0xff]
    %v212 = vld [vmem:[%s190 + $0xa8] sm:$0xff]
    %v213 = vld [vmem:[%s190 + $0xb0] sm:$0xff]
    %v214 = vld [vmem:[%s190 + $0xb8] sm:$0xff]
    %v215 = vld [vmem:[%s190 + $0xc0] sm:$0xff]
    %v216 = vld [vmem:[%s190 + $0xc8] sm:$0xff]
    %v217 = vpack.c.bf16 %v192, %v191
    %v218 = vpack.c.bf16 %v194, %v193
    %v219 = vpack.c.bf16 %v196, %v195
    %v220 = vpack.c.bf16 %v198, %v197
    %v221 = vpack.c.bf16 %v200, %v199
    %v222 = vpack.c.bf16 %v202, %v201
    %v223 = vpack.c.bf16 %v204, %v203
    %v224 = vpack.c.bf16 %v206, %v205
    %v225 = vpack.c.bf16 %v208, %v207
    %v226 = vpack.c.bf16 %v210, %v209
    %v227 = vpack.c.bf16 %v212, %v211
    %v228 = vpack.c.bf16 %v214, %v213
    %v229 = vpack.c.bf16 %v216, %v215
    %s230 = scalar_lea.vmem [#allocation2], 128
    %v231 = vld [vmem:[%s230] sm:$0xff]
    %v232 = vld [vmem:[%s230 + $0x8] sm:$0xff]
    %v233 = vld [vmem:[%s230 + $0x10] sm:$0xff]
    %v234 = vld [vmem:[%s230 + $0x18] sm:$0xff]
    %v235 = vld [vmem:[%s230 + $0x20] sm:$0xff]
    %v236 = vld [vmem:[%s230 + $0x28] sm:$0xff]
    %v237 = vld [vmem:[%s230 + $0x30] sm:$0xff]
    %v238 = vld [vmem:[%s230 + $0x38] sm:$0xff]
    %v239 = vld [vmem:[%s230 + $0x40] sm:$0xff]
    %v240 = vld [vmem:[%s230 + $0x48] sm:$0xff]
    %v241 = vld [vmem:[%s230 + $0x50] sm:$0xff]
    %v242 = vld [vmem:[%s230 + $0x58] sm:$0xff]
    %v243 = vld [vmem:[%s230 + $0x60] sm:$0x33]
    %v244 = vld [vmem:[%s230 + $0x68] sm:$0x33]
    %v245 = vld [vmem:[%s230 + $0x70] sm:$0x33]
    %v246 = vld [vmem:[%s230 + $0x78] sm:$0x33]
    %v263 = vunpack.c.l.b16 %v231
    %v264 = vunpack.c.h.b16 %v231
    %v265 = vunpack.c.l.b16 %v232
    %v266 = vunpack.c.h.b16 %v232
    %v267 = vunpack.c.l.b16 %v233
    %v268 = vunpack.c.h.b16 %v233
    %v269 = vunpack.c.l.b16 %v234
    %v270 = vunpack.c.h.b16 %v234
    %v271 = vunpack.c.l.b16 %v235
    %v272 = vunpack.c.h.b16 %v235
    %v273 = vunpack.c.l.b16 %v236
    %v274 = vunpack.c.h.b16 %v236
    %v275 = vunpack.c.l.b16 %v237
    %v276 = vunpack.c.h.b16 %v237
    %v277 = vunpack.c.l.b16 %v238
    %v278 = vunpack.c.h.b16 %v238
    %v279 = vunpack.c.l.b16 %v239
    %v280 = vunpack.c.h.b16 %v239
    %v281 = vunpack.c.l.b16 %v240
    %v282 = vunpack.c.h.b16 %v240
    %v283 = vunpack.c.l.b16 %v241
    %v284 = vunpack.c.h.b16 %v241
    %v285 = vunpack.c.l.b16 %v242
    %v286 = vunpack.c.h.b16 %v242
    %v287 = vunpack.c.l.b16 %v243
    %v288 = vunpack.c.h.b16 %v243
    %v289 = vunpack.c.l.b16 %v244
    %v290 = vunpack.c.h.b16 %v244
    %v291 = vunpack.c.l.b16 %v245
    %v292 = vunpack.c.h.b16 %v245
    %v293 = vunpack.c.l.b16 %v246
    %v294 = vunpack.c.h.b16 %v246
    %v295 = vpack.c.b16 %v271, %v263
    %v296 = vpack.c.b16 %v272, %v264
    %v297 = vpack.c.b16 %v273, %v265
    %v298 = vpack.c.b16 %v274, %v266
    %v299 = vpack.c.b16 %v275, %v267
    %v300 = vpack.c.b16 %v276, %v268
    %v301 = vpack.c.b16 %v277, %v269
    %v302 = vpack.c.b16 %v278, %v270
    %v303 = vpack.c.b16 %v287, %v279
    %v304 = vpack.c.b16 %v288, %v280
    %v305 = vpack.c.b16 %v289, %v281
    %v306 = vpack.c.b16 %v290, %v282
    %v307 = vpack.c.b16 %v291, %v283
    %v308 = vpack.c.b16 %v292, %v284
    %v309 = vpack.c.b16 %v293, %v285
    %v310 = vpack.c.b16 %v294, %v286
    %vm319 = vcmask 228352
    %v321 = vsel %vm319, %v217, 0
    %v324 = vsel %vm319, %v218, 0
    %v327 = vsel %vm319, %v219, 0
    %v330 = vsel %vm319, %v220, 0
    %v333 = vsel %vm319, %v221, 0
    %v336 = vsel %vm319, %v222, 0
    %v339 = vsel %vm319, %v223, 0
    %v342 = vsel %vm319, %v224, 0
    %v345 = vsel %vm319, %v225, 0
    %v348 = vsel %vm319, %v226, 0
    %v351 = vsel %vm319, %v227, 0
    %v354 = vsel %vm319, %v228, 0
    %v357 = vsel %vm319, %v229, 0
    %vm359 = vcmask 1045504
    %v361 = vsel %vm359, %v303, 0
    %v364 = vsel %vm359, %v304, 0
    %v367 = vsel %vm359, %v305, 0
    %v370 = vsel %vm359, %v306, 0
    %v373 = vsel %vm359, %v307, 0
    %v376 = vsel %vm359, %v308, 0
    %v379 = vsel %vm359, %v309, 0
    %v382 = vsel %vm359, %v310, 0
    %384 = vmatprep.subr.bf16.mxu0 %v296
    %385 = vmatpush1.bf16.msra.mxu0 %v295
    %386 = vmatprep.subr.bf16.mxu0 %v364
    %387 = vmatpush1.bf16.msra.mxu0 %v361
    %388 = vmatprep.subr.bf16.mxu0 0
    %389 = vmatpush1.bf16.msra.mxu0 0
    %390 = vmatprep.subr.bf16.mxu0 0
    %391 = vmatpush1.bf16.msra.mxu0 0
    %392 = vmatprep.subr.bf16.mxu0 0
    %393 = vmatpush1.bf16.msra.mxu0 0
    %394 = vmatprep.subr.bf16.mxu0 0
    %395 = vmatpush1.bf16.msra.mxu0 0
    %396 = vmatprep.subr.bf16.mxu0 0
    %397 = vmatpush1.bf16.msra.mxu0 0
    %398 = vmatprep.subr.bf16.mxu0 0
    %399 = vmatpush1.bf16.msra.mxu0 0
    %400 = vmatprep.subr.bf16.mxu0 0
    %401 = vmatpush1.bf16.msra.mxu0 0
    %402 = vmatprep.subr.bf16.mxu0 0
    %403 = vmatpush1.bf16.msra.mxu0 0
    %404 = vmatprep.subr.bf16.mxu0 0
    %405 = vmatpush1.bf16.msra.mxu0 0
    %406 = vmatprep.subr.bf16.mxu0 0
    %407 = vmatpush1.bf16.msra.mxu0 0
    %408 = vmatprep.subr.bf16.mxu0 0
    %409 = vmatpush1.bf16.msra.mxu0 0
    %410 = vmatprep.subr.bf16.mxu0 0
    %411 = vmatpush1.bf16.msra.mxu0 0
    %412 = vmatprep.subr.bf16.mxu0 0
    %413 = vmatpush1.bf16.msra.mxu0 0
    %414 = vmatprep.subr.bf16.mxu0 0
    %415 = vmatpush1.bf16.msra.mxu0 0
    %416 = vmatprep.mubr.bf16.mxu0 0
    %417 = vmatmul.mubr.bf16.gmra.mrb[0].mxu0 %v321
    %v418 = vpop.f32.mrb[0].mxu0
    %v419 = vadd.f32 0.0, %v418
    %v420 = vpop.f32.mrb[0].mxu0
    %v421 = vadd.f32 0.0, %v420
    %v422 = vpop.f32.mrb[0].mxu0
    %v423 = vadd.f32 0.0, %v422
    %v424 = vpop.f32.mrb[0].mxu0
    %v425 = vadd.f32 0.0, %v424
    %426 = vmatprep.mubr.bf16.mxu0 0
    %427 = vmatmul.mubr.bf16.gmra.mrb[0].mxu0 %v324
    %v428 = vpop.f32.mrb[0].mxu0
    %v429 = vadd.f32 0.0, %v428
    %v430 = vpop.f32.mrb[0].mxu0
    %v431 = vadd.f32 0.0, %v430
    %v432 = vpop.f32.mrb[0].mxu0
    %v433 = vadd.f32 0.0, %v432
    %v434 = vpop.f32.mrb[0].mxu0
    %v435 = vadd.f32 0.0, %v434
    %436 = vmatprep.mubr.bf16.mxu0 0
    %437 = vmatmul.mubr.bf16.gmra.mrb[0].mxu0 %v327
    %v438 = vpop.f32.mrb[0].mxu0
    %v439 = vadd.f32 0.0, %v438
    %v440 = vpop.f32.mrb[0].mxu0
    %v441 = vadd.f32 0.0, %v440
    %v442 = vpop.f32.mrb[0].mxu0
    %v443 = vadd.f32 0.0, %v442
    %v444 = vpop.f32.mrb[0].mxu0
    %v445 = vadd.f32 0.0, %v444
    %446 = vmatprep.mubr.bf16.mxu0 0
    %447 = vmatmul.mubr.bf16.gmra.mrb[0].mxu0 %v330
    %v448 = vpop.f32.mrb[0].mxu0
    %v449 = vadd.f32 0.0, %v448
    %v450 = vpop.f32.mrb[0].mxu0
    %v451 = vadd.f32 0.0, %v450
    %v452 = vpop.f32.mrb[0].mxu0
    %v453 = vadd.f32 0.0, %v452
    %v454 = vpop.f32.mrb[0].mxu0
    %v455 = vadd.f32 0.0, %v454
    %456 = vmatprep.mubr.bf16.mxu0 0
    %457 = vmatmul.mubr.bf16.gmra.mrb[0].mxu0 %v333
    %v458 = vpop.f32.mrb[0].mxu0
    %v459 = vadd.f32 0.0, %v458
    %v460 = vpop.f32.mrb[0].mxu0
    %v461 = vadd.f32 0.0, %v460
    %v462 = vpop.f32.mrb[0].mxu0
    %v463 = vadd.f32 0.0, %v462
    %v464 = vpop.f32.mrb[0].mxu0
    %v465 = vadd.f32 0.0, %v464
    %466 = vmatprep.mubr.bf16.mxu0 0
    %467 = vmatmul.mubr.bf16.gmra.mrb[0].mxu0 %v336
    %v468 = vpop.f32.mrb[0].mxu0
    %v469 = vadd.f32 0.0, %v468
    %v470 = vpop.f32.mrb[0].mxu0
    %v471 = vadd.f32 0.0, %v470
    %v472 = vpop.f32.mrb[0].mxu0
    %v473 = vadd.f32 0.0, %v472
    %v474 = vpop.f32.mrb[0].mxu0
    %v475 = vadd.f32 0.0, %v474
    %476 = vmatprep.mubr.bf16.mxu0 0
    %477 = vmatmul.mubr.bf16.gmra.mrb[0].mxu0 %v339
    %v478 = vpop.f32.mrb[0].mxu0
    %v479 = vadd.f32 0.0, %v478
    %v480 = vpop.f32.mrb[0].mxu0
    %v481 = vadd.f32 0.0, %v480
    %v482 = vpop.f32.mrb[0].mxu0
    %v483 = vadd.f32 0.0, %v482
    %v484 = vpop.f32.mrb[0].mxu0
    %v485 = vadd.f32 0.0, %v484
    %486 = vmatprep.mubr.bf16.mxu0 0
    %487 = vmatmul.mubr.bf16.gmra.mrb[0].mxu0 %v342
    %v488 = vpop.f32.mrb[0].mxu0
    %v489 = vadd.f32 0.0, %v488
    %v490 = vpop.f32.mrb[0].mxu0
    %v491 = vadd.f32 0.0, %v490
    %v492 = vpop.f32.mrb[0].mxu0
    %v493 = vadd.f32 0.0, %v492
    %v494 = vpop.f32.mrb[0].mxu0
    %v495 = vadd.f32 0.0, %v494
    %496 = vmatprep.mubr.bf16.mxu0 0
    %497 = vmatmul.mubr.bf16.gmra.mrb[0].mxu0 %v345
    %v498 = vpop.f32.mrb[0].mxu0
    %v499 = vadd.f32 0.0, %v498
    %v500 = vpop.f32.mrb[0].mxu0
    %v501 = vadd.f32 0.0, %v500
    %v502 = vpop.f32.mrb[0].mxu0
    %v503 = vadd.f32 0.0, %v502
    %v504 = vpop.f32.mrb[0].mxu0
    %v505 = vadd.f32 0.0, %v504
    %506 = vmatprep.mubr.bf16.mxu0 0
    %507 = vmatmul.mubr.bf16.gmra.mrb[0].mxu0 %v348
    %v508 = vpop.f32.mrb[0].mxu0
    %v509 = vadd.f32 0.0, %v508
    %v510 = vpop.f32.mrb[0].mxu0
    %v511 = vadd.f32 0.0, %v510
    %v512 = vpop.f32.mrb[0].mxu0
    %v513 = vadd.f32 0.0, %v512
    %v514 = vpop.f32.mrb[0].mxu0
    %v515 = vadd.f32 0.0, %v514
    %516 = vmatprep.mubr.bf16.mxu0 0
    %517 = vmatmul.mubr.bf16.gmra.mrb[0].mxu0 %v351
    %v518 = vpop.f32.mrb[0].mxu0
    %v519 = vadd.f32 0.0, %v518
    %v520 = vpop.f32.mrb[0].mxu0
    %v521 = vadd.f32 0.0, %v520
    %v522 = vpop.f32.mrb[0].mxu0
    %v523 = vadd.f32 0.0, %v522
    %v524 = vpop.f32.mrb[0].mxu0
    %v525 = vadd.f32 0.0, %v524
    %526 = vmatprep.mubr.bf16.mxu0 0
    %527 = vmatmul.mubr.bf16.gmra.mrb[0].mxu0 %v354
    %v528 = vpop.f32.mrb[0].mxu0
    %v529 = vadd.f32 0.0, %v528
    %v530 = vpop.f32.mrb[0].mxu0
    %v531 = vadd.f32 0.0, %v530
    %v532 = vpop.f32.mrb[0].mxu0
    %v533 = vadd.f32 0.0, %v532
    %v534 = vpop.f32.mrb[0].mxu0
    %v535 = vadd.f32 0.0, %v534
    %536 = vmatprep.mubr.bf16.mxu0 0
    %537 = vmatmul.mubr.bf16.gmra.mrb[0].mxu0 %v357
    %v538 = vpop.f32.mrb[0].mxu0
    %v539 = vadd.f32 0.0, %v538
    %v540 = vpop.f32.mrb[0].mxu0
    %v541 = vadd.f32 0.0, %v540
    %v542 = vpop.f32.mrb[0].mxu0
    %v543 = vadd.f32 0.0, %v542
    %v544 = vpop.f32.mrb[0].mxu0
    %v545 = vadd.f32 0.0, %v544
    %546 = vdwg.mxu0
    %547 = vmatprep.subr.bf16.mxu0 %v298
    %548 = vmatpush1.bf16.msra.mxu0 %v297
    %549 = vmatprep.subr.bf16.mxu0 %v370
    %550 = vmatpush1.bf16.msra.mxu0 %v367
    %551 = vmatprep.subr.bf16.mxu0 0
    %552 = vmatpush1.bf16.msra.mxu0 0
    %553 = vmatprep.subr.bf16.mxu0 0
    %554 = vmatpush1.bf16.msra.mxu0 0
    %555 = vmatprep.subr.bf16.mxu0 0
    %556 = vmatpush1.bf16.msra.mxu0 0
    %557 = vmatprep.subr.bf16.mxu0 0
    %558 = vmatpush1.bf16.msra.mxu0 0
    %559 = vmatprep.subr.bf16.mxu0 0
    %560 = vmatpush1.bf16.msra.mxu0 0
    %561 = vmatprep.subr.bf16.mxu0 0
    %562 = vmatpush1.bf16.msra.mxu0 0
    %563 = vmatprep.subr.bf16.mxu0 0
    %564 = vmatpush1.bf16.msra.mxu0 0
    %565 = vmatprep.subr.bf16.mxu0 0
    %566 = vmatpush1.bf16.msra.mxu0 0
    %567 = vmatprep.subr.bf16.mxu0 0
    %568 = vmatpush1.bf16.msra.mxu0 0
    %569 = vmatprep.subr.bf16.mxu0 0
    %570 = vmatpush1.bf16.msra.mxu0 0
    %571 = vmatprep.subr.bf16.mxu0 0
    %572 = vmatpush1.bf16.msra.mxu0 0
    %573 = vmatprep.subr.bf16.mxu0 0
    %574 = vmatpush1.bf16.msra.mxu0 0
    %575 = vmatprep.subr.bf16.mxu0 0
    %576 = vmatpush1.bf16.msra.mxu0 0
    %577 = vmatprep.subr.bf16.mxu0 0
    %578 = vmatpush1.bf16.msra.mxu0 0
    %579 = vmatprep.mubr.bf16.mxu0 0
    %580 = vmatmul.mubr.bf16.gmra.mrb[0].mxu0 %v321
    %v581 = vpop.f32.mrb[0].mxu0
    %v582 = vadd.f32 0.0, %v581
    %v583 = vpop.f32.mrb[0].mxu0
    %v584 = vadd.f32 0.0, %v583
    %v585 = vpop.f32.mrb[0].mxu0
    %v586 = vadd.f32 0.0, %v585
    %v587 = vpop.f32.mrb[0].mxu0
    %v588 = vadd.f32 0.0, %v587
    %589 = vmatprep.mubr.bf16.mxu0 0
    %590 = vmatmul.mubr.bf16.gmra.mrb[0].mxu0 %v324
    %v591 = vpop.f32.mrb[0].mxu0
    %v592 = vadd.f32 0.0, %v591
    %v593 = vpop.f32.mrb[0].mxu0
    %v594 = vadd.f32 0.0, %v593
    %v595 = vpop.f32.mrb[0].mxu0
    %v596 = vadd.f32 0.0, %v595
    %v597 = vpop.f32.mrb[0].mxu0
    %v598 = vadd.f32 0.0, %v597
    %599 = vmatprep.mubr.bf16.mxu0 0
    %600 = vmatmul.mubr.bf16.gmra.mrb[0].mxu0 %v327
    %v601 = vpop.f32.mrb[0].mxu0
    %v602 = vadd.f32 0.0, %v601
    %v603 = vpop.f32.mrb[0].mxu0
    %v604 = vadd.f32 0.0, %v603
    %v605 = vpop.f32.mrb[0].mxu0
    %v606 = vadd.f32 0.0, %v605
    %v607 = vpop.f32.mrb[0].mxu0
    %v608 = vadd.f32 0.0, %v607
    %609 = vmatprep.mubr.bf16.mxu0 0
    %610 = vmatmul.mubr.bf16.gmra.mrb[0].mxu0 %v330
    %v611 = vpop.f32.mrb[0].mxu0
    %v612 = vadd.f32 0.0, %v611
    %v613 = vpop.f32.mrb[0].mxu0
    %v614 = vadd.f32 0.0, %v613
    %v615 = vpop.f32.mrb[0].mxu0
    %v616 = vadd.f32 0.0, %v615
    %v617 = vpop.f32.mrb[0].mxu0
    %v618 = vadd.f32 0.0, %v617
    %619 = vmatprep.mubr.bf16.mxu0 0
    %620 = vmatmul.mubr.bf16.gmra.mrb[0].mxu0 %v333
    %v621 = vpop.f32.mrb[0].mxu0
    %v622 = vadd.f32 0.0, %v621
    %v623 = vpop.f32.mrb[0].mxu0
    %v624 = vadd.f32 0.0, %v623
    %v625 = vpop.f32.mrb[0].mxu0
    %v626 = vadd.f32 0.0, %v625
    %v627 = vpop.f32.mrb[0].mxu0
    %v628 = vadd.f32 0.0, %v627
    %629 = vmatprep.mubr.bf16.mxu0 0
    %630 = vmatmul.mubr.bf16.gmra.mrb[0].mxu0 %v336
    %v631 = vpop.f32.mrb[0].mxu0
    %v632 = vadd.f32 0.0, %v631
    %v633 = vpop.f32.mrb[0].mxu0
    %v634 = vadd.f32 0.0, %v633
    %v635 = vpop.f32.mrb[0].mxu0
    %v636 = vadd.f32 0.0, %v635
    %v637 = vpop.f32.mrb[0].mxu0
    %v638 = vadd.f32 0.0, %v637
    %639 = vmatprep.mubr.bf16.mxu0 0
    %640 = vmatmul.mubr.bf16.gmra.mrb[0].mxu0 %v339
    %v641 = vpop.f32.mrb[0].mxu0
    %v642 = vadd.f32 0.0, %v641
    %v643 = vpop.f32.mrb[0].mxu0
    %v644 = vadd.f32 0.0, %v643
    %v645 = vpop.f32.mrb[0].mxu0
    %v646 = vadd.f32 0.0, %v645
    %v647 = vpop.f32.mrb[0].mxu0
    %v648 = vadd.f32 0.0, %v647
    %649 = vmatprep.mubr.bf16.mxu0 0
    %650 = vmatmul.mubr.bf16.gmra.mrb[0].mxu0 %v342
    %v651 = vpop.f32.mrb[0].mxu0
    %v652 = vadd.f32 0.0, %v651
    %v653 = vpop.f32.mrb[0].mxu0
    %v654 = vadd.f32 0.0, %v653
    %v655 = vpop.f32.mrb[0].mxu0
    %v656 = vadd.f32 0.0, %v655
    %v657 = vpop.f32.mrb[0].mxu0
    %v658 = vadd.f32 0.0, %v657
    %659 = vmatprep.mubr.bf16.mxu0 0
    %660 = vmatmul.mubr.bf16.gmra.mrb[0].mxu0 %v345
    %v661 = vpop.f32.mrb[0].mxu0
    %v662 = vadd.f32 0.0, %v661
    %v663 = vpop.f32.mrb[0].mxu0
    %v664 = vadd.f32 0.0, %v663
    %v665 = vpop.f32.mrb[0].mxu0
    %v666 = vadd.f32 0.0, %v665
    %v667 = vpop.f32.mrb[0].mxu0
    %v668 = vadd.f32 0.0, %v667
    %669 = vmatprep.mubr.bf16.mxu0 0
    %670 = vmatmul.mubr.bf16.gmra.mrb[0].mxu0 %v348
    %v671 = vpop.f32.mrb[0].mxu0
    %v672 = vadd.f32 0.0, %v671
    %v673 = vpop.f32.mrb[0].mxu0
    %v674 = vadd.f32 0.0, %v673
    %v675 = vpop.f32.mrb[0].mxu0
    %v676 = vadd.f32 0.0, %v675
    %v677 = vpop.f32.mrb[0].mxu0
    %v678 = vadd.f32 0.0, %v677
    %679 = vmatprep.mubr.bf16.mxu0 0
    %680 = vmatmul.mubr.bf16.gmra.mrb[0].mxu0 %v351
    %v681 = vpop.f32.mrb[0].mxu0
    %v682 = vadd.f32 0.0, %v681
    %v683 = vpop.f32.mrb[0].mxu0
    %v684 = vadd.f32 0.0, %v683
    %v685 = vpop.f32.mrb[0].mxu0
    %v686 = vadd.f32 0.0, %v685
    %v687 = vpop.f32.mrb[0].mxu0
    %v688 = vadd.f32 0.0, %v687
    %689 = vmatprep.mubr.bf16.mxu0 0
    %690 = vmatmul.mubr.bf16.gmra.mrb[0].mxu0 %v354
    %v691 = vpop.f32.mrb[0].mxu0
    %v692 = vadd.f32 0.0, %v691
    %v693 = vpop.f32.mrb[0].mxu0
    %v694 = vadd.f32 0.0, %v693
    %v695 = vpop.f32.mrb[0].mxu0
    %v696 = vadd.f32 0.0, %v695
    %v697 = vpop.f32.mrb[0].mxu0
    %v698 = vadd.f32 0.0, %v697
    %699 = vmatprep.mubr.bf16.mxu0 0
    %700 = vmatmul.mubr.bf16.gmra.mrb[0].mxu0 %v357
    %v701 = vpop.f32.mrb[0].mxu0
    %v702 = vadd.f32 0.0, %v701
    %v703 = vpop.f32.mrb[0].mxu0
    %v704 = vadd.f32 0.0, %v703
    %v705 = vpop.f32.mrb[0].mxu0
    %v706 = vadd.f32 0.0, %v705
    %v707 = vpop.f32.mrb[0].mxu0
    %v708 = vadd.f32 0.0, %v707
    %709 = vdwg.mxu0
    %710 = vmatprep.subr.bf16.mxu0 %v300
    %711 = vmatpush1.bf16.msra.mxu0 %v299
    %712 = vmatprep.subr.bf16.mxu0 %v376
    %713 = vmatpush1.bf16.msra.mxu0 %v373
    %714 = vmatprep.subr.bf16.mxu0 0
    %715 = vmatpush1.bf16.msra.mxu0 0
    %716 = vmatprep.subr.bf16.mxu0 0
    %717 = vmatpush1.bf16.msra.mxu0 0
    %718 = vmatprep.subr.bf16.mxu0 0
    %719 = vmatpush1.bf16.msra.mxu0 0
    %720 = vmatprep.subr.bf16.mxu0 0
    %721 = vmatpush1.bf16.msra.mxu0 0
    %722 = vmatprep.subr.bf16.mxu0 0
    %723 = vmatpush1.bf16.msra.mxu0 0
    %724 = vmatprep.subr.bf16.mxu0 0
    %725 = vmatpush1.bf16.msra.mxu0 0
    %726 = vmatprep.subr.bf16.mxu0 0
    %727 = vmatpush1.bf16.msra.mxu0 0
    %728 = vmatprep.subr.bf16.mxu0 0
    %729 = vmatpush1.bf16.msra.mxu0 0
    %730 = vmatprep.subr.bf16.mxu0 0
    %731 = vmatpush1.bf16.msra.mxu0 0
    %732 = vmatprep.subr.bf16.mxu0 0
    %733 = vmatpush1.bf16.msra.mxu0 0
    %734 = vmatprep.subr.bf16.mxu0 0
    %735 = vmatpush1.bf16.msra.mxu0 0
    %736 = vmatprep.subr.bf16.mxu0 0
    %737 = vmatpush1.bf16.msra.mxu0 0
    %738 = vmatprep.subr.bf16.mxu0 0
    %739 = vmatpush1.bf16.msra.mxu0 0
    %740 = vmatprep.subr.bf16.mxu0 0
    %741 = vmatpush1.bf16.msra.mxu0 0
    %742 = vmatprep.mubr.bf16.mxu0 0
    %743 = vmatmul.mubr.bf16.gmra.mrb[0].mxu0 %v321
    %v744 = vpop.f32.mrb[0].mxu0
    %v745 = vadd.f32 0.0, %v744
    %v746 = vpop.f32.mrb[0].mxu0
    %v747 = vadd.f32 0.0, %v746
    %v748 = vpop.f32.mrb[0].mxu0
    %v749 = vadd.f32 0.0, %v748
    %v750 = vpop.f32.mrb[0].mxu0
    %v751 = vadd.f32 0.0, %v750
    %752 = vmatprep.mubr.bf16.mxu0 0
    %753 = vmatmul.mubr.bf16.gmra.mrb[0].mxu0 %v324
    %v754 = vpop.f32.mrb[0].mxu0
    %v755 = vadd.f32 0.0, %v754
    %v756 = vpop.f32.mrb[0].mxu0
    %v757 = vadd.f32 0.0, %v756
    %v758 = vpop.f32.mrb[0].mxu0
    %v759 = vadd.f32 0.0, %v758
    %v760 = vpop.f32.mrb[0].mxu0
    %v761 = vadd.f32 0.0, %v760
    %762 = vmatprep.mubr.bf16.mxu0 0
    %763 = vmatmul.mubr.bf16.gmra.mrb[0].mxu0 %v327
    %v764 = vpop.f32.mrb[0].mxu0
    %v765 = vadd.f32 0.0, %v764
    %v766 = vpop.f32.mrb[0].mxu0
    %v767 = vadd.f32 0.0, %v766
    %v768 = vpop.f32.mrb[0].mxu0
    %v769 = vadd.f32 0.0, %v768
    %v770 = vpop.f32.mrb[0].mxu0
    %v771 = vadd.f32 0.0, %v770
    %772 = vmatprep.mubr.bf16.mxu0 0
    %773 = vmatmul.mubr.bf16.gmra.mrb[0].mxu0 %v330
    %v774 = vpop.f32.mrb[0].mxu0
    %v775 = vadd.f32 0.0, %v774
    %v776 = vpop.f32.mrb[0].mxu0
    %v777 = vadd.f32 0.0, %v776
    %v778 = vpop.f32.mrb[0].mxu0
    %v779 = vadd.f32 0.0, %v778
    %v780 = vpop.f32.mrb[0].mxu0
    %v781 = vadd.f32 0.0, %v780
    %782 = vmatprep.mubr.bf16.mxu0 0
    %783 = vmatmul.mubr.bf16.gmra.mrb[0].mxu0 %v333
    %v784 = vpop.f32.mrb[0].mxu0
    %v785 = vadd.f32 0.0, %v784
    %v786 = vpop.f32.mrb[0].mxu0
    %v787 = vadd.f32 0.0, %v786
    %v788 = vpop.f32.mrb[0].mxu0
    %v789 = vadd.f32 0.0, %v788
    %v790 = vpop.f32.mrb[0].mxu0
    %v791 = vadd.f32 0.0, %v790
    %792 = vmatprep.mubr.bf16.mxu0 0
    %793 = vmatmul.mubr.bf16.gmra.mrb[0].mxu0 %v336
    %v794 = vpop.f32.mrb[0].mxu0
    %v795 = vadd.f32 0.0, %v794
    %v796 = vpop.f32.mrb[0].mxu0
    %v797 = vadd.f32 0.0, %v796
    %v798 = vpop.f32.mrb[0].mxu0
    %v799 = vadd.f32 0.0, %v798
    %v800 = vpop.f32.mrb[0].mxu0
    %v801 = vadd.f32 0.0, %v800
    %802 = vmatprep.mubr.bf16.mxu0 0
    %803 = vmatmul.mubr.bf16.gmra.mrb[0].mxu0 %v339
    %v804 = vpop.f32.mrb[0].mxu0
    %v805 = vadd.f32 0.0, %v804
    %v806 = vpop.f32.mrb[0].mxu0
    %v807 = vadd.f32 0.0, %v806
    %v808 = vpop.f32.mrb[0].mxu0
    %v809 = vadd.f32 0.0, %v808
    %v810 = vpop.f32.mrb[0].mxu0
    %v811 = vadd.f32 0.0, %v810
    %812 = vmatprep.mubr.bf16.mxu0 0
    %813 = vmatmul.mubr.bf16.gmra.mrb[0].mxu0 %v342
    %v814 = vpop.f32.mrb[0].mxu0
    %v815 = vadd.f32 0.0, %v814
    %v816 = vpop.f32.mrb[0].mxu0
    %v817 = vadd.f32 0.0, %v816
    %v818 = vpop.f32.mrb[0].mxu0
    %v819 = vadd.f32 0.0, %v818
    %v820 = vpop.f32.mrb[0].mxu0
    %v821 = vadd.f32 0.0, %v820
    %822 = vmatprep.mubr.bf16.mxu0 0
    %823 = vmatmul.mubr.bf16.gmra.mrb[0].mxu0 %v345
    %v824 = vpop.f32.mrb[0].mxu0
    %v825 = vadd.f32 0.0, %v824
    %v826 = vpop.f32.mrb[0].mxu0
    %v827 = vadd.f32 0.0, %v826
    %v828 = vpop.f32.mrb[0].mxu0
    %v829 = vadd.f32 0.0, %v828
    %v830 = vpop.f32.mrb[0].mxu0
    %v831 = vadd.f32 0.0, %v830
    %832 = vmatprep.mubr.bf16.mxu0 0
    %833 = vmatmul.mubr.bf16.gmra.mrb[0].mxu0 %v348
    %v834 = vpop.f32.mrb[0].mxu0
    %v835 = vadd.f32 0.0, %v834
    %v836 = vpop.f32.mrb[0].mxu0
    %v837 = vadd.f32 0.0, %v836
    %v838 = vpop.f32.mrb[0].mxu0
    %v839 = vadd.f32 0.0, %v838
    %v840 = vpop.f32.mrb[0].mxu0
    %v841 = vadd.f32 0.0, %v840
    %842 = vmatprep.mubr.bf16.mxu0 0
    %843 = vmatmul.mubr.bf16.gmra.mrb[0].mxu0 %v351
    %v844 = vpop.f32.mrb[0].mxu0
    %v845 = vadd.f32 0.0, %v844
    %v846 = vpop.f32.mrb[0].mxu0
    %v847 = vadd.f32 0.0, %v846
    %v848 = vpop.f32.mrb[0].mxu0
    %v849 = vadd.f32 0.0, %v848
    %v850 = vpop.f32.mrb[0].mxu0
    %v851 = vadd.f32 0.0, %v850
    %852 = vmatprep.mubr.bf16.mxu0 0
    %853 = vmatmul.mubr.bf16.gmra.mrb[0].mxu0 %v354
    %v854 = vpop.f32.mrb[0].mxu0
    %v855 = vadd.f32 0.0, %v854
    %v856 = vpop.f32.mrb[0].mxu0
    %v857 = vadd.f32 0.0, %v856
    %v858 = vpop.f32.mrb[0].mxu0
    %v859 = vadd.f32 0.0, %v858
    %v860 = vpop.f32.mrb[0].mxu0
    %v861 = vadd.f32 0.0, %v860
    %862 = vmatprep.mubr.bf16.mxu0 0
    %863 = vmatmul.mubr.bf16.gmra.mrb[0].mxu0 %v357
    %v864 = vpop.f32.mrb[0].mxu0
    %v865 = vadd.f32 0.0, %v864
    %v866 = vpop.f32.mrb[0].mxu0
    %v867 = vadd.f32 0.0, %v866
    %v868 = vpop.f32.mrb[0].mxu0
    %v869 = vadd.f32 0.0, %v868
    %v870 = vpop.f32.mrb[0].mxu0
    %v871 = vadd.f32 0.0, %v870
    %872 = vdwg.mxu0
    %873 = vmatprep.subr.bf16.mxu0 %v302
    %874 = vmatpush1.bf16.msra.mxu0 %v301
    %875 = vmatprep.subr.bf16.mxu0 %v382
    %876 = vmatpush1.bf16.msra.mxu0 %v379
    %877 = vmatprep.subr.bf16.mxu0 0
    %878 = vmatpush1.bf16.msra.mxu0 0
    %879 = vmatprep.subr.bf16.mxu0 0
    %880 = vmatpush1.bf16.msra.mxu0 0
    %881 = vmatprep.subr.bf16.mxu0 0
    %882 = vmatpush1.bf16.msra.mxu0 0
    %883 = vmatprep.subr.bf16.mxu0 0
    %884 = vmatpush1.bf16.msra.mxu0 0
    %885 = vmatprep.subr.bf16.mxu0 0
    %886 = vmatpush1.bf16.msra.mxu0 0
    %887 = vmatprep.subr.bf16.mxu0 0
    %888 = vmatpush1.bf16.msra.mxu0 0
    %889 = vmatprep.subr.bf16.mxu0 0
    %890 = vmatpush1.bf16.msra.mxu0 0
    %891 = vmatprep.subr.bf16.mxu0 0
    %892 = vmatpush1.bf16.msra.mxu0 0
    %893 = vmatprep.subr.bf16.mxu0 0
    %894 = vmatpush1.bf16.msra.mxu0 0
    %895 = vmatprep.subr.bf16.mxu0 0
    %896 = vmatpush1.bf16.msra.mxu0 0
    %897 = vmatprep.subr.bf16.mxu0 0
    %898 = vmatpush1.bf16.msra.mxu0 0
    %899 = vmatprep.subr.bf16.mxu0 0
    %900 = vmatpush1.bf16.msra.mxu0 0
    %901 = vmatprep.subr.bf16.mxu0 0
    %902 = vmatpush1.bf16.msra.mxu0 0
    %903 = vmatprep.subr.bf16.mxu0 0
    %904 = vmatpush1.bf16.msra.mxu0 0
    %905 = vmatprep.mubr.bf16.mxu0 0
    %906 = vmatmul.mubr.bf16.gmra.mrb[0].mxu0 %v321
    %v907 = vpop.f32.mrb[0].mxu0
    %v908 = vadd.f32 0.0, %v907
    %v909 = vpop.f32.mrb[0].mxu0
    %v910 = vadd.f32 0.0, %v909
    %v911 = vpop.f32.mrb[0].mxu0
    %v912 = vadd.f32 0.0, %v911
    %v913 = vpop.f32.mrb[0].mxu0
    %v914 = vadd.f32 0.0, %v913
    %915 = vmatprep.mubr.bf16.mxu0 0
    %916 = vmatmul.mubr.bf16.gmra.mrb[0].mxu0 %v324
    %v917 = vpop.f32.mrb[0].mxu0
    %v918 = vadd.f32 0.0, %v917
    %v919 = vpop.f32.mrb[0].mxu0
    %v920 = vadd.f32 0.0, %v919
    %v921 = vpop.f32.mrb[0].mxu0
    %v922 = vadd.f32 0.0, %v921
    %v923 = vpop.f32.mrb[0].mxu0
    %v924 = vadd.f32 0.0, %v923
    %925 = vmatprep.mubr.bf16.mxu0 0
    %926 = vmatmul.mubr.bf16.gmra.mrb[0].mxu0 %v327
    %v927 = vpop.f32.mrb[0].mxu0
    %v928 = vadd.f32 0.0, %v927
    %v929 = vpop.f32.mrb[0].mxu0
    %v930 = vadd.f32 0.0, %v929
    %v931 = vpop.f32.mrb[0].mxu0
    %v932 = vadd.f32 0.0, %v931
    %v933 = vpop.f32.mrb[0].mxu0
    %v934 = vadd.f32 0.0, %v933
    %935 = vmatprep.mubr.bf16.mxu0 0
    %936 = vmatmul.mubr.bf16.gmra.mrb[0].mxu0 %v330
    %v937 = vpop.f32.mrb[0].mxu0
    %v938 = vadd.f32 0.0, %v937
    %v939 = vpop.f32.mrb[0].mxu0
    %v940 = vadd.f32 0.0, %v939
    %v941 = vpop.f32.mrb[0].mxu0
    %v942 = vadd.f32 0.0, %v941
    %v943 = vpop.f32.mrb[0].mxu0
    %v944 = vadd.f32 0.0, %v943
    %945 = vmatprep.mubr.bf16.mxu0 0
    %946 = vmatmul.mubr.bf16.gmra.mrb[0].mxu0 %v333
    %v947 = vpop.f32.mrb[0].mxu0
    %v948 = vadd.f32 0.0, %v947
    %v949 = vpop.f32.mrb[0].mxu0
    %v950 = vadd.f32 0.0, %v949
    %v951 = vpop.f32.mrb[0].mxu0
    %v952 = vadd.f32 0.0, %v951
    %v953 = vpop.f32.mrb[0].mxu0
    %v954 = vadd.f32 0.0, %v953
    %955 = vmatprep.mubr.bf16.mxu0 0
    %956 = vmatmul.mubr.bf16.gmra.mrb[0].mxu0 %v336
    %v957 = vpop.f32.mrb[0].mxu0
    %v958 = vadd.f32 0.0, %v957
    %v959 = vpop.f32.mrb[0].mxu0
    %v960 = vadd.f32 0.0, %v959
    %v961 = vpop.f32.mrb[0].mxu0
    %v962 = vadd.f32 0.0, %v961
    %v963 = vpop.f32.mrb[0].mxu0
    %v964 = vadd.f32 0.0, %v963
    %965 = vmatprep.mubr.bf16.mxu0 0
    %966 = vmatmul.mubr.bf16.gmra.mrb[0].mxu0 %v339
    %v967 = vpop.f32.mrb[0].mxu0
    %v968 = vadd.f32 0.0, %v967
    %v969 = vpop.f32.mrb[0].mxu0
    %v970 = vadd.f32 0.0, %v969
    %v971 = vpop.f32.mrb[0].mxu0
    %v972 = vadd.f32 0.0, %v971
    %v973 = vpop.f32.mrb[0].mxu0
    %v974 = vadd.f32 0.0, %v973
    %975 = vmatprep.mubr.bf16.mxu0 0
    %976 = vmatmul.mubr.bf16.gmra.mrb[0].mxu0 %v342
    %v977 = vpop.f32.mrb[0].mxu0
    %v978 = vadd.f32 0.0, %v977
    %v979 = vpop.f32.mrb[0].mxu0
    %v980 = vadd.f32 0.0, %v979
    %v981 = vpop.f32.mrb[0].mxu0
    %v982 = vadd.f32 0.0, %v981
    %v983 = vpop.f32.mrb[0].mxu0
    %v984 = vadd.f32 0.0, %v983
    %985 = vmatprep.mubr.bf16.mxu0 0
    %986 = vmatmul.mubr.bf16.gmra.mrb[0].mxu0 %v345
    %v987 = vpop.f32.mrb[0].mxu0
    %v988 = vadd.f32 0.0, %v987
    %v989 = vpop.f32.mrb[0].mxu0
    %v990 = vadd.f32 0.0, %v989
    %v991 = vpop.f32.mrb[0].mxu0
    %v992 = vadd.f32 0.0, %v991
    %v993 = vpop.f32.mrb[0].mxu0
    %v994 = vadd.f32 0.0, %v993
    %995 = vmatprep.mubr.bf16.mxu0 0
    %996 = vmatmul.mubr.bf16.gmra.mrb[0].mxu0 %v348
    %v997 = vpop.f32.mrb[0].mxu0
    %v998 = vadd.f32 0.0, %v997
    %v999 = vpop.f32.mrb[0].mxu0
    %v1000 = vadd.f32 0.0, %v999
    %v1001 = vpop.f32.mrb[0].mxu0
    %v1002 = vadd.f32 0.0, %v1001
    %v1003 = vpop.f32.mrb[0].mxu0
    %v1004 = vadd.f32 0.0, %v1003
    %1005 = vmatprep.mubr.bf16.mxu0 0
    %1006 = vmatmul.mubr.bf16.gmra.mrb[0].mxu0 %v351
    %v1007 = vpop.f32.mrb[0].mxu0
    %v1008 = vadd.f32 0.0, %v1007
    %v1009 = vpop.f32.mrb[0].mxu0
    %v1010 = vadd.f32 0.0, %v1009
    %v1011 = vpop.f32.mrb[0].mxu0
    %v1012 = vadd.f32 0.0, %v1011
    %v1013 = vpop.f32.mrb[0].mxu0
    %v1014 = vadd.f32 0.0, %v1013
    %1015 = vmatprep.mubr.bf16.mxu0 0
    %1016 = vmatmul.mubr.bf16.gmra.mrb[0].mxu0 %v354
    %v1017 = vpop.f32.mrb[0].mxu0
    %v1018 = vadd.f32 0.0, %v1017
    %v1019 = vpop.f32.mrb[0].mxu0
    %v1020 = vadd.f32 0.0, %v1019
    %v1021 = vpop.f32.mrb[0].mxu0
    %v1022 = vadd.f32 0.0, %v1021
    %v1023 = vpop.f32.mrb[0].mxu0
    %v1024 = vadd.f32 0.0, %v1023
    %1025 = vmatprep.mubr.bf16.mxu0 0
    %1026 = vmatmul.mubr.bf16.gmra.mrb[0].mxu0 %v357
    %v1027 = vpop.f32.mrb[0].mxu0
    %v1028 = vadd.f32 0.0, %v1027
    %v1029 = vpop.f32.mrb[0].mxu0
    %v1030 = vadd.f32 0.0, %v1029
    %v1031 = vpop.f32.mrb[0].mxu0
    %v1032 = vadd.f32 0.0, %v1031
    %v1033 = vpop.f32.mrb[0].mxu0
    %v1034 = vadd.f32 0.0, %v1033
    %1035 = vdwg.mxu0
    %v1052 = vunpack.c.l.b16 %v174
    %v1053 = vunpack.c.h.b16 %v174
    %v1054 = vunpack.c.l.b16 %v175
    %v1055 = vunpack.c.h.b16 %v175
    %v1056 = vunpack.c.l.b16 %v176
    %v1057 = vunpack.c.h.b16 %v176
    %v1058 = vunpack.c.l.b16 %v177
    %v1059 = vunpack.c.h.b16 %v177
    %v1060 = vunpack.c.l.b16 %v178
    %v1061 = vunpack.c.h.b16 %v178
    %v1062 = vunpack.c.l.b16 %v179
    %v1063 = vunpack.c.h.b16 %v179
    %v1064 = vunpack.c.l.b16 %v180
    %v1065 = vunpack.c.h.b16 %v180
    %v1066 = vunpack.c.l.b16 %v181
    %v1067 = vunpack.c.h.b16 %v181
    %v1068 = vunpack.c.l.b16 %v182
    %v1069 = vunpack.c.h.b16 %v182
    %v1070 = vunpack.c.l.b16 %v183
    %v1071 = vunpack.c.h.b16 %v183
    %v1072 = vunpack.c.l.b16 %v184
    %v1073 = vunpack.c.h.b16 %v184
    %v1074 = vunpack.c.l.b16 %v185
    %v1075 = vunpack.c.h.b16 %v185
    %v1076 = vunpack.c.l.b16 %v186
    %v1077 = vunpack.c.h.b16 %v186
    %v1078 = vunpack.c.l.b16 %v187
    %v1079 = vunpack.c.h.b16 %v187
    %v1080 = vunpack.c.l.b16 %v188
    %v1081 = vunpack.c.h.b16 %v188
    %v1082 = vunpack.c.l.b16 %v189
    %v1083 = vunpack.c.h.b16 %v189
    %v1084 = vpack.c.b16 %v1060, %v1052
    %v1085 = vpack.c.b16 %v1061, %v1053
    %v1086 = vpack.c.b16 %v1062, %v1054
    %v1087 = vpack.c.b16 %v1063, %v1055
    %v1088 = vpack.c.b16 %v1064, %v1056
    %v1089 = vpack.c.b16 %v1065, %v1057
    %v1090 = vpack.c.b16 %v1066, %v1058
    %v1091 = vpack.c.b16 %v1067, %v1059
    %v1092 = vpack.c.b16 %v1076, %v1068
    %v1093 = vpack.c.b16 %v1077, %v1069
    %v1094 = vpack.c.b16 %v1078, %v1070
    %v1095 = vpack.c.b16 %v1079, %v1071
    %v1096 = vpack.c.b16 %v1080, %v1072
    %v1097 = vpack.c.b16 %v1081, %v1073
    %v1098 = vpack.c.b16 %v1082, %v1074
    %v1099 = vpack.c.b16 %v1083, %v1075
    %v1109 = vsel %vm319, %v161, 0
    %v1112 = vsel %vm319, %v162, 0
    %v1115 = vsel %vm319, %v163, 0
    %v1118 = vsel %vm319, %v164, 0
    %v1121 = vsel %vm319, %v165, 0
    %v1124 = vsel %vm319, %v166, 0
    %v1127 = vsel %vm319, %v167, 0
    %v1130 = vsel %vm319, %v168, 0
    %v1133 = vsel %vm319, %v169, 0
    %v1136 = vsel %vm319, %v170, 0
    %v1139 = vsel %vm319, %v171, 0
    %v1142 = vsel %vm319, %v172, 0
    %v1145 = vsel %vm319, %v173, 0
    %v1148 = vsel %vm359, %v1092, 0
    %v1151 = vsel %vm359, %v1093, 0
    %v1154 = vsel %vm359, %v1094, 0
    %v1157 = vsel %vm359, %v1095, 0
    %v1160 = vsel %vm359, %v1096, 0
    %v1163 = vsel %vm359, %v1097, 0
    %v1166 = vsel %vm359, %v1098, 0
    %v1169 = vsel %vm359, %v1099, 0
    %1171 = vmatprep.subr.bf16.mxu0 %v1085
    %1172 = vmatpush1.bf16.msra.mxu0 %v1084
    %1173 = vmatprep.subr.bf16.mxu0 %v1151
    %1174 = vmatpush1.bf16.msra.mxu0 %v1148
    %1175 = vmatprep.subr.bf16.mxu0 0
    %1176 = vmatpush1.bf16.msra.mxu0 0
    %1177 = vmatprep.subr.bf16.mxu0 0
    %1178 = vmatpush1.bf16.msra.mxu0 0
    %1179 = vmatprep.subr.bf16.mxu0 0
    %1180 = vmatpush1.bf16.msra.mxu0 0
    %1181 = vmatprep.subr.bf16.mxu0 0
    %1182 = vmatpush1.bf16.msra.mxu0 0
    %1183 = vmatprep.subr.bf16.mxu0 0
    %1184 = vmatpush1.bf16.msra.mxu0 0
    %1185 = vmatprep.subr.bf16.mxu0 0
    %1186 = vmatpush1.bf16.msra.mxu0 0
    %1187 = vmatprep.subr.bf16.mxu0 0
    %1188 = vmatpush1.bf16.msra.mxu0 0
    %1189 = vmatprep.subr.bf16.mxu0 0
    %1190 = vmatpush1.bf16.msra.mxu0 0
    %1191 = vmatprep.subr.bf16.mxu0 0
    %1192 = vmatpush1.bf16.msra.mxu0 0
    %1193 = vmatprep.subr.bf16.mxu0 0
    %1194 = vmatpush1.bf16.msra.mxu0 0
    %1195 = vmatprep.subr.bf16.mxu0 0
    %1196 = vmatpush1.bf16.msra.mxu0 0
    %1197 = vmatprep.subr.bf16.mxu0 0
    %1198 = vmatpush1.bf16.msra.mxu0 0
    %1199 = vmatprep.subr.bf16.mxu0 0
    %1200 = vmatpush1.bf16.msra.mxu0 0
    %1201 = vmatprep.subr.bf16.mxu0 0
    %1202 = vmatpush1.bf16.msra.mxu0 0
    %1203 = vmatprep.mubr.bf16.mxu0 0
    %1204 = vmatmul.mubr.bf16.gmra.mrb[0].mxu0 %v1109
    %v1205 = vpop.f32.mrb[0].mxu0
    %v1206 = vadd.f32 %v419, %v1205
    %v1207 = vpop.f32.mrb[0].mxu0
    %v1208 = vadd.f32 %v421, %v1207
    %v1209 = vpop.f32.mrb[0].mxu0
    %v1210 = vadd.f32 %v423, %v1209
    %v1211 = vpop.f32.mrb[0].mxu0
    %v1212 = vadd.f32 %v425, %v1211
    %1213 = vmatprep.mubr.bf16.mxu0 0
    %1214 = vmatmul.mubr.bf16.gmra.mrb[0].mxu0 %v1112
    %v1215 = vpop.f32.mrb[0].mxu0
    %v1216 = vadd.f32 %v429, %v1215
    %v1217 = vpop.f32.mrb[0].mxu0
    %v1218 = vadd.f32 %v431, %v1217
    %v1219 = vpop.f32.mrb[0].mxu0
    %v1220 = vadd.f32 %v433, %v1219
    %v1221 = vpop.f32.mrb[0].mxu0
    %v1222 = vadd.f32 %v435, %v1221
    %1223 = vmatprep.mubr.bf16.mxu0 0
    %1224 = vmatmul.mubr.bf16.gmra.mrb[0].mxu0 %v1115
    %v1225 = vpop.f32.mrb[0].mxu0
    %v1226 = vadd.f32 %v439, %v1225
    %v1227 = vpop.f32.mrb[0].mxu0
    %v1228 = vadd.f32 %v441, %v1227
    %v1229 = vpop.f32.mrb[0].mxu0
    %v1230 = vadd.f32 %v443, %v1229
    %v1231 = vpop.f32.mrb[0].mxu0
    %v1232 = vadd.f32 %v445, %v1231
    %1233 = vmatprep.mubr.bf16.mxu0 0
    %1234 = vmatmul.mubr.bf16.gmra.mrb[0].mxu0 %v1118
    %v1235 = vpop.f32.mrb[0].mxu0
    %v1236 = vadd.f32 %v449, %v1235
    %v1237 = vpop.f32.mrb[0].mxu0
    %v1238 = vadd.f32 %v451, %v1237
    %v1239 = vpop.f32.mrb[0].mxu0
    %v1240 = vadd.f32 %v453, %v1239
    %v1241 = vpop.f32.mrb[0].mxu0
    %v1242 = vadd.f32 %v455, %v1241
    %1243 = vmatprep.mubr.bf16.mxu0 0
    %1244 = vmatmul.mubr.bf16.gmra.mrb[0].mxu0 %v1121
    %v1245 = vpop.f32.mrb[0].mxu0
    %v1246 = vadd.f32 %v459, %v1245
    %v1247 = vpop.f32.mrb[0].mxu0
    %v1248 = vadd.f32 %v461, %v1247
    %v1249 = vpop.f32.mrb[0].mxu0
    %v1250 = vadd.f32 %v463, %v1249
    %v1251 = vpop.f32.mrb[0].mxu0
    %v1252 = vadd.f32 %v465, %v1251
    %1253 = vmatprep.mubr.bf16.mxu0 0
    %1254 = vmatmul.mubr.bf16.gmra.mrb[0].mxu0 %v1124
    %v1255 = vpop.f32.mrb[0].mxu0
    %v1256 = vadd.f32 %v469, %v1255
    %v1257 = vpop.f32.mrb[0].mxu0
    %v1258 = vadd.f32 %v471, %v1257
    %v1259 = vpop.f32.mrb[0].mxu0
    %v1260 = vadd.f32 %v473, %v1259
    %v1261 = vpop.f32.mrb[0].mxu0
    %v1262 = vadd.f32 %v475, %v1261
    %1263 = vmatprep.mubr.bf16.mxu0 0
    %1264 = vmatmul.mubr.bf16.gmra.mrb[0].mxu0 %v1127
    %v1265 = vpop.f32.mrb[0].mxu0
    %v1266 = vadd.f32 %v479, %v1265
    %v1267 = vpop.f32.mrb[0].mxu0
    %v1268 = vadd.f32 %v481, %v1267
    %v1269 = vpop.f32.mrb[0].mxu0
    %v1270 = vadd.f32 %v483, %v1269
    %v1271 = vpop.f32.mrb[0].mxu0
    %v1272 = vadd.f32 %v485, %v1271
    %1273 = vmatprep.mubr.bf16.mxu0 0
    %1274 = vmatmul.mubr.bf16.gmra.mrb[0].mxu0 %v1130
    %v1275 = vpop.f32.mrb[0].mxu0
    %v1276 = vadd.f32 %v489, %v1275
    %v1277 = vpop.f32.mrb[0].mxu0
    %v1278 = vadd.f32 %v491, %v1277
    %v1279 = vpop.f32.mrb[0].mxu0
    %v1280 = vadd.f32 %v493, %v1279
    %v1281 = vpop.f32.mrb[0].mxu0
    %v1282 = vadd.f32 %v495, %v1281
    %1283 = vmatprep.mubr.bf16.mxu0 0
    %1284 = vmatmul.mubr.bf16.gmra.mrb[0].mxu0 %v1133
    %v1285 = vpop.f32.mrb[0].mxu0
    %v1286 = vadd.f32 %v499, %v1285
    %v1287 = vpop.f32.mrb[0].mxu0
    %v1288 = vadd.f32 %v501, %v1287
    %v1289 = vpop.f32.mrb[0].mxu0
    %v1290 = vadd.f32 %v503, %v1289
    %v1291 = vpop.f32.mrb[0].mxu0
    %v1292 = vadd.f32 %v505, %v1291
    %1293 = vmatprep.mubr.bf16.mxu0 0
    %1294 = vmatmul.mubr.bf16.gmra.mrb[0].mxu0 %v1136
    %v1295 = vpop.f32.mrb[0].mxu0
    %v1296 = vadd.f32 %v509, %v1295
    %v1297 = vpop.f32.mrb[0].mxu0
    %v1298 = vadd.f32 %v511, %v1297
    %v1299 = vpop.f32.mrb[0].mxu0
    %v1300 = vadd.f32 %v513, %v1299
    %v1301 = vpop.f32.mrb[0].mxu0
    %v1302 = vadd.f32 %v515, %v1301
    %1303 = vmatprep.mubr.bf16.mxu0 0
    %1304 = vmatmul.mubr.bf16.gmra.mrb[0].mxu0 %v1139
    %v1305 = vpop.f32.mrb[0].mxu0
    %v1306 = vadd.f32 %v519, %v1305
    %v1307 = vpop.f32.mrb[0].mxu0
    %v1308 = vadd.f32 %v521, %v1307
    %v1309 = vpop.f32.mrb[0].mxu0
    %v1310 = vadd.f32 %v523, %v1309
    %v1311 = vpop.f32.mrb[0].mxu0
    %v1312 = vadd.f32 %v525, %v1311
    %1313 = vmatprep.mubr.bf16.mxu0 0
    %1314 = vmatmul.mubr.bf16.gmra.mrb[0].mxu0 %v1142
    %v1315 = vpop.f32.mrb[0].mxu0
    %v1316 = vadd.f32 %v529, %v1315
    %v1317 = vpop.f32.mrb[0].mxu0
    %v1318 = vadd.f32 %v531, %v1317
    %v1319 = vpop.f32.mrb[0].mxu0
    %v1320 = vadd.f32 %v533, %v1319
    %v1321 = vpop.f32.mrb[0].mxu0
    %v1322 = vadd.f32 %v535, %v1321
    %1323 = vmatprep.mubr.bf16.mxu0 0
    %1324 = vmatmul.mubr.bf16.gmra.mrb[0].mxu0 %v1145
    %v1325 = vpop.f32.mrb[0].mxu0
    %v1326 = vadd.f32 %v539, %v1325
    %v1327 = vpop.f32.mrb[0].mxu0
    %v1328 = vadd.f32 %v541, %v1327
    %v1329 = vpop.f32.mrb[0].mxu0
    %v1330 = vadd.f32 %v543, %v1329
    %v1331 = vpop.f32.mrb[0].mxu0
    %v1332 = vadd.f32 %v545, %v1331
    %1333 = vdwg.mxu0
    %1334 = vmatprep.subr.bf16.mxu0 %v1087
    %1335 = vmatpush1.bf16.msra.mxu0 %v1086
    %1336 = vmatprep.subr.bf16.mxu0 %v1157
    %1337 = vmatpush1.bf16.msra.mxu0 %v1154
    %1338 = vmatprep.subr.bf16.mxu0 0
    %1339 = vmatpush1.bf16.msra.mxu0 0
    %1340 = vmatprep.subr.bf16.mxu0 0
    %1341 = vmatpush1.bf16.msra.mxu0 0
    %1342 = vmatprep.subr.bf16.mxu0 0
    %1343 = vmatpush1.bf16.msra.mxu0 0
    %1344 = vmatprep.subr.bf16.mxu0 0
    %1345 = vmatpush1.bf16.msra.mxu0 0
    %1346 = vmatprep.subr.bf16.mxu0 0
    %1347 = vmatpush1.bf16.msra.mxu0 0
    %1348 = vmatprep.subr.bf16.mxu0 0
    %1349 = vmatpush1.bf16.msra.mxu0 0
    %1350 = vmatprep.subr.bf16.mxu0 0
    %1351 = vmatpush1.bf16.msra.mxu0 0
    %1352 = vmatprep.subr.bf16.mxu0 0
    %1353 = vmatpush1.bf16.msra.mxu0 0
    %1354 = vmatprep.subr.bf16.mxu0 0
    %1355 = vmatpush1.bf16.msra.mxu0 0
    %1356 = vmatprep.subr.bf16.mxu0 0
    %1357 = vmatpush1.bf16.msra.mxu0 0
    %1358 = vmatprep.subr.bf16.mxu0 0
    %1359 = vmatpush1.bf16.msra.mxu0 0
    %1360 = vmatprep.subr.bf16.mxu0 0
    %1361 = vmatpush1.bf16.msra.mxu0 0
    %1362 = vmatprep.subr.bf16.mxu0 0
    %1363 = vmatpush1.bf16.msra.mxu0 0
    %1364 = vmatprep.subr.bf16.mxu0 0
    %1365 = vmatpush1.bf16.msra.mxu0 0
    %1366 = vmatprep.mubr.bf16.mxu0 0
    %1367 = vmatmul.mubr.bf16.gmra.mrb[0].mxu0 %v1109
    %v1368 = vpop.f32.mrb[0].mxu0
    %v1369 = vadd.f32 %v582, %v1368
    %v1370 = vpop.f32.mrb[0].mxu0
    %v1371 = vadd.f32 %v584, %v1370
    %v1372 = vpop.f32.mrb[0].mxu0
    %v1373 = vadd.f32 %v586, %v1372
    %v1374 = vpop.f32.mrb[0].mxu0
    %v1375 = vadd.f32 %v588, %v1374
    %1376 = vmatprep.mubr.bf16.mxu0 0
    %1377 = vmatmul.mubr.bf16.gmra.mrb[0].mxu0 %v1112
    %v1378 = vpop.f32.mrb[0].mxu0
    %v1379 = vadd.f32 %v592, %v1378
    %v1380 = vpop.f32.mrb[0].mxu0
    %v1381 = vadd.f32 %v594, %v1380
    %v1382 = vpop.f32.mrb[0].mxu0
    %v1383 = vadd.f32 %v596, %v1382
    %v1384 = vpop.f32.mrb[0].mxu0
    %v1385 = vadd.f32 %v598, %v1384
    %1386 = vmatprep.mubr.bf16.mxu0 0
    %1387 = vmatmul.mubr.bf16.gmra.mrb[0].mxu0 %v1115
    %v1388 = vpop.f32.mrb[0].mxu0
    %v1389 = vadd.f32 %v602, %v1388
    %v1390 = vpop.f32.mrb[0].mxu0
    %v1391 = vadd.f32 %v604, %v1390
    %v1392 = vpop.f32.mrb[0].mxu0
    %v1393 = vadd.f32 %v606, %v1392
    %v1394 = vpop.f32.mrb[0].mxu0
    %v1395 = vadd.f32 %v608, %v1394
    %1396 = vmatprep.mubr.bf16.mxu0 0
    %1397 = vmatmul.mubr.bf16.gmra.mrb[0].mxu0 %v1118
    %v1398 = vpop.f32.mrb[0].mxu0
    %v1399 = vadd.f32 %v612, %v1398
    %v1400 = vpop.f32.mrb[0].mxu0
    %v1401 = vadd.f32 %v614, %v1400
    %v1402 = vpop.f32.mrb[0].mxu0
    %v1403 = vadd.f32 %v616, %v1402
    %v1404 = vpop.f32.mrb[0].mxu0
    %v1405 = vadd.f32 %v618, %v1404
    %1406 = vmatprep.mubr.bf16.mxu0 0
    %1407 = vmatmul.mubr.bf16.gmra.mrb[0].mxu0 %v1121
    %v1408 = vpop.f32.mrb[0].mxu0
    %v1409 = vadd.f32 %v622, %v1408
    %v1410 = vpop.f32.mrb[0].mxu0
    %v1411 = vadd.f32 %v624, %v1410
    %v1412 = vpop.f32.mrb[0].mxu0
    %v1413 = vadd.f32 %v626, %v1412
    %v1414 = vpop.f32.mrb[0].mxu0
    %v1415 = vadd.f32 %v628, %v1414
    %1416 = vmatprep.mubr.bf16.mxu0 0
    %1417 = vmatmul.mubr.bf16.gmra.mrb[0].mxu0 %v1124
    %v1418 = vpop.f32.mrb[0].mxu0
    %v1419 = vadd.f32 %v632, %v1418
    %v1420 = vpop.f32.mrb[0].mxu0
    %v1421 = vadd.f32 %v634, %v1420
    %v1422 = vpop.f32.mrb[0].mxu0
    %v1423 = vadd.f32 %v636, %v1422
    %v1424 = vpop.f32.mrb[0].mxu0
    %v1425 = vadd.f32 %v638, %v1424
    %1426 = vmatprep.mubr.bf16.mxu0 0
    %1427 = vmatmul.mubr.bf16.gmra.mrb[0].mxu0 %v1127
    %v1428 = vpop.f32.mrb[0].mxu0
    %v1429 = vadd.f32 %v642, %v1428
    %v1430 = vpop.f32.mrb[0].mxu0
    %v1431 = vadd.f32 %v644, %v1430
    %v1432 = vpop.f32.mrb[0].mxu0
    %v1433 = vadd.f32 %v646, %v1432
    %v1434 = vpop.f32.mrb[0].mxu0
    %v1435 = vadd.f32 %v648, %v1434
    %1436 = vmatprep.mubr.bf16.mxu0 0
    %1437 = vmatmul.mubr.bf16.gmra.mrb[0].mxu0 %v1130
    %v1438 = vpop.f32.mrb[0].mxu0
    %v1439 = vadd.f32 %v652, %v1438
    %v1440 = vpop.f32.mrb[0].mxu0
    %v1441 = vadd.f32 %v654, %v1440
    %v1442 = vpop.f32.mrb[0].mxu0
    %v1443 = vadd.f32 %v656, %v1442
    %v1444 = vpop.f32.mrb[0].mxu0
    %v1445 = vadd.f32 %v658, %v1444
    %1446 = vmatprep.mubr.bf16.mxu0 0
    %1447 = vmatmul.mubr.bf16.gmra.mrb[0].mxu0 %v1133
    %v1448 = vpop.f32.mrb[0].mxu0
    %v1449 = vadd.f32 %v662, %v1448
    %v1450 = vpop.f32.mrb[0].mxu0
    %v1451 = vadd.f32 %v664, %v1450
    %v1452 = vpop.f32.mrb[0].mxu0
    %v1453 = vadd.f32 %v666, %v1452
    %v1454 = vpop.f32.mrb[0].mxu0
    %v1455 = vadd.f32 %v668, %v1454
    %1456 = vmatprep.mubr.bf16.mxu0 0
    %1457 = vmatmul.mubr.bf16.gmra.mrb[0].mxu0 %v1136
    %v1458 = vpop.f32.mrb[0].mxu0
    %v1459 = vadd.f32 %v672, %v1458
    %v1460 = vpop.f32.mrb[0].mxu0
    %v1461 = vadd.f32 %v674, %v1460
    %v1462 = vpop.f32.mrb[0].mxu0
    %v1463 = vadd.f32 %v676, %v1462
    %v1464 = vpop.f32.mrb[0].mxu0
    %v1465 = vadd.f32 %v678, %v1464
    %1466 = vmatprep.mubr.bf16.mxu0 0
    %1467 = vmatmul.mubr.bf16.gmra.mrb[0].mxu0 %v1139
    %v1468 = vpop.f32.mrb[0].mxu0
    %v1469 = vadd.f32 %v682, %v1468
    %v1470 = vpop.f32.mrb[0].mxu0
    %v1471 = vadd.f32 %v684, %v1470
    %v1472 = vpop.f32.mrb[0].mxu0
    %v1473 = vadd.f32 %v686, %v1472
    %v1474 = vpop.f32.mrb[0].mxu0
    %v1475 = vadd.f32 %v688, %v1474
    %1476 = vmatprep.mubr.bf16.mxu0 0
    %1477 = vmatmul.mubr.bf16.gmra.mrb[0].mxu0 %v1142
    %v1478 = vpop.f32.mrb[0].mxu0
    %v1479 = vadd.f32 %v692, %v1478
    %v1480 = vpop.f32.mrb[0].mxu0
    %v1481 = vadd.f32 %v694, %v1480
    %v1482 = vpop.f32.mrb[0].mxu0
    %v1483 = vadd.f32 %v696, %v1482
    %v1484 = vpop.f32.mrb[0].mxu0
    %v1485 = vadd.f32 %v698, %v1484
    %1486 = vmatprep.mubr.bf16.mxu0 0
    %1487 = vmatmul.mubr.bf16.gmra.mrb[0].mxu0 %v1145
    %v1488 = vpop.f32.mrb[0].mxu0
    %v1489 = vadd.f32 %v702, %v1488
    %v1490 = vpop.f32.mrb[0].mxu0
    %v1491 = vadd.f32 %v704, %v1490
    %v1492 = vpop.f32.mrb[0].mxu0
    %v1493 = vadd.f32 %v706, %v1492
    %v1494 = vpop.f32.mrb[0].mxu0
    %v1495 = vadd.f32 %v708, %v1494
    %1496 = vdwg.mxu0
    %1497 = vmatprep.subr.bf16.mxu0 %v1089
    %1498 = vmatpush1.bf16.msra.mxu0 %v1088
    %1499 = vmatprep.subr.bf16.mxu0 %v1163
    %1500 = vmatpush1.bf16.msra.mxu0 %v1160
    %1501 = vmatprep.subr.bf16.mxu0 0
    %1502 = vmatpush1.bf16.msra.mxu0 0
    %1503 = vmatprep.subr.bf16.mxu0 0
    %1504 = vmatpush1.bf16.msra.mxu0 0
    %1505 = vmatprep.subr.bf16.mxu0 0
    %1506 = vmatpush1.bf16.msra.mxu0 0
    %1507 = vmatprep.subr.bf16.mxu0 0
    %1508 = vmatpush1.bf16.msra.mxu0 0
    %1509 = vmatprep.subr.bf16.mxu0 0
    %1510 = vmatpush1.bf16.msra.mxu0 0
    %1511 = vmatprep.subr.bf16.mxu0 0
    %1512 = vmatpush1.bf16.msra.mxu0 0
    %1513 = vmatprep.subr.bf16.mxu0 0
    %1514 = vmatpush1.bf16.msra.mxu0 0
    %1515 = vmatprep.subr.bf16.mxu0 0
    %1516 = vmatpush1.bf16.msra.mxu0 0
    %1517 = vmatprep.subr.bf16.mxu0 0
    %1518 = vmatpush1.bf16.msra.mxu0 0
    %1519 = vmatprep.subr.bf16.mxu0 0
    %1520 = vmatpush1.bf16.msra.mxu0 0
    %1521 = vmatprep.subr.bf16.mxu0 0
    %1522 = vmatpush1.bf16.msra.mxu0 0
    %1523 = vmatprep.subr.bf16.mxu0 0
    %1524 = vmatpush1.bf16.msra.mxu0 0
    %1525 = vmatprep.subr.bf16.mxu0 0
    %1526 = vmatpush1.bf16.msra.mxu0 0
    %1527 = vmatprep.subr.bf16.mxu0 0
    %1528 = vmatpush1.bf16.msra.mxu0 0
    %1529 = vmatprep.mubr.bf16.mxu0 0
    %1530 = vmatmul.mubr.bf16.gmra.mrb[0].mxu0 %v1109
    %v1531 = vpop.f32.mrb[0].mxu0
    %v1532 = vadd.f32 %v745, %v1531
    %v1533 = vpop.f32.mrb[0].mxu0
    %v1534 = vadd.f32 %v747, %v1533
    %v1535 = vpop.f32.mrb[0].mxu0
    %v1536 = vadd.f32 %v749, %v1535
    %v1537 = vpop.f32.mrb[0].mxu0
    %v1538 = vadd.f32 %v751, %v1537
    %1539 = vmatprep.mubr.bf16.mxu0 0
    %1540 = vmatmul.mubr.bf16.gmra.mrb[0].mxu0 %v1112
    %v1541 = vpop.f32.mrb[0].mxu0
    %v1542 = vadd.f32 %v755, %v1541
    %v1543 = vpop.f32.mrb[0].mxu0
    %v1544 = vadd.f32 %v757, %v1543
    %v1545 = vpop.f32.mrb[0].mxu0
    %v1546 = vadd.f32 %v759, %v1545
    %v1547 = vpop.f32.mrb[0].mxu0
    %v1548 = vadd.f32 %v761, %v1547
    %1549 = vmatprep.mubr.bf16.mxu0 0
    %1550 = vmatmul.mubr.bf16.gmra.mrb[0].mxu0 %v1115
    %v1551 = vpop.f32.mrb[0].mxu0
    %v1552 = vadd.f32 %v765, %v1551
    %v1553 = vpop.f32.mrb[0].mxu0
    %v1554 = vadd.f32 %v767, %v1553
    %v1555 = vpop.f32.mrb[0].mxu0
    %v1556 = vadd.f32 %v769, %v1555
    %v1557 = vpop.f32.mrb[0].mxu0
    %v1558 = vadd.f32 %v771, %v1557
    %1559 = vmatprep.mubr.bf16.mxu0 0
    %1560 = vmatmul.mubr.bf16.gmra.mrb[0].mxu0 %v1118
    %v1561 = vpop.f32.mrb[0].mxu0
    %v1562 = vadd.f32 %v775, %v1561
    %v1563 = vpop.f32.mrb[0].mxu0
    %v1564 = vadd.f32 %v777, %v1563
    %v1565 = vpop.f32.mrb[0].mxu0
    %v1566 = vadd.f32 %v779, %v1565
    %v1567 = vpop.f32.mrb[0].mxu0
    %v1568 = vadd.f32 %v781, %v1567
    %1569 = vmatprep.mubr.bf16.mxu0 0
    %1570 = vmatmul.mubr.bf16.gmra.mrb[0].mxu0 %v1121
    %v1571 = vpop.f32.mrb[0].mxu0
    %v1572 = vadd.f32 %v785, %v1571
    %v1573 = vpop.f32.mrb[0].mxu0
    %v1574 = vadd.f32 %v787, %v1573
    %v1575 = vpop.f32.mrb[0].mxu0
    %v1576 = vadd.f32 %v789, %v1575
    %v1577 = vpop.f32.mrb[0].mxu0
    %v1578 = vadd.f32 %v791, %v1577
    %1579 = vmatprep.mubr.bf16.mxu0 0
    %1580 = vmatmul.mubr.bf16.gmra.mrb[0].mxu0 %v1124
    %v1581 = vpop.f32.mrb[0].mxu0
    %v1582 = vadd.f32 %v795, %v1581
    %v1583 = vpop.f32.mrb[0].mxu0
    %v1584 = vadd.f32 %v797, %v1583
    %v1585 = vpop.f32.mrb[0].mxu0
    %v1586 = vadd.f32 %v799, %v1585
    %v1587 = vpop.f32.mrb[0].mxu0
    %v1588 = vadd.f32 %v801, %v1587
    %1589 = vmatprep.mubr.bf16.mxu0 0
    %1590 = vmatmul.mubr.bf16.gmra.mrb[0].mxu0 %v1127
    %v1591 = vpop.f32.mrb[0].mxu0
    %v1592 = vadd.f32 %v805, %v1591
    %v1593 = vpop.f32.mrb[0].mxu0
    %v1594 = vadd.f32 %v807, %v1593
    %v1595 = vpop.f32.mrb[0].mxu0
    %v1596 = vadd.f32 %v809, %v1595
    %v1597 = vpop.f32.mrb[0].mxu0
    %v1598 = vadd.f32 %v811, %v1597
    %1599 = vmatprep.mubr.bf16.mxu0 0
    %1600 = vmatmul.mubr.bf16.gmra.mrb[0].mxu0 %v1130
    %v1601 = vpop.f32.mrb[0].mxu0
    %v1602 = vadd.f32 %v815, %v1601
    %v1603 = vpop.f32.mrb[0].mxu0
    %v1604 = vadd.f32 %v817, %v1603
    %v1605 = vpop.f32.mrb[0].mxu0
    %v1606 = vadd.f32 %v819, %v1605
    %v1607 = vpop.f32.mrb[0].mxu0
    %v1608 = vadd.f32 %v821, %v1607
    %1609 = vmatprep.mubr.bf16.mxu0 0
    %1610 = vmatmul.mubr.bf16.gmra.mrb[0].mxu0 %v1133
    %v1611 = vpop.f32.mrb[0].mxu0
    %v1612 = vadd.f32 %v825, %v1611
    %v1613 = vpop.f32.mrb[0].mxu0
    %v1614 = vadd.f32 %v827, %v1613
    %v1615 = vpop.f32.mrb[0].mxu0
    %v1616 = vadd.f32 %v829, %v1615
    %v1617 = vpop.f32.mrb[0].mxu0
    %v1618 = vadd.f32 %v831, %v1617
    %1619 = vmatprep.mubr.bf16.mxu0 0
    %1620 = vmatmul.mubr.bf16.gmra.mrb[0].mxu0 %v1136
    %v1621 = vpop.f32.mrb[0].mxu0
    %v1622 = vadd.f32 %v835, %v1621
    %v1623 = vpop.f32.mrb[0].mxu0
    %v1624 = vadd.f32 %v837, %v1623
    %v1625 = vpop.f32.mrb[0].mxu0
    %v1626 = vadd.f32 %v839, %v1625
    %v1627 = vpop.f32.mrb[0].mxu0
    %v1628 = vadd.f32 %v841, %v1627
    %1629 = vmatprep.mubr.bf16.mxu0 0
    %1630 = vmatmul.mubr.bf16.gmra.mrb[0].mxu0 %v1139
    %v1631 = vpop.f32.mrb[0].mxu0
    %v1632 = vadd.f32 %v845, %v1631
    %v1633 = vpop.f32.mrb[0].mxu0
    %v1634 = vadd.f32 %v847, %v1633
    %v1635 = vpop.f32.mrb[0].mxu0
    %v1636 = vadd.f32 %v849, %v1635
    %v1637 = vpop.f32.mrb[0].mxu0
    %v1638 = vadd.f32 %v851, %v1637
    %1639 = vmatprep.mubr.bf16.mxu0 0
    %1640 = vmatmul.mubr.bf16.gmra.mrb[0].mxu0 %v1142
    %v1641 = vpop.f32.mrb[0].mxu0
    %v1642 = vadd.f32 %v855, %v1641
    %v1643 = vpop.f32.mrb[0].mxu0
    %v1644 = vadd.f32 %v857, %v1643
    %v1645 = vpop.f32.mrb[0].mxu0
    %v1646 = vadd.f32 %v859, %v1645
    %v1647 = vpop.f32.mrb[0].mxu0
    %v1648 = vadd.f32 %v861, %v1647
    %1649 = vmatprep.mubr.bf16.mxu0 0
    %1650 = vmatmul.mubr.bf16.gmra.mrb[0].mxu0 %v1145
    %v1651 = vpop.f32.mrb[0].mxu0
    %v1652 = vadd.f32 %v865, %v1651
    %v1653 = vpop.f32.mrb[0].mxu0
    %v1654 = vadd.f32 %v867, %v1653
    %v1655 = vpop.f32.mrb[0].mxu0
    %v1656 = vadd.f32 %v869, %v1655
    %v1657 = vpop.f32.mrb[0].mxu0
    %v1658 = vadd.f32 %v871, %v1657
    %1659 = vdwg.mxu0
    %1660 = vmatprep.subr.bf16.mxu0 %v1091
    %1661 = vmatpush1.bf16.msra.mxu0 %v1090
    %1662 = vmatprep.subr.bf16.mxu0 %v1169
    %1663 = vmatpush1.bf16.msra.mxu0 %v1166
    %1664 = vmatprep.subr.bf16.mxu0 0
    %1665 = vmatpush1.bf16.msra.mxu0 0
    %1666 = vmatprep.subr.bf16.mxu0 0
    %1667 = vmatpush1.bf16.msra.mxu0 0
    %1668 = vmatprep.subr.bf16.mxu0 0
    %1669 = vmatpush1.bf16.msra.mxu0 0
    %1670 = vmatprep.subr.bf16.mxu0 0
    %1671 = vmatpush1.bf16.msra.mxu0 0
    %1672 = vmatprep.subr.bf16.mxu0 0
    %1673 = vmatpush1.bf16.msra.mxu0 0
    %1674 = vmatprep.subr.bf16.mxu0 0
    %1675 = vmatpush1.bf16.msra.mxu0 0
    %1676 = vmatprep.subr.bf16.mxu0 0
    %1677 = vmatpush1.bf16.msra.mxu0 0
    %1678 = vmatprep.subr.bf16.mxu0 0
    %1679 = vmatpush1.bf16.msra.mxu0 0
    %1680 = vmatprep.subr.bf16.mxu0 0
    %1681 = vmatpush1.bf16.msra.mxu0 0
    %1682 = vmatprep.subr.bf16.mxu0 0
    %1683 = vmatpush1.bf16.msra.mxu0 0
    %1684 = vmatprep.subr.bf16.mxu0 0
    %1685 = vmatpush1.bf16.msra.mxu0 0
    %1686 = vmatprep.subr.bf16.mxu0 0
    %1687 = vmatpush1.bf16.msra.mxu0 0
    %1688 = vmatprep.subr.bf16.mxu0 0
    %1689 = vmatpush1.bf16.msra.mxu0 0
    %1690 = vmatprep.subr.bf16.mxu0 0
    %1691 = vmatpush1.bf16.msra.mxu0 0
    %1692 = vmatprep.mubr.bf16.mxu0 0
    %1693 = vmatmul.mubr.bf16.gmra.mrb[0].mxu0 %v1109
    %v1694 = vpop.f32.mrb[0].mxu0
    %v1695 = vadd.f32 %v908, %v1694
    %v1696 = vpop.f32.mrb[0].mxu0
    %v1697 = vadd.f32 %v910, %v1696
    %v1698 = vpop.f32.mrb[0].mxu0
    %v1699 = vadd.f32 %v912, %v1698
    %v1700 = vpop.f32.mrb[0].mxu0
    %v1701 = vadd.f32 %v914, %v1700
    %1702 = vmatprep.mubr.bf16.mxu0 0
    %1703 = vmatmul.mubr.bf16.gmra.mrb[0].mxu0 %v1112
    %v1704 = vpop.f32.mrb[0].mxu0
    %v1705 = vadd.f32 %v918, %v1704
    %v1706 = vpop.f32.mrb[0].mxu0
    %v1707 = vadd.f32 %v920, %v1706
    %v1708 = vpop.f32.mrb[0].mxu0
    %v1709 = vadd.f32 %v922, %v1708
    %v1710 = vpop.f32.mrb[0].mxu0
    %v1711 = vadd.f32 %v924, %v1710
    %1712 = vmatprep.mubr.bf16.mxu0 0
    %1713 = vmatmul.mubr.bf16.gmra.mrb[0].mxu0 %v1115
    %v1714 = vpop.f32.mrb[0].mxu0
    %v1715 = vadd.f32 %v928, %v1714
    %v1716 = vpop.f32.mrb[0].mxu0
    %v1717 = vadd.f32 %v930, %v1716
    %v1718 = vpop.f32.mrb[0].mxu0
    %v1719 = vadd.f32 %v932, %v1718
    %v1720 = vpop.f32.mrb[0].mxu0
    %v1721 = vadd.f32 %v934, %v1720
    %1722 = vmatprep.mubr.bf16.mxu0 0
    %1723 = vmatmul.mubr.bf16.gmra.mrb[0].mxu0 %v1118
    %v1724 = vpop.f32.mrb[0].mxu0
    %v1725 = vadd.f32 %v938, %v1724
    %v1726 = vpop.f32.mrb[0].mxu0
    %v1727 = vadd.f32 %v940, %v1726
    %v1728 = vpop.f32.mrb[0].mxu0
    %v1729 = vadd.f32 %v942, %v1728
    %v1730 = vpop.f32.mrb[0].mxu0
    %v1731 = vadd.f32 %v944, %v1730
    %1732 = vmatprep.mubr.bf16.mxu0 0
    %1733 = vmatmul.mubr.bf16.gmra.mrb[0].mxu0 %v1121
    %v1734 = vpop.f32.mrb[0].mxu0
    %v1735 = vadd.f32 %v948, %v1734
    %v1736 = vpop.f32.mrb[0].mxu0
    %v1737 = vadd.f32 %v950, %v1736
    %v1738 = vpop.f32.mrb[0].mxu0
    %v1739 = vadd.f32 %v952, %v1738
    %v1740 = vpop.f32.mrb[0].mxu0
    %v1741 = vadd.f32 %v954, %v1740
    %1742 = vmatprep.mubr.bf16.mxu0 0
    %1743 = vmatmul.mubr.bf16.gmra.mrb[0].mxu0 %v1124
    %v1744 = vpop.f32.mrb[0].mxu0
    %v1745 = vadd.f32 %v958, %v1744
    %v1746 = vpop.f32.mrb[0].mxu0
    %v1747 = vadd.f32 %v960, %v1746
    %v1748 = vpop.f32.mrb[0].mxu0
    %v1749 = vadd.f32 %v962, %v1748
    %v1750 = vpop.f32.mrb[0].mxu0
    %v1751 = vadd.f32 %v964, %v1750
    %1752 = vmatprep.mubr.bf16.mxu0 0
    %1753 = vmatmul.mubr.bf16.gmra.mrb[0].mxu0 %v1127
    %v1754 = vpop.f32.mrb[0].mxu0
    %v1755 = vadd.f32 %v968, %v1754
    %v1756 = vpop.f32.mrb[0].mxu0
    %v1757 = vadd.f32 %v970, %v1756
    %v1758 = vpop.f32.mrb[0].mxu0
    %v1759 = vadd.f32 %v972, %v1758
    %v1760 = vpop.f32.mrb[0].mxu0
    %v1761 = vadd.f32 %v974, %v1760
    %1762 = vmatprep.mubr.bf16.mxu0 0
    %1763 = vmatmul.mubr.bf16.gmra.mrb[0].mxu0 %v1130
    %v1764 = vpop.f32.mrb[0].mxu0
    %v1765 = vadd.f32 %v978, %v1764
    %v1766 = vpop.f32.mrb[0].mxu0
    %v1767 = vadd.f32 %v980, %v1766
    %v1768 = vpop.f32.mrb[0].mxu0
    %v1769 = vadd.f32 %v982, %v1768
    %v1770 = vpop.f32.mrb[0].mxu0
    %v1771 = vadd.f32 %v984, %v1770
    %1772 = vmatprep.mubr.bf16.mxu0 0
    %1773 = vmatmul.mubr.bf16.gmra.mrb[0].mxu0 %v1133
    %v1774 = vpop.f32.mrb[0].mxu0
    %v1775 = vadd.f32 %v988, %v1774
    %v1776 = vpop.f32.mrb[0].mxu0
    %v1777 = vadd.f32 %v990, %v1776
    %v1778 = vpop.f32.mrb[0].mxu0
    %v1779 = vadd.f32 %v992, %v1778
    %v1780 = vpop.f32.mrb[0].mxu0
    %v1781 = vadd.f32 %v994, %v1780
    %1782 = vmatprep.mubr.bf16.mxu0 0
    %1783 = vmatmul.mubr.bf16.gmra.mrb[0].mxu0 %v1136
    %v1784 = vpop.f32.mrb[0].mxu0
    %v1785 = vadd.f32 %v998, %v1784
    %v1786 = vpop.f32.mrb[0].mxu0
    %v1787 = vadd.f32 %v1000, %v1786
    %v1788 = vpop.f32.mrb[0].mxu0
    %v1789 = vadd.f32 %v1002, %v1788
    %v1790 = vpop.f32.mrb[0].mxu0
    %v1791 = vadd.f32 %v1004, %v1790
    %1792 = vmatprep.mubr.bf16.mxu0 0
    %1793 = vmatmul.mubr.bf16.gmra.mrb[0].mxu0 %v1139
    %v1794 = vpop.f32.mrb[0].mxu0
    %v1795 = vadd.f32 %v1008, %v1794
    %v1796 = vpop.f32.mrb[0].mxu0
    %v1797 = vadd.f32 %v1010, %v1796
    %v1798 = vpop.f32.mrb[0].mxu0
    %v1799 = vadd.f32 %v1012, %v1798
    %v1800 = vpop.f32.mrb[0].mxu0
    %v1801 = vadd.f32 %v1014, %v1800
    %1802 = vmatprep.mubr.bf16.mxu0 0
    %1803 = vmatmul.mubr.bf16.gmra.mrb[0].mxu0 %v1142
    %v1804 = vpop.f32.mrb[0].mxu0
    %v1805 = vadd.f32 %v1018, %v1804
    %v1806 = vpop.f32.mrb[0].mxu0
    %v1807 = vadd.f32 %v1020, %v1806
    %v1808 = vpop.f32.mrb[0].mxu0
    %v1809 = vadd.f32 %v1022, %v1808
    %v1810 = vpop.f32.mrb[0].mxu0
    %v1811 = vadd.f32 %v1024, %v1810
    %1812 = vmatprep.mubr.bf16.mxu0 0
    %1813 = vmatmul.mubr.bf16.gmra.mrb[0].mxu0 %v1145
    %v1814 = vpop.f32.mrb[0].mxu0
    %v1815 = vadd.f32 %v1028, %v1814
    %v1816 = vpop.f32.mrb[0].mxu0
    %v1817 = vadd.f32 %v1030, %v1816
    %v1818 = vpop.f32.mrb[0].mxu0
    %v1819 = vadd.f32 %v1032, %v1818
    %v1820 = vpop.f32.mrb[0].mxu0
    %v1821 = vadd.f32 %v1034, %v1820
    %1822 = vdwg.mxu0
    %s1823 = scalar_lea.vmem %s0, 16
    %v1824 = vld [vmem:[%s1823] sm:$0xff]
    %v1825 = vld [vmem:[%s1823 + $0x8] sm:$0xff]
    %v1826 = vld [vmem:[%s1823 + $0x10] sm:$0xff]
    %v1827 = vld [vmem:[%s1823 + $0x18] sm:$0xff]
    %v1828 = vld [vmem:[%s1823 + $0x20] sm:$0xff]
    %v1829 = vld [vmem:[%s1823 + $0x28] sm:$0xff]
    %v1830 = vld [vmem:[%s1823 + $0x30] sm:$0xff]
    %v1831 = vld [vmem:[%s1823 + $0x38] sm:$0xff]
    %v1832 = vld [vmem:[%s1823 + $0x40] sm:$0xff]
    %v1833 = vld [vmem:[%s1823 + $0x48] sm:$0xff]
    %v1834 = vld [vmem:[%s1823 + $0x50] sm:$0xff]
    %v1835 = vld [vmem:[%s1823 + $0x58] sm:$0xff]
    %v1836 = vld [vmem:[%s1823 + $0x60] sm:$0xff]
    %v1837 = vld [vmem:[%s1823 + $0x68] sm:$0xff]
    %v1838 = vld [vmem:[%s1823 + $0x70] sm:$0xff]
    %v1839 = vld [vmem:[%s1823 + $0x78] sm:$0xff]
    %v1840 = vld [vmem:[%s1823 + $0x80] sm:$0xff]
    %v1841 = vld [vmem:[%s1823 + $0x88] sm:$0xff]
    %v1842 = vld [vmem:[%s1823 + $0x90] sm:$0xff]
    %v1843 = vld [vmem:[%s1823 + $0x98] sm:$0xff]
    %v1844 = vld [vmem:[%s1823 + $0xa0] sm:$0xff]
    %v1845 = vld [vmem:[%s1823 + $0xa8] sm:$0xff]
    %v1846 = vld [vmem:[%s1823 + $0xb0] sm:$0xff]
    %v1847 = vld [vmem:[%s1823 + $0xb8] sm:$0xff]
    %v1848 = vld [vmem:[%s1823 + $0xc0] sm:$0xff]
    %v1849 = vld [vmem:[%s1823 + $0xc8] sm:$0xff]
    %v1850 = vpack.c.bf16 %v1825, %v1824
    %v1851 = vpack.c.bf16 %v1827, %v1826
    %v1852 = vpack.c.bf16 %v1829, %v1828
    %v1853 = vpack.c.bf16 %v1831, %v1830
    %v1854 = vpack.c.bf16 %v1833, %v1832
    %v1855 = vpack.c.bf16 %v1835, %v1834
    %v1856 = vpack.c.bf16 %v1837, %v1836
    %v1857 = vpack.c.bf16 %v1839, %v1838
    %v1858 = vpack.c.bf16 %v1841, %v1840
    %v1859 = vpack.c.bf16 %v1843, %v1842
    %v1860 = vpack.c.bf16 %v1845, %v1844
    %v1861 = vpack.c.bf16 %v1847, %v1846
    %v1862 = vpack.c.bf16 %v1849, %v1848
    %s1863 = scalar_lea.vmem [#allocation2], 256
    %v1864 = vld [vmem:[%s1863] sm:$0xff]
    %v1865 = vld [vmem:[%s1863 + $0x8] sm:$0xff]
    %v1866 = vld [vmem:[%s1863 + $0x10] sm:$0xff]
    %v1867 = vld [vmem:[%s1863 + $0x18] sm:$0xff]
    %v1868 = vld [vmem:[%s1863 + $0x20] sm:$0xff]
    %v1869 = vld [vmem:[%s1863 + $0x28] sm:$0xff]
    %v1870 = vld [vmem:[%s1863 + $0x30] sm:$0xff]
    %v1871 = vld [vmem:[%s1863 + $0x38] sm:$0xff]
    %v1872 = vld [vmem:[%s1863 + $0x40] sm:$0xff]
    %v1873 = vld [vmem:[%s1863 + $0x48] sm:$0xff]
    %v1874 = vld [vmem:[%s1863 + $0x50] sm:$0xff]
    %v1875 = vld [vmem:[%s1863 + $0x58] sm:$0xff]
    %v1876 = vld [vmem:[%s1863 + $0x60] sm:$0x33]
    %v1877 = vld [vmem:[%s1863 + $0x68] sm:$0x33]
    %v1878 = vld [vmem:[%s1863 + $0x70] sm:$0x33]
    %v1879 = vld [vmem:[%s1863 + $0x78] sm:$0x33]
    %v1896 = vunpack.c.l.b16 %v1864
    %v1897 = vunpack.c.h.b16 %v1864
    %v1898 = vunpack.c.l.b16 %v1865
    %v1899 = vunpack.c.h.b16 %v1865
    %v1900 = vunpack.c.l.b16 %v1866
    %v1901 = vunpack.c.h.b16 %v1866
    %v1902 = vunpack.c.l.b16 %v1867
    %v1903 = vunpack.c.h.b16 %v1867
    %v1904 = vunpack.c.l.b16 %v1868
    %v1905 = vunpack.c.h.b16 %v1868
    %v1906 = vunpack.c.l.b16 %v1869
    %v1907 = vunpack.c.h.b16 %v1869
    %v1908 = vunpack.c.l.b16 %v1870
    %v1909 = vunpack.c.h.b16 %v1870
    %v1910 = vunpack.c.l.b16 %v1871
    %v1911 = vunpack.c.h.b16 %v1871
    %v1912 = vunpack.c.l.b16 %v1872
    %v1913 = vunpack.c.h.b16 %v1872
    %v1914 = vunpack.c.l.b16 %v1873
    %v1915 = vunpack.c.h.b16 %v1873
    %v1916 = vunpack.c.l.b16 %v1874
    %v1917 = vunpack.c.h.b16 %v1874
    %v1918 = vunpack.c.l.b16 %v1875
    %v1919 = vunpack.c.h.b16 %v1875
    %v1920 = vunpack.c.l.b16 %v1876
    %v1921 = vunpack.c.h.b16 %v1876
    %v1922 = vunpack.c.l.b16 %v1877
    %v1923 = vunpack.c.h.b16 %v1877
    %v1924 = vunpack.c.l.b16 %v1878
    %v1925 = vunpack.c.h.b16 %v1878
    %v1926 = vunpack.c.l.b16 %v1879
    %v1927 = vunpack.c.h.b16 %v1879
    %v1928 = vpack.c.b16 %v1904, %v1896
    %v1929 = vpack.c.b16 %v1905, %v1897
    %v1930 = vpack.c.b16 %v1906, %v1898
    %v1931 = vpack.c.b16 %v1907, %v1899
    %v1932 = vpack.c.b16 %v1908, %v1900
    %v1933 = vpack.c.b16 %v1909, %v1901
    %v1934 = vpack.c.b16 %v1910, %v1902
    %v1935 = vpack.c.b16 %v1911, %v1903
    %v1936 = vpack.c.b16 %v1920, %v1912
    %v1937 = vpack.c.b16 %v1921, %v1913
    %v1938 = vpack.c.b16 %v1922, %v1914
    %v1939 = vpack.c.b16 %v1923, %v1915
    %v1940 = vpack.c.b16 %v1924, %v1916
    %v1941 = vpack.c.b16 %v1925, %v1917
    %v1942 = vpack.c.b16 %v1926, %v1918
    %v1943 = vpack.c.b16 %v1927, %v1919
    %v1953 = vsel %vm319, %v1850, 0
    %v1956 = vsel %vm319, %v1851, 0
    %v1959 = vsel %vm319, %v1852, 0
    %v1962 = vsel %vm319, %v1853, 0
    %v1965 = vsel %vm319, %v1854, 0
    %v1968 = vsel %vm319, %v1855, 0
    %v1971 = vsel %vm319, %v1856, 0
    %v1974 = vsel %vm319, %v1857, 0
    %v1977 = vsel %vm319, %v1858, 0
    %v1980 = vsel %vm319, %v1859, 0
    %v1983 = vsel %vm319, %v1860, 0
    %v1986 = vsel %vm319, %v1861, 0
    %v1989 = vsel %vm319, %v1862, 0
    %v1992 = vsel %vm359, %v1936, 0
    %v1995 = vsel %vm359, %v1937, 0
    %v1998 = vsel %vm359, %v1938, 0
    %v2001 = vsel %vm359, %v1939, 0
    %v2004 = vsel %vm359, %v1940, 0
    %v2007 = vsel %vm359, %v1941, 0
    %v2010 = vsel %vm359, %v1942, 0
    %v2013 = vsel %vm359, %v1943, 0
    %2015 = vmatprep.subr.bf16.mxu0 %v1929
    %2016 = vmatpush1.bf16.msra.mxu0 %v1928
    %2017 = vmatprep.subr.bf16.mxu0 %v1995
    %2018 = vmatpush1.bf16.msra.mxu0 %v1992
    %2019 = vmatprep.subr.bf16.mxu0 0
    %2020 = vmatpush1.bf16.msra.mxu0 0
    %2021 = vmatprep.subr.bf16.mxu0 0
    %2022 = vmatpush1.bf16.msra.mxu0 0
    %2023 = vmatprep.subr.bf16.mxu0 0
    %2024 = vmatpush1.bf16.msra.mxu0 0
    %2025 = vmatprep.subr.bf16.mxu0 0
    %2026 = vmatpush1.bf16.msra.mxu0 0
    %2027 = vmatprep.subr.bf16.mxu0 0
    %2028 = vmatpush1.bf16.msra.mxu0 0
    %2029 = vmatprep.subr.bf16.mxu0 0
    %2030 = vmatpush1.bf16.msra.mxu0 0
    %2031 = vmatprep.subr.bf16.mxu0 0
    %2032 = vmatpush1.bf16.msra.mxu0 0
    %2033 = vmatprep.subr.bf16.mxu0 0
    %2034 = vmatpush1.bf16.msra.mxu0 0
    %2035 = vmatprep.subr.bf16.mxu0 0
    %2036 = vmatpush1.bf16.msra.mxu0 0
    %2037 = vmatprep.subr.bf16.mxu0 0
    %2038 = vmatpush1.bf16.msra.mxu0 0
    %2039 = vmatprep.subr.bf16.mxu0 0
    %2040 = vmatpush1.bf16.msra.mxu0 0
    %2041 = vmatprep.subr.bf16.mxu0 0
    %2042 = vmatpush1.bf16.msra.mxu0 0
    %2043 = vmatprep.subr.bf16.mxu0 0
    %2044 = vmatpush1.bf16.msra.mxu0 0
    %2045 = vmatprep.subr.bf16.mxu0 0
    %2046 = vmatpush1.bf16.msra.mxu0 0
    %2047 = vmatprep.mubr.bf16.mxu0 0
    %2048 = vmatmul.mubr.bf16.gmra.mrb[0].mxu0 %v1953
    %v2049 = vpop.f32.mrb[0].mxu0
    %v2050 = vadd.f32 0.0, %v2049
    %v2051 = vpop.f32.mrb[0].mxu0
    %v2052 = vadd.f32 0.0, %v2051
    %v2053 = vpop.f32.mrb[0].mxu0
    %v2054 = vadd.f32 0.0, %v2053
    %v2055 = vpop.f32.mrb[0].mxu0
    %v2056 = vadd.f32 0.0, %v2055
    %2057 = vmatprep.mubr.bf16.mxu0 0
    %2058 = vmatmul.mubr.bf16.gmra.mrb[0].mxu0 %v1956
    %v2059 = vpop.f32.mrb[0].mxu0
    %v2060 = vadd.f32 0.0, %v2059
    %v2061 = vpop.f32.mrb[0].mxu0
    %v2062 = vadd.f32 0.0, %v2061
    %v2063 = vpop.f32.mrb[0].mxu0
    %v2064 = vadd.f32 0.0, %v2063
    %v2065 = vpop.f32.mrb[0].mxu0
    %v2066 = vadd.f32 0.0, %v2065
    %2067 = vmatprep.mubr.bf16.mxu0 0
    %2068 = vmatmul.mubr.bf16.gmra.mrb[0].mxu0 %v1959
    %v2069 = vpop.f32.mrb[0].mxu0
    %v2070 = vadd.f32 0.0, %v2069
    %v2071 = vpop.f32.mrb[0].mxu0
    %v2072 = vadd.f32 0.0, %v2071
    %v2073 = vpop.f32.mrb[0].mxu0
    %v2074 = vadd.f32 0.0, %v2073
    %v2075 = vpop.f32.mrb[0].mxu0
    %v2076 = vadd.f32 0.0, %v2075
    %2077 = vmatprep.mubr.bf16.mxu0 0
    %2078 = vmatmul.mubr.bf16.gmra.mrb[0].mxu0 %v1962
    %v2079 = vpop.f32.mrb[0].mxu0
    %v2080 = vadd.f32 0.0, %v2079
    %v2081 = vpop.f32.mrb[0].mxu0
    %v2082 = vadd.f32 0.0, %v2081
    %v2083 = vpop.f32.mrb[0].mxu0
    %v2084 = vadd.f32 0.0, %v2083
    %v2085 = vpop.f32.mrb[0].mxu0
    %v2086 = vadd.f32 0.0, %v2085
    %2087 = vmatprep.mubr.bf16.mxu0 0
    %2088 = vmatmul.mubr.bf16.gmra.mrb[0].mxu0 %v1965
    %v2089 = vpop.f32.mrb[0].mxu0
    %v2090 = vadd.f32 0.0, %v2089
    %v2091 = vpop.f32.mrb[0].mxu0
    %v2092 = vadd.f32 0.0, %v2091
    %v2093 = vpop.f32.mrb[0].mxu0
    %v2094 = vadd.f32 0.0, %v2093
    %v2095 = vpop.f32.mrb[0].mxu0
    %v2096 = vadd.f32 0.0, %v2095
    %2097 = vmatprep.mubr.bf16.mxu0 0
    %2098 = vmatmul.mubr.bf16.gmra.mrb[0].mxu0 %v1968
    %v2099 = vpop.f32.mrb[0].mxu0
    %v2100 = vadd.f32 0.0, %v2099
    %v2101 = vpop.f32.mrb[0].mxu0
    %v2102 = vadd.f32 0.0, %v2101
    %v2103 = vpop.f32.mrb[0].mxu0
    %v2104 = vadd.f32 0.0, %v2103
    %v2105 = vpop.f32.mrb[0].mxu0
    %v2106 = vadd.f32 0.0, %v2105
    %2107 = vmatprep.mubr.bf16.mxu0 0
    %2108 = vmatmul.mubr.bf16.gmra.mrb[0].mxu0 %v1971
    %v2109 = vpop.f32.mrb[0].mxu0
    %v2110 = vadd.f32 0.0, %v2109
    %v2111 = vpop.f32.mrb[0].mxu0
    %v2112 = vadd.f32 0.0, %v2111
    %v2113 = vpop.f32.mrb[0].mxu0
    %v2114 = vadd.f32 0.0, %v2113
    %v2115 = vpop.f32.mrb[0].mxu0
    %v2116 = vadd.f32 0.0, %v2115
    %2117 = vmatprep.mubr.bf16.mxu0 0
    %2118 = vmatmul.mubr.bf16.gmra.mrb[0].mxu0 %v1974
    %v2119 = vpop.f32.mrb[0].mxu0
    %v2120 = vadd.f32 0.0, %v2119
    %v2121 = vpop.f32.mrb[0].mxu0
    %v2122 = vadd.f32 0.0, %v2121
    %v2123 = vpop.f32.mrb[0].mxu0
    %v2124 = vadd.f32 0.0, %v2123
    %v2125 = vpop.f32.mrb[0].mxu0
    %v2126 = vadd.f32 0.0, %v2125
    %2127 = vmatprep.mubr.bf16.mxu0 0
    %2128 = vmatmul.mubr.bf16.gmra.mrb[0].mxu0 %v1977
    %v2129 = vpop.f32.mrb[0].mxu0
    %v2130 = vadd.f32 0.0, %v2129
    %v2131 = vpop.f32.mrb[0].mxu0
    %v2132 = vadd.f32 0.0, %v2131
    %v2133 = vpop.f32.mrb[0].mxu0
    %v2134 = vadd.f32 0.0, %v2133
    %v2135 = vpop.f32.mrb[0].mxu0
    %v2136 = vadd.f32 0.0, %v2135
    %2137 = vmatprep.mubr.bf16.mxu0 0
    %2138 = vmatmul.mubr.bf16.gmra.mrb[0].mxu0 %v1980
    %v2139 = vpop.f32.mrb[0].mxu0
    %v2140 = vadd.f32 0.0, %v2139
    %v2141 = vpop.f32.mrb[0].mxu0
    %v2142 = vadd.f32 0.0, %v2141
    %v2143 = vpop.f32.mrb[0].mxu0
    %v2144 = vadd.f32 0.0, %v2143
    %v2145 = vpop.f32.mrb[0].mxu0
    %v2146 = vadd.f32 0.0, %v2145
    %2147 = vmatprep.mubr.bf16.mxu0 0
    %2148 = vmatmul.mubr.bf16.gmra.mrb[0].mxu0 %v1983
    %v2149 = vpop.f32.mrb[0].mxu0
    %v2150 = vadd.f32 0.0, %v2149
    %v2151 = vpop.f32.mrb[0].mxu0
    %v2152 = vadd.f32 0.0, %v2151
    %v2153 = vpop.f32.mrb[0].mxu0
    %v2154 = vadd.f32 0.0, %v2153
    %v2155 = vpop.f32.mrb[0].mxu0
    %v2156 = vadd.f32 0.0, %v2155
    %2157 = vmatprep.mubr.bf16.mxu0 0
    %2158 = vmatmul.mubr.bf16.gmra.mrb[0].mxu0 %v1986
    %v2159 = vpop.f32.mrb[0].mxu0
    %v2160 = vadd.f32 0.0, %v2159
    %v2161 = vpop.f32.mrb[0].mxu0
    %v2162 = vadd.f32 0.0, %v2161
    %v2163 = vpop.f32.mrb[0].mxu0
    %v2164 = vadd.f32 0.0, %v2163
    %v2165 = vpop.f32.mrb[0].mxu0
    %v2166 = vadd.f32 0.0, %v2165
    %2167 = vmatprep.mubr.bf16.mxu0 0
    %2168 = vmatmul.mubr.bf16.gmra.mrb[0].mxu0 %v1989
    %v2169 = vpop.f32.mrb[0].mxu0
    %v2170 = vadd.f32 0.0, %v2169
    %v2171 = vpop.f32.mrb[0].mxu0
    %v2172 = vadd.f32 0.0, %v2171
    %v2173 = vpop.f32.mrb[0].mxu0
    %v2174 = vadd.f32 0.0, %v2173
    %v2175 = vpop.f32.mrb[0].mxu0
    %v2176 = vadd.f32 0.0, %v2175
    %2177 = vdwg.mxu0
    %2178 = vmatprep.subr.bf16.mxu0 %v1931
    %2179 = vmatpush1.bf16.msra.mxu0 %v1930
    %2180 = vmatprep.subr.bf16.mxu0 %v2001
    %2181 = vmatpush1.bf16.msra.mxu0 %v1998
    %2182 = vmatprep.subr.bf16.mxu0 0
    %2183 = vmatpush1.bf16.msra.mxu0 0
    %2184 = vmatprep.subr.bf16.mxu0 0
    %2185 = vmatpush1.bf16.msra.mxu0 0
    %2186 = vmatprep.subr.bf16.mxu0 0
    %2187 = vmatpush1.bf16.msra.mxu0 0
    %2188 = vmatprep.subr.bf16.mxu0 0
    %2189 = vmatpush1.bf16.msra.mxu0 0
    %2190 = vmatprep.subr.bf16.mxu0 0
    %2191 = vmatpush1.bf16.msra.mxu0 0
    %2192 = vmatprep.subr.bf16.mxu0 0
    %2193 = vmatpush1.bf16.msra.mxu0 0
    %2194 = vmatprep.subr.bf16.mxu0 0
    %2195 = vmatpush1.bf16.msra.mxu0 0
    %2196 = vmatprep.subr.bf16.mxu0 0
    %2197 = vmatpush1.bf16.msra.mxu0 0
    %2198 = vmatprep.subr.bf16.mxu0 0
    %2199 = vmatpush1.bf16.msra.mxu0 0
    %2200 = vmatprep.subr.bf16.mxu0 0
    %2201 = vmatpush1.bf16.msra.mxu0 0
    %2202 = vmatprep.subr.bf16.mxu0 0
    %2203 = vmatpush1.bf16.msra.mxu0 0
    %2204 = vmatprep.subr.bf16.mxu0 0
    %2205 = vmatpush1.bf16.msra.mxu0 0
    %2206 = vmatprep.subr.bf16.mxu0 0
    %2207 = vmatpush1.bf16.msra.mxu0 0
    %2208 = vmatprep.subr.bf16.mxu0 0
    %2209 = vmatpush1.bf16.msra.mxu0 0
    %2210 = vmatprep.mubr.bf16.mxu0 0
    %2211 = vmatmul.mubr.bf16.gmra.mrb[0].mxu0 %v1953
    %v2212 = vpop.f32.mrb[0].mxu0
    %v2213 = vadd.f32 0.0, %v2212
    %v2214 = vpop.f32.mrb[0].mxu0
    %v2215 = vadd.f32 0.0, %v2214
    %v2216 = vpop.f32.mrb[0].mxu0
    %v2217 = vadd.f32 0.0, %v2216
    %v2218 = vpop.f32.mrb[0].mxu0
    %v2219 = vadd.f32 0.0, %v2218
    %2220 = vmatprep.mubr.bf16.mxu0 0
    %2221 = vmatmul.mubr.bf16.gmra.mrb[0].mxu0 %v1956
    %v2222 = vpop.f32.mrb[0].mxu0
    %v2223 = vadd.f32 0.0, %v2222
    %v2224 = vpop.f32.mrb[0].mxu0
    %v2225 = vadd.f32 0.0, %v2224
    %v2226 = vpop.f32.mrb[0].mxu0
    %v2227 = vadd.f32 0.0, %v2226
    %v2228 = vpop.f32.mrb[0].mxu0
    %v2229 = vadd.f32 0.0, %v2228
    %2230 = vmatprep.mubr.bf16.mxu0 0
    %2231 = vmatmul.mubr.bf16.gmra.mrb[0].mxu0 %v1959
    %v2232 = vpop.f32.mrb[0].mxu0
    %v2233 = vadd.f32 0.0, %v2232
    %v2234 = vpop.f32.mrb[0].mxu0
    %v2235 = vadd.f32 0.0, %v2234
    %v2236 = vpop.f32.mrb[0].mxu0
    %v2237 = vadd.f32 0.0, %v2236
    %v2238 = vpop.f32.mrb[0].mxu0
    %v2239 = vadd.f32 0.0, %v2238
    %2240 = vmatprep.mubr.bf16.mxu0 0
    %2241 = vmatmul.mubr.bf16.gmra.mrb[0].mxu0 %v1962
    %v2242 = vpop.f32.mrb[0].mxu0
    %v2243 = vadd.f32 0.0, %v2242
    %v2244 = vpop.f32.mrb[0].mxu0
    %v2245 = vadd.f32 0.0, %v2244
    %v2246 = vpop.f32.mrb[0].mxu0
    %v2247 = vadd.f32 0.0, %v2246
    %v2248 = vpop.f32.mrb[0].mxu0
    %v2249 = vadd.f32 0.0, %v2248
    %2250 = vmatprep.mubr.bf16.mxu0 0
    %2251 = vmatmul.mubr.bf16.gmra.mrb[0].mxu0 %v1965
    %v2252 = vpop.f32.mrb[0].mxu0
    %v2253 = vadd.f32 0.0, %v2252
    %v2254 = vpop.f32.mrb[0].mxu0
    %v2255 = vadd.f32 0.0, %v2254
    %v2256 = vpop.f32.mrb[0].mxu0
    %v2257 = vadd.f32 0.0, %v2256
    %v2258 = vpop.f32.mrb[0].mxu0
    %v2259 = vadd.f32 0.0, %v2258
    %2260 = vmatprep.mubr.bf16.mxu0 0
    %2261 = vmatmul.mubr.bf16.gmra.mrb[0].mxu0 %v1968
    %v2262 = vpop.f32.mrb[0].mxu0
    %v2263 = vadd.f32 0.0, %v2262
    %v2264 = vpop.f32.mrb[0].mxu0
    %v2265 = vadd.f32 0.0, %v2264
    %v2266 = vpop.f32.mrb[0].mxu0
    %v2267 = vadd.f32 0.0, %v2266
    %v2268 = vpop.f32.mrb[0].mxu0
    %v2269 = vadd.f32 0.0, %v2268
    %2270 = vmatprep.mubr.bf16.mxu0 0
    %2271 = vmatmul.mubr.bf16.gmra.mrb[0].mxu0 %v1971
    %v2272 = vpop.f32.mrb[0].mxu0
    %v2273 = vadd.f32 0.0, %v2272
    %v2274 = vpop.f32.mrb[0].mxu0
    %v2275 = vadd.f32 0.0, %v2274
    %v2276 = vpop.f32.mrb[0].mxu0
    %v2277 = vadd.f32 0.0, %v2276
    %v2278 = vpop.f32.mrb[0].mxu0
    %v2279 = vadd.f32 0.0, %v2278
    %2280 = vmatprep.mubr.bf16.mxu0 0
    %2281 = vmatmul.mubr.bf16.gmra.mrb[0].mxu0 %v1974
    %v2282 = vpop.f32.mrb[0].mxu0
    %v2283 = vadd.f32 0.0, %v2282
    %v2284 = vpop.f32.mrb[0].mxu0
    %v2285 = vadd.f32 0.0, %v2284
    %v2286 = vpop.f32.mrb[0].mxu0
    %v2287 = vadd.f32 0.0, %v2286
    %v2288 = vpop.f32.mrb[0].mxu0
    %v2289 = vadd.f32 0.0, %v2288
    %2290 = vmatprep.mubr.bf16.mxu0 0
    %2291 = vmatmul.mubr.bf16.gmra.mrb[0].mxu0 %v1977
    %v2292 = vpop.f32.mrb[0].mxu0
    %v2293 = vadd.f32 0.0, %v2292
    %v2294 = vpop.f32.mrb[0].mxu0
    %v2295 = vadd.f32 0.0, %v2294
    %v2296 = vpop.f32.mrb[0].mxu0
    %v2297 = vadd.f32 0.0, %v2296
    %v2298 = vpop.f32.mrb[0].mxu0
    %v2299 = vadd.f32 0.0, %v2298
    %2300 = vmatprep.mubr.bf16.mxu0 0
    %2301 = vmatmul.mubr.bf16.gmra.mrb[0].mxu0 %v1980
    %v2302 = vpop.f32.mrb[0].mxu0
    %v2303 = vadd.f32 0.0, %v2302
    %v2304 = vpop.f32.mrb[0].mxu0
    %v2305 = vadd.f32 0.0, %v2304
    %v2306 = vpop.f32.mrb[0].mxu0
    %v2307 = vadd.f32 0.0, %v2306
    %v2308 = vpop.f32.mrb[0].mxu0
    %v2309 = vadd.f32 0.0, %v2308
    %2310 = vmatprep.mubr.bf16.mxu0 0
    %2311 = vmatmul.mubr.bf16.gmra.mrb[0].mxu0 %v1983
    %v2312 = vpop.f32.mrb[0].mxu0
    %v2313 = vadd.f32 0.0, %v2312
    %v2314 = vpop.f32.mrb[0].mxu0
    %v2315 = vadd.f32 0.0, %v2314
    %v2316 = vpop.f32.mrb[0].mxu0
    %v2317 = vadd.f32 0.0, %v2316
    %v2318 = vpop.f32.mrb[0].mxu0
    %v2319 = vadd.f32 0.0, %v2318
    %2320 = vmatprep.mubr.bf16.mxu0 0
    %2321 = vmatmul.mubr.bf16.gmra.mrb[0].mxu0 %v1986
    %v2322 = vpop.f32.mrb[0].mxu0
    %v2323 = vadd.f32 0.0, %v2322
    %v2324 = vpop.f32.mrb[0].mxu0
    %v2325 = vadd.f32 0.0, %v2324
    %v2326 = vpop.f32.mrb[0].mxu0
    %v2327 = vadd.f32 0.0, %v2326
    %v2328 = vpop.f32.mrb[0].mxu0
    %v2329 = vadd.f32 0.0, %v2328
    %2330 = vmatprep.mubr.bf16.mxu0 0
    %2331 = vmatmul.mubr.bf16.gmra.mrb[0].mxu0 %v1989
    %v2332 = vpop.f32.mrb[0].mxu0
    %v2333 = vadd.f32 0.0, %v2332
    %v2334 = vpop.f32.mrb[0].mxu0
    %v2335 = vadd.f32 0.0, %v2334
    %v2336 = vpop.f32.mrb[0].mxu0
    %v2337 = vadd.f32 0.0, %v2336
    %v2338 = vpop.f32.mrb[0].mxu0
    %v2339 = vadd.f32 0.0, %v2338
    %2340 = vdwg.mxu0
    %2341 = vmatprep.subr.bf16.mxu0 %v1933
    %2342 = vmatpush1.bf16.msra.mxu0 %v1932
    %2343 = vmatprep.subr.bf16.mxu0 %v2007
    %2344 = vmatpush1.bf16.msra.mxu0 %v2004
    %2345 = vmatprep.subr.bf16.mxu0 0
    %2346 = vmatpush1.bf16.msra.mxu0 0
    %2347 = vmatprep.subr.bf16.mxu0 0
    %2348 = vmatpush1.bf16.msra.mxu0 0
    %2349 = vmatprep.subr.bf16.mxu0 0
    %2350 = vmatpush1.bf16.msra.mxu0 0
    %2351 = vmatprep.subr.bf16.mxu0 0
    %2352 = vmatpush1.bf16.msra.mxu0 0
    %2353 = vmatprep.subr.bf16.mxu0 0
    %2354 = vmatpush1.bf16.msra.mxu0 0
    %2355 = vmatprep.subr.bf16.mxu0 0
    %2356 = vmatpush1.bf16.msra.mxu0 0
    %2357 = vmatprep.subr.bf16.mxu0 0
    %2358 = vmatpush1.bf16.msra.mxu0 0
    %2359 = vmatprep.subr.bf16.mxu0 0
    %2360 = vmatpush1.bf16.msra.mxu0 0
    %2361 = vmatprep.subr.bf16.mxu0 0
    %2362 = vmatpush1.bf16.msra.mxu0 0
    %2363 = vmatprep.subr.bf16.mxu0 0
    %2364 = vmatpush1.bf16.msra.mxu0 0
    %2365 = vmatprep.subr.bf16.mxu0 0
    %2366 = vmatpush1.bf16.msra.mxu0 0
    %2367 = vmatprep.subr.bf16.mxu0 0
    %2368 = vmatpush1.bf16.msra.mxu0 0
    %2369 = vmatprep.subr.bf16.mxu0 0
    %2370 = vmatpush1.bf16.msra.mxu0 0
    %2371 = vmatprep.subr.bf16.mxu0 0
    %2372 = vmatpush1.bf16.msra.mxu0 0
    %2373 = vmatprep.mubr.bf16.mxu0 0
    %2374 = vmatmul.mubr.bf16.gmra.mrb[0].mxu0 %v1953
    %v2375 = vpop.f32.mrb[0].mxu0
    %v2376 = vadd.f32 0.0, %v2375
    %v2377 = vpop.f32.mrb[0].mxu0
    %v2378 = vadd.f32 0.0, %v2377
    %v2379 = vpop.f32.mrb[0].mxu0
    %v2380 = vadd.f32 0.0, %v2379
    %v2381 = vpop.f32.mrb[0].mxu0
    %v2382 = vadd.f32 0.0, %v2381
    %2383 = vmatprep.mubr.bf16.mxu0 0
    %2384 = vmatmul.mubr.bf16.gmra.mrb[0].mxu0 %v1956
    %v2385 = vpop.f32.mrb[0].mxu0
    %v2386 = vadd.f32 0.0, %v2385
    %v2387 = vpop.f32.mrb[0].mxu0
    %v2388 = vadd.f32 0.0, %v2387
    %v2389 = vpop.f32.mrb[0].mxu0
    %v2390 = vadd.f32 0.0, %v2389
    %v2391 = vpop.f32.mrb[0].mxu0
    %v2392 = vadd.f32 0.0, %v2391
    %2393 = vmatprep.mubr.bf16.mxu0 0
    %2394 = vmatmul.mubr.bf16.gmra.mrb[0].mxu0 %v1959
    %v2395 = vpop.f32.mrb[0].mxu0
    %v2396 = vadd.f32 0.0, %v2395
    %v2397 = vpop.f32.mrb[0].mxu0
    %v2398 = vadd.f32 0.0, %v2397
    %v2399 = vpop.f32.mrb[0].mxu0
    %v2400 = vadd.f32 0.0, %v2399
    %v2401 = vpop.f32.mrb[0].mxu0
    %v2402 = vadd.f32 0.0, %v2401
    %2403 = vmatprep.mubr.bf16.mxu0 0
    %2404 = vmatmul.mubr.bf16.gmra.mrb[0].mxu0 %v1962
    %v2405 = vpop.f32.mrb[0].mxu0
    %v2406 = vadd.f32 0.0, %v2405
    %v2407 = vpop.f32.mrb[0].mxu0
    %v2408 = vadd.f32 0.0, %v2407
    %v2409 = vpop.f32.mrb[0].mxu0
    %v2410 = vadd.f32 0.0, %v2409
    %v2411 = vpop.f32.mrb[0].mxu0
    %v2412 = vadd.f32 0.0, %v2411
    %2413 = vmatprep.mubr.bf16.mxu0 0
    %2414 = vmatmul.mubr.bf16.gmra.mrb[0].mxu0 %v1965
    %v2415 = vpop.f32.mrb[0].mxu0
    %v2416 = vadd.f32 0.0, %v2415
    %v2417 = vpop.f32.mrb[0].mxu0
    %v2418 = vadd.f32 0.0, %v2417
    %v2419 = vpop.f32.mrb[0].mxu0
    %v2420 = vadd.f32 0.0, %v2419
    %v2421 = vpop.f32.mrb[0].mxu0
    %v2422 = vadd.f32 0.0, %v2421
    %2423 = vmatprep.mubr.bf16.mxu0 0
    %2424 = vmatmul.mubr.bf16.gmra.mrb[0].mxu0 %v1968
    %v2425 = vpop.f32.mrb[0].mxu0
    %v2426 = vadd.f32 0.0, %v2425
    %v2427 = vpop.f32.mrb[0].mxu0
    %v2428 = vadd.f32 0.0, %v2427
    %v2429 = vpop.f32.mrb[0].mxu0
    %v2430 = vadd.f32 0.0, %v2429
    %v2431 = vpop.f32.mrb[0].mxu0
    %v2432 = vadd.f32 0.0, %v2431
    %2433 = vmatprep.mubr.bf16.mxu0 0
    %2434 = vmatmul.mubr.bf16.gmra.mrb[0].mxu0 %v1971
    %v2435 = vpop.f32.mrb[0].mxu0
    %v2436 = vadd.f32 0.0, %v2435
    %v2437 = vpop.f32.mrb[0].mxu0
    %v2438 = vadd.f32 0.0, %v2437
    %v2439 = vpop.f32.mrb[0].mxu0
    %v2440 = vadd.f32 0.0, %v2439
    %v2441 = vpop.f32.mrb[0].mxu0
    %v2442 = vadd.f32 0.0, %v2441
    %2443 = vmatprep.mubr.bf16.mxu0 0
    %2444 = vmatmul.mubr.bf16.gmra.mrb[0].mxu0 %v1974
    %v2445 = vpop.f32.mrb[0].mxu0
    %v2446 = vadd.f32 0.0, %v2445
    %v2447 = vpop.f32.mrb[0].mxu0
    %v2448 = vadd.f32 0.0, %v2447
    %v2449 = vpop.f32.mrb[0].mxu0
    %v2450 = vadd.f32 0.0, %v2449
    %v2451 = vpop.f32.mrb[0].mxu0
    %v2452 = vadd.f32 0.0, %v2451
    %2453 = vmatprep.mubr.bf16.mxu0 0
    %2454 = vmatmul.mubr.bf16.gmra.mrb[0].mxu0 %v1977
    %v2455 = vpop.f32.mrb[0].mxu0
    %v2456 = vadd.f32 0.0, %v2455
    %v2457 = vpop.f32.mrb[0].mxu0
    %v2458 = vadd.f32 0.0, %v2457
    %v2459 = vpop.f32.mrb[0].mxu0
    %v2460 = vadd.f32 0.0, %v2459
    %v2461 = vpop.f32.mrb[0].mxu0
    %v2462 = vadd.f32 0.0, %v2461
    %2463 = vmatprep.mubr.bf16.mxu0 0
    %2464 = vmatmul.mubr.bf16.gmra.mrb[0].mxu0 %v1980
    %v2465 = vpop.f32.mrb[0].mxu0
    %v2466 = vadd.f32 0.0, %v2465
    %v2467 = vpop.f32.mrb[0].mxu0
    %v2468 = vadd.f32 0.0, %v2467
    %v2469 = vpop.f32.mrb[0].mxu0
    %v2470 = vadd.f32 0.0, %v2469
    %v2471 = vpop.f32.mrb[0].mxu0
    %v2472 = vadd.f32 0.0, %v2471
    %2473 = vmatprep.mubr.bf16.mxu0 0
    %2474 = vmatmul.mubr.bf16.gmra.mrb[0].mxu0 %v1983
    %v2475 = vpop.f32.mrb[0].mxu0
    %v2476 = vadd.f32 0.0, %v2475
    %v2477 = vpop.f32.mrb[0].mxu0
    %v2478 = vadd.f32 0.0, %v2477
    %v2479 = vpop.f32.mrb[0].mxu0
    %v2480 = vadd.f32 0.0, %v2479
    %v2481 = vpop.f32.mrb[0].mxu0
    %v2482 = vadd.f32 0.0, %v2481
    %2483 = vmatprep.mubr.bf16.mxu0 0
    %2484 = vmatmul.mubr.bf16.gmra.mrb[0].mxu0 %v1986
    %v2485 = vpop.f32.mrb[0].mxu0
    %v2486 = vadd.f32 0.0, %v2485
    %v2487 = vpop.f32.mrb[0].mxu0
    %v2488 = vadd.f32 0.0, %v2487
    %v2489 = vpop.f32.mrb[0].mxu0
    %v2490 = vadd.f32 0.0, %v2489
    %v2491 = vpop.f32.mrb[0].mxu0
    %v2492 = vadd.f32 0.0, %v2491
    %2493 = vmatprep.mubr.bf16.mxu0 0
    %2494 = vmatmul.mubr.bf16.gmra.mrb[0].mxu0 %v1989
    %v2495 = vpop.f32.mrb[0].mxu0
    %v2496 = vadd.f32 0.0, %v2495
    %v2497 = vpop.f32.mrb[0].mxu0
    %v2498 = vadd.f32 0.0, %v2497
    %v2499 = vpop.f32.mrb[0].mxu0
    %v2500 = vadd.f32 0.0, %v2499
    %v2501 = vpop.f32.mrb[0].mxu0
    %v2502 = vadd.f32 0.0, %v2501
    %2503 = vdwg.mxu0
    %2504 = vmatprep.subr.bf16.mxu0 %v1935
    %2505 = vmatpush1.bf16.msra.mxu0 %v1934
    %2506 = vmatprep.subr.bf16.mxu0 %v2013
    %2507 = vmatpush1.bf16.msra.mxu0 %v2010
    %2508 = vmatprep.subr.bf16.mxu0 0
    %2509 = vmatpush1.bf16.msra.mxu0 0
    %2510 = vmatprep.subr.bf16.mxu0 0
    %2511 = vmatpush1.bf16.msra.mxu0 0
    %2512 = vmatprep.subr.bf16.mxu0 0
    %2513 = vmatpush1.bf16.msra.mxu0 0
    %2514 = vmatprep.subr.bf16.mxu0 0
    %2515 = vmatpush1.bf16.msra.mxu0 0
    %2516 = vmatprep.subr.bf16.mxu0 0
    %2517 = vmatpush1.bf16.msra.mxu0 0
    %2518 = vmatprep.subr.bf16.mxu0 0
    %2519 = vmatpush1.bf16.msra.mxu0 0
    %2520 = vmatprep.subr.bf16.mxu0 0
    %2521 = vmatpush1.bf16.msra.mxu0 0
    %2522 = vmatprep.subr.bf16.mxu0 0
    %2523 = vmatpush1.bf16.msra.mxu0 0
    %2524 = vmatprep.subr.bf16.mxu0 0
    %2525 = vmatpush1.bf16.msra.mxu0 0
    %2526 = vmatprep.subr.bf16.mxu0 0
    %2527 = vmatpush1.bf16.msra.mxu0 0
    %2528 = vmatprep.subr.bf16.mxu0 0
    %2529 = vmatpush1.bf16.msra.mxu0 0
    %2530 = vmatprep.subr.bf16.mxu0 0
    %2531 = vmatpush1.bf16.msra.mxu0 0
    %2532 = vmatprep.subr.bf16.mxu0 0
    %2533 = vmatpush1.bf16.msra.mxu0 0
    %2534 = vmatprep.subr.bf16.mxu0 0
    %2535 = vmatpush1.bf16.msra.mxu0 0
    %2536 = vmatprep.mubr.bf16.mxu0 0
    %2537 = vmatmul.mubr.bf16.gmra.mrb[0].mxu0 %v1953
    %v2538 = vpop.f32.mrb[0].mxu0
    %v2539 = vadd.f32 0.0, %v2538
    %v2540 = vpop.f32.mrb[0].mxu0
    %v2541 = vadd.f32 0.0, %v2540
    %v2542 = vpop.f32.mrb[0].mxu0
    %v2543 = vadd.f32 0.0, %v2542
    %v2544 = vpop.f32.mrb[0].mxu0
    %v2545 = vadd.f32 0.0, %v2544
    %2546 = vmatprep.mubr.bf16.mxu0 0
    %2547 = vmatmul.mubr.bf16.gmra.mrb[0].mxu0 %v1956
    %v2548 = vpop.f32.mrb[0].mxu0
    %v2549 = vadd.f32 0.0, %v2548
    %v2550 = vpop.f32.mrb[0].mxu0
    %v2551 = vadd.f32 0.0, %v2550
    %v2552 = vpop.f32.mrb[0].mxu0
    %v2553 = vadd.f32 0.0, %v2552
    %v2554 = vpop.f32.mrb[0].mxu0
    %v2555 = vadd.f32 0.0, %v2554
    %2556 = vmatprep.mubr.bf16.mxu0 0
    %2557 = vmatmul.mubr.bf16.gmra.mrb[0].mxu0 %v1959
    %v2558 = vpop.f32.mrb[0].mxu0
    %v2559 = vadd.f32 0.0, %v2558
    %v2560 = vpop.f32.mrb[0].mxu0
    %v2561 = vadd.f32 0.0, %v2560
    %v2562 = vpop.f32.mrb[0].mxu0
    %v2563 = vadd.f32 0.0, %v2562
    %v2564 = vpop.f32.mrb[0].mxu0
    %v2565 = vadd.f32 0.0, %v2564
    %2566 = vmatprep.mubr.bf16.mxu0 0
    %2567 = vmatmul.mubr.bf16.gmra.mrb[0].mxu0 %v1962
    %v2568 = vpop.f32.mrb[0].mxu0
    %v2569 = vadd.f32 0.0, %v2568
    %v2570 = vpop.f32.mrb[0].mxu0
    %v2571 = vadd.f32 0.0, %v2570
    %v2572 = vpop.f32.mrb[0].mxu0
    %v2573 = vadd.f32 0.0, %v2572
    %v2574 = vpop.f32.mrb[0].mxu0
    %v2575 = vadd.f32 0.0, %v2574
    %2576 = vmatprep.mubr.bf16.mxu0 0
    %2577 = vmatmul.mubr.bf16.gmra.mrb[0].mxu0 %v1965
    %v2578 = vpop.f32.mrb[0].mxu0
    %v2579 = vadd.f32 0.0, %v2578
    %v2580 = vpop.f32.mrb[0].mxu0
    %v2581 = vadd.f32 0.0, %v2580
    %v2582 = vpop.f32.mrb[0].mxu0
    %v2583 = vadd.f32 0.0, %v2582
    %v2584 = vpop.f32.mrb[0].mxu0
    %v2585 = vadd.f32 0.0, %v2584
    %2586 = vmatprep.mubr.bf16.mxu0 0
    %2587 = vmatmul.mubr.bf16.gmra.mrb[0].mxu0 %v1968
    %v2588 = vpop.f32.mrb[0].mxu0
    %v2589 = vadd.f32 0.0, %v2588
    %v2590 = vpop.f32.mrb[0].mxu0
    %v2591 = vadd.f32 0.0, %v2590
    %v2592 = vpop.f32.mrb[0].mxu0
    %v2593 = vadd.f32 0.0, %v2592
    %v2594 = vpop.f32.mrb[0].mxu0
    %v2595 = vadd.f32 0.0, %v2594
    %2596 = vmatprep.mubr.bf16.mxu0 0
    %2597 = vmatmul.mubr.bf16.gmra.mrb[0].mxu0 %v1971
    %v2598 = vpop.f32.mrb[0].mxu0
    %v2599 = vadd.f32 0.0, %v2598
    %v2600 = vpop.f32.mrb[0].mxu0
    %v2601 = vadd.f32 0.0, %v2600
    %v2602 = vpop.f32.mrb[0].mxu0
    %v2603 = vadd.f32 0.0, %v2602
    %v2604 = vpop.f32.mrb[0].mxu0
    %v2605 = vadd.f32 0.0, %v2604
    %2606 = vmatprep.mubr.bf16.mxu0 0
    %2607 = vmatmul.mubr.bf16.gmra.mrb[0].mxu0 %v1974
    %v2608 = vpop.f32.mrb[0].mxu0
    %v2609 = vadd.f32 0.0, %v2608
    %v2610 = vpop.f32.mrb[0].mxu0
    %v2611 = vadd.f32 0.0, %v2610
    %v2612 = vpop.f32.mrb[0].mxu0
    %v2613 = vadd.f32 0.0, %v2612
    %v2614 = vpop.f32.mrb[0].mxu0
    %v2615 = vadd.f32 0.0, %v2614
    %2616 = vmatprep.mubr.bf16.mxu0 0
    %2617 = vmatmul.mubr.bf16.gmra.mrb[0].mxu0 %v1977
    %v2618 = vpop.f32.mrb[0].mxu0
    %v2619 = vadd.f32 0.0, %v2618
    %v2620 = vpop.f32.mrb[0].mxu0
    %v2621 = vadd.f32 0.0, %v2620
    %v2622 = vpop.f32.mrb[0].mxu0
    %v2623 = vadd.f32 0.0, %v2622
    %v2624 = vpop.f32.mrb[0].mxu0
    %v2625 = vadd.f32 0.0, %v2624
    %2626 = vmatprep.mubr.bf16.mxu0 0
    %2627 = vmatmul.mubr.bf16.gmra.mrb[0].mxu0 %v1980
    %v2628 = vpop.f32.mrb[0].mxu0
    %v2629 = vadd.f32 0.0, %v2628
    %v2630 = vpop.f32.mrb[0].mxu0
    %v2631 = vadd.f32 0.0, %v2630
    %v2632 = vpop.f32.mrb[0].mxu0
    %v2633 = vadd.f32 0.0, %v2632
    %v2634 = vpop.f32.mrb[0].mxu0
    %v2635 = vadd.f32 0.0, %v2634
    %2636 = vmatprep.mubr.bf16.mxu0 0
    %2637 = vmatmul.mubr.bf16.gmra.mrb[0].mxu0 %v1983
    %v2638 = vpop.f32.mrb[0].mxu0
    %v2639 = vadd.f32 0.0, %v2638
    %v2640 = vpop.f32.mrb[0].mxu0
    %v2641 = vadd.f32 0.0, %v2640
    %v2642 = vpop.f32.mrb[0].mxu0
    %v2643 = vadd.f32 0.0, %v2642
    %v2644 = vpop.f32.mrb[0].mxu0
    %v2645 = vadd.f32 0.0, %v2644
    %2646 = vmatprep.mubr.bf16.mxu0 0
    %2647 = vmatmul.mubr.bf16.gmra.mrb[0].mxu0 %v1986
    %v2648 = vpop.f32.mrb[0].mxu0
    %v2649 = vadd.f32 0.0, %v2648
    %v2650 = vpop.f32.mrb[0].mxu0
    %v2651 = vadd.f32 0.0, %v2650
    %v2652 = vpop.f32.mrb[0].mxu0
    %v2653 = vadd.f32 0.0, %v2652
    %v2654 = vpop.f32.mrb[0].mxu0
    %v2655 = vadd.f32 0.0, %v2654
    %2656 = vmatprep.mubr.bf16.mxu0 0
    %2657 = vmatmul.mubr.bf16.gmra.mrb[0].mxu0 %v1989
    %v2658 = vpop.f32.mrb[0].mxu0
    %v2659 = vadd.f32 0.0, %v2658
    %v2660 = vpop.f32.mrb[0].mxu0
    %v2661 = vadd.f32 0.0, %v2660
    %v2662 = vpop.f32.mrb[0].mxu0
    %v2663 = vadd.f32 0.0, %v2662
    %v2664 = vpop.f32.mrb[0].mxu0
    %v2665 = vadd.f32 0.0, %v2664
    %2666 = vdwg.mxu0
    %v2667 = vadd.f32 %v1206, %v2050
    %v2668 = vadd.f32 %v1208, %v2052
    %v2669 = vadd.f32 %v1369, %v2213
    %v2670 = vadd.f32 %v1371, %v2215
    %v2671 = vadd.f32 %v1532, %v2376
    %v2672 = vadd.f32 %v1534, %v2378
    %v2673 = vadd.f32 %v1695, %v2539
    %v2674 = vadd.f32 %v1697, %v2541
    %v2675 = vadd.f32 %v1210, %v2054
    %v2676 = vadd.f32 %v1212, %v2056
    %v2677 = vadd.f32 %v1373, %v2217
    %v2678 = vadd.f32 %v1375, %v2219
    %v2679 = vadd.f32 %v1536, %v2380
    %v2680 = vadd.f32 %v1538, %v2382
    %v2681 = vadd.f32 %v1699, %v2543
    %v2682 = vadd.f32 %v1701, %v2545
    %v2683 = vadd.f32 %v1216, %v2060
    %v2684 = vadd.f32 %v1218, %v2062
    %v2685 = vadd.f32 %v1379, %v2223
    %v2686 = vadd.f32 %v1381, %v2225
    %v2687 = vadd.f32 %v1542, %v2386
    %v2688 = vadd.f32 %v1544, %v2388
    %v2689 = vadd.f32 %v1705, %v2549
    %v2690 = vadd.f32 %v1707, %v2551
    %v2691 = vadd.f32 %v1220, %v2064
    %v2692 = vadd.f32 %v1222, %v2066
    %v2693 = vadd.f32 %v1383, %v2227
    %v2694 = vadd.f32 %v1385, %v2229
    %v2695 = vadd.f32 %v1546, %v2390
    %v2696 = vadd.f32 %v1548, %v2392
    %v2697 = vadd.f32 %v1709, %v2553
    %v2698 = vadd.f32 %v1711, %v2555
    %v2699 = vadd.f32 %v1226, %v2070
    %v2700 = vadd.f32 %v1228, %v2072
    %v2701 = vadd.f32 %v1389, %v2233
    %v2702 = vadd.f32 %v1391, %v2235
    %v2703 = vadd.f32 %v1552, %v2396
    %v2704 = vadd.f32 %v1554, %v2398
    %v2705 = vadd.f32 %v1715, %v2559
    %v2706 = vadd.f32 %v1717, %v2561
    %v2707 = vadd.f32 %v1230, %v2074
    %v2708 = vadd.f32 %v1232, %v2076
    %v2709 = vadd.f32 %v1393, %v2237
    %v2710 = vadd.f32 %v1395, %v2239
    %v2711 = vadd.f32 %v1556, %v2400
    %v2712 = vadd.f32 %v1558, %v2402
    %v2713 = vadd.f32 %v1719, %v2563
    %v2714 = vadd.f32 %v1721, %v2565
    %v2715 = vadd.f32 %v1236, %v2080
    %v2716 = vadd.f32 %v1238, %v2082
    %v2717 = vadd.f32 %v1399, %v2243
    %v2718 = vadd.f32 %v1401, %v2245
    %v2719 = vadd.f32 %v1562, %v2406
    %v2720 = vadd.f32 %v1564, %v2408
    %v2721 = vadd.f32 %v1725, %v2569
    %v2722 = vadd.f32 %v1727, %v2571
    %v2723 = vadd.f32 %v1240, %v2084
    %v2724 = vadd.f32 %v1242, %v2086
    %v2725 = vadd.f32 %v1403, %v2247
    %v2726 = vadd.f32 %v1405, %v2249
    %v2727 = vadd.f32 %v1566, %v2410
    %v2728 = vadd.f32 %v1568, %v2412
    %v2729 = vadd.f32 %v1729, %v2573
    %v2730 = vadd.f32 %v1731, %v2575
    %v2731 = vadd.f32 %v1246, %v2090
    %v2732 = vadd.f32 %v1248, %v2092
    %v2733 = vadd.f32 %v1409, %v2253
    %v2734 = vadd.f32 %v1411, %v2255
    %v2735 = vadd.f32 %v1572, %v2416
    %v2736 = vadd.f32 %v1574, %v2418
    %v2737 = vadd.f32 %v1735, %v2579
    %v2738 = vadd.f32 %v1737, %v2581
    %v2739 = vadd.f32 %v1250, %v2094
    %v2740 = vadd.f32 %v1252, %v2096
    %v2741 = vadd.f32 %v1413, %v2257
    %v2742 = vadd.f32 %v1415, %v2259
    %v2743 = vadd.f32 %v1576, %v2420
    %v2744 = vadd.f32 %v1578, %v2422
    %v2745 = vadd.f32 %v1739, %v2583
    %v2746 = vadd.f32 %v1741, %v2585
    %v2747 = vadd.f32 %v1256, %v2100
    %v2748 = vadd.f32 %v1258, %v2102
    %v2749 = vadd.f32 %v1419, %v2263
    %v2750 = vadd.f32 %v1421, %v2265
    %v2751 = vadd.f32 %v1582, %v2426
    %v2752 = vadd.f32 %v1584, %v2428
    %v2753 = vadd.f32 %v1745, %v2589
    %v2754 = vadd.f32 %v1747, %v2591
    %v2755 = vadd.f32 %v1260, %v2104
    %v2756 = vadd.f32 %v1262, %v2106
    %v2757 = vadd.f32 %v1423, %v2267
    %v2758 = vadd.f32 %v1425, %v2269
    %v2759 = vadd.f32 %v1586, %v2430
    %v2760 = vadd.f32 %v1588, %v2432
    %v2761 = vadd.f32 %v1749, %v2593
    %v2762 = vadd.f32 %v1751, %v2595
    %v2763 = vadd.f32 %v1266, %v2110
    %v2764 = vadd.f32 %v1268, %v2112
    %v2765 = vadd.f32 %v1429, %v2273
    %v2766 = vadd.f32 %v1431, %v2275
    %v2767 = vadd.f32 %v1592, %v2436
    %v2768 = vadd.f32 %v1594, %v2438
    %v2769 = vadd.f32 %v1755, %v2599
    %v2770 = vadd.f32 %v1757, %v2601
    %v2771 = vadd.f32 %v1270, %v2114
    %v2772 = vadd.f32 %v1272, %v2116
    %v2773 = vadd.f32 %v1433, %v2277
    %v2774 = vadd.f32 %v1435, %v2279
    %v2775 = vadd.f32 %v1596, %v2440
    %v2776 = vadd.f32 %v1598, %v2442
    %v2777 = vadd.f32 %v1759, %v2603
    %v2778 = vadd.f32 %v1761, %v2605
    %v2779 = vadd.f32 %v1276, %v2120
    %v2780 = vadd.f32 %v1278, %v2122
    %v2781 = vadd.f32 %v1439, %v2283
    %v2782 = vadd.f32 %v1441, %v2285
    %v2783 = vadd.f32 %v1602, %v2446
    %v2784 = vadd.f32 %v1604, %v2448
    %v2785 = vadd.f32 %v1765, %v2609
    %v2786 = vadd.f32 %v1767, %v2611
    %v2787 = vadd.f32 %v1280, %v2124
    %v2788 = vadd.f32 %v1282, %v2126
    %v2789 = vadd.f32 %v1443, %v2287
    %v2790 = vadd.f32 %v1445, %v2289
    %v2791 = vadd.f32 %v1606, %v2450
    %v2792 = vadd.f32 %v1608, %v2452
    %v2793 = vadd.f32 %v1769, %v2613
    %v2794 = vadd.f32 %v1771, %v2615
    %v2795 = vadd.f32 %v1286, %v2130
    %v2796 = vadd.f32 %v1288, %v2132
    %v2797 = vadd.f32 %v1449, %v2293
    %v2798 = vadd.f32 %v1451, %v2295
    %v2799 = vadd.f32 %v1612, %v2456
    %v2800 = vadd.f32 %v1614, %v2458
    %v2801 = vadd.f32 %v1775, %v2619
    %v2802 = vadd.f32 %v1777, %v2621
    %v2803 = vadd.f32 %v1290, %v2134
    %v2804 = vadd.f32 %v1292, %v2136
    %v2805 = vadd.f32 %v1453, %v2297
    %v2806 = vadd.f32 %v1455, %v2299
    %v2807 = vadd.f32 %v1616, %v2460
    %v2808 = vadd.f32 %v1618, %v2462
    %v2809 = vadd.f32 %v1779, %v2623
    %v2810 = vadd.f32 %v1781, %v2625
    %v2811 = vadd.f32 %v1296, %v2140
    %v2812 = vadd.f32 %v1298, %v2142
    %v2813 = vadd.f32 %v1459, %v2303
    %v2814 = vadd.f32 %v1461, %v2305
    %v2815 = vadd.f32 %v1622, %v2466
    %v2816 = vadd.f32 %v1624, %v2468
    %v2817 = vadd.f32 %v1785, %v2629
    %v2818 = vadd.f32 %v1787, %v2631
    %v2819 = vadd.f32 %v1300, %v2144
    %v2820 = vadd.f32 %v1302, %v2146
    %v2821 = vadd.f32 %v1463, %v2307
    %v2822 = vadd.f32 %v1465, %v2309
    %v2823 = vadd.f32 %v1626, %v2470
    %v2824 = vadd.f32 %v1628, %v2472
    %v2825 = vadd.f32 %v1789, %v2633
    %v2826 = vadd.f32 %v1791, %v2635
    %v2827 = vadd.f32 %v1306, %v2150
    %v2828 = vadd.f32 %v1308, %v2152
    %v2829 = vadd.f32 %v1469, %v2313
    %v2830 = vadd.f32 %v1471, %v2315
    %v2831 = vadd.f32 %v1632, %v2476
    %v2832 = vadd.f32 %v1634, %v2478
    %v2833 = vadd.f32 %v1795, %v2639
    %v2834 = vadd.f32 %v1797, %v2641
    %v2835 = vadd.f32 %v1310, %v2154
    %v2836 = vadd.f32 %v1312, %v2156
    %v2837 = vadd.f32 %v1473, %v2317
    %v2838 = vadd.f32 %v1475, %v2319
    %v2839 = vadd.f32 %v1636, %v2480
    %v2840 = vadd.f32 %v1638, %v2482
    %v2841 = vadd.f32 %v1799, %v2643
    %v2842 = vadd.f32 %v1801, %v2645
    %v2843 = vadd.f32 %v1316, %v2160
    %v2844 = vadd.f32 %v1318, %v2162
    %v2845 = vadd.f32 %v1479, %v2323
    %v2846 = vadd.f32 %v1481, %v2325
    %v2847 = vadd.f32 %v1642, %v2486
    %v2848 = vadd.f32 %v1644, %v2488
    %v2849 = vadd.f32 %v1805, %v2649
    %v2850 = vadd.f32 %v1807, %v2651
    %v2851 = vadd.f32 %v1320, %v2164
    %v2852 = vadd.f32 %v1322, %v2166
    %v2853 = vadd.f32 %v1483, %v2327
    %v2854 = vadd.f32 %v1485, %v2329
    %v2855 = vadd.f32 %v1646, %v2490
    %v2856 = vadd.f32 %v1648, %v2492
    %v2857 = vadd.f32 %v1809, %v2653
    %v2858 = vadd.f32 %v1811, %v2655
    %v2859 = vadd.f32 %v1326, %v2170
    %v2860 = vadd.f32 %v1328, %v2172
    %v2861 = vadd.f32 %v1489, %v2333
    %v2862 = vadd.f32 %v1491, %v2335
    %v2863 = vadd.f32 %v1652, %v2496
    %v2864 = vadd.f32 %v1654, %v2498
    %v2865 = vadd.f32 %v1815, %v2659
    %v2866 = vadd.f32 %v1817, %v2661
    %v2867 = vadd.f32 %v1330, %v2174
    %v2868 = vadd.f32 %v1332, %v2176
    %v2869 = vadd.f32 %v1493, %v2337
    %v2870 = vadd.f32 %v1495, %v2339
    %v2871 = vadd.f32 %v1656, %v2500
    %v2872 = vadd.f32 %v1658, %v2502
    %v2873 = vadd.f32 %v1819, %v2663
    %v2874 = vadd.f32 %v1821, %v2665
    %v2875 = vmax.f32 %v2667, %v2671
    %v2876 = vmax.f32 %v2668, %v2672
    %v2877 = vmax.f32 %v2669, %v2673
    %v2878 = vmax.f32 %v2670, %v2674
    %v2879 = vmax.f32 %v2675, %v2679
    %v2880 = vmax.f32 %v2676, %v2680
    %v2881 = vmax.f32 %v2677, %v2681
    %v2882 = vmax.f32 %v2678, %v2682
    %v2883 = vmax.f32 %v2683, %v2687
    %v2884 = vmax.f32 %v2684, %v2688
    %v2885 = vmax.f32 %v2685, %v2689
    %v2886 = vmax.f32 %v2686, %v2690
    %v2887 = vmax.f32 %v2691, %v2695
    %v2888 = vmax.f32 %v2692, %v2696
    %v2889 = vmax.f32 %v2693, %v2697
    %v2890 = vmax.f32 %v2694, %v2698
    %v2891 = vmax.f32 %v2699, %v2703
    %v2892 = vmax.f32 %v2700, %v2704
    %v2893 = vmax.f32 %v2701, %v2705
    %v2894 = vmax.f32 %v2702, %v2706
    %v2895 = vmax.f32 %v2707, %v2711
    %v2896 = vmax.f32 %v2708, %v2712
    %v2897 = vmax.f32 %v2709, %v2713
    %v2898 = vmax.f32 %v2710, %v2714
    %v2899 = vmax.f32 %v2715, %v2719
    %v2900 = vmax.f32 %v2716, %v2720
    %v2901 = vmax.f32 %v2717, %v2721
    %v2902 = vmax.f32 %v2718, %v2722
    %v2903 = vmax.f32 %v2723, %v2727
    %v2904 = vmax.f32 %v2724, %v2728
    %v2905 = vmax.f32 %v2725, %v2729
    %v2906 = vmax.f32 %v2726, %v2730
    %v2907 = vmax.f32 %v2731, %v2735
    %v2908 = vmax.f32 %v2732, %v2736
    %v2909 = vmax.f32 %v2733, %v2737
    %v2910 = vmax.f32 %v2734, %v2738
    %v2911 = vmax.f32 %v2739, %v2743
    %v2912 = vmax.f32 %v2740, %v2744
    %v2913 = vmax.f32 %v2741, %v2745
    %v2914 = vmax.f32 %v2742, %v2746
    %v2915 = vmax.f32 %v2747, %v2751
    %v2916 = vmax.f32 %v2748, %v2752
    %v2917 = vmax.f32 %v2749, %v2753
    %v2918 = vmax.f32 %v2750, %v2754
    %v2919 = vmax.f32 %v2755, %v2759
    %v2920 = vmax.f32 %v2756, %v2760
    %v2921 = vmax.f32 %v2757, %v2761
    %v2922 = vmax.f32 %v2758, %v2762
    %v2923 = vmax.f32 %v2763, %v2767
    %v2924 = vmax.f32 %v2764, %v2768
    %v2925 = vmax.f32 %v2765, %v2769
    %v2926 = vmax.f32 %v2766, %v2770
    %v2927 = vmax.f32 %v2771, %v2775
    %v2928 = vmax.f32 %v2772, %v2776
    %v2929 = vmax.f32 %v2773, %v2777
    %v2930 = vmax.f32 %v2774, %v2778
    %v2931 = vmax.f32 %v2779, %v2783
    %v2932 = vmax.f32 %v2780, %v2784
    %v2933 = vmax.f32 %v2781, %v2785
    %v2934 = vmax.f32 %v2782, %v2786
    %v2935 = vmax.f32 %v2787, %v2791
    %v2936 = vmax.f32 %v2788, %v2792
    %v2937 = vmax.f32 %v2789, %v2793
    %v2938 = vmax.f32 %v2790, %v2794
    %v2939 = vmax.f32 %v2795, %v2799
    %v2940 = vmax.f32 %v2796, %v2800
    %v2941 = vmax.f32 %v2797, %v2801
    %v2942 = vmax.f32 %v2798, %v2802
    %v2943 = vmax.f32 %v2803, %v2807
    %v2944 = vmax.f32 %v2804, %v2808
    %v2945 = vmax.f32 %v2805, %v2809
    %v2946 = vmax.f32 %v2806, %v2810
    %v2947 = vmax.f32 %v2811, %v2815
    %v2948 = vmax.f32 %v2812, %v2816
    %v2949 = vmax.f32 %v2813, %v2817
    %v2950 = vmax.f32 %v2814, %v2818
    %v2951 = vmax.f32 %v2819, %v2823
    %v2952 = vmax.f32 %v2820, %v2824
    %v2953 = vmax.f32 %v2821, %v2825
    %v2954 = vmax.f32 %v2822, %v2826
    %v2955 = vmax.f32 %v2827, %v2831
    %v2956 = vmax.f32 %v2828, %v2832
    %v2957 = vmax.f32 %v2829, %v2833
    %v2958 = vmax.f32 %v2830, %v2834
    %v2959 = vmax.f32 %v2835, %v2839
    %v2960 = vmax.f32 %v2836, %v2840
    %v2961 = vmax.f32 %v2837, %v2841
    %v2962 = vmax.f32 %v2838, %v2842
    %v2963 = vmax.f32 %v2843, %v2847
    %v2964 = vmax.f32 %v2844, %v2848
    %v2965 = vmax.f32 %v2845, %v2849
    %v2966 = vmax.f32 %v2846, %v2850
    %v2967 = vmax.f32 %v2851, %v2855
    %v2968 = vmax.f32 %v2852, %v2856
    %v2969 = vmax.f32 %v2853, %v2857
    %v2970 = vmax.f32 %v2854, %v2858
    %v2971 = vmax.f32 %v2859, %v2863
    %v2972 = vmax.f32 %v2860, %v2864
    %v2973 = vmax.f32 %v2861, %v2865
    %v2974 = vmax.f32 %v2862, %v2866
    %v2975 = vmax.f32 %v2867, %v2871
    %v2976 = vmax.f32 %v2868, %v2872
    %v2977 = vmax.f32 %v2869, %v2873
    %v2978 = vmax.f32 %v2870, %v2874
    %v2979 = vmax.f32 %v2875, %v2879
    %v2980 = vmax.f32 %v2876, %v2880
    %v2981 = vmax.f32 %v2877, %v2881
    %v2982 = vmax.f32 %v2878, %v2882
    %v2983 = vmax.f32 %v2883, %v2887
    %v2984 = vmax.f32 %v2884, %v2888
    %v2985 = vmax.f32 %v2885, %v2889
    %v2986 = vmax.f32 %v2886, %v2890
    %v2987 = vmax.f32 %v2891, %v2895
    %v2988 = vmax.f32 %v2892, %v2896
    %v2989 = vmax.f32 %v2893, %v2897
    %v2990 = vmax.f32 %v2894, %v2898
    %v2991 = vmax.f32 %v2899, %v2903
    %v2992 = vmax.f32 %v2900, %v2904
    %v2993 = vmax.f32 %v2901, %v2905
    %v2994 = vmax.f32 %v2902, %v2906
    %v2995 = vmax.f32 %v2907, %v2911
    %v2996 = vmax.f32 %v2908, %v2912
    %v2997 = vmax.f32 %v2909, %v2913
    %v2998 = vmax.f32 %v2910, %v2914
    %v2999 = vmax.f32 %v2915, %v2919
    %v3000 = vmax.f32 %v2916, %v2920
    %v3001 = vmax.f32 %v2917, %v2921
    %v3002 = vmax.f32 %v2918, %v2922
    %v3003 = vmax.f32 %v2923, %v2927
    %v3004 = vmax.f32 %v2924, %v2928
    %v3005 = vmax.f32 %v2925, %v2929
    %v3006 = vmax.f32 %v2926, %v2930
    %v3007 = vmax.f32 %v2931, %v2935
    %v3008 = vmax.f32 %v2932, %v2936
    %v3009 = vmax.f32 %v2933, %v2937
    %v3010 = vmax.f32 %v2934, %v2938
    %v3011 = vmax.f32 %v2939, %v2943
    %v3012 = vmax.f32 %v2940, %v2944
    %v3013 = vmax.f32 %v2941, %v2945
    %v3014 = vmax.f32 %v2942, %v2946
    %v3015 = vmax.f32 %v2947, %v2951
    %v3016 = vmax.f32 %v2948, %v2952
    %v3017 = vmax.f32 %v2949, %v2953
    %v3018 = vmax.f32 %v2950, %v2954
    %v3019 = vmax.f32 %v2955, %v2959
    %v3020 = vmax.f32 %v2956, %v2960
    %v3021 = vmax.f32 %v2957, %v2961
    %v3022 = vmax.f32 %v2958, %v2962
    %v3023 = vmax.f32 %v2963, %v2967
    %v3024 = vmax.f32 %v2964, %v2968
    %v3025 = vmax.f32 %v2965, %v2969
    %v3026 = vmax.f32 %v2966, %v2970
    %v3027 = vmax.f32 %v2971, %v2975
    %v3028 = vmax.f32 %v2972, %v2976
    %v3029 = vmax.f32 %v2973, %v2977
    %v3030 = vmax.f32 %v2974, %v2978
    %v3031 = vld [vmem:[#allocation5] sm:$0xf]
    %v3033 = vlaneseq
    %v3034 = vshrl.u32 %v3033, 7
    %v3035 = vsub.s32 0, %v3034
    %v3036 = vrot.slane %v3031, %v3035
    %v3037 = vlaneseq
    %v3038 = vshrl.u32 %v3037, 7
    %v3039 = vsub.s32 1, %v3038
    %v3040 = vrot.slane %v3031, %v3039
    %v3041 = vlaneseq
    %v3042 = vshrl.u32 %v3041, 7
    %v3043 = vsub.s32 2, %v3042
    %v3044 = vrot.slane %v3031, %v3043
    %v3045 = vlaneseq
    %v3046 = vshrl.u32 %v3045, 7
    %v3047 = vsub.s32 3, %v3046
    %v3048 = vrot.slane %v3031, %v3047
    %v3053 = vadd.f32 %v2979, %v3036
    %v3054 = vadd.f32 %v2980, %v3040
    %v3055 = vadd.f32 %v2981, %v3044
    %v3056 = vadd.f32 %v2982, %v3048
    %v3057 = vadd.f32 %v2983, %v3036
    %v3058 = vadd.f32 %v2984, %v3040
    %v3059 = vadd.f32 %v2985, %v3044
    %v3060 = vadd.f32 %v2986, %v3048
    %v3061 = vadd.f32 %v2987, %v3036
    %v3062 = vadd.f32 %v2988, %v3040
    %v3063 = vadd.f32 %v2989, %v3044
    %v3064 = vadd.f32 %v2990, %v3048
    %v3065 = vadd.f32 %v2991, %v3036
    %v3066 = vadd.f32 %v2992, %v3040
    %v3067 = vadd.f32 %v2993, %v3044
    %v3068 = vadd.f32 %v2994, %v3048
    %v3069 = vadd.f32 %v2995, %v3036
    %v3070 = vadd.f32 %v2996, %v3040
    %v3071 = vadd.f32 %v2997, %v3044
    %v3072 = vadd.f32 %v2998, %v3048
    %v3073 = vadd.f32 %v2999, %v3036
    %v3074 = vadd.f32 %v3000, %v3040
    %v3075 = vadd.f32 %v3001, %v3044
    %v3076 = vadd.f32 %v3002, %v3048
    %v3077 = vadd.f32 %v3003, %v3036
    %v3078 = vadd.f32 %v3004, %v3040
    %v3079 = vadd.f32 %v3005, %v3044
    %v3080 = vadd.f32 %v3006, %v3048
    %v3081 = vadd.f32 %v3007, %v3036
    %v3082 = vadd.f32 %v3008, %v3040
    %v3083 = vadd.f32 %v3009, %v3044
    %v3084 = vadd.f32 %v3010, %v3048
    %v3085 = vadd.f32 %v3011, %v3036
    %v3086 = vadd.f32 %v3012, %v3040
    %v3087 = vadd.f32 %v3013, %v3044
    %v3088 = vadd.f32 %v3014, %v3048
    %v3089 = vadd.f32 %v3015, %v3036
    %v3090 = vadd.f32 %v3016, %v3040
    %v3091 = vadd.f32 %v3017, %v3044
    %v3092 = vadd.f32 %v3018, %v3048
    %v3093 = vadd.f32 %v3019, %v3036
    %v3094 = vadd.f32 %v3020, %v3040
    %v3095 = vadd.f32 %v3021, %v3044
    %v3096 = vadd.f32 %v3022, %v3048
    %v3097 = vadd.f32 %v3023, %v3036
    %v3098 = vadd.f32 %v3024, %v3040
    %v3099 = vadd.f32 %v3025, %v3044
    %v3100 = vadd.f32 %v3026, %v3048
    %v3101 = vadd.f32 %v3027, %v3036
    %v3102 = vadd.f32 %v3028, %v3040
    %v3103 = vadd.f32 %v3029, %v3044
    %v3104 = vadd.f32 %v3030, %v3048
    %v3105 = vmax.f32 %v3053, 0.0
    %v3106 = vmax.f32 %v3054, 0.0
    %v3107 = vmax.f32 %v3055, 0.0
    %v3108 = vmax.f32 %v3056, 0.0
    %v3109 = vmax.f32 %v3057, 0.0
    %v3110 = vmax.f32 %v3058, 0.0
    %v3111 = vmax.f32 %v3059, 0.0
    %v3112 = vmax.f32 %v3060, 0.0
    %v3113 = vmax.f32 %v3061, 0.0
    %v3114 = vmax.f32 %v3062, 0.0
    %v3115 = vmax.f32 %v3063, 0.0
    %v3116 = vmax.f32 %v3064, 0.0
    %v3117 = vmax.f32 %v3065, 0.0
    %v3118 = vmax.f32 %v3066, 0.0
    %v3119 = vmax.f32 %v3067, 0.0
    %v3120 = vmax.f32 %v3068, 0.0
    %v3121 = vmax.f32 %v3069, 0.0
    %v3122 = vmax.f32 %v3070, 0.0
    %v3123 = vmax.f32 %v3071, 0.0
    %v3124 = vmax.f32 %v3072, 0.0
    %v3125 = vmax.f32 %v3073, 0.0
    %v3126 = vmax.f32 %v3074, 0.0
    %v3127 = vmax.f32 %v3075, 0.0
    %v3128 = vmax.f32 %v3076, 0.0
    %v3129 = vmax.f32 %v3077, 0.0
    %v3130 = vmax.f32 %v3078, 0.0
    %v3131 = vmax.f32 %v3079, 0.0
    %v3132 = vmax.f32 %v3080, 0.0
    %v3133 = vmax.f32 %v3081, 0.0
    %v3134 = vmax.f32 %v3082, 0.0
    %v3135 = vmax.f32 %v3083, 0.0
    %v3136 = vmax.f32 %v3084, 0.0
    %v3137 = vmax.f32 %v3085, 0.0
    %v3138 = vmax.f32 %v3086, 0.0
    %v3139 = vmax.f32 %v3087, 0.0
    %v3140 = vmax.f32 %v3088, 0.0
    %v3141 = vmax.f32 %v3089, 0.0
    %v3142 = vmax.f32 %v3090, 0.0
    %v3143 = vmax.f32 %v3091, 0.0
    %v3144 = vmax.f32 %v3092, 0.0
    %v3145 = vmax.f32 %v3093, 0.0
    %v3146 = vmax.f32 %v3094, 0.0
    %v3147 = vmax.f32 %v3095, 0.0
    %v3148 = vmax.f32 %v3096, 0.0
    %v3149 = vmax.f32 %v3097, 0.0
    %v3150 = vmax.f32 %v3098, 0.0
    %v3151 = vmax.f32 %v3099, 0.0
    %v3152 = vmax.f32 %v3100, 0.0
    %v3153 = vmax.f32 %v3101, 0.0
    %v3154 = vmax.f32 %v3102, 0.0
    %v3155 = vmax.f32 %v3103, 0.0
    %v3156 = vmax.f32 %v3104, 0.0
    %v3157 = vpack.c.bf16 %v3109, %v3105
    %v3158 = vpack.c.bf16 %v3110, %v3106
    %v3159 = vpack.c.bf16 %v3111, %v3107
    %v3160 = vpack.c.bf16 %v3112, %v3108
    %v3161 = vpack.c.bf16 %v3117, %v3113
    %v3162 = vpack.c.bf16 %v3118, %v3114
    %v3163 = vpack.c.bf16 %v3119, %v3115
    %v3164 = vpack.c.bf16 %v3120, %v3116
    %v3165 = vpack.c.bf16 %v3125, %v3121
    %v3166 = vpack.c.bf16 %v3126, %v3122
    %v3167 = vpack.c.bf16 %v3127, %v3123
    %v3168 = vpack.c.bf16 %v3128, %v3124
    %v3169 = vpack.c.bf16 %v3133, %v3129
    %v3170 = vpack.c.bf16 %v3134, %v3130
    %v3171 = vpack.c.bf16 %v3135, %v3131
    %v3172 = vpack.c.bf16 %v3136, %v3132
    %v3173 = vpack.c.bf16 %v3141, %v3137
    %v3174 = vpack.c.bf16 %v3142, %v3138
    %v3175 = vpack.c.bf16 %v3143, %v3139
    %v3176 = vpack.c.bf16 %v3144, %v3140
    %v3177 = vpack.c.bf16 %v3145, %v3145
    %v3178 = vpack.c.bf16 %v3146, %v3146
    %v3179 = vpack.c.bf16 %v3147, %v3147
    %v3180 = vpack.c.bf16 %v3148, %v3148
    %v3181 = vld [vmem:[#allocation7] sm:$0xff]
    %v3182 = vld [vmem:[#allocation7 + $0x8] sm:$0xff]
    %v3183 = vld [vmem:[#allocation7 + $0x10] sm:$0xff]
    %v3184 = vld [vmem:[#allocation7 + $0x18] sm:$0xff]
    %v3185 = vld [vmem:[#allocation7 + $0x20] sm:$0xff]
    %v3186 = vld [vmem:[#allocation7 + $0x28] sm:$0xff]
    %v3187 = vld [vmem:[#allocation7 + $0x30] sm:$0xff]
    %v3188 = vld [vmem:[#allocation7 + $0x38] sm:$0xff]
    %v3189 = vld [vmem:[#allocation7 + $0x40] sm:$0xff]
    %v3190 = vld [vmem:[#allocation7 + $0x48] sm:$0xff]
    %v3191 = vld [vmem:[#allocation7 + $0x50] sm:$0xff]
    %v3192 = vld [vmem:[#allocation7 + $0x58] sm:$0xff]
    %v3193 = vld [vmem:[#allocation7 + $0x60] sm:$0xff]
    %v3194 = vld [vmem:[#allocation7 + $0x68] sm:$0xff]
    %v3195 = vld [vmem:[#allocation7 + $0x70] sm:$0xff]
    %v3196 = vld [vmem:[#allocation7 + $0x78] sm:$0xff]
    %v3197 = vld [vmem:[#allocation7 + $0x80] sm:$0xff]
    %v3198 = vld [vmem:[#allocation7 + $0x88] sm:$0xff]
    %v3199 = vld [vmem:[#allocation7 + $0x90] sm:$0xff]
    %v3200 = vld [vmem:[#allocation7 + $0x98] sm:$0xff]
    %v3201 = vld [vmem:[#allocation7 + $0xa0] sm:$0xff]
    %v3202 = vld [vmem:[#allocation7 + $0xa8] sm:$0xff]
    %v3203 = vld [vmem:[#allocation7 + $0xb0] sm:$0xff]
    %v3204 = vld [vmem:[#allocation7 + $0xb8] sm:$0xff]
    %v3205 = vld [vmem:[#allocation7 + $0xc0] sm:$0xff]
    %v3206 = vld [vmem:[#allocation7 + $0xc8] sm:$0xff]
    %v3207 = vld [vmem:[#allocation7 + $0xd0] sm:$0xff]
    %v3208 = vld [vmem:[#allocation7 + $0xd8] sm:$0xff]
    %v3209 = vld [vmem:[#allocation7 + $0xe0] sm:$0xff]
    %v3210 = vld [vmem:[#allocation7 + $0xe8] sm:$0xff]
    %v3211 = vld [vmem:[#allocation7 + $0xf0] sm:$0xff]
    %v3212 = vld [vmem:[#allocation7 + $0xf8] sm:$0xff]
    %v3213 = vld [vmem:[#allocation7 + $0x100] sm:$0xff]
    %v3214 = vld [vmem:[#allocation7 + $0x108] sm:$0xff]
    %v3215 = vld [vmem:[#allocation7 + $0x110] sm:$0xff]
    %v3216 = vld [vmem:[#allocation7 + $0x118] sm:$0xff]
    %v3217 = vld [vmem:[#allocation7 + $0x120] sm:$0xff]
    %v3218 = vld [vmem:[#allocation7 + $0x128] sm:$0xff]
    %v3219 = vld [vmem:[#allocation7 + $0x130] sm:$0xff]
    %v3220 = vld [vmem:[#allocation7 + $0x138] sm:$0xff]
    %v3221 = vld [vmem:[#allocation7 + $0x140] sm:$0xff]
    %v3222 = vld [vmem:[#allocation7 + $0x148] sm:$0xff]
    %v3223 = vld [vmem:[#allocation7 + $0x150] sm:$0xff]
    %v3224 = vld [vmem:[#allocation7 + $0x158] sm:$0xff]
    %v3225 = vld [vmem:[#allocation7 + $0x160] sm:$0xff]
    %v3226 = vld [vmem:[#allocation7 + $0x168] sm:$0xff]
    %v3227 = vld [vmem:[#allocation7 + $0x170] sm:$0xff]
    %v3228 = vld [vmem:[#allocation7 + $0x178] sm:$0xff]
    %v3229 = vld [vmem:[#allocation7 + $0x180] sm:$0xff]
    %v3230 = vld [vmem:[#allocation7 + $0x188] sm:$0xff]
    %v3231 = vld [vmem:[#allocation7 + $0x190] sm:$0xff]
    %v3232 = vld [vmem:[#allocation7 + $0x198] sm:$0xff]
    %v3233 = vld [vmem:[#allocation7 + $0x1a0] sm:$0xff]
    %v3234 = vld [vmem:[#allocation7 + $0x1a8] sm:$0xff]
    %v3235 = vld [vmem:[#allocation7 + $0x1b0] sm:$0xff]
    %v3236 = vld [vmem:[#allocation7 + $0x1b8] sm:$0xff]
    %v3237 = vld [vmem:[#allocation7 + $0x1c0] sm:$0xff]
    %v3238 = vld [vmem:[#allocation7 + $0x1c8] sm:$0xff]
    %v3239 = vld [vmem:[#allocation7 + $0x1d0] sm:$0xff]
    %v3240 = vld [vmem:[#allocation7 + $0x1d8] sm:$0xff]
    %v3241 = vld [vmem:[#allocation7 + $0x1e0] sm:$0xff]
    %v3242 = vld [vmem:[#allocation7 + $0x1e8] sm:$0xff]
    %v3243 = vld [vmem:[#allocation7 + $0x1f0] sm:$0xff]
    %v3244 = vld [vmem:[#allocation7 + $0x1f8] sm:$0xff]
    %v3245 = vld [vmem:[#allocation7 + $0x200] sm:$0xff]
    %v3246 = vld [vmem:[#allocation7 + $0x208] sm:$0xff]
    %v3247 = vld [vmem:[#allocation7 + $0x210] sm:$0xff]
    %v3248 = vld [vmem:[#allocation7 + $0x218] sm:$0xff]
    %v3249 = vld [vmem:[#allocation7 + $0x220] sm:$0xff]
    %v3250 = vld [vmem:[#allocation7 + $0x228] sm:$0xff]
    %v3251 = vld [vmem:[#allocation7 + $0x230] sm:$0xff]
    %v3252 = vld [vmem:[#allocation7 + $0x238] sm:$0xff]
    %v3253 = vld [vmem:[#allocation7 + $0x240] sm:$0xff]
    %v3254 = vld [vmem:[#allocation7 + $0x248] sm:$0xff]
    %v3255 = vld [vmem:[#allocation7 + $0x250] sm:$0xff]
    %v3256 = vld [vmem:[#allocation7 + $0x258] sm:$0xff]
    %v3257 = vld [vmem:[#allocation7 + $0x260] sm:$0xff]
    %v3258 = vld [vmem:[#allocation7 + $0x268] sm:$0xff]
    %v3259 = vld [vmem:[#allocation7 + $0x270] sm:$0xff]
    %v3260 = vld [vmem:[#allocation7 + $0x278] sm:$0xff]
    %v3261 = vld [vmem:[#allocation7 + $0x280] sm:$0xff]
    %v3262 = vld [vmem:[#allocation7 + $0x288] sm:$0xff]
    %v3263 = vld [vmem:[#allocation7 + $0x290] sm:$0xff]
    %v3264 = vld [vmem:[#allocation7 + $0x298] sm:$0xff]
    %v3265 = vld [vmem:[#allocation7 + $0x2a0] sm:$0xff]
    %v3266 = vld [vmem:[#allocation7 + $0x2a8] sm:$0xff]
    %v3267 = vld [vmem:[#allocation7 + $0x2b0] sm:$0xff]
    %v3268 = vld [vmem:[#allocation7 + $0x2b8] sm:$0xff]
    %v3269 = vld [vmem:[#allocation7 + $0x2c0] sm:$0xff]
    %v3270 = vld [vmem:[#allocation7 + $0x2c8] sm:$0xff]
    %v3271 = vld [vmem:[#allocation7 + $0x2d0] sm:$0xff]
    %v3272 = vld [vmem:[#allocation7 + $0x2d8] sm:$0xff]
    %v3273 = vld [vmem:[#allocation7 + $0x2e0] sm:$0xff]
    %v3274 = vld [vmem:[#allocation7 + $0x2e8] sm:$0xff]
    %v3275 = vld [vmem:[#allocation7 + $0x2f0] sm:$0xff]
    %v3276 = vld [vmem:[#allocation7 + $0x2f8] sm:$0xff]
    %v3277 = vld [vmem:[#allocation7 + $0x300] sm:$0xff]
    %v3278 = vld [vmem:[#allocation7 + $0x308] sm:$0xff]
    %v3279 = vld [vmem:[#allocation7 + $0x310] sm:$0xff]
    %v3280 = vld [vmem:[#allocation7 + $0x318] sm:$0xff]
    %v3281 = vld [vmem:[#allocation7 + $0x320] sm:$0xff]
    %v3282 = vld [vmem:[#allocation7 + $0x328] sm:$0xff]
    %v3283 = vld [vmem:[#allocation7 + $0x330] sm:$0xff]
    %v3284 = vld [vmem:[#allocation7 + $0x338] sm:$0xff]
    %v3285 = vld [vmem:[#allocation7 + $0x340] sm:$0xff]
    %v3286 = vld [vmem:[#allocation7 + $0x348] sm:$0xff]
    %v3287 = vld [vmem:[#allocation7 + $0x350] sm:$0xff]
    %v3288 = vld [vmem:[#allocation7 + $0x358] sm:$0xff]
    %v3289 = vld [vmem:[#allocation7 + $0x360] sm:$0xff]
    %v3290 = vld [vmem:[#allocation7 + $0x368] sm:$0xff]
    %v3291 = vld [vmem:[#allocation7 + $0x370] sm:$0xff]
    %v3292 = vld [vmem:[#allocation7 + $0x378] sm:$0xff]
    %v3293 = vld [vmem:[#allocation7 + $0x380] sm:$0xff]
    %v3294 = vld [vmem:[#allocation7 + $0x388] sm:$0xff]
    %v3295 = vld [vmem:[#allocation7 + $0x390] sm:$0xff]
    %v3296 = vld [vmem:[#allocation7 + $0x398] sm:$0xff]
    %v3297 = vld [vmem:[#allocation7 + $0x3a0] sm:$0xff]
    %v3298 = vld [vmem:[#allocation7 + $0x3a8] sm:$0xff]
    %v3299 = vld [vmem:[#allocation7 + $0x3b0] sm:$0xff]
    %v3300 = vld [vmem:[#allocation7 + $0x3b8] sm:$0xff]
    %v3301 = vld [vmem:[#allocation7 + $0x3c0] sm:$0xff]
    %v3302 = vld [vmem:[#allocation7 + $0x3c8] sm:$0xff]
    %v3303 = vld [vmem:[#allocation7 + $0x3d0] sm:$0xff]
    %v3304 = vld [vmem:[#allocation7 + $0x3d8] sm:$0xff]
    %v3305 = vld [vmem:[#allocation7 + $0x3e0] sm:$0xff]
    %v3306 = vld [vmem:[#allocation7 + $0x3e8] sm:$0xff]
    %v3307 = vld [vmem:[#allocation7 + $0x3f0] sm:$0xff]
    %v3308 = vld [vmem:[#allocation7 + $0x3f8] sm:$0xff]
    %v3309 = vld [vmem:[#allocation7 + $0x400] sm:$0xff]
    %v3310 = vld [vmem:[#allocation7 + $0x408] sm:$0xff]
    %v3311 = vld [vmem:[#allocation7 + $0x410] sm:$0xff]
    %v3312 = vld [vmem:[#allocation7 + $0x418] sm:$0xff]
    %v3313 = vld [vmem:[#allocation7 + $0x420] sm:$0xff]
    %v3314 = vld [vmem:[#allocation7 + $0x428] sm:$0xff]
    %v3315 = vld [vmem:[#allocation7 + $0x430] sm:$0xff]
    %v3316 = vld [vmem:[#allocation7 + $0x438] sm:$0xff]
    %v3317 = vld [vmem:[#allocation7 + $0x440] sm:$0xff]
    %v3318 = vld [vmem:[#allocation7 + $0x448] sm:$0xff]
    %v3319 = vld [vmem:[#allocation7 + $0x450] sm:$0xff]
    %v3320 = vld [vmem:[#allocation7 + $0x458] sm:$0xff]
    %v3321 = vld [vmem:[#allocation7 + $0x460] sm:$0xff]
    %v3322 = vld [vmem:[#allocation7 + $0x468] sm:$0xff]
    %v3323 = vld [vmem:[#allocation7 + $0x470] sm:$0xff]
    %v3324 = vld [vmem:[#allocation7 + $0x478] sm:$0xff]
    %v3325 = vld [vmem:[#allocation7 + $0x480] sm:$0xff]
    %v3326 = vld [vmem:[#allocation7 + $0x488] sm:$0xff]
    %v3327 = vld [vmem:[#allocation7 + $0x490] sm:$0xff]
    %v3328 = vld [vmem:[#allocation7 + $0x498] sm:$0xff]
    %v3329 = vld [vmem:[#allocation7 + $0x4a0] sm:$0xff]
    %v3330 = vld [vmem:[#allocation7 + $0x4a8] sm:$0xff]
    %v3331 = vld [vmem:[#allocation7 + $0x4b0] sm:$0xff]
    %v3332 = vld [vmem:[#allocation7 + $0x4b8] sm:$0xff]
    %v3333 = vld [vmem:[#allocation7 + $0x4c0] sm:$0xff]
    %v3334 = vld [vmem:[#allocation7 + $0x4c8] sm:$0xff]
    %v3335 = vld [vmem:[#allocation7 + $0x4d0] sm:$0xff]
    %v3336 = vld [vmem:[#allocation7 + $0x4d8] sm:$0xff]
    %v3337 = vld [vmem:[#allocation7 + $0x4e0] sm:$0xff]
    %v3338 = vld [vmem:[#allocation7 + $0x4e8] sm:$0xff]
    %v3339 = vld [vmem:[#allocation7 + $0x4f0] sm:$0xff]
    %v3340 = vld [vmem:[#allocation7 + $0x4f8] sm:$0xff]
    %v3341 = vld [vmem:[#allocation7 + $0x500] sm:$0xff]
    %v3342 = vld [vmem:[#allocation7 + $0x508] sm:$0xff]
    %v3343 = vld [vmem:[#allocation7 + $0x510] sm:$0xff]
    %v3344 = vld [vmem:[#allocation7 + $0x518] sm:$0xff]
    %v3345 = vld [vmem:[#allocation7 + $0x520] sm:$0xff]
    %v3346 = vld [vmem:[#allocation7 + $0x528] sm:$0xff]
    %v3347 = vld [vmem:[#allocation7 + $0x530] sm:$0xff]
    %v3348 = vld [vmem:[#allocation7 + $0x538] sm:$0xff]
    %v3349 = vld [vmem:[#allocation7 + $0x540] sm:$0xff]
    %v3350 = vld [vmem:[#allocation7 + $0x548] sm:$0xff]
    %v3351 = vld [vmem:[#allocation7 + $0x550] sm:$0xff]
    %v3352 = vld [vmem:[#allocation7 + $0x558] sm:$0xff]
    %v3353 = vld [vmem:[#allocation7 + $0x560] sm:$0xff]
    %v3354 = vld [vmem:[#allocation7 + $0x568] sm:$0xff]
    %v3355 = vld [vmem:[#allocation7 + $0x570] sm:$0xff]
    %v3356 = vld [vmem:[#allocation7 + $0x578] sm:$0xff]
    %v3357 = vld [vmem:[#allocation7 + $0x580] sm:$0xff]
    %v3358 = vld [vmem:[#allocation7 + $0x588] sm:$0xff]
    %v3359 = vld [vmem:[#allocation7 + $0x590] sm:$0xff]
    %v3360 = vld [vmem:[#allocation7 + $0x598] sm:$0xff]
    %v3361 = vld [vmem:[#allocation7 + $0x5a0] sm:$0xff]
    %v3362 = vld [vmem:[#allocation7 + $0x5a8] sm:$0xff]
    %v3363 = vld [vmem:[#allocation7 + $0x5b0] sm:$0xff]
    %v3364 = vld [vmem:[#allocation7 + $0x5b8] sm:$0xff]
    %v3365 = vld [vmem:[#allocation7 + $0x5c0] sm:$0xff]
    %v3366 = vld [vmem:[#allocation7 + $0x5c8] sm:$0xff]
    %v3367 = vld [vmem:[#allocation7 + $0x5d0] sm:$0xff]
    %v3368 = vld [vmem:[#allocation7 + $0x5d8] sm:$0xff]
    %v3369 = vld [vmem:[#allocation7 + $0x5e0] sm:$0xff]
    %v3370 = vld [vmem:[#allocation7 + $0x5e8] sm:$0xff]
    %v3371 = vld [vmem:[#allocation7 + $0x5f0] sm:$0xff]
    %v3372 = vld [vmem:[#allocation7 + $0x5f8] sm:$0xff]
    %v3373 = vpack.c.bf16 %v3113, %v3109
    %v3374 = vpack.c.bf16 %v3114, %v3110
    %v3375 = vpack.c.bf16 %v3115, %v3111
    %v3376 = vpack.c.bf16 %v3116, %v3112
    %v3377 = vpack.c.bf16 %v3121, %v3117
    %v3378 = vpack.c.bf16 %v3122, %v3118
    %v3379 = vpack.c.bf16 %v3123, %v3119
    %v3380 = vpack.c.bf16 %v3124, %v3120
    %v3381 = vpack.c.bf16 %v3129, %v3125
    %v3382 = vpack.c.bf16 %v3130, %v3126
    %v3383 = vpack.c.bf16 %v3131, %v3127
    %v3384 = vpack.c.bf16 %v3132, %v3128
    %v3385 = vpack.c.bf16 %v3137, %v3133
    %v3386 = vpack.c.bf16 %v3138, %v3134
    %v3387 = vpack.c.bf16 %v3139, %v3135
    %v3388 = vpack.c.bf16 %v3140, %v3136
    %v3389 = vpack.c.bf16 %v3145, %v3141
    %v3390 = vpack.c.bf16 %v3146, %v3142
    %v3391 = vpack.c.bf16 %v3147, %v3143
    %v3392 = vpack.c.bf16 %v3148, %v3144
    %v3393 = vpack.c.bf16 %v3149, %v3149
    %v3394 = vpack.c.bf16 %v3150, %v3150
    %v3395 = vpack.c.bf16 %v3151, %v3151
    %v3396 = vpack.c.bf16 %v3152, %v3152
    %s3397 = scalar_lea.vmem [#allocation7], 1536
    %v3398 = vld [vmem:[%s3397] sm:$0xff]
    %v3399 = vld [vmem:[%s3397 + $0x8] sm:$0xff]
    %v3400 = vld [vmem:[%s3397 + $0x10] sm:$0xff]
    %v3401 = vld [vmem:[%s3397 + $0x18] sm:$0xff]
    %v3402 = vld [vmem:[%s3397 + $0x20] sm:$0xff]
    %v3403 = vld [vmem:[%s3397 + $0x28] sm:$0xff]
    %v3404 = vld [vmem:[%s3397 + $0x30] sm:$0xff]
    %v3405 = vld [vmem:[%s3397 + $0x38] sm:$0xff]
    %v3406 = vld [vmem:[%s3397 + $0x40] sm:$0xff]
    %v3407 = vld [vmem:[%s3397 + $0x48] sm:$0xff]
    %v3408 = vld [vmem:[%s3397 + $0x50] sm:$0xff]
    %v3409 = vld [vmem:[%s3397 + $0x58] sm:$0xff]
    %v3410 = vld [vmem:[%s3397 + $0x60] sm:$0xff]
    %v3411 = vld [vmem:[%s3397 + $0x68] sm:$0xff]
    %v3412 = vld [vmem:[%s3397 + $0x70] sm:$0xff]
    %v3413 = vld [vmem:[%s3397 + $0x78] sm:$0xff]
    %v3414 = vld [vmem:[%s3397 + $0x80] sm:$0xff]
    %v3415 = vld [vmem:[%s3397 + $0x88] sm:$0xff]
    %v3416 = vld [vmem:[%s3397 + $0x90] sm:$0xff]
    %v3417 = vld [vmem:[%s3397 + $0x98] sm:$0xff]
    %v3418 = vld [vmem:[%s3397 + $0xa0] sm:$0xff]
    %v3419 = vld [vmem:[%s3397 + $0xa8] sm:$0xff]
    %v3420 = vld [vmem:[%s3397 + $0xb0] sm:$0xff]
    %v3421 = vld [vmem:[%s3397 + $0xb8] sm:$0xff]
    %v3422 = vld [vmem:[%s3397 + $0xc0] sm:$0xff]
    %v3423 = vld [vmem:[%s3397 + $0xc8] sm:$0xff]
    %v3424 = vld [vmem:[%s3397 + $0xd0] sm:$0xff]
    %v3425 = vld [vmem:[%s3397 + $0xd8] sm:$0xff]
    %v3426 = vld [vmem:[%s3397 + $0xe0] sm:$0xff]
    %v3427 = vld [vmem:[%s3397 + $0xe8] sm:$0xff]
    %v3428 = vld [vmem:[%s3397 + $0xf0] sm:$0xff]
    %v3429 = vld [vmem:[%s3397 + $0xf8] sm:$0xff]
    %v3430 = vld [vmem:[%s3397 + $0x100] sm:$0xff]
    %v3431 = vld [vmem:[%s3397 + $0x108] sm:$0xff]
    %v3432 = vld [vmem:[%s3397 + $0x110] sm:$0xff]
    %v3433 = vld [vmem:[%s3397 + $0x118] sm:$0xff]
    %v3434 = vld [vmem:[%s3397 + $0x120] sm:$0xff]
    %v3435 = vld [vmem:[%s3397 + $0x128] sm:$0xff]
    %v3436 = vld [vmem:[%s3397 + $0x130] sm:$0xff]
    %v3437 = vld [vmem:[%s3397 + $0x138] sm:$0xff]
    %v3438 = vld [vmem:[%s3397 + $0x140] sm:$0xff]
    %v3439 = vld [vmem:[%s3397 + $0x148] sm:$0xff]
    %v3440 = vld [vmem:[%s3397 + $0x150] sm:$0xff]
    %v3441 = vld [vmem:[%s3397 + $0x158] sm:$0xff]
    %v3442 = vld [vmem:[%s3397 + $0x160] sm:$0xff]
    %v3443 = vld [vmem:[%s3397 + $0x168] sm:$0xff]
    %v3444 = vld [vmem:[%s3397 + $0x170] sm:$0xff]
    %v3445 = vld [vmem:[%s3397 + $0x178] sm:$0xff]
    %v3446 = vld [vmem:[%s3397 + $0x180] sm:$0xff]
    %v3447 = vld [vmem:[%s3397 + $0x188] sm:$0xff]
    %v3448 = vld [vmem:[%s3397 + $0x190] sm:$0xff]
    %v3449 = vld [vmem:[%s3397 + $0x198] sm:$0xff]
    %v3450 = vld [vmem:[%s3397 + $0x1a0] sm:$0xff]
    %v3451 = vld [vmem:[%s3397 + $0x1a8] sm:$0xff]
    %v3452 = vld [vmem:[%s3397 + $0x1b0] sm:$0xff]
    %v3453 = vld [vmem:[%s3397 + $0x1b8] sm:$0xff]
    %v3454 = vld [vmem:[%s3397 + $0x1c0] sm:$0xff]
    %v3455 = vld [vmem:[%s3397 + $0x1c8] sm:$0xff]
    %v3456 = vld [vmem:[%s3397 + $0x1d0] sm:$0xff]
    %v3457 = vld [vmem:[%s3397 + $0x1d8] sm:$0xff]
    %v3458 = vld [vmem:[%s3397 + $0x1e0] sm:$0xff]
    %v3459 = vld [vmem:[%s3397 + $0x1e8] sm:$0xff]
    %v3460 = vld [vmem:[%s3397 + $0x1f0] sm:$0xff]
    %v3461 = vld [vmem:[%s3397 + $0x1f8] sm:$0xff]
    %v3462 = vld [vmem:[%s3397 + $0x200] sm:$0xff]
    %v3463 = vld [vmem:[%s3397 + $0x208] sm:$0xff]
    %v3464 = vld [vmem:[%s3397 + $0x210] sm:$0xff]
    %v3465 = vld [vmem:[%s3397 + $0x218] sm:$0xff]
    %v3466 = vld [vmem:[%s3397 + $0x220] sm:$0xff]
    %v3467 = vld [vmem:[%s3397 + $0x228] sm:$0xff]
    %v3468 = vld [vmem:[%s3397 + $0x230] sm:$0xff]
    %v3469 = vld [vmem:[%s3397 + $0x238] sm:$0xff]
    %v3470 = vld [vmem:[%s3397 + $0x240] sm:$0xff]
    %v3471 = vld [vmem:[%s3397 + $0x248] sm:$0xff]
    %v3472 = vld [vmem:[%s3397 + $0x250] sm:$0xff]
    %v3473 = vld [vmem:[%s3397 + $0x258] sm:$0xff]
    %v3474 = vld [vmem:[%s3397 + $0x260] sm:$0xff]
    %v3475 = vld [vmem:[%s3397 + $0x268] sm:$0xff]
    %v3476 = vld [vmem:[%s3397 + $0x270] sm:$0xff]
    %v3477 = vld [vmem:[%s3397 + $0x278] sm:$0xff]
    %v3478 = vld [vmem:[%s3397 + $0x280] sm:$0xff]
    %v3479 = vld [vmem:[%s3397 + $0x288] sm:$0xff]
    %v3480 = vld [vmem:[%s3397 + $0x290] sm:$0xff]
    %v3481 = vld [vmem:[%s3397 + $0x298] sm:$0xff]
    %v3482 = vld [vmem:[%s3397 + $0x2a0] sm:$0xff]
    %v3483 = vld [vmem:[%s3397 + $0x2a8] sm:$0xff]
    %v3484 = vld [vmem:[%s3397 + $0x2b0] sm:$0xff]
    %v3485 = vld [vmem:[%s3397 + $0x2b8] sm:$0xff]
    %v3486 = vld [vmem:[%s3397 + $0x2c0] sm:$0xff]
    %v3487 = vld [vmem:[%s3397 + $0x2c8] sm:$0xff]
    %v3488 = vld [vmem:[%s3397 + $0x2d0] sm:$0xff]
    %v3489 = vld [vmem:[%s3397 + $0x2d8] sm:$0xff]
    %v3490 = vld [vmem:[%s3397 + $0x2e0] sm:$0xff]
    %v3491 = vld [vmem:[%s3397 + $0x2e8] sm:$0xff]
    %v3492 = vld [vmem:[%s3397 + $0x2f0] sm:$0xff]
    %v3493 = vld [vmem:[%s3397 + $0x2f8] sm:$0xff]
    %v3494 = vld [vmem:[%s3397 + $0x300] sm:$0xff]
    %v3495 = vld [vmem:[%s3397 + $0x308] sm:$0xff]
    %v3496 = vld [vmem:[%s3397 + $0x310] sm:$0xff]
    %v3497 = vld [vmem:[%s3397 + $0x318] sm:$0xff]
    %v3498 = vld [vmem:[%s3397 + $0x320] sm:$0xff]
    %v3499 = vld [vmem:[%s3397 + $0x328] sm:$0xff]
    %v3500 = vld [vmem:[%s3397 + $0x330] sm:$0xff]
    %v3501 = vld [vmem:[%s3397 + $0x338] sm:$0xff]
    %v3502 = vld [vmem:[%s3397 + $0x340] sm:$0xff]
    %v3503 = vld [vmem:[%s3397 + $0x348] sm:$0xff]
    %v3504 = vld [vmem:[%s3397 + $0x350] sm:$0xff]
    %v3505 = vld [vmem:[%s3397 + $0x358] sm:$0xff]
    %v3506 = vld [vmem:[%s3397 + $0x360] sm:$0xff]
    %v3507 = vld [vmem:[%s3397 + $0x368] sm:$0xff]
    %v3508 = vld [vmem:[%s3397 + $0x370] sm:$0xff]
    %v3509 = vld [vmem:[%s3397 + $0x378] sm:$0xff]
    %v3510 = vld [vmem:[%s3397 + $0x380] sm:$0xff]
    %v3511 = vld [vmem:[%s3397 + $0x388] sm:$0xff]
    %v3512 = vld [vmem:[%s3397 + $0x390] sm:$0xff]
    %v3513 = vld [vmem:[%s3397 + $0x398] sm:$0xff]
    %v3514 = vld [vmem:[%s3397 + $0x3a0] sm:$0xff]
    %v3515 = vld [vmem:[%s3397 + $0x3a8] sm:$0xff]
    %v3516 = vld [vmem:[%s3397 + $0x3b0] sm:$0xff]
    %v3517 = vld [vmem:[%s3397 + $0x3b8] sm:$0xff]
    %v3518 = vld [vmem:[%s3397 + $0x3c0] sm:$0xff]
    %v3519 = vld [vmem:[%s3397 + $0x3c8] sm:$0xff]
    %v3520 = vld [vmem:[%s3397 + $0x3d0] sm:$0xff]
    %v3521 = vld [vmem:[%s3397 + $0x3d8] sm:$0xff]
    %v3522 = vld [vmem:[%s3397 + $0x3e0] sm:$0xff]
    %v3523 = vld [vmem:[%s3397 + $0x3e8] sm:$0xff]
    %v3524 = vld [vmem:[%s3397 + $0x3f0] sm:$0xff]
    %v3525 = vld [vmem:[%s3397 + $0x3f8] sm:$0xff]
    %v3526 = vld [vmem:[%s3397 + $0x400] sm:$0xff]
    %v3527 = vld [vmem:[%s3397 + $0x408] sm:$0xff]
    %v3528 = vld [vmem:[%s3397 + $0x410] sm:$0xff]
    %v3529 = vld [vmem:[%s3397 + $0x418] sm:$0xff]
    %v3530 = vld [vmem:[%s3397 + $0x420] sm:$0xff]
    %v3531 = vld [vmem:[%s3397 + $0x428] sm:$0xff]
    %v3532 = vld [vmem:[%s3397 + $0x430] sm:$0xff]
    %v3533 = vld [vmem:[%s3397 + $0x438] sm:$0xff]
    %v3534 = vld [vmem:[%s3397 + $0x440] sm:$0xff]
    %v3535 = vld [vmem:[%s3397 + $0x448] sm:$0xff]
    %v3536 = vld [vmem:[%s3397 + $0x450] sm:$0xff]
    %v3537 = vld [vmem:[%s3397 + $0x458] sm:$0xff]
    %v3538 = vld [vmem:[%s3397 + $0x460] sm:$0xff]
    %v3539 = vld [vmem:[%s3397 + $0x468] sm:$0xff]
    %v3540 = vld [vmem:[%s3397 + $0x470] sm:$0xff]
    %v3541 = vld [vmem:[%s3397 + $0x478] sm:$0xff]
    %v3542 = vld [vmem:[%s3397 + $0x480] sm:$0xff]
    %v3543 = vld [vmem:[%s3397 + $0x488] sm:$0xff]
    %v3544 = vld [vmem:[%s3397 + $0x490] sm:$0xff]
    %v3545 = vld [vmem:[%s3397 + $0x498] sm:$0xff]
    %v3546 = vld [vmem:[%s3397 + $0x4a0] sm:$0xff]
    %v3547 = vld [vmem:[%s3397 + $0x4a8] sm:$0xff]
    %v3548 = vld [vmem:[%s3397 + $0x4b0] sm:$0xff]
    %v3549 = vld [vmem:[%s3397 + $0x4b8] sm:$0xff]
    %v3550 = vld [vmem:[%s3397 + $0x4c0] sm:$0xff]
    %v3551 = vld [vmem:[%s3397 + $0x4c8] sm:$0xff]
    %v3552 = vld [vmem:[%s3397 + $0x4d0] sm:$0xff]
    %v3553 = vld [vmem:[%s3397 + $0x4d8] sm:$0xff]
    %v3554 = vld [vmem:[%s3397 + $0x4e0] sm:$0xff]
    %v3555 = vld [vmem:[%s3397 + $0x4e8] sm:$0xff]
    %v3556 = vld [vmem:[%s3397 + $0x4f0] sm:$0xff]
    %v3557 = vld [vmem:[%s3397 + $0x4f8] sm:$0xff]
    %v3558 = vld [vmem:[%s3397 + $0x500] sm:$0xff]
    %v3559 = vld [vmem:[%s3397 + $0x508] sm:$0xff]
    %v3560 = vld [vmem:[%s3397 + $0x510] sm:$0xff]
    %v3561 = vld [vmem:[%s3397 + $0x518] sm:$0xff]
    %v3562 = vld [vmem:[%s3397 + $0x520] sm:$0xff]
    %v3563 = vld [vmem:[%s3397 + $0x528] sm:$0xff]
    %v3564 = vld [vmem:[%s3397 + $0x530] sm:$0xff]
    %v3565 = vld [vmem:[%s3397 + $0x538] sm:$0xff]
    %v3566 = vld [vmem:[%s3397 + $0x540] sm:$0xff]
    %v3567 = vld [vmem:[%s3397 + $0x548] sm:$0xff]
    %v3568 = vld [vmem:[%s3397 + $0x550] sm:$0xff]
    %v3569 = vld [vmem:[%s3397 + $0x558] sm:$0xff]
    %v3570 = vld [vmem:[%s3397 + $0x560] sm:$0xff]
    %v3571 = vld [vmem:[%s3397 + $0x568] sm:$0xff]
    %v3572 = vld [vmem:[%s3397 + $0x570] sm:$0xff]
    %v3573 = vld [vmem:[%s3397 + $0x578] sm:$0xff]
    %v3574 = vld [vmem:[%s3397 + $0x580] sm:$0xff]
    %v3575 = vld [vmem:[%s3397 + $0x588] sm:$0xff]
    %v3576 = vld [vmem:[%s3397 + $0x590] sm:$0xff]
    %v3577 = vld [vmem:[%s3397 + $0x598] sm:$0xff]
    %v3578 = vld [vmem:[%s3397 + $0x5a0] sm:$0xff]
    %v3579 = vld [vmem:[%s3397 + $0x5a8] sm:$0xff]
    %v3580 = vld [vmem:[%s3397 + $0x5b0] sm:$0xff]
    %v3581 = vld [vmem:[%s3397 + $0x5b8] sm:$0xff]
    %v3582 = vld [vmem:[%s3397 + $0x5c0] sm:$0xff]
    %v3583 = vld [vmem:[%s3397 + $0x5c8] sm:$0xff]
    %v3584 = vld [vmem:[%s3397 + $0x5d0] sm:$0xff]
    %v3585 = vld [vmem:[%s3397 + $0x5d8] sm:$0xff]
    %v3586 = vld [vmem:[%s3397 + $0x5e0] sm:$0xff]
    %v3587 = vld [vmem:[%s3397 + $0x5e8] sm:$0xff]
    %v3588 = vld [vmem:[%s3397 + $0x5f0] sm:$0xff]
    %v3589 = vld [vmem:[%s3397 + $0x5f8] sm:$0xff]
    %v3782 = vunpack.c.l.b16 %v3398
    %v3783 = vunpack.c.h.b16 %v3398
    %v3784 = vunpack.c.l.b16 %v3399
    %v3785 = vunpack.c.h.b16 %v3399
    %v3786 = vunpack.c.l.b16 %v3400
    %v3787 = vunpack.c.h.b16 %v3400
    %v3788 = vunpack.c.l.b16 %v3401
    %v3789 = vunpack.c.h.b16 %v3401
    %v3790 = vunpack.c.l.b16 %v3402
    %v3791 = vunpack.c.h.b16 %v3402
    %v3792 = vunpack.c.l.b16 %v3403
    %v3793 = vunpack.c.h.b16 %v3403
    %v3794 = vunpack.c.l.b16 %v3404
    %v3795 = vunpack.c.h.b16 %v3404
    %v3796 = vunpack.c.l.b16 %v3405
    %v3797 = vunpack.c.h.b16 %v3405
    %v3798 = vunpack.c.l.b16 %v3406
    %v3799 = vunpack.c.h.b16 %v3406
    %v3800 = vunpack.c.l.b16 %v3407
    %v3801 = vunpack.c.h.b16 %v3407
    %v3802 = vunpack.c.l.b16 %v3408
    %v3803 = vunpack.c.h.b16 %v3408
    %v3804 = vunpack.c.l.b16 %v3409
    %v3805 = vunpack.c.h.b16 %v3409
    %v3806 = vunpack.c.l.b16 %v3410
    %v3807 = vunpack.c.h.b16 %v3410
    %v3808 = vunpack.c.l.b16 %v3411
    %v3809 = vunpack.c.h.b16 %v3411
    %v3810 = vunpack.c.l.b16 %v3412
    %v3811 = vunpack.c.h.b16 %v3412
    %v3812 = vunpack.c.l.b16 %v3413
    %v3813 = vunpack.c.h.b16 %v3413
    %v3814 = vunpack.c.l.b16 %v3414
    %v3815 = vunpack.c.h.b16 %v3414
    %v3816 = vunpack.c.l.b16 %v3415
    %v3817 = vunpack.c.h.b16 %v3415
    %v3818 = vunpack.c.l.b16 %v3416
    %v3819 = vunpack.c.h.b16 %v3416
    %v3820 = vunpack.c.l.b16 %v3417
    %v3821 = vunpack.c.h.b16 %v3417
    %v3822 = vunpack.c.l.b16 %v3418
    %v3823 = vunpack.c.h.b16 %v3418
    %v3824 = vunpack.c.l.b16 %v3419
    %v3825 = vunpack.c.h.b16 %v3419
    %v3826 = vunpack.c.l.b16 %v3420
    %v3827 = vunpack.c.h.b16 %v3420
    %v3828 = vunpack.c.l.b16 %v3421
    %v3829 = vunpack.c.h.b16 %v3421
    %v3830 = vunpack.c.l.b16 %v3422
    %v3831 = vunpack.c.h.b16 %v3422
    %v3832 = vunpack.c.l.b16 %v3423
    %v3833 = vunpack.c.h.b16 %v3423
    %v3834 = vunpack.c.l.b16 %v3424
    %v3835 = vunpack.c.h.b16 %v3424
    %v3836 = vunpack.c.l.b16 %v3425
    %v3837 = vunpack.c.h.b16 %v3425
    %v3838 = vunpack.c.l.b16 %v3426
    %v3839 = vunpack.c.h.b16 %v3426
    %v3840 = vunpack.c.l.b16 %v3427
    %v3841 = vunpack.c.h.b16 %v3427
    %v3842 = vunpack.c.l.b16 %v3428
    %v3843 = vunpack.c.h.b16 %v3428
    %v3844 = vunpack.c.l.b16 %v3429
    %v3845 = vunpack.c.h.b16 %v3429
    %v3846 = vunpack.c.l.b16 %v3430
    %v3847 = vunpack.c.h.b16 %v3430
    %v3848 = vunpack.c.l.b16 %v3431
    %v3849 = vunpack.c.h.b16 %v3431
    %v3850 = vunpack.c.l.b16 %v3432
    %v3851 = vunpack.c.h.b16 %v3432
    %v3852 = vunpack.c.l.b16 %v3433
    %v3853 = vunpack.c.h.b16 %v3433
    %v3854 = vunpack.c.l.b16 %v3434
    %v3855 = vunpack.c.h.b16 %v3434
    %v3856 = vunpack.c.l.b16 %v3435
    %v3857 = vunpack.c.h.b16 %v3435
    %v3858 = vunpack.c.l.b16 %v3436
    %v3859 = vunpack.c.h.b16 %v3436
    %v3860 = vunpack.c.l.b16 %v3437
    %v3861 = vunpack.c.h.b16 %v3437
    %v3862 = vunpack.c.l.b16 %v3438
    %v3863 = vunpack.c.h.b16 %v3438
    %v3864 = vunpack.c.l.b16 %v3439
    %v3865 = vunpack.c.h.b16 %v3439
    %v3866 = vunpack.c.l.b16 %v3440
    %v3867 = vunpack.c.h.b16 %v3440
    %v3868 = vunpack.c.l.b16 %v3441
    %v3869 = vunpack.c.h.b16 %v3441
    %v3870 = vunpack.c.l.b16 %v3442
    %v3871 = vunpack.c.h.b16 %v3442
    %v3872 = vunpack.c.l.b16 %v3443
    %v3873 = vunpack.c.h.b16 %v3443
    %v3874 = vunpack.c.l.b16 %v3444
    %v3875 = vunpack.c.h.b16 %v3444
    %v3876 = vunpack.c.l.b16 %v3445
    %v3877 = vunpack.c.h.b16 %v3445
    %v3878 = vunpack.c.l.b16 %v3446
    %v3879 = vunpack.c.h.b16 %v3446
    %v3880 = vunpack.c.l.b16 %v3447
    %v3881 = vunpack.c.h.b16 %v3447
    %v3882 = vunpack.c.l.b16 %v3448
    %v3883 = vunpack.c.h.b16 %v3448
    %v3884 = vunpack.c.l.b16 %v3449
    %v3885 = vunpack.c.h.b16 %v3449
    %v3886 = vunpack.c.l.b16 %v3450
    %v3887 = vunpack.c.h.b16 %v3450
    %v3888 = vunpack.c.l.b16 %v3451
    %v3889 = vunpack.c.h.b16 %v3451
    %v3890 = vunpack.c.l.b16 %v3452
    %v3891 = vunpack.c.h.b16 %v3452
    %v3892 = vunpack.c.l.b16 %v3453
    %v3893 = vunpack.c.h.b16 %v3453
    %v3894 = vunpack.c.l.b16 %v3454
    %v3895 = vunpack.c.h.b16 %v3454
    %v3896 = vunpack.c.l.b16 %v3455
    %v3897 = vunpack.c.h.b16 %v3455
    %v3898 = vunpack.c.l.b16 %v3456
    %v3899 = vunpack.c.h.b16 %v3456
    %v3900 = vunpack.c.l.b16 %v3457
    %v3901 = vunpack.c.h.b16 %v3457
    %v3902 = vunpack.c.l.b16 %v3458
    %v3903 = vunpack.c.h.b16 %v3458
    %v3904 = vunpack.c.l.b16 %v3459
    %v3905 = vunpack.c.h.b16 %v3459
    %v3906 = vunpack.c.l.b16 %v3460
    %v3907 = vunpack.c.h.b16 %v3460
    %v3908 = vunpack.c.l.b16 %v3461
    %v3909 = vunpack.c.h.b16 %v3461
    %v3910 = vunpack.c.l.b16 %v3462
    %v3911 = vunpack.c.h.b16 %v3462
    %v3912 = vunpack.c.l.b16 %v3463
    %v3913 = vunpack.c.h.b16 %v3463
    %v3914 = vunpack.c.l.b16 %v3464
    %v3915 = vunpack.c.h.b16 %v3464
    %v3916 = vunpack.c.l.b16 %v3465
    %v3917 = vunpack.c.h.b16 %v3465
    %v3918 = vunpack.c.l.b16 %v3466
    %v3919 = vunpack.c.h.b16 %v3466
    %v3920 = vunpack.c.l.b16 %v3467
    %v3921 = vunpack.c.h.b16 %v3467
    %v3922 = vunpack.c.l.b16 %v3468
    %v3923 = vunpack.c.h.b16 %v3468
    %v3924 = vunpack.c.l.b16 %v3469
    %v3925 = vunpack.c.h.b16 %v3469
    %v3926 = vunpack.c.l.b16 %v3470
    %v3927 = vunpack.c.h.b16 %v3470
    %v3928 = vunpack.c.l.b16 %v3471
    %v3929 = vunpack.c.h.b16 %v3471
    %v3930 = vunpack.c.l.b16 %v3472
    %v3931 = vunpack.c.h.b16 %v3472
    %v3932 = vunpack.c.l.b16 %v3473
    %v3933 = vunpack.c.h.b16 %v3473
    %v3934 = vunpack.c.l.b16 %v3474
    %v3935 = vunpack.c.h.b16 %v3474
    %v3936 = vunpack.c.l.b16 %v3475
    %v3937 = vunpack.c.h.b16 %v3475
    %v3938 = vunpack.c.l.b16 %v3476
    %v3939 = vunpack.c.h.b16 %v3476
    %v3940 = vunpack.c.l.b16 %v3477
    %v3941 = vunpack.c.h.b16 %v3477
    %v3942 = vunpack.c.l.b16 %v3478
    %v3943 = vunpack.c.h.b16 %v3478
    %v3944 = vunpack.c.l.b16 %v3479
    %v3945 = vunpack.c.h.b16 %v3479
    %v3946 = vunpack.c.l.b16 %v3480
    %v3947 = vunpack.c.h.b16 %v3480
    %v3948 = vunpack.c.l.b16 %v3481
    %v3949 = vunpack.c.h.b16 %v3481
    %v3950 = vunpack.c.l.b16 %v3482
    %v3951 = vunpack.c.h.b16 %v3482
    %v3952 = vunpack.c.l.b16 %v3483
    %v3953 = vunpack.c.h.b16 %v3483
    %v3954 = vunpack.c.l.b16 %v3484
    %v3955 = vunpack.c.h.b16 %v3484
    %v3956 = vunpack.c.l.b16 %v3485
    %v3957 = vunpack.c.h.b16 %v3485
    %v3958 = vunpack.c.l.b16 %v3486
    %v3959 = vunpack.c.h.b16 %v3486
    %v3960 = vunpack.c.l.b16 %v3487
    %v3961 = vunpack.c.h.b16 %v3487
    %v3962 = vunpack.c.l.b16 %v3488
    %v3963 = vunpack.c.h.b16 %v3488
    %v3964 = vunpack.c.l.b16 %v3489
    %v3965 = vunpack.c.h.b16 %v3489
    %v3966 = vunpack.c.l.b16 %v3490
    %v3967 = vunpack.c.h.b16 %v3490
    %v3968 = vunpack.c.l.b16 %v3491
    %v3969 = vunpack.c.h.b16 %v3491
    %v3970 = vunpack.c.l.b16 %v3492
    %v3971 = vunpack.c.h.b16 %v3492
    %v3972 = vunpack.c.l.b16 %v3493
    %v3973 = vunpack.c.h.b16 %v3493
    %v3974 = vunpack.c.l.b16 %v3494
    %v3975 = vunpack.c.h.b16 %v3494
    %v3976 = vunpack.c.l.b16 %v3495
    %v3977 = vunpack.c.h.b16 %v3495
    %v3978 = vunpack.c.l.b16 %v3496
    %v3979 = vunpack.c.h.b16 %v3496
    %v3980 = vunpack.c.l.b16 %v3497
    %v3981 = vunpack.c.h.b16 %v3497
    %v3982 = vunpack.c.l.b16 %v3498
    %v3983 = vunpack.c.h.b16 %v3498
    %v3984 = vunpack.c.l.b16 %v3499
    %v3985 = vunpack.c.h.b16 %v3499
    %v3986 = vunpack.c.l.b16 %v3500
    %v3987 = vunpack.c.h.b16 %v3500
    %v3988 = vunpack.c.l.b16 %v3501
    %v3989 = vunpack.c.h.b16 %v3501
    %v3990 = vunpack.c.l.b16 %v3502
    %v3991 = vunpack.c.h.b16 %v3502
    %v3992 = vunpack.c.l.b16 %v3503
    %v3993 = vunpack.c.h.b16 %v3503
    %v3994 = vunpack.c.l.b16 %v3504
    %v3995 = vunpack.c.h.b16 %v3504
    %v3996 = vunpack.c.l.b16 %v3505
    %v3997 = vunpack.c.h.b16 %v3505
    %v3998 = vunpack.c.l.b16 %v3506
    %v3999 = vunpack.c.h.b16 %v3506
    %v4000 = vunpack.c.l.b16 %v3507
    %v4001 = vunpack.c.h.b16 %v3507
    %v4002 = vunpack.c.l.b16 %v3508
    %v4003 = vunpack.c.h.b16 %v3508
    %v4004 = vunpack.c.l.b16 %v3509
    %v4005 = vunpack.c.h.b16 %v3509
    %v4006 = vunpack.c.l.b16 %v3510
    %v4007 = vunpack.c.h.b16 %v3510
    %v4008 = vunpack.c.l.b16 %v3511
    %v4009 = vunpack.c.h.b16 %v3511
    %v4010 = vunpack.c.l.b16 %v3512
    %v4011 = vunpack.c.h.b16 %v3512
    %v4012 = vunpack.c.l.b16 %v3513
    %v4013 = vunpack.c.h.b16 %v3513
    %v4014 = vunpack.c.l.b16 %v3514
    %v4015 = vunpack.c.h.b16 %v3514
    %v4016 = vunpack.c.l.b16 %v3515
    %v4017 = vunpack.c.h.b16 %v3515
    %v4018 = vunpack.c.l.b16 %v3516
    %v4019 = vunpack.c.h.b16 %v3516
    %v4020 = vunpack.c.l.b16 %v3517
    %v4021 = vunpack.c.h.b16 %v3517
    %v4022 = vunpack.c.l.b16 %v3518
    %v4023 = vunpack.c.h.b16 %v3518
    %v4024 = vunpack.c.l.b16 %v3519
    %v4025 = vunpack.c.h.b16 %v3519
    %v4026 = vunpack.c.l.b16 %v3520
    %v4027 = vunpack.c.h.b16 %v3520
    %v4028 = vunpack.c.l.b16 %v3521
    %v4029 = vunpack.c.h.b16 %v3521
    %v4030 = vunpack.c.l.b16 %v3522
    %v4031 = vunpack.c.h.b16 %v3522
    %v4032 = vunpack.c.l.b16 %v3523
    %v4033 = vunpack.c.h.b16 %v3523
    %v4034 = vunpack.c.l.b16 %v3524
    %v4035 = vunpack.c.h.b16 %v3524
    %v4036 = vunpack.c.l.b16 %v3525
    %v4037 = vunpack.c.h.b16 %v3525
    %v4038 = vunpack.c.l.b16 %v3526
    %v4039 = vunpack.c.h.b16 %v3526
    %v4040 = vunpack.c.l.b16 %v3527
    %v4041 = vunpack.c.h.b16 %v3527
    %v4042 = vunpack.c.l.b16 %v3528
    %v4043 = vunpack.c.h.b16 %v3528
    %v4044 = vunpack.c.l.b16 %v3529
    %v4045 = vunpack.c.h.b16 %v3529
    %v4046 = vunpack.c.l.b16 %v3530
    %v4047 = vunpack.c.h.b16 %v3530
    %v4048 = vunpack.c.l.b16 %v3531
    %v4049 = vunpack.c.h.b16 %v3531
    %v4050 = vunpack.c.l.b16 %v3532
    %v4051 = vunpack.c.h.b16 %v3532
    %v4052 = vunpack.c.l.b16 %v3533
    %v4053 = vunpack.c.h.b16 %v3533
    %v4054 = vunpack.c.l.b16 %v3534
    %v4055 = vunpack.c.h.b16 %v3534
    %v4056 = vunpack.c.l.b16 %v3535
    %v4057 = vunpack.c.h.b16 %v3535
    %v4058 = vunpack.c.l.b16 %v3536
    %v4059 = vunpack.c.h.b16 %v3536
    %v4060 = vunpack.c.l.b16 %v3537
    %v4061 = vunpack.c.h.b16 %v3537
    %v4062 = vunpack.c.l.b16 %v3538
    %v4063 = vunpack.c.h.b16 %v3538
    %v4064 = vunpack.c.l.b16 %v3539
    %v4065 = vunpack.c.h.b16 %v3539
    %v4066 = vunpack.c.l.b16 %v3540
    %v4067 = vunpack.c.h.b16 %v3540
    %v4068 = vunpack.c.l.b16 %v3541
    %v4069 = vunpack.c.h.b16 %v3541
    %v4070 = vunpack.c.l.b16 %v3542
    %v4071 = vunpack.c.h.b16 %v3542
    %v4072 = vunpack.c.l.b16 %v3543
    %v4073 = vunpack.c.h.b16 %v3543
    %v4074 = vunpack.c.l.b16 %v3544
    %v4075 = vunpack.c.h.b16 %v3544
    %v4076 = vunpack.c.l.b16 %v3545
    %v4077 = vunpack.c.h.b16 %v3545
    %v4078 = vunpack.c.l.b16 %v3546
    %v4079 = vunpack.c.h.b16 %v3546
    %v4080 = vunpack.c.l.b16 %v3547
    %v4081 = vunpack.c.h.b16 %v3547
    %v4082 = vunpack.c.l.b16 %v3548
    %v4083 = vunpack.c.h.b16 %v3548
    %v4084 = vunpack.c.l.b16 %v3549
    %v4085 = vunpack.c.h.b16 %v3549
    %v4086 = vunpack.c.l.b16 %v3550
    %v4087 = vunpack.c.h.b16 %v3550
    %v4088 = vunpack.c.l.b16 %v3551
    %v4089 = vunpack.c.h.b16 %v3551
    %v4090 = vunpack.c.l.b16 %v3552
    %v4091 = vunpack.c.h.b16 %v3552
    %v4092 = vunpack.c.l.b16 %v3553
    %v4093 = vunpack.c.h.b16 %v3553
    %v4094 = vunpack.c.l.b16 %v3554
    %v4095 = vunpack.c.h.b16 %v3554
    %v4096 = vunpack.c.l.b16 %v3555
    %v4097 = vunpack.c.h.b16 %v3555
    %v4098 = vunpack.c.l.b16 %v3556
    %v4099 = vunpack.c.h.b16 %v3556
    %v4100 = vunpack.c.l.b16 %v3557
    %v4101 = vunpack.c.h.b16 %v3557
    %v4102 = vunpack.c.l.b16 %v3558
    %v4103 = vunpack.c.h.b16 %v3558
    %v4104 = vunpack.c.l.b16 %v3559
    %v4105 = vunpack.c.h.b16 %v3559
    %v4106 = vunpack.c.l.b16 %v3560
    %v4107 = vunpack.c.h.b16 %v3560
    %v4108 = vunpack.c.l.b16 %v3561
    %v4109 = vunpack.c.h.b16 %v3561
    %v4110 = vunpack.c.l.b16 %v3562
    %v4111 = vunpack.c.h.b16 %v3562
    %v4112 = vunpack.c.l.b16 %v3563
    %v4113 = vunpack.c.h.b16 %v3563
    %v4114 = vunpack.c.l.b16 %v3564
    %v4115 = vunpack.c.h.b16 %v3564
    %v4116 = vunpack.c.l.b16 %v3565
    %v4117 = vunpack.c.h.b16 %v3565
    %v4118 = vunpack.c.l.b16 %v3566
    %v4119 = vunpack.c.h.b16 %v3566
    %v4120 = vunpack.c.l.b16 %v3567
    %v4121 = vunpack.c.h.b16 %v3567
    %v4122 = vunpack.c.l.b16 %v3568
    %v4123 = vunpack.c.h.b16 %v3568
    %v4124 = vunpack.c.l.b16 %v3569
    %v4125 = vunpack.c.h.b16 %v3569
    %v4126 = vunpack.c.l.b16 %v3570
    %v4127 = vunpack.c.h.b16 %v3570
    %v4128 = vunpack.c.l.b16 %v3571
    %v4129 = vunpack.c.h.b16 %v3571
    %v4130 = vunpack.c.l.b16 %v3572
    %v4131 = vunpack.c.h.b16 %v3572
    %v4132 = vunpack.c.l.b16 %v3573
    %v4133 = vunpack.c.h.b16 %v3573
    %v4134 = vunpack.c.l.b16 %v3574
    %v4135 = vunpack.c.h.b16 %v3574
    %v4136 = vunpack.c.l.b16 %v3575
    %v4137 = vunpack.c.h.b16 %v3575
    %v4138 = vunpack.c.l.b16 %v3576
    %v4139 = vunpack.c.h.b16 %v3576
    %v4140 = vunpack.c.l.b16 %v3577
    %v4141 = vunpack.c.h.b16 %v3577
    %v4142 = vunpack.c.l.b16 %v3578
    %v4143 = vunpack.c.h.b16 %v3578
    %v4144 = vunpack.c.l.b16 %v3579
    %v4145 = vunpack.c.h.b16 %v3579
    %v4146 = vunpack.c.l.b16 %v3580
    %v4147 = vunpack.c.h.b16 %v3580
    %v4148 = vunpack.c.l.b16 %v3581
    %v4149 = vunpack.c.h.b16 %v3581
    %v4150 = vunpack.c.l.b16 %v3582
    %v4151 = vunpack.c.h.b16 %v3582
    %v4152 = vunpack.c.l.b16 %v3583
    %v4153 = vunpack.c.h.b16 %v3583
    %v4154 = vunpack.c.l.b16 %v3584
    %v4155 = vunpack.c.h.b16 %v3584
    %v4156 = vunpack.c.l.b16 %v3585
    %v4157 = vunpack.c.h.b16 %v3585
    %v4158 = vunpack.c.l.b16 %v3586
    %v4159 = vunpack.c.h.b16 %v3586
    %v4160 = vunpack.c.l.b16 %v3587
    %v4161 = vunpack.c.h.b16 %v3587
    %v4162 = vunpack.c.l.b16 %v3588
    %v4163 = vunpack.c.h.b16 %v3588
    %v4164 = vunpack.c.l.b16 %v3589
    %v4165 = vunpack.c.h.b16 %v3589
    %v4166 = vpack.c.b16 %v3788, %v3782
    %v4167 = vpack.c.b16 %v3789, %v3783
    %v4168 = vpack.c.b16 %v3790, %v3784
    %v4169 = vpack.c.b16 %v3791, %v3785
    %v4170 = vpack.c.b16 %v3792, %v3786
    %v4171 = vpack.c.b16 %v3793, %v3787
    %v4172 = vpack.c.b16 %v3800, %v3794
    %v4173 = vpack.c.b16 %v3801, %v3795
    %v4174 = vpack.c.b16 %v3802, %v3796
    %v4175 = vpack.c.b16 %v3803, %v3797
    %v4176 = vpack.c.b16 %v3804, %v3798
    %v4177 = vpack.c.b16 %v3805, %v3799
    %v4178 = vpack.c.b16 %v3812, %v3806
    %v4179 = vpack.c.b16 %v3813, %v3807
    %v4180 = vpack.c.b16 %v3814, %v3808
    %v4181 = vpack.c.b16 %v3815, %v3809
    %v4182 = vpack.c.b16 %v3816, %v3810
    %v4183 = vpack.c.b16 %v3817, %v3811
    %v4184 = vpack.c.b16 %v3824, %v3818
    %v4185 = vpack.c.b16 %v3825, %v3819
    %v4186 = vpack.c.b16 %v3826, %v3820
    %v4187 = vpack.c.b16 %v3827, %v3821
    %v4188 = vpack.c.b16 %v3828, %v3822
    %v4189 = vpack.c.b16 %v3829, %v3823
    %v4190 = vpack.c.b16 %v3836, %v3830
    %v4191 = vpack.c.b16 %v3837, %v3831
    %v4192 = vpack.c.b16 %v3838, %v3832
    %v4193 = vpack.c.b16 %v3839, %v3833
    %v4194 = vpack.c.b16 %v3840, %v3834
    %v4195 = vpack.c.b16 %v3841, %v3835
    %v4196 = vpack.c.b16 %v3848, %v3842
    %v4197 = vpack.c.b16 %v3849, %v3843
    %v4198 = vpack.c.b16 %v3850, %v3844
    %v4199 = vpack.c.b16 %v3851, %v3845
    %v4200 = vpack.c.b16 %v3852, %v3846
    %v4201 = vpack.c.b16 %v3853, %v3847
    %v4202 = vpack.c.b16 %v3860, %v3854
    %v4203 = vpack.c.b16 %v3861, %v3855
    %v4204 = vpack.c.b16 %v3862, %v3856
    %v4205 = vpack.c.b16 %v3863, %v3857
    %v4206 = vpack.c.b16 %v3864, %v3858
    %v4207 = vpack.c.b16 %v3865, %v3859
    %v4208 = vpack.c.b16 %v3872, %v3866
    %v4209 = vpack.c.b16 %v3873, %v3867
    %v4210 = vpack.c.b16 %v3874, %v3868
    %v4211 = vpack.c.b16 %v3875, %v3869
    %v4212 = vpack.c.b16 %v3876, %v3870
    %v4213 = vpack.c.b16 %v3877, %v3871
    %v4214 = vpack.c.b16 %v3884, %v3878
    %v4215 = vpack.c.b16 %v3885, %v3879
    %v4216 = vpack.c.b16 %v3886, %v3880
    %v4217 = vpack.c.b16 %v3887, %v3881
    %v4218 = vpack.c.b16 %v3888, %v3882
    %v4219 = vpack.c.b16 %v3889, %v3883
    %v4220 = vpack.c.b16 %v3896, %v3890
    %v4221 = vpack.c.b16 %v3897, %v3891
    %v4222 = vpack.c.b16 %v3898, %v3892
    %v4223 = vpack.c.b16 %v3899, %v3893
    %v4224 = vpack.c.b16 %v3900, %v3894
    %v4225 = vpack.c.b16 %v3901, %v3895
    %v4226 = vpack.c.b16 %v3908, %v3902
    %v4227 = vpack.c.b16 %v3909, %v3903
    %v4228 = vpack.c.b16 %v3910, %v3904
    %v4229 = vpack.c.b16 %v3911, %v3905
    %v4230 = vpack.c.b16 %v3912, %v3906
    %v4231 = vpack.c.b16 %v3913, %v3907
    %v4232 = vpack.c.b16 %v3920, %v3914
    %v4233 = vpack.c.b16 %v3921, %v3915
    %v4234 = vpack.c.b16 %v3922, %v3916
    %v4235 = vpack.c.b16 %v3923, %v3917
    %v4236 = vpack.c.b16 %v3924, %v3918
    %v4237 = vpack.c.b16 %v3925, %v3919
    %v4238 = vpack.c.b16 %v3932, %v3926
    %v4239 = vpack.c.b16 %v3933, %v3927
    %v4240 = vpack.c.b16 %v3934, %v3928
    %v4241 = vpack.c.b16 %v3935, %v3929
    %v4242 = vpack.c.b16 %v3936, %v3930
    %v4243 = vpack.c.b16 %v3937, %v3931
    %v4244 = vpack.c.b16 %v3944, %v3938
    %v4245 = vpack.c.b16 %v3945, %v3939
    %v4246 = vpack.c.b16 %v3946, %v3940
    %v4247 = vpack.c.b16 %v3947, %v3941
    %v4248 = vpack.c.b16 %v3948, %v3942
    %v4249 = vpack.c.b16 %v3949, %v3943
    %v4250 = vpack.c.b16 %v3956, %v3950
    %v4251 = vpack.c.b16 %v3957, %v3951
    %v4252 = vpack.c.b16 %v3958, %v3952
    %v4253 = vpack.c.b16 %v3959, %v3953
    %v4254 = vpack.c.b16 %v3960, %v3954
    %v4255 = vpack.c.b16 %v3961, %v3955
    %v4256 = vpack.c.b16 %v3968, %v3962
    %v4257 = vpack.c.b16 %v3969, %v3963
    %v4258 = vpack.c.b16 %v3970, %v3964
    %v4259 = vpack.c.b16 %v3971, %v3965
    %v4260 = vpack.c.b16 %v3972, %v3966
    %v4261 = vpack.c.b16 %v3973, %v3967
    %v4262 = vpack.c.b16 %v3980, %v3974
    %v4263 = vpack.c.b16 %v3981, %v3975
    %v4264 = vpack.c.b16 %v3982, %v3976
    %v4265 = vpack.c.b16 %v3983, %v3977
    %v4266 = vpack.c.b16 %v3984, %v3978
    %v4267 = vpack.c.b16 %v3985, %v3979
    %v4268 = vpack.c.b16 %v3992, %v3986
    %v4269 = vpack.c.b16 %v3993, %v3987
    %v4270 = vpack.c.b16 %v3994, %v3988
    %v4271 = vpack.c.b16 %v3995, %v3989
    %v4272 = vpack.c.b16 %v3996, %v3990
    %v4273 = vpack.c.b16 %v3997, %v3991
    %v4274 = vpack.c.b16 %v4004, %v3998
    %v4275 = vpack.c.b16 %v4005, %v3999
    %v4276 = vpack.c.b16 %v4006, %v4000
    %v4277 = vpack.c.b16 %v4007, %v4001
    %v4278 = vpack.c.b16 %v4008, %v4002
    %v4279 = vpack.c.b16 %v4009, %v4003
    %v4280 = vpack.c.b16 %v4016, %v4010
    %v4281 = vpack.c.b16 %v4017, %v4011
    %v4282 = vpack.c.b16 %v4018, %v4012
    %v4283 = vpack.c.b16 %v4019, %v4013
    %v4284 = vpack.c.b16 %v4020, %v4014
    %v4285 = vpack.c.b16 %v4021, %v4015
    %v4286 = vpack.c.b16 %v4028, %v4022
    %v4287 = vpack.c.b16 %v4029, %v4023
    %v4288 = vpack.c.b16 %v4030, %v4024
    %v4289 = vpack.c.b16 %v4031, %v4025
    %v4290 = vpack.c.b16 %v4032, %v4026
    %v4291 = vpack.c.b16 %v4033, %v4027
    %v4292 = vpack.c.b16 %v4040, %v4034
    %v4293 = vpack.c.b16 %v4041, %v4035
    %v4294 = vpack.c.b16 %v4042, %v4036
    %v4295 = vpack.c.b16 %v4043, %v4037
    %v4296 = vpack.c.b16 %v4044, %v4038
    %v4297 = vpack.c.b16 %v4045, %v4039
    %v4298 = vpack.c.b16 %v4052, %v4046
    %v4299 = vpack.c.b16 %v4053, %v4047
    %v4300 = vpack.c.b16 %v4054, %v4048
    %v4301 = vpack.c.b16 %v4055, %v4049
    %v4302 = vpack.c.b16 %v4056, %v4050
    %v4303 = vpack.c.b16 %v4057, %v4051
    %v4304 = vpack.c.b16 %v4064, %v4058
    %v4305 = vpack.c.b16 %v4065, %v4059
    %v4306 = vpack.c.b16 %v4066, %v4060
    %v4307 = vpack.c.b16 %v4067, %v4061
    %v4308 = vpack.c.b16 %v4068, %v4062
    %v4309 = vpack.c.b16 %v4069, %v4063
    %v4310 = vpack.c.b16 %v4076, %v4070
    %v4311 = vpack.c.b16 %v4077, %v4071
    %v4312 = vpack.c.b16 %v4078, %v4072
    %v4313 = vpack.c.b16 %v4079, %v4073
    %v4314 = vpack.c.b16 %v4080, %v4074
    %v4315 = vpack.c.b16 %v4081, %v4075
    %v4316 = vpack.c.b16 %v4088, %v4082
    %v4317 = vpack.c.b16 %v4089, %v4083
    %v4318 = vpack.c.b16 %v4090, %v4084
    %v4319 = vpack.c.b16 %v4091, %v4085
    %v4320 = vpack.c.b16 %v4092, %v4086
    %v4321 = vpack.c.b16 %v4093, %v4087
    %v4322 = vpack.c.b16 %v4100, %v4094
    %v4323 = vpack.c.b16 %v4101, %v4095
    %v4324 = vpack.c.b16 %v4102, %v4096
    %v4325 = vpack.c.b16 %v4103, %v4097
    %v4326 = vpack.c.b16 %v4104, %v4098
    %v4327 = vpack.c.b16 %v4105, %v4099
    %v4328 = vpack.c.b16 %v4112, %v4106
    %v4329 = vpack.c.b16 %v4113, %v4107
    %v4330 = vpack.c.b16 %v4114, %v4108
    %v4331 = vpack.c.b16 %v4115, %v4109
    %v4332 = vpack.c.b16 %v4116, %v4110
    %v4333 = vpack.c.b16 %v4117, %v4111
    %v4334 = vpack.c.b16 %v4124, %v4118
    %v4335 = vpack.c.b16 %v4125, %v4119
    %v4336 = vpack.c.b16 %v4126, %v4120
    %v4337 = vpack.c.b16 %v4127, %v4121
    %v4338 = vpack.c.b16 %v4128, %v4122
    %v4339 = vpack.c.b16 %v4129, %v4123
    %v4340 = vpack.c.b16 %v4136, %v4130
    %v4341 = vpack.c.b16 %v4137, %v4131
    %v4342 = vpack.c.b16 %v4138, %v4132
    %v4343 = vpack.c.b16 %v4139, %v4133
    %v4344 = vpack.c.b16 %v4140, %v4134
    %v4345 = vpack.c.b16 %v4141, %v4135
    %v4346 = vpack.c.b16 %v4148, %v4142
    %v4347 = vpack.c.b16 %v4149, %v4143
    %v4348 = vpack.c.b16 %v4150, %v4144
    %v4349 = vpack.c.b16 %v4151, %v4145
    %v4350 = vpack.c.b16 %v4152, %v4146
    %v4351 = vpack.c.b16 %v4153, %v4147
    %v4352 = vpack.c.b16 %v4160, %v4154
    %v4353 = vpack.c.b16 %v4161, %v4155
    %v4354 = vpack.c.b16 %v4162, %v4156
    %v4355 = vpack.c.b16 %v4163, %v4157
    %v4356 = vpack.c.b16 %v4164, %v4158
    %v4357 = vpack.c.b16 %v4165, %v4159
    %4550 = vmatprep.subr.bf16.mxu0 %v4167
    %4551 = vmatpush1.bf16.msra.mxu0 %v4166
    %4552 = vmatprep.subr.bf16.mxu0 %v4173
    %4553 = vmatpush1.bf16.msra.mxu0 %v4172
    %4554 = vmatprep.subr.bf16.mxu0 %v4179
    %4555 = vmatpush1.bf16.msra.mxu0 %v4178
    %4556 = vmatprep.subr.bf16.mxu0 %v4185
    %4557 = vmatpush1.bf16.msra.mxu0 %v4184
    %4558 = vmatprep.subr.bf16.mxu0 %v4191
    %4559 = vmatpush1.bf16.msra.mxu0 %v4190
    %4560 = vmatprep.subr.bf16.mxu0 %v4197
    %4561 = vmatpush1.bf16.msra.mxu0 %v4196
    %4562 = vmatprep.subr.bf16.mxu0 %v4203
    %4563 = vmatpush1.bf16.msra.mxu0 %v4202
    %4564 = vmatprep.subr.bf16.mxu0 %v4209
    %4565 = vmatpush1.bf16.msra.mxu0 %v4208
    %4566 = vmatprep.subr.bf16.mxu0 %v4215
    %4567 = vmatpush1.bf16.msra.mxu0 %v4214
    %4568 = vmatprep.subr.bf16.mxu0 %v4221
    %4569 = vmatpush1.bf16.msra.mxu0 %v4220
    %4570 = vmatprep.subr.bf16.mxu0 %v4227
    %4571 = vmatpush1.bf16.msra.mxu0 %v4226
    %4572 = vmatprep.subr.bf16.mxu0 %v4233
    %4573 = vmatpush1.bf16.msra.mxu0 %v4232
    %4574 = vmatprep.subr.bf16.mxu0 %v4239
    %4575 = vmatpush1.bf16.msra.mxu0 %v4238
    %4576 = vmatprep.subr.bf16.mxu0 %v4245
    %4577 = vmatpush1.bf16.msra.mxu0 %v4244
    %4578 = vmatprep.subr.bf16.mxu0 %v4251
    %4579 = vmatpush1.bf16.msra.mxu0 %v4250
    %4580 = vmatprep.subr.bf16.mxu0 %v4257
    %4581 = vmatpush1.bf16.msra.mxu0 %v4256
    %4582 = vmatprep.mubr.bf16.mxu0 %v3374
    %4583 = vmatmul.mubr.bf16.gmra.mrb[0].mxu0 %v3373
    %v4584 = vpop.f32.mrb[0].mxu0
    %v4585 = vadd.f32 0.0, %v4584
    %v4586 = vpop.f32.mrb[0].mxu0
    %v4587 = vadd.f32 0.0, %v4586
    %v4588 = vpop.f32.mrb[0].mxu0
    %v4589 = vadd.f32 0.0, %v4588
    %v4590 = vpop.f32.mrb[0].mxu0
    %v4591 = vadd.f32 0.0, %v4590
    %4592 = vmatprep.mubr.bf16.mxu0 %v3378
    %4593 = vmatmul.mubr.bf16.gmra.mrb[0].mxu0 %v3377
    %v4594 = vpop.f32.mrb[0].mxu0
    %v4595 = vadd.f32 0.0, %v4594
    %v4596 = vpop.f32.mrb[0].mxu0
    %v4597 = vadd.f32 0.0, %v4596
    %v4598 = vpop.f32.mrb[0].mxu0
    %v4599 = vadd.f32 0.0, %v4598
    %v4600 = vpop.f32.mrb[0].mxu0
    %v4601 = vadd.f32 0.0, %v4600
    %4602 = vmatprep.mubr.bf16.mxu0 %v3382
    %4603 = vmatmul.mubr.bf16.gmra.mrb[0].mxu0 %v3381
    %v4604 = vpop.f32.mrb[0].mxu0
    %v4605 = vadd.f32 0.0, %v4604
    %v4606 = vpop.f32.mrb[0].mxu0
    %v4607 = vadd.f32 0.0, %v4606
    %v4608 = vpop.f32.mrb[0].mxu0
    %v4609 = vadd.f32 0.0, %v4608
    %v4610 = vpop.f32.mrb[0].mxu0
    %v4611 = vadd.f32 0.0, %v4610
    %4612 = vmatprep.mubr.bf16.mxu0 %v3386
    %4613 = vmatmul.mubr.bf16.gmra.mrb[0].mxu0 %v3385
    %v4614 = vpop.f32.mrb[0].mxu0
    %v4615 = vadd.f32 0.0, %v4614
    %v4616 = vpop.f32.mrb[0].mxu0
    %v4617 = vadd.f32 0.0, %v4616
    %v4618 = vpop.f32.mrb[0].mxu0
    %v4619 = vadd.f32 0.0, %v4618
    %v4620 = vpop.f32.mrb[0].mxu0
    %v4621 = vadd.f32 0.0, %v4620
    %4622 = vmatprep.mubr.bf16.mxu0 %v3390
    %4623 = vmatmul.mubr.bf16.gmra.mrb[0].mxu0 %v3389
    %v4624 = vpop.f32.mrb[0].mxu0
    %v4625 = vadd.f32 0.0, %v4624
    %v4626 = vpop.f32.mrb[0].mxu0
    %v4627 = vadd.f32 0.0, %v4626
    %v4628 = vpop.f32.mrb[0].mxu0
    %v4629 = vadd.f32 0.0, %v4628
    %v4630 = vpop.f32.mrb[0].mxu0
    %v4631 = vadd.f32 0.0, %v4630
    %4632 = vmatprep.mubr.bf16.mxu0 %v3394
    %4633 = vmatmul.mubr.bf16.gmra.mrb[0].mxu0 %v3393
    %v4634 = vpop.f32.mrb[0].mxu0
    %v4635 = vpop.f32.mrb[0].mxu0
    %v4636 = vpop.f32.mrb[0].mxu0
    %v4637 = vpop.f32.mrb[0].mxu0
    %4638 = vdwg.mxu0
    %4639 = vmatprep.subr.bf16.mxu0 %v4263
    %4640 = vmatpush1.bf16.msra.mxu0 %v4262
    %4641 = vmatprep.subr.bf16.mxu0 %v4269
    %4642 = vmatpush1.bf16.msra.mxu0 %v4268
    %4643 = vmatprep.subr.bf16.mxu0 %v4275
    %4644 = vmatpush1.bf16.msra.mxu0 %v4274
    %4645 = vmatprep.subr.bf16.mxu0 %v4281
    %4646 = vmatpush1.bf16.msra.mxu0 %v4280
    %4647 = vmatprep.subr.bf16.mxu0 %v4287
    %4648 = vmatpush1.bf16.msra.mxu0 %v4286
    %4649 = vmatprep.subr.bf16.mxu0 %v4293
    %4650 = vmatpush1.bf16.msra.mxu0 %v4292
    %4651 = vmatprep.subr.bf16.mxu0 %v4299
    %4652 = vmatpush1.bf16.msra.mxu0 %v4298
    %4653 = vmatprep.subr.bf16.mxu0 %v4305
    %4654 = vmatpush1.bf16.msra.mxu0 %v4304
    %4655 = vmatprep.subr.bf16.mxu0 %v4311
    %4656 = vmatpush1.bf16.msra.mxu0 %v4310
    %4657 = vmatprep.subr.bf16.mxu0 %v4317
    %4658 = vmatpush1.bf16.msra.mxu0 %v4316
    %4659 = vmatprep.subr.bf16.mxu0 %v4323
    %4660 = vmatpush1.bf16.msra.mxu0 %v4322
    %4661 = vmatprep.subr.bf16.mxu0 %v4329
    %4662 = vmatpush1.bf16.msra.mxu0 %v4328
    %4663 = vmatprep.subr.bf16.mxu0 %v4335
    %4664 = vmatpush1.bf16.msra.mxu0 %v4334
    %4665 = vmatprep.subr.bf16.mxu0 %v4341
    %4666 = vmatpush1.bf16.msra.mxu0 %v4340
    %4667 = vmatprep.subr.bf16.mxu0 %v4347
    %4668 = vmatpush1.bf16.msra.mxu0 %v4346
    %4669 = vmatprep.subr.bf16.mxu0 %v4353
    %4670 = vmatpush1.bf16.msra.mxu0 %v4352
    %4671 = vmatprep.mubr.bf16.mxu0 %v3376
    %4672 = vmatmul.mubr.bf16.gmra.mrb[0].mxu0 %v3375
    %v4673 = vpop.f32.mrb[0].mxu0
    %v4674 = vadd.f32 %v4585, %v4673
    %v4675 = vpop.f32.mrb[0].mxu0
    %v4676 = vadd.f32 %v4587, %v4675
    %v4677 = vpop.f32.mrb[0].mxu0
    %v4678 = vadd.f32 %v4589, %v4677
    %v4679 = vpop.f32.mrb[0].mxu0
    %v4680 = vadd.f32 %v4591, %v4679
    %4681 = vmatprep.mubr.bf16.mxu0 %v3380
    %4682 = vmatmul.mubr.bf16.gmra.mrb[0].mxu0 %v3379
    %v4683 = vpop.f32.mrb[0].mxu0
    %v4684 = vadd.f32 %v4595, %v4683
    %v4685 = vpop.f32.mrb[0].mxu0
    %v4686 = vadd.f32 %v4597, %v4685
    %v4687 = vpop.f32.mrb[0].mxu0
    %v4688 = vadd.f32 %v4599, %v4687
    %v4689 = vpop.f32.mrb[0].mxu0
    %v4690 = vadd.f32 %v4601, %v4689
    %4691 = vmatprep.mubr.bf16.mxu0 %v3384
    %4692 = vmatmul.mubr.bf16.gmra.mrb[0].mxu0 %v3383
    %v4693 = vpop.f32.mrb[0].mxu0
    %v4694 = vadd.f32 %v4605, %v4693
    %v4695 = vpop.f32.mrb[0].mxu0
    %v4696 = vadd.f32 %v4607, %v4695
    %v4697 = vpop.f32.mrb[0].mxu0
    %v4698 = vadd.f32 %v4609, %v4697
    %v4699 = vpop.f32.mrb[0].mxu0
    %v4700 = vadd.f32 %v4611, %v4699
    %4701 = vmatprep.mubr.bf16.mxu0 %v3388
    %4702 = vmatmul.mubr.bf16.gmra.mrb[0].mxu0 %v3387
    %v4703 = vpop.f32.mrb[0].mxu0
    %v4704 = vadd.f32 %v4615, %v4703
    %v4705 = vpop.f32.mrb[0].mxu0
    %v4706 = vadd.f32 %v4617, %v4705
    %v4707 = vpop.f32.mrb[0].mxu0
    %v4708 = vadd.f32 %v4619, %v4707
    %v4709 = vpop.f32.mrb[0].mxu0
    %v4710 = vadd.f32 %v4621, %v4709
    %4711 = vmatprep.mubr.bf16.mxu0 %v3392
    %4712 = vmatmul.mubr.bf16.gmra.mrb[0].mxu0 %v3391
    %v4713 = vpop.f32.mrb[0].mxu0
    %v4714 = vadd.f32 %v4625, %v4713
    %v4715 = vpop.f32.mrb[0].mxu0
    %v4716 = vadd.f32 %v4627, %v4715
    %v4717 = vpop.f32.mrb[0].mxu0
    %v4718 = vadd.f32 %v4629, %v4717
    %v4719 = vpop.f32.mrb[0].mxu0
    %v4720 = vadd.f32 %v4631, %v4719
    %4721 = vmatprep.mubr.bf16.mxu0 %v3396
    %4722 = vmatmul.mubr.bf16.gmra.mrb[0].mxu0 %v3395
    %v4723 = vpop.f32.mrb[0].mxu0
    %v4724 = vpop.f32.mrb[0].mxu0
    %v4725 = vpop.f32.mrb[0].mxu0
    %v4726 = vpop.f32.mrb[0].mxu0
    %4727 = vdwg.mxu0
    %4728 = vmatprep.subr.bf16.mxu0 %v4169
    %4729 = vmatpush1.bf16.msra.mxu0 %v4168
    %4730 = vmatprep.subr.bf16.mxu0 %v4175
    %4731 = vmatpush1.bf16.msra.mxu0 %v4174
    %4732 = vmatprep.subr.bf16.mxu0 %v4181
    %4733 = vmatpush1.bf16.msra.mxu0 %v4180
    %4734 = vmatprep.subr.bf16.mxu0 %v4187
    %4735 = vmatpush1.bf16.msra.mxu0 %v4186
    %4736 = vmatprep.subr.bf16.mxu0 %v4193
    %4737 = vmatpush1.bf16.msra.mxu0 %v4192
    %4738 = vmatprep.subr.bf16.mxu0 %v4199
    %4739 = vmatpush1.bf16.msra.mxu0 %v4198
    %4740 = vmatprep.subr.bf16.mxu0 %v4205
    %4741 = vmatpush1.bf16.msra.mxu0 %v4204
    %4742 = vmatprep.subr.bf16.mxu0 %v4211
    %4743 = vmatpush1.bf16.msra.mxu0 %v4210
    %4744 = vmatprep.subr.bf16.mxu0 %v4217
    %4745 = vmatpush1.bf16.msra.mxu0 %v4216
    %4746 = vmatprep.subr.bf16.mxu0 %v4223
    %4747 = vmatpush1.bf16.msra.mxu0 %v4222
    %4748 = vmatprep.subr.bf16.mxu0 %v4229
    %4749 = vmatpush1.bf16.msra.mxu0 %v4228
    %4750 = vmatprep.subr.bf16.mxu0 %v4235
    %4751 = vmatpush1.bf16.msra.mxu0 %v4234
    %4752 = vmatprep.subr.bf16.mxu0 %v4241
    %4753 = vmatpush1.bf16.msra.mxu0 %v4240
    %4754 = vmatprep.subr.bf16.mxu0 %v4247
    %4755 = vmatpush1.bf16.msra.mxu0 %v4246
    %4756 = vmatprep.subr.bf16.mxu0 %v4253
    %4757 = vmatpush1.bf16.msra.mxu0 %v4252
    %4758 = vmatprep.subr.bf16.mxu0 %v4259
    %4759 = vmatpush1.bf16.msra.mxu0 %v4258
    %4760 = vmatprep.mubr.bf16.mxu0 %v3374
    %4761 = vmatmul.mubr.bf16.gmra.mrb[0].mxu0 %v3373
    %v4762 = vpop.f32.mrb[0].mxu0
    %v4763 = vadd.f32 0.0, %v4762
    %v4764 = vpop.f32.mrb[0].mxu0
    %v4765 = vadd.f32 0.0, %v4764
    %v4766 = vpop.f32.mrb[0].mxu0
    %v4767 = vadd.f32 0.0, %v4766
    %v4768 = vpop.f32.mrb[0].mxu0
    %v4769 = vadd.f32 0.0, %v4768
    %4770 = vmatprep.mubr.bf16.mxu0 %v3378
    %4771 = vmatmul.mubr.bf16.gmra.mrb[0].mxu0 %v3377
    %v4772 = vpop.f32.mrb[0].mxu0
    %v4773 = vadd.f32 0.0, %v4772
    %v4774 = vpop.f32.mrb[0].mxu0
    %v4775 = vadd.f32 0.0, %v4774
    %v4776 = vpop.f32.mrb[0].mxu0
    %v4777 = vadd.f32 0.0, %v4776
    %v4778 = vpop.f32.mrb[0].mxu0
    %v4779 = vadd.f32 0.0, %v4778
    %4780 = vmatprep.mubr.bf16.mxu0 %v3382
    %4781 = vmatmul.mubr.bf16.gmra.mrb[0].mxu0 %v3381
    %v4782 = vpop.f32.mrb[0].mxu0
    %v4783 = vadd.f32 0.0, %v4782
    %v4784 = vpop.f32.mrb[0].mxu0
    %v4785 = vadd.f32 0.0, %v4784
    %v4786 = vpop.f32.mrb[0].mxu0
    %v4787 = vadd.f32 0.0, %v4786
    %v4788 = vpop.f32.mrb[0].mxu0
    %v4789 = vadd.f32 0.0, %v4788
    %4790 = vmatprep.mubr.bf16.mxu0 %v3386
    %4791 = vmatmul.mubr.bf16.gmra.mrb[0].mxu0 %v3385
    %v4792 = vpop.f32.mrb[0].mxu0
    %v4793 = vadd.f32 0.0, %v4792
    %v4794 = vpop.f32.mrb[0].mxu0
    %v4795 = vadd.f32 0.0, %v4794
    %v4796 = vpop.f32.mrb[0].mxu0
    %v4797 = vadd.f32 0.0, %v4796
    %v4798 = vpop.f32.mrb[0].mxu0
    %v4799 = vadd.f32 0.0, %v4798
    %4800 = vmatprep.mubr.bf16.mxu0 %v3390
    %4801 = vmatmul.mubr.bf16.gmra.mrb[0].mxu0 %v3389
    %v4802 = vpop.f32.mrb[0].mxu0
    %v4803 = vadd.f32 0.0, %v4802
    %v4804 = vpop.f32.mrb[0].mxu0
    %v4805 = vadd.f32 0.0, %v4804
    %v4806 = vpop.f32.mrb[0].mxu0
    %v4807 = vadd.f32 0.0, %v4806
    %v4808 = vpop.f32.mrb[0].mxu0
    %v4809 = vadd.f32 0.0, %v4808
    %4810 = vmatprep.mubr.bf16.mxu0 %v3394
    %4811 = vmatmul.mubr.bf16.gmra.mrb[0].mxu0 %v3393
    %v4812 = vpop.f32.mrb[0].mxu0
    %v4813 = vpop.f32.mrb[0].mxu0
    %v4814 = vpop.f32.mrb[0].mxu0
    %v4815 = vpop.f32.mrb[0].mxu0
    %4816 = vdwg.mxu0
    %4817 = vmatprep.subr.bf16.mxu0 %v4265
    %4818 = vmatpush1.bf16.msra.mxu0 %v4264
    %4819 = vmatprep.subr.bf16.mxu0 %v4271
    %4820 = vmatpush1.bf16.msra.mxu0 %v4270
    %4821 = vmatprep.subr.bf16.mxu0 %v4277
    %4822 = vmatpush1.bf16.msra.mxu0 %v4276
    %4823 = vmatprep.subr.bf16.mxu0 %v4283
    %4824 = vmatpush1.bf16.msra.mxu0 %v4282
    %4825 = vmatprep.subr.bf16.mxu0 %v4289
    %4826 = vmatpush1.bf16.msra.mxu0 %v4288
    %4827 = vmatprep.subr.bf16.mxu0 %v4295
    %4828 = vmatpush1.bf16.msra.mxu0 %v4294
    %4829 = vmatprep.subr.bf16.mxu0 %v4301
    %4830 = vmatpush1.bf16.msra.mxu0 %v4300
    %4831 = vmatprep.subr.bf16.mxu0 %v4307
    %4832 = vmatpush1.bf16.msra.mxu0 %v4306
    %4833 = vmatprep.subr.bf16.mxu0 %v4313
    %4834 = vmatpush1.bf16.msra.mxu0 %v4312
    %4835 = vmatprep.subr.bf16.mxu0 %v4319
    %4836 = vmatpush1.bf16.msra.mxu0 %v4318
    %4837 = vmatprep.subr.bf16.mxu0 %v4325
    %4838 = vmatpush1.bf16.msra.mxu0 %v4324
    %4839 = vmatprep.subr.bf16.mxu0 %v4331
    %4840 = vmatpush1.bf16.msra.mxu0 %v4330
    %4841 = vmatprep.subr.bf16.mxu0 %v4337
    %4842 = vmatpush1.bf16.msra.mxu0 %v4336
    %4843 = vmatprep.subr.bf16.mxu0 %v4343
    %4844 = vmatpush1.bf16.msra.mxu0 %v4342
    %4845 = vmatprep.subr.bf16.mxu0 %v4349
    %4846 = vmatpush1.bf16.msra.mxu0 %v4348
    %4847 = vmatprep.subr.bf16.mxu0 %v4355
    %4848 = vmatpush1.bf16.msra.mxu0 %v4354
    %4849 = vmatprep.mubr.bf16.mxu0 %v3376
    %4850 = vmatmul.mubr.bf16.gmra.mrb[0].mxu0 %v3375
    %v4851 = vpop.f32.mrb[0].mxu0
    %v4852 = vadd.f32 %v4763, %v4851
    %v4853 = vpop.f32.mrb[0].mxu0
    %v4854 = vadd.f32 %v4765, %v4853
    %v4855 = vpop.f32.mrb[0].mxu0
    %v4856 = vadd.f32 %v4767, %v4855
    %v4857 = vpop.f32.mrb[0].mxu0
    %v4858 = vadd.f32 %v4769, %v4857
    %4859 = vmatprep.mubr.bf16.mxu0 %v3380
    %4860 = vmatmul.mubr.bf16.gmra.mrb[0].mxu0 %v3379
    %v4861 = vpop.f32.mrb[0].mxu0
    %v4862 = vadd.f32 %v4773, %v4861
    %v4863 = vpop.f32.mrb[0].mxu0
    %v4864 = vadd.f32 %v4775, %v4863
    %v4865 = vpop.f32.mrb[0].mxu0
    %v4866 = vadd.f32 %v4777, %v4865
    %v4867 = vpop.f32.mrb[0].mxu0
    %v4868 = vadd.f32 %v4779, %v4867
    %4869 = vmatprep.mubr.bf16.mxu0 %v3384
    %4870 = vmatmul.mubr.bf16.gmra.mrb[0].mxu0 %v3383
    %v4871 = vpop.f32.mrb[0].mxu0
    %v4872 = vadd.f32 %v4783, %v4871
    %v4873 = vpop.f32.mrb[0].mxu0
    %v4874 = vadd.f32 %v4785, %v4873
    %v4875 = vpop.f32.mrb[0].mxu0
    %v4876 = vadd.f32 %v4787, %v4875
    %v4877 = vpop.f32.mrb[0].mxu0
    %v4878 = vadd.f32 %v4789, %v4877
    %4879 = vmatprep.mubr.bf16.mxu0 %v3388
    %4880 = vmatmul.mubr.bf16.gmra.mrb[0].mxu0 %v3387
    %v4881 = vpop.f32.mrb[0].mxu0
    %v4882 = vadd.f32 %v4793, %v4881
    %v4883 = vpop.f32.mrb[0].mxu0
    %v4884 = vadd.f32 %v4795, %v4883
    %v4885 = vpop.f32.mrb[0].mxu0
    %v4886 = vadd.f32 %v4797, %v4885
    %v4887 = vpop.f32.mrb[0].mxu0
    %v4888 = vadd.f32 %v4799, %v4887
    %4889 = vmatprep.mubr.bf16.mxu0 %v3392
    %4890 = vmatmul.mubr.bf16.gmra.mrb[0].mxu0 %v3391
    %v4891 = vpop.f32.mrb[0].mxu0
    %v4892 = vadd.f32 %v4803, %v4891
    %v4893 = vpop.f32.mrb[0].mxu0
    %v4894 = vadd.f32 %v4805, %v4893
    %v4895 = vpop.f32.mrb[0].mxu0
    %v4896 = vadd.f32 %v4807, %v4895
    %v4897 = vpop.f32.mrb[0].mxu0
    %v4898 = vadd.f32 %v4809, %v4897
    %4899 = vmatprep.mubr.bf16.mxu0 %v3396
    %4900 = vmatmul.mubr.bf16.gmra.mrb[0].mxu0 %v3395
    %v4901 = vpop.f32.mrb[0].mxu0
    %v4902 = vpop.f32.mrb[0].mxu0
    %v4903 = vpop.f32.mrb[0].mxu0
    %v4904 = vpop.f32.mrb[0].mxu0
    %4905 = vdwg.mxu0
    %4906 = vmatprep.subr.bf16.mxu0 %v4171
    %4907 = vmatpush1.bf16.msra.mxu0 %v4170
    %4908 = vmatprep.subr.bf16.mxu0 %v4177
    %4909 = vmatpush1.bf16.msra.mxu0 %v4176
    %4910 = vmatprep.subr.bf16.mxu0 %v4183
    %4911 = vmatpush1.bf16.msra.mxu0 %v4182
    %4912 = vmatprep.subr.bf16.mxu0 %v4189
    %4913 = vmatpush1.bf16.msra.mxu0 %v4188
    %4914 = vmatprep.subr.bf16.mxu0 %v4195
    %4915 = vmatpush1.bf16.msra.mxu0 %v4194
    %4916 = vmatprep.subr.bf16.mxu0 %v4201
    %4917 = vmatpush1.bf16.msra.mxu0 %v4200
    %4918 = vmatprep.subr.bf16.mxu0 %v4207
    %4919 = vmatpush1.bf16.msra.mxu0 %v4206
    %4920 = vmatprep.subr.bf16.mxu0 %v4213
    %4921 = vmatpush1.bf16.msra.mxu0 %v4212
    %4922 = vmatprep.subr.bf16.mxu0 %v4219
    %4923 = vmatpush1.bf16.msra.mxu0 %v4218
    %4924 = vmatprep.subr.bf16.mxu0 %v4225
    %4925 = vmatpush1.bf16.msra.mxu0 %v4224
    %4926 = vmatprep.subr.bf16.mxu0 %v4231
    %4927 = vmatpush1.bf16.msra.mxu0 %v4230
    %4928 = vmatprep.subr.bf16.mxu0 %v4237
    %4929 = vmatpush1.bf16.msra.mxu0 %v4236
    %4930 = vmatprep.subr.bf16.mxu0 %v4243
    %4931 = vmatpush1.bf16.msra.mxu0 %v4242
    %4932 = vmatprep.subr.bf16.mxu0 %v4249
    %4933 = vmatpush1.bf16.msra.mxu0 %v4248
    %4934 = vmatprep.subr.bf16.mxu0 %v4255
    %4935 = vmatpush1.bf16.msra.mxu0 %v4254
    %4936 = vmatprep.subr.bf16.mxu0 %v4261
    %4937 = vmatpush1.bf16.msra.mxu0 %v4260
    %4938 = vmatprep.mubr.bf16.mxu0 %v3374
    %4939 = vmatmul.mubr.bf16.gmra.mrb[0].mxu0 %v3373
    %v4940 = vpop.f32.mrb[0].mxu0
    %v4941 = vadd.f32 0.0, %v4940
    %v4942 = vpop.f32.mrb[0].mxu0
    %v4943 = vadd.f32 0.0, %v4942
    %v4944 = vpop.f32.mrb[0].mxu0
    %v4945 = vadd.f32 0.0, %v4944
    %v4946 = vpop.f32.mrb[0].mxu0
    %v4947 = vadd.f32 0.0, %v4946
    %4948 = vmatprep.mubr.bf16.mxu0 %v3378
    %4949 = vmatmul.mubr.bf16.gmra.mrb[0].mxu0 %v3377
    %v4950 = vpop.f32.mrb[0].mxu0
    %v4951 = vadd.f32 0.0, %v4950
    %v4952 = vpop.f32.mrb[0].mxu0
    %v4953 = vadd.f32 0.0, %v4952
    %v4954 = vpop.f32.mrb[0].mxu0
    %v4955 = vadd.f32 0.0, %v4954
    %v4956 = vpop.f32.mrb[0].mxu0
    %v4957 = vadd.f32 0.0, %v4956
    %4958 = vmatprep.mubr.bf16.mxu0 %v3382
    %4959 = vmatmul.mubr.bf16.gmra.mrb[0].mxu0 %v3381
    %v4960 = vpop.f32.mrb[0].mxu0
    %v4961 = vadd.f32 0.0, %v4960
    %v4962 = vpop.f32.mrb[0].mxu0
    %v4963 = vadd.f32 0.0, %v4962
    %v4964 = vpop.f32.mrb[0].mxu0
    %v4965 = vadd.f32 0.0, %v4964
    %v4966 = vpop.f32.mrb[0].mxu0
    %v4967 = vadd.f32 0.0, %v4966
    %4968 = vmatprep.mubr.bf16.mxu0 %v3386
    %4969 = vmatmul.mubr.bf16.gmra.mrb[0].mxu0 %v3385
    %v4970 = vpop.f32.mrb[0].mxu0
    %v4971 = vadd.f32 0.0, %v4970
    %v4972 = vpop.f32.mrb[0].mxu0
    %v4973 = vadd.f32 0.0, %v4972
    %v4974 = vpop.f32.mrb[0].mxu0
    %v4975 = vadd.f32 0.0, %v4974
    %v4976 = vpop.f32.mrb[0].mxu0
    %v4977 = vadd.f32 0.0, %v4976
    %4978 = vmatprep.mubr.bf16.mxu0 %v3390
    %4979 = vmatmul.mubr.bf16.gmra.mrb[0].mxu0 %v3389
    %v4980 = vpop.f32.mrb[0].mxu0
    %v4981 = vadd.f32 0.0, %v4980
    %v4982 = vpop.f32.mrb[0].mxu0
    %v4983 = vadd.f32 0.0, %v4982
    %v4984 = vpop.f32.mrb[0].mxu0
    %v4985 = vadd.f32 0.0, %v4984
    %v4986 = vpop.f32.mrb[0].mxu0
    %v4987 = vadd.f32 0.0, %v4986
    %4988 = vmatprep.mubr.bf16.mxu0 %v3394
    %4989 = vmatmul.mubr.bf16.gmra.mrb[0].mxu0 %v3393
    %v4990 = vpop.f32.mrb[0].mxu0
    %v4991 = vpop.f32.mrb[0].mxu0
    %v4992 = vpop.f32.mrb[0].mxu0
    %v4993 = vpop.f32.mrb[0].mxu0
    %4994 = vdwg.mxu0
    %4995 = vmatprep.subr.bf16.mxu0 %v4267
    %4996 = vmatpush1.bf16.msra.mxu0 %v4266
    %4997 = vmatprep.subr.bf16.mxu0 %v4273
    %4998 = vmatpush1.bf16.msra.mxu0 %v4272
    %4999 = vmatprep.subr.bf16.mxu0 %v4279
    %5000 = vmatpush1.bf16.msra.mxu0 %v4278
    %5001 = vmatprep.subr.bf16.mxu0 %v4285
    %5002 = vmatpush1.bf16.msra.mxu0 %v4284
    %5003 = vmatprep.subr.bf16.mxu0 %v4291
    %5004 = vmatpush1.bf16.msra.mxu0 %v4290
    %5005 = vmatprep.subr.bf16.mxu0 %v4297
    %5006 = vmatpush1.bf16.msra.mxu0 %v4296
    %5007 = vmatprep.subr.bf16.mxu0 %v4303
    %5008 = vmatpush1.bf16.msra.mxu0 %v4302
    %5009 = vmatprep.subr.bf16.mxu0 %v4309
    %5010 = vmatpush1.bf16.msra.mxu0 %v4308
    %5011 = vmatprep.subr.bf16.mxu0 %v4315
    %5012 = vmatpush1.bf16.msra.mxu0 %v4314
    %5013 = vmatprep.subr.bf16.mxu0 %v4321
    %5014 = vmatpush1.bf16.msra.mxu0 %v4320
    %5015 = vmatprep.subr.bf16.mxu0 %v4327
    %5016 = vmatpush1.bf16.msra.mxu0 %v4326
    %5017 = vmatprep.subr.bf16.mxu0 %v4333
    %5018 = vmatpush1.bf16.msra.mxu0 %v4332
    %5019 = vmatprep.subr.bf16.mxu0 %v4339
    %5020 = vmatpush1.bf16.msra.mxu0 %v4338
    %5021 = vmatprep.subr.bf16.mxu0 %v4345
    %5022 = vmatpush1.bf16.msra.mxu0 %v4344
    %5023 = vmatprep.subr.bf16.mxu0 %v4351
    %5024 = vmatpush1.bf16.msra.mxu0 %v4350
    %5025 = vmatprep.subr.bf16.mxu0 %v4357
    %5026 = vmatpush1.bf16.msra.mxu0 %v4356
    %5027 = vmatprep.mubr.bf16.mxu0 %v3376
    %5028 = vmatmul.mubr.bf16.gmra.mrb[0].mxu0 %v3375
    %v5029 = vpop.f32.mrb[0].mxu0
    %v5030 = vadd.f32 %v4941, %v5029
    %v5031 = vpop.f32.mrb[0].mxu0
    %v5032 = vadd.f32 %v4943, %v5031
    %v5033 = vpop.f32.mrb[0].mxu0
    %v5034 = vadd.f32 %v4945, %v5033
    %v5035 = vpop.f32.mrb[0].mxu0
    %v5036 = vadd.f32 %v4947, %v5035
    %5037 = vmatprep.mubr.bf16.mxu0 %v3380
    %5038 = vmatmul.mubr.bf16.gmra.mrb[0].mxu0 %v3379
    %v5039 = vpop.f32.mrb[0].mxu0
    %v5040 = vadd.f32 %v4951, %v5039
    %v5041 = vpop.f32.mrb[0].mxu0
    %v5042 = vadd.f32 %v4953, %v5041
    %v5043 = vpop.f32.mrb[0].mxu0
    %v5044 = vadd.f32 %v4955, %v5043
    %v5045 = vpop.f32.mrb[0].mxu0
    %v5046 = vadd.f32 %v4957, %v5045
    %5047 = vmatprep.mubr.bf16.mxu0 %v3384
    %5048 = vmatmul.mubr.bf16.gmra.mrb[0].mxu0 %v3383
    %v5049 = vpop.f32.mrb[0].mxu0
    %v5050 = vadd.f32 %v4961, %v5049
    %v5051 = vpop.f32.mrb[0].mxu0
    %v5052 = vadd.f32 %v4963, %v5051
    %v5053 = vpop.f32.mrb[0].mxu0
    %v5054 = vadd.f32 %v4965, %v5053
    %v5055 = vpop.f32.mrb[0].mxu0
    %v5056 = vadd.f32 %v4967, %v5055
    %5057 = vmatprep.mubr.bf16.mxu0 %v3388
    %5058 = vmatmul.mubr.bf16.gmra.mrb[0].mxu0 %v3387
    %v5059 = vpop.f32.mrb[0].mxu0
    %v5060 = vadd.f32 %v4971, %v5059
    %v5061 = vpop.f32.mrb[0].mxu0
    %v5062 = vadd.f32 %v4973, %v5061
    %v5063 = vpop.f32.mrb[0].mxu0
    %v5064 = vadd.f32 %v4975, %v5063
    %v5065 = vpop.f32.mrb[0].mxu0
    %v5066 = vadd.f32 %v4977, %v5065
    %5067 = vmatprep.mubr.bf16.mxu0 %v3392
    %5068 = vmatmul.mubr.bf16.gmra.mrb[0].mxu0 %v3391
    %v5069 = vpop.f32.mrb[0].mxu0
    %v5070 = vadd.f32 %v4981, %v5069
    %v5071 = vpop.f32.mrb[0].mxu0
    %v5072 = vadd.f32 %v4983, %v5071
    %v5073 = vpop.f32.mrb[0].mxu0
    %v5074 = vadd.f32 %v4985, %v5073
    %v5075 = vpop.f32.mrb[0].mxu0
    %v5076 = vadd.f32 %v4987, %v5075
    %5077 = vmatprep.mubr.bf16.mxu0 %v3396
    %5078 = vmatmul.mubr.bf16.gmra.mrb[0].mxu0 %v3395
    %v5079 = vpop.f32.mrb[0].mxu0
    %v5080 = vpop.f32.mrb[0].mxu0
    %v5081 = vpop.f32.mrb[0].mxu0
    %v5082 = vpop.f32.mrb[0].mxu0
    %5083 = vdwg.mxu0
    %v5276 = vunpack.c.l.b16 %v3181
    %v5277 = vunpack.c.h.b16 %v3181
    %v5278 = vunpack.c.l.b16 %v3182
    %v5279 = vunpack.c.h.b16 %v3182
    %v5280 = vunpack.c.l.b16 %v3183
    %v5281 = vunpack.c.h.b16 %v3183
    %v5282 = vunpack.c.l.b16 %v3184
    %v5283 = vunpack.c.h.b16 %v3184
    %v5284 = vunpack.c.l.b16 %v3185
    %v5285 = vunpack.c.h.b16 %v3185
    %v5286 = vunpack.c.l.b16 %v3186
    %v5287 = vunpack.c.h.b16 %v3186
    %v5288 = vunpack.c.l.b16 %v3187
    %v5289 = vunpack.c.h.b16 %v3187
    %v5290 = vunpack.c.l.b16 %v3188
    %v5291 = vunpack.c.h.b16 %v3188
    %v5292 = vunpack.c.l.b16 %v3189
    %v5293 = vunpack.c.h.b16 %v3189
    %v5294 = vunpack.c.l.b16 %v3190
    %v5295 = vunpack.c.h.b16 %v3190
    %v5296 = vunpack.c.l.b16 %v3191
    %v5297 = vunpack.c.h.b16 %v3191
    %v5298 = vunpack.c.l.b16 %v3192
    %v5299 = vunpack.c.h.b16 %v3192
    %v5300 = vunpack.c.l.b16 %v3193
    %v5301 = vunpack.c.h.b16 %v3193
    %v5302 = vunpack.c.l.b16 %v3194
    %v5303 = vunpack.c.h.b16 %v3194
    %v5304 = vunpack.c.l.b16 %v3195
    %v5305 = vunpack.c.h.b16 %v3195
    %v5306 = vunpack.c.l.b16 %v3196
    %v5307 = vunpack.c.h.b16 %v3196
    %v5308 = vunpack.c.l.b16 %v3197
    %v5309 = vunpack.c.h.b16 %v3197
    %v5310 = vunpack.c.l.b16 %v3198
    %v5311 = vunpack.c.h.b16 %v3198
    %v5312 = vunpack.c.l.b16 %v3199
    %v5313 = vunpack.c.h.b16 %v3199
    %v5314 = vunpack.c.l.b16 %v3200
    %v5315 = vunpack.c.h.b16 %v3200
    %v5316 = vunpack.c.l.b16 %v3201
    %v5317 = vunpack.c.h.b16 %v3201
    %v5318 = vunpack.c.l.b16 %v3202
    %v5319 = vunpack.c.h.b16 %v3202
    %v5320 = vunpack.c.l.b16 %v3203
    %v5321 = vunpack.c.h.b16 %v3203
    %v5322 = vunpack.c.l.b16 %v3204
    %v5323 = vunpack.c.h.b16 %v3204
    %v5324 = vunpack.c.l.b16 %v3205
    %v5325 = vunpack.c.h.b16 %v3205
    %v5326 = vunpack.c.l.b16 %v3206
    %v5327 = vunpack.c.h.b16 %v3206
    %v5328 = vunpack.c.l.b16 %v3207
    %v5329 = vunpack.c.h.b16 %v3207
    %v5330 = vunpack.c.l.b16 %v3208
    %v5331 = vunpack.c.h.b16 %v3208
    %v5332 = vunpack.c.l.b16 %v3209
    %v5333 = vunpack.c.h.b16 %v3209
    %v5334 = vunpack.c.l.b16 %v3210
    %v5335 = vunpack.c.h.b16 %v3210
    %v5336 = vunpack.c.l.b16 %v3211
    %v5337 = vunpack.c.h.b16 %v3211
    %v5338 = vunpack.c.l.b16 %v3212
    %v5339 = vunpack.c.h.b16 %v3212
    %v5340 = vunpack.c.l.b16 %v3213
    %v5341 = vunpack.c.h.b16 %v3213
    %v5342 = vunpack.c.l.b16 %v3214
    %v5343 = vunpack.c.h.b16 %v3214
    %v5344 = vunpack.c.l.b16 %v3215
    %v5345 = vunpack.c.h.b16 %v3215
    %v5346 = vunpack.c.l.b16 %v3216
    %v5347 = vunpack.c.h.b16 %v3216
    %v5348 = vunpack.c.l.b16 %v3217
    %v5349 = vunpack.c.h.b16 %v3217
    %v5350 = vunpack.c.l.b16 %v3218
    %v5351 = vunpack.c.h.b16 %v3218
    %v5352 = vunpack.c.l.b16 %v3219
    %v5353 = vunpack.c.h.b16 %v3219
    %v5354 = vunpack.c.l.b16 %v3220
    %v5355 = vunpack.c.h.b16 %v3220
    %v5356 = vunpack.c.l.b16 %v3221
    %v5357 = vunpack.c.h.b16 %v3221
    %v5358 = vunpack.c.l.b16 %v3222
    %v5359 = vunpack.c.h.b16 %v3222
    %v5360 = vunpack.c.l.b16 %v3223
    %v5361 = vunpack.c.h.b16 %v3223
    %v5362 = vunpack.c.l.b16 %v3224
    %v5363 = vunpack.c.h.b16 %v3224
    %v5364 = vunpack.c.l.b16 %v3225
    %v5365 = vunpack.c.h.b16 %v3225
    %v5366 = vunpack.c.l.b16 %v3226
    %v5367 = vunpack.c.h.b16 %v3226
    %v5368 = vunpack.c.l.b16 %v3227
    %v5369 = vunpack.c.h.b16 %v3227
    %v5370 = vunpack.c.l.b16 %v3228
    %v5371 = vunpack.c.h.b16 %v3228
    %v5372 = vunpack.c.l.b16 %v3229
    %v5373 = vunpack.c.h.b16 %v3229
    %v5374 = vunpack.c.l.b16 %v3230
    %v5375 = vunpack.c.h.b16 %v3230
    %v5376 = vunpack.c.l.b16 %v3231
    %v5377 = vunpack.c.h.b16 %v3231
    %v5378 = vunpack.c.l.b16 %v3232
    %v5379 = vunpack.c.h.b16 %v3232
    %v5380 = vunpack.c.l.b16 %v3233
    %v5381 = vunpack.c.h.b16 %v3233
    %v5382 = vunpack.c.l.b16 %v3234
    %v5383 = vunpack.c.h.b16 %v3234
    %v5384 = vunpack.c.l.b16 %v3235
    %v5385 = vunpack.c.h.b16 %v3235
    %v5386 = vunpack.c.l.b16 %v3236
    %v5387 = vunpack.c.h.b16 %v3236
    %v5388 = vunpack.c.l.b16 %v3237
    %v5389 = vunpack.c.h.b16 %v3237
    %v5390 = vunpack.c.l.b16 %v3238
    %v5391 = vunpack.c.h.b16 %v3238
    %v5392 = vunpack.c.l.b16 %v3239
    %v5393 = vunpack.c.h.b16 %v3239
    %v5394 = vunpack.c.l.b16 %v3240
    %v5395 = vunpack.c.h.b16 %v3240
    %v5396 = vunpack.c.l.b16 %v3241
    %v5397 = vunpack.c.h.b16 %v3241
    %v5398 = vunpack.c.l.b16 %v3242
    %v5399 = vunpack.c.h.b16 %v3242
    %v5400 = vunpack.c.l.b16 %v3243
    %v5401 = vunpack.c.h.b16 %v3243
    %v5402 = vunpack.c.l.b16 %v3244
    %v5403 = vunpack.c.h.b16 %v3244
    %v5404 = vunpack.c.l.b16 %v3245
    %v5405 = vunpack.c.h.b16 %v3245
    %v5406 = vunpack.c.l.b16 %v3246
    %v5407 = vunpack.c.h.b16 %v3246
    %v5408 = vunpack.c.l.b16 %v3247
    %v5409 = vunpack.c.h.b16 %v3247
    %v5410 = vunpack.c.l.b16 %v3248
    %v5411 = vunpack.c.h.b16 %v3248
    %v5412 = vunpack.c.l.b16 %v3249
    %v5413 = vunpack.c.h.b16 %v3249
    %v5414 = vunpack.c.l.b16 %v3250
    %v5415 = vunpack.c.h.b16 %v3250
    %v5416 = vunpack.c.l.b16 %v3251
    %v5417 = vunpack.c.h.b16 %v3251
    %v5418 = vunpack.c.l.b16 %v3252
    %v5419 = vunpack.c.h.b16 %v3252
    %v5420 = vunpack.c.l.b16 %v3253
    %v5421 = vunpack.c.h.b16 %v3253
    %v5422 = vunpack.c.l.b16 %v3254
    %v5423 = vunpack.c.h.b16 %v3254
    %v5424 = vunpack.c.l.b16 %v3255
    %v5425 = vunpack.c.h.b16 %v3255
    %v5426 = vunpack.c.l.b16 %v3256
    %v5427 = vunpack.c.h.b16 %v3256
    %v5428 = vunpack.c.l.b16 %v3257
    %v5429 = vunpack.c.h.b16 %v3257
    %v5430 = vunpack.c.l.b16 %v3258
    %v5431 = vunpack.c.h.b16 %v3258
    %v5432 = vunpack.c.l.b16 %v3259
    %v5433 = vunpack.c.h.b16 %v3259
    %v5434 = vunpack.c.l.b16 %v3260
    %v5435 = vunpack.c.h.b16 %v3260
    %v5436 = vunpack.c.l.b16 %v3261
    %v5437 = vunpack.c.h.b16 %v3261
    %v5438 = vunpack.c.l.b16 %v3262
    %v5439 = vunpack.c.h.b16 %v3262
    %v5440 = vunpack.c.l.b16 %v3263
    %v5441 = vunpack.c.h.b16 %v3263
    %v5442 = vunpack.c.l.b16 %v3264
    %v5443 = vunpack.c.h.b16 %v3264
    %v5444 = vunpack.c.l.b16 %v3265
    %v5445 = vunpack.c.h.b16 %v3265
    %v5446 = vunpack.c.l.b16 %v3266
    %v5447 = vunpack.c.h.b16 %v3266
    %v5448 = vunpack.c.l.b16 %v3267
    %v5449 = vunpack.c.h.b16 %v3267
    %v5450 = vunpack.c.l.b16 %v3268
    %v5451 = vunpack.c.h.b16 %v3268
    %v5452 = vunpack.c.l.b16 %v3269
    %v5453 = vunpack.c.h.b16 %v3269
    %v5454 = vunpack.c.l.b16 %v3270
    %v5455 = vunpack.c.h.b16 %v3270
    %v5456 = vunpack.c.l.b16 %v3271
    %v5457 = vunpack.c.h.b16 %v3271
    %v5458 = vunpack.c.l.b16 %v3272
    %v5459 = vunpack.c.h.b16 %v3272
    %v5460 = vunpack.c.l.b16 %v3273
    %v5461 = vunpack.c.h.b16 %v3273
    %v5462 = vunpack.c.l.b16 %v3274
    %v5463 = vunpack.c.h.b16 %v3274
    %v5464 = vunpack.c.l.b16 %v3275
    %v5465 = vunpack.c.h.b16 %v3275
    %v5466 = vunpack.c.l.b16 %v3276
    %v5467 = vunpack.c.h.b16 %v3276
    %v5468 = vunpack.c.l.b16 %v3277
    %v5469 = vunpack.c.h.b16 %v3277
    %v5470 = vunpack.c.l.b16 %v3278
    %v5471 = vunpack.c.h.b16 %v3278
    %v5472 = vunpack.c.l.b16 %v3279
    %v5473 = vunpack.c.h.b16 %v3279
    %v5474 = vunpack.c.l.b16 %v3280
    %v5475 = vunpack.c.h.b16 %v3280
    %v5476 = vunpack.c.l.b16 %v3281
    %v5477 = vunpack.c.h.b16 %v3281
    %v5478 = vunpack.c.l.b16 %v3282
    %v5479 = vunpack.c.h.b16 %v3282
    %v5480 = vunpack.c.l.b16 %v3283
    %v5481 = vunpack.c.h.b16 %v3283
    %v5482 = vunpack.c.l.b16 %v3284
    %v5483 = vunpack.c.h.b16 %v3284
    %v5484 = vunpack.c.l.b16 %v3285
    %v5485 = vunpack.c.h.b16 %v3285
    %v5486 = vunpack.c.l.b16 %v3286
    %v5487 = vunpack.c.h.b16 %v3286
    %v5488 = vunpack.c.l.b16 %v3287
    %v5489 = vunpack.c.h.b16 %v3287
    %v5490 = vunpack.c.l.b16 %v3288
    %v5491 = vunpack.c.h.b16 %v3288
    %v5492 = vunpack.c.l.b16 %v3289
    %v5493 = vunpack.c.h.b16 %v3289
    %v5494 = vunpack.c.l.b16 %v3290
    %v5495 = vunpack.c.h.b16 %v3290
    %v5496 = vunpack.c.l.b16 %v3291
    %v5497 = vunpack.c.h.b16 %v3291
    %v5498 = vunpack.c.l.b16 %v3292
    %v5499 = vunpack.c.h.b16 %v3292
    %v5500 = vunpack.c.l.b16 %v3293
    %v5501 = vunpack.c.h.b16 %v3293
    %v5502 = vunpack.c.l.b16 %v3294
    %v5503 = vunpack.c.h.b16 %v3294
    %v5504 = vunpack.c.l.b16 %v3295
    %v5505 = vunpack.c.h.b16 %v3295
    %v5506 = vunpack.c.l.b16 %v3296
    %v5507 = vunpack.c.h.b16 %v3296
    %v5508 = vunpack.c.l.b16 %v3297
    %v5509 = vunpack.c.h.b16 %v3297
    %v5510 = vunpack.c.l.b16 %v3298
    %v5511 = vunpack.c.h.b16 %v3298
    %v5512 = vunpack.c.l.b16 %v3299
    %v5513 = vunpack.c.h.b16 %v3299
    %v5514 = vunpack.c.l.b16 %v3300
    %v5515 = vunpack.c.h.b16 %v3300
    %v5516 = vunpack.c.l.b16 %v3301
    %v5517 = vunpack.c.h.b16 %v3301
    %v5518 = vunpack.c.l.b16 %v3302
    %v5519 = vunpack.c.h.b16 %v3302
    %v5520 = vunpack.c.l.b16 %v3303
    %v5521 = vunpack.c.h.b16 %v3303
    %v5522 = vunpack.c.l.b16 %v3304
    %v5523 = vunpack.c.h.b16 %v3304
    %v5524 = vunpack.c.l.b16 %v3305
    %v5525 = vunpack.c.h.b16 %v3305
    %v5526 = vunpack.c.l.b16 %v3306
    %v5527 = vunpack.c.h.b16 %v3306
    %v5528 = vunpack.c.l.b16 %v3307
    %v5529 = vunpack.c.h.b16 %v3307
    %v5530 = vunpack.c.l.b16 %v3308
    %v5531 = vunpack.c.h.b16 %v3308
    %v5532 = vunpack.c.l.b16 %v3309
    %v5533 = vunpack.c.h.b16 %v3309
    %v5534 = vunpack.c.l.b16 %v3310
    %v5535 = vunpack.c.h.b16 %v3310
    %v5536 = vunpack.c.l.b16 %v3311
    %v5537 = vunpack.c.h.b16 %v3311
    %v5538 = vunpack.c.l.b16 %v3312
    %v5539 = vunpack.c.h.b16 %v3312
    %v5540 = vunpack.c.l.b16 %v3313
    %v5541 = vunpack.c.h.b16 %v3313
    %v5542 = vunpack.c.l.b16 %v3314
    %v5543 = vunpack.c.h.b16 %v3314
    %v5544 = vunpack.c.l.b16 %v3315
    %v5545 = vunpack.c.h.b16 %v3315
    %v5546 = vunpack.c.l.b16 %v3316
    %v5547 = vunpack.c.h.b16 %v3316
    %v5548 = vunpack.c.l.b16 %v3317
    %v5549 = vunpack.c.h.b16 %v3317
    %v5550 = vunpack.c.l.b16 %v3318
    %v5551 = vunpack.c.h.b16 %v3318
    %v5552 = vunpack.c.l.b16 %v3319
    %v5553 = vunpack.c.h.b16 %v3319
    %v5554 = vunpack.c.l.b16 %v3320
    %v5555 = vunpack.c.h.b16 %v3320
    %v5556 = vunpack.c.l.b16 %v3321
    %v5557 = vunpack.c.h.b16 %v3321
    %v5558 = vunpack.c.l.b16 %v3322
    %v5559 = vunpack.c.h.b16 %v3322
    %v5560 = vunpack.c.l.b16 %v3323
    %v5561 = vunpack.c.h.b16 %v3323
    %v5562 = vunpack.c.l.b16 %v3324
    %v5563 = vunpack.c.h.b16 %v3324
    %v5564 = vunpack.c.l.b16 %v3325
    %v5565 = vunpack.c.h.b16 %v3325
    %v5566 = vunpack.c.l.b16 %v3326
    %v5567 = vunpack.c.h.b16 %v3326
    %v5568 = vunpack.c.l.b16 %v3327
    %v5569 = vunpack.c.h.b16 %v3327
    %v5570 = vunpack.c.l.b16 %v3328
    %v5571 = vunpack.c.h.b16 %v3328
    %v5572 = vunpack.c.l.b16 %v3329
    %v5573 = vunpack.c.h.b16 %v3329
    %v5574 = vunpack.c.l.b16 %v3330
    %v5575 = vunpack.c.h.b16 %v3330
    %v5576 = vunpack.c.l.b16 %v3331
    %v5577 = vunpack.c.h.b16 %v3331
    %v5578 = vunpack.c.l.b16 %v3332
    %v5579 = vunpack.c.h.b16 %v3332
    %v5580 = vunpack.c.l.b16 %v3333
    %v5581 = vunpack.c.h.b16 %v3333
    %v5582 = vunpack.c.l.b16 %v3334
    %v5583 = vunpack.c.h.b16 %v3334
    %v5584 = vunpack.c.l.b16 %v3335
    %v5585 = vunpack.c.h.b16 %v3335
    %v5586 = vunpack.c.l.b16 %v3336
    %v5587 = vunpack.c.h.b16 %v3336
    %v5588 = vunpack.c.l.b16 %v3337
    %v5589 = vunpack.c.h.b16 %v3337
    %v5590 = vunpack.c.l.b16 %v3338
    %v5591 = vunpack.c.h.b16 %v3338
    %v5592 = vunpack.c.l.b16 %v3339
    %v5593 = vunpack.c.h.b16 %v3339
    %v5594 = vunpack.c.l.b16 %v3340
    %v5595 = vunpack.c.h.b16 %v3340
    %v5596 = vunpack.c.l.b16 %v3341
    %v5597 = vunpack.c.h.b16 %v3341
    %v5598 = vunpack.c.l.b16 %v3342
    %v5599 = vunpack.c.h.b16 %v3342
    %v5600 = vunpack.c.l.b16 %v3343
    %v5601 = vunpack.c.h.b16 %v3343
    %v5602 = vunpack.c.l.b16 %v3344
    %v5603 = vunpack.c.h.b16 %v3344
    %v5604 = vunpack.c.l.b16 %v3345
    %v5605 = vunpack.c.h.b16 %v3345
    %v5606 = vunpack.c.l.b16 %v3346
    %v5607 = vunpack.c.h.b16 %v3346
    %v5608 = vunpack.c.l.b16 %v3347
    %v5609 = vunpack.c.h.b16 %v3347
    %v5610 = vunpack.c.l.b16 %v3348
    %v5611 = vunpack.c.h.b16 %v3348
    %v5612 = vunpack.c.l.b16 %v3349
    %v5613 = vunpack.c.h.b16 %v3349
    %v5614 = vunpack.c.l.b16 %v3350
    %v5615 = vunpack.c.h.b16 %v3350
    %v5616 = vunpack.c.l.b16 %v3351
    %v5617 = vunpack.c.h.b16 %v3351
    %v5618 = vunpack.c.l.b16 %v3352
    %v5619 = vunpack.c.h.b16 %v3352
    %v5620 = vunpack.c.l.b16 %v3353
    %v5621 = vunpack.c.h.b16 %v3353
    %v5622 = vunpack.c.l.b16 %v3354
    %v5623 = vunpack.c.h.b16 %v3354
    %v5624 = vunpack.c.l.b16 %v3355
    %v5625 = vunpack.c.h.b16 %v3355
    %v5626 = vunpack.c.l.b16 %v3356
    %v5627 = vunpack.c.h.b16 %v3356
    %v5628 = vunpack.c.l.b16 %v3357
    %v5629 = vunpack.c.h.b16 %v3357
    %v5630 = vunpack.c.l.b16 %v3358
    %v5631 = vunpack.c.h.b16 %v3358
    %v5632 = vunpack.c.l.b16 %v3359
    %v5633 = vunpack.c.h.b16 %v3359
    %v5634 = vunpack.c.l.b16 %v3360
    %v5635 = vunpack.c.h.b16 %v3360
    %v5636 = vunpack.c.l.b16 %v3361
    %v5637 = vunpack.c.h.b16 %v3361
    %v5638 = vunpack.c.l.b16 %v3362
    %v5639 = vunpack.c.h.b16 %v3362
    %v5640 = vunpack.c.l.b16 %v3363
    %v5641 = vunpack.c.h.b16 %v3363
    %v5642 = vunpack.c.l.b16 %v3364
    %v5643 = vunpack.c.h.b16 %v3364
    %v5644 = vunpack.c.l.b16 %v3365
    %v5645 = vunpack.c.h.b16 %v3365
    %v5646 = vunpack.c.l.b16 %v3366
    %v5647 = vunpack.c.h.b16 %v3366
    %v5648 = vunpack.c.l.b16 %v3367
    %v5649 = vunpack.c.h.b16 %v3367
    %v5650 = vunpack.c.l.b16 %v3368
    %v5651 = vunpack.c.h.b16 %v3368
    %v5652 = vunpack.c.l.b16 %v3369
    %v5653 = vunpack.c.h.b16 %v3369
    %v5654 = vunpack.c.l.b16 %v3370
    %v5655 = vunpack.c.h.b16 %v3370
    %v5656 = vunpack.c.l.b16 %v3371
    %v5657 = vunpack.c.h.b16 %v3371
    %v5658 = vunpack.c.l.b16 %v3372
    %v5659 = vunpack.c.h.b16 %v3372
    %v5660 = vpack.c.b16 %v5282, %v5276
    %v5661 = vpack.c.b16 %v5283, %v5277
    %v5662 = vpack.c.b16 %v5284, %v5278
    %v5663 = vpack.c.b16 %v5285, %v5279
    %v5664 = vpack.c.b16 %v5286, %v5280
    %v5665 = vpack.c.b16 %v5287, %v5281
    %v5666 = vpack.c.b16 %v5294, %v5288
    %v5667 = vpack.c.b16 %v5295, %v5289
    %v5668 = vpack.c.b16 %v5296, %v5290
    %v5669 = vpack.c.b16 %v5297, %v5291
    %v5670 = vpack.c.b16 %v5298, %v5292
    %v5671 = vpack.c.b16 %v5299, %v5293
    %v5672 = vpack.c.b16 %v5306, %v5300
    %v5673 = vpack.c.b16 %v5307, %v5301
    %v5674 = vpack.c.b16 %v5308, %v5302
    %v5675 = vpack.c.b16 %v5309, %v5303
    %v5676 = vpack.c.b16 %v5310, %v5304
    %v5677 = vpack.c.b16 %v5311, %v5305
    %v5678 = vpack.c.b16 %v5318, %v5312
    %v5679 = vpack.c.b16 %v5319, %v5313
    %v5680 = vpack.c.b16 %v5320, %v5314
    %v5681 = vpack.c.b16 %v5321, %v5315
    %v5682 = vpack.c.b16 %v5322, %v5316
    %v5683 = vpack.c.b16 %v5323, %v5317
    %v5684 = vpack.c.b16 %v5330, %v5324
    %v5685 = vpack.c.b16 %v5331, %v5325
    %v5686 = vpack.c.b16 %v5332, %v5326
    %v5687 = vpack.c.b16 %v5333, %v5327
    %v5688 = vpack.c.b16 %v5334, %v5328
    %v5689 = vpack.c.b16 %v5335, %v5329
    %v5690 = vpack.c.b16 %v5342, %v5336
    %v5691 = vpack.c.b16 %v5343, %v5337
    %v5692 = vpack.c.b16 %v5344, %v5338
    %v5693 = vpack.c.b16 %v5345, %v5339
    %v5694 = vpack.c.b16 %v5346, %v5340
    %v5695 = vpack.c.b16 %v5347, %v5341
    %v5696 = vpack.c.b16 %v5354, %v5348
    %v5697 = vpack.c.b16 %v5355, %v5349
    %v5698 = vpack.c.b16 %v5356, %v5350
    %v5699 = vpack.c.b16 %v5357, %v5351
    %v5700 = vpack.c.b16 %v5358, %v5352
    %v5701 = vpack.c.b16 %v5359, %v5353
    %v5702 = vpack.c.b16 %v5366, %v5360
    %v5703 = vpack.c.b16 %v5367, %v5361
    %v5704 = vpack.c.b16 %v5368, %v5362
    %v5705 = vpack.c.b16 %v5369, %v5363
    %v5706 = vpack.c.b16 %v5370, %v5364
    %v5707 = vpack.c.b16 %v5371, %v5365
    %v5708 = vpack.c.b16 %v5378, %v5372
    %v5709 = vpack.c.b16 %v5379, %v5373
    %v5710 = vpack.c.b16 %v5380, %v5374
    %v5711 = vpack.c.b16 %v5381, %v5375
    %v5712 = vpack.c.b16 %v5382, %v5376
    %v5713 = vpack.c.b16 %v5383, %v5377
    %v5714 = vpack.c.b16 %v5390, %v5384
    %v5715 = vpack.c.b16 %v5391, %v5385
    %v5716 = vpack.c.b16 %v5392, %v5386
    %v5717 = vpack.c.b16 %v5393, %v5387
    %v5718 = vpack.c.b16 %v5394, %v5388
    %v5719 = vpack.c.b16 %v5395, %v5389
    %v5720 = vpack.c.b16 %v5402, %v5396
    %v5721 = vpack.c.b16 %v5403, %v5397
    %v5722 = vpack.c.b16 %v5404, %v5398
    %v5723 = vpack.c.b16 %v5405, %v5399
    %v5724 = vpack.c.b16 %v5406, %v5400
    %v5725 = vpack.c.b16 %v5407, %v5401
    %v5726 = vpack.c.b16 %v5414, %v5408
    %v5727 = vpack.c.b16 %v5415, %v5409
    %v5728 = vpack.c.b16 %v5416, %v5410
    %v5729 = vpack.c.b16 %v5417, %v5411
    %v5730 = vpack.c.b16 %v5418, %v5412
    %v5731 = vpack.c.b16 %v5419, %v5413
    %v5732 = vpack.c.b16 %v5426, %v5420
    %v5733 = vpack.c.b16 %v5427, %v5421
    %v5734 = vpack.c.b16 %v5428, %v5422
    %v5735 = vpack.c.b16 %v5429, %v5423
    %v5736 = vpack.c.b16 %v5430, %v5424
    %v5737 = vpack.c.b16 %v5431, %v5425
    %v5738 = vpack.c.b16 %v5438, %v5432
    %v5739 = vpack.c.b16 %v5439, %v5433
    %v5740 = vpack.c.b16 %v5440, %v5434
    %v5741 = vpack.c.b16 %v5441, %v5435
    %v5742 = vpack.c.b16 %v5442, %v5436
    %v5743 = vpack.c.b16 %v5443, %v5437
    %v5744 = vpack.c.b16 %v5450, %v5444
    %v5745 = vpack.c.b16 %v5451, %v5445
    %v5746 = vpack.c.b16 %v5452, %v5446
    %v5747 = vpack.c.b16 %v5453, %v5447
    %v5748 = vpack.c.b16 %v5454, %v5448
    %v5749 = vpack.c.b16 %v5455, %v5449
    %v5750 = vpack.c.b16 %v5462, %v5456
    %v5751 = vpack.c.b16 %v5463, %v5457
    %v5752 = vpack.c.b16 %v5464, %v5458
    %v5753 = vpack.c.b16 %v5465, %v5459
    %v5754 = vpack.c.b16 %v5466, %v5460
    %v5755 = vpack.c.b16 %v5467, %v5461
    %v5756 = vpack.c.b16 %v5474, %v5468
    %v5757 = vpack.c.b16 %v5475, %v5469
    %v5758 = vpack.c.b16 %v5476, %v5470
    %v5759 = vpack.c.b16 %v5477, %v5471
    %v5760 = vpack.c.b16 %v5478, %v5472
    %v5761 = vpack.c.b16 %v5479, %v5473
    %v5762 = vpack.c.b16 %v5486, %v5480
    %v5763 = vpack.c.b16 %v5487, %v5481
    %v5764 = vpack.c.b16 %v5488, %v5482
    %v5765 = vpack.c.b16 %v5489, %v5483
    %v5766 = vpack.c.b16 %v5490, %v5484
    %v5767 = vpack.c.b16 %v5491, %v5485
    %v5768 = vpack.c.b16 %v5498, %v5492
    %v5769 = vpack.c.b16 %v5499, %v5493
    %v5770 = vpack.c.b16 %v5500, %v5494
    %v5771 = vpack.c.b16 %v5501, %v5495
    %v5772 = vpack.c.b16 %v5502, %v5496
    %v5773 = vpack.c.b16 %v5503, %v5497
    %v5774 = vpack.c.b16 %v5510, %v5504
    %v5775 = vpack.c.b16 %v5511, %v5505
    %v5776 = vpack.c.b16 %v5512, %v5506
    %v5777 = vpack.c.b16 %v5513, %v5507
    %v5778 = vpack.c.b16 %v5514, %v5508
    %v5779 = vpack.c.b16 %v5515, %v5509
    %v5780 = vpack.c.b16 %v5522, %v5516
    %v5781 = vpack.c.b16 %v5523, %v5517
    %v5782 = vpack.c.b16 %v5524, %v5518
    %v5783 = vpack.c.b16 %v5525, %v5519
    %v5784 = vpack.c.b16 %v5526, %v5520
    %v5785 = vpack.c.b16 %v5527, %v5521
    %v5786 = vpack.c.b16 %v5534, %v5528
    %v5787 = vpack.c.b16 %v5535, %v5529
    %v5788 = vpack.c.b16 %v5536, %v5530
    %v5789 = vpack.c.b16 %v5537, %v5531
    %v5790 = vpack.c.b16 %v5538, %v5532
    %v5791 = vpack.c.b16 %v5539, %v5533
    %v5792 = vpack.c.b16 %v5546, %v5540
    %v5793 = vpack.c.b16 %v5547, %v5541
    %v5794 = vpack.c.b16 %v5548, %v5542
    %v5795 = vpack.c.b16 %v5549, %v5543
    %v5796 = vpack.c.b16 %v5550, %v5544
    %v5797 = vpack.c.b16 %v5551, %v5545
    %v5798 = vpack.c.b16 %v5558, %v5552
    %v5799 = vpack.c.b16 %v5559, %v5553
    %v5800 = vpack.c.b16 %v5560, %v5554
    %v5801 = vpack.c.b16 %v5561, %v5555
    %v5802 = vpack.c.b16 %v5562, %v5556
    %v5803 = vpack.c.b16 %v5563, %v5557
    %v5804 = vpack.c.b16 %v5570, %v5564
    %v5805 = vpack.c.b16 %v5571, %v5565
    %v5806 = vpack.c.b16 %v5572, %v5566
    %v5807 = vpack.c.b16 %v5573, %v5567
    %v5808 = vpack.c.b16 %v5574, %v5568
    %v5809 = vpack.c.b16 %v5575, %v5569
    %v5810 = vpack.c.b16 %v5582, %v5576
    %v5811 = vpack.c.b16 %v5583, %v5577
    %v5812 = vpack.c.b16 %v5584, %v5578
    %v5813 = vpack.c.b16 %v5585, %v5579
    %v5814 = vpack.c.b16 %v5586, %v5580
    %v5815 = vpack.c.b16 %v5587, %v5581
    %v5816 = vpack.c.b16 %v5594, %v5588
    %v5817 = vpack.c.b16 %v5595, %v5589
    %v5818 = vpack.c.b16 %v5596, %v5590
    %v5819 = vpack.c.b16 %v5597, %v5591
    %v5820 = vpack.c.b16 %v5598, %v5592
    %v5821 = vpack.c.b16 %v5599, %v5593
    %v5822 = vpack.c.b16 %v5606, %v5600
    %v5823 = vpack.c.b16 %v5607, %v5601
    %v5824 = vpack.c.b16 %v5608, %v5602
    %v5825 = vpack.c.b16 %v5609, %v5603
    %v5826 = vpack.c.b16 %v5610, %v5604
    %v5827 = vpack.c.b16 %v5611, %v5605
    %v5828 = vpack.c.b16 %v5618, %v5612
    %v5829 = vpack.c.b16 %v5619, %v5613
    %v5830 = vpack.c.b16 %v5620, %v5614
    %v5831 = vpack.c.b16 %v5621, %v5615
    %v5832 = vpack.c.b16 %v5622, %v5616
    %v5833 = vpack.c.b16 %v5623, %v5617
    %v5834 = vpack.c.b16 %v5630, %v5624
    %v5835 = vpack.c.b16 %v5631, %v5625
    %v5836 = vpack.c.b16 %v5632, %v5626
    %v5837 = vpack.c.b16 %v5633, %v5627
    %v5838 = vpack.c.b16 %v5634, %v5628
    %v5839 = vpack.c.b16 %v5635, %v5629
    %v5840 = vpack.c.b16 %v5642, %v5636
    %v5841 = vpack.c.b16 %v5643, %v5637
    %v5842 = vpack.c.b16 %v5644, %v5638
    %v5843 = vpack.c.b16 %v5645, %v5639
    %v5844 = vpack.c.b16 %v5646, %v5640
    %v5845 = vpack.c.b16 %v5647, %v5641
    %v5846 = vpack.c.b16 %v5654, %v5648
    %v5847 = vpack.c.b16 %v5655, %v5649
    %v5848 = vpack.c.b16 %v5656, %v5650
    %v5849 = vpack.c.b16 %v5657, %v5651
    %v5850 = vpack.c.b16 %v5658, %v5652
    %v5851 = vpack.c.b16 %v5659, %v5653
    %6044 = vmatprep.subr.bf16.mxu0 %v5661
    %6045 = vmatpush1.bf16.msra.mxu0 %v5660
    %6046 = vmatprep.subr.bf16.mxu0 %v5667
    %6047 = vmatpush1.bf16.msra.mxu0 %v5666
    %6048 = vmatprep.subr.bf16.mxu0 %v5673
    %6049 = vmatpush1.bf16.msra.mxu0 %v5672
    %6050 = vmatprep.subr.bf16.mxu0 %v5679
    %6051 = vmatpush1.bf16.msra.mxu0 %v5678
    %6052 = vmatprep.subr.bf16.mxu0 %v5685
    %6053 = vmatpush1.bf16.msra.mxu0 %v5684
    %6054 = vmatprep.subr.bf16.mxu0 %v5691
    %6055 = vmatpush1.bf16.msra.mxu0 %v5690
    %6056 = vmatprep.subr.bf16.mxu0 %v5697
    %6057 = vmatpush1.bf16.msra.mxu0 %v5696
    %6058 = vmatprep.subr.bf16.mxu0 %v5703
    %6059 = vmatpush1.bf16.msra.mxu0 %v5702
    %6060 = vmatprep.subr.bf16.mxu0 %v5709
    %6061 = vmatpush1.bf16.msra.mxu0 %v5708
    %6062 = vmatprep.subr.bf16.mxu0 %v5715
    %6063 = vmatpush1.bf16.msra.mxu0 %v5714
    %6064 = vmatprep.subr.bf16.mxu0 %v5721
    %6065 = vmatpush1.bf16.msra.mxu0 %v5720
    %6066 = vmatprep.subr.bf16.mxu0 %v5727
    %6067 = vmatpush1.bf16.msra.mxu0 %v5726
    %6068 = vmatprep.subr.bf16.mxu0 %v5733
    %6069 = vmatpush1.bf16.msra.mxu0 %v5732
    %6070 = vmatprep.subr.bf16.mxu0 %v5739
    %6071 = vmatpush1.bf16.msra.mxu0 %v5738
    %6072 = vmatprep.subr.bf16.mxu0 %v5745
    %6073 = vmatpush1.bf16.msra.mxu0 %v5744
    %6074 = vmatprep.subr.bf16.mxu0 %v5751
    %6075 = vmatpush1.bf16.msra.mxu0 %v5750
    %6076 = vmatprep.mubr.bf16.mxu0 %v3158
    %6077 = vmatmul.mubr.bf16.gmra.mrb[0].mxu0 %v3157
    %v6078 = vpop.f32.mrb[0].mxu0
    %v6079 = vadd.f32 %v4674, %v6078
    %v6080 = vpop.f32.mrb[0].mxu0
    %v6081 = vadd.f32 %v4676, %v6080
    %v6082 = vpop.f32.mrb[0].mxu0
    %v6083 = vadd.f32 %v4678, %v6082
    %v6084 = vpop.f32.mrb[0].mxu0
    %v6085 = vadd.f32 %v4680, %v6084
    %6086 = vmatprep.mubr.bf16.mxu0 %v3162
    %6087 = vmatmul.mubr.bf16.gmra.mrb[0].mxu0 %v3161
    %v6088 = vpop.f32.mrb[0].mxu0
    %v6089 = vadd.f32 %v4684, %v6088
    %v6090 = vpop.f32.mrb[0].mxu0
    %v6091 = vadd.f32 %v4686, %v6090
    %v6092 = vpop.f32.mrb[0].mxu0
    %v6093 = vadd.f32 %v4688, %v6092
    %v6094 = vpop.f32.mrb[0].mxu0
    %v6095 = vadd.f32 %v4690, %v6094
    %6096 = vmatprep.mubr.bf16.mxu0 %v3166
    %6097 = vmatmul.mubr.bf16.gmra.mrb[0].mxu0 %v3165
    %v6098 = vpop.f32.mrb[0].mxu0
    %v6099 = vadd.f32 %v4694, %v6098
    %v6100 = vpop.f32.mrb[0].mxu0
    %v6101 = vadd.f32 %v4696, %v6100
    %v6102 = vpop.f32.mrb[0].mxu0
    %v6103 = vadd.f32 %v4698, %v6102
    %v6104 = vpop.f32.mrb[0].mxu0
    %v6105 = vadd.f32 %v4700, %v6104
    %6106 = vmatprep.mubr.bf16.mxu0 %v3170
    %6107 = vmatmul.mubr.bf16.gmra.mrb[0].mxu0 %v3169
    %v6108 = vpop.f32.mrb[0].mxu0
    %v6109 = vadd.f32 %v4704, %v6108
    %v6110 = vpop.f32.mrb[0].mxu0
    %v6111 = vadd.f32 %v4706, %v6110
    %v6112 = vpop.f32.mrb[0].mxu0
    %v6113 = vadd.f32 %v4708, %v6112
    %v6114 = vpop.f32.mrb[0].mxu0
    %v6115 = vadd.f32 %v4710, %v6114
    %6116 = vmatprep.mubr.bf16.mxu0 %v3174
    %6117 = vmatmul.mubr.bf16.gmra.mrb[0].mxu0 %v3173
    %v6118 = vpop.f32.mrb[0].mxu0
    %v6119 = vadd.f32 %v4714, %v6118
    %v6120 = vpop.f32.mrb[0].mxu0
    %v6121 = vadd.f32 %v4716, %v6120
    %v6122 = vpop.f32.mrb[0].mxu0
    %v6123 = vadd.f32 %v4718, %v6122
    %v6124 = vpop.f32.mrb[0].mxu0
    %v6125 = vadd.f32 %v4720, %v6124
    %6126 = vmatprep.mubr.bf16.mxu0 %v3178
    %6127 = vmatmul.mubr.bf16.gmra.mrb[0].mxu0 %v3177
    %v6128 = vpop.f32.mrb[0].mxu0
    %v6129 = vpop.f32.mrb[0].mxu0
    %v6130 = vpop.f32.mrb[0].mxu0
    %v6131 = vpop.f32.mrb[0].mxu0
    %6132 = vdwg.mxu0
    %6133 = vmatprep.subr.bf16.mxu0 %v5757
    %6134 = vmatpush1.bf16.msra.mxu0 %v5756
    %6135 = vmatprep.subr.bf16.mxu0 %v5763
    %6136 = vmatpush1.bf16.msra.mxu0 %v5762
    %6137 = vmatprep.subr.bf16.mxu0 %v5769
    %6138 = vmatpush1.bf16.msra.mxu0 %v5768
    %6139 = vmatprep.subr.bf16.mxu0 %v5775
    %6140 = vmatpush1.bf16.msra.mxu0 %v5774
    %6141 = vmatprep.subr.bf16.mxu0 %v5781
    %6142 = vmatpush1.bf16.msra.mxu0 %v5780
    %6143 = vmatprep.subr.bf16.mxu0 %v5787
    %6144 = vmatpush1.bf16.msra.mxu0 %v5786
    %6145 = vmatprep.subr.bf16.mxu0 %v5793
    %6146 = vmatpush1.bf16.msra.mxu0 %v5792
    %6147 = vmatprep.subr.bf16.mxu0 %v5799
    %6148 = vmatpush1.bf16.msra.mxu0 %v5798
    %6149 = vmatprep.subr.bf16.mxu0 %v5805
    %6150 = vmatpush1.bf16.msra.mxu0 %v5804
    %6151 = vmatprep.subr.bf16.mxu0 %v5811
    %6152 = vmatpush1.bf16.msra.mxu0 %v5810
    %6153 = vmatprep.subr.bf16.mxu0 %v5817
    %6154 = vmatpush1.bf16.msra.mxu0 %v5816
    %6155 = vmatprep.subr.bf16.mxu0 %v5823
    %6156 = vmatpush1.bf16.msra.mxu0 %v5822
    %6157 = vmatprep.subr.bf16.mxu0 %v5829
    %6158 = vmatpush1.bf16.msra.mxu0 %v5828
    %6159 = vmatprep.subr.bf16.mxu0 %v5835
    %6160 = vmatpush1.bf16.msra.mxu0 %v5834
    %6161 = vmatprep.subr.bf16.mxu0 %v5841
    %6162 = vmatpush1.bf16.msra.mxu0 %v5840
    %6163 = vmatprep.subr.bf16.mxu0 %v5847
    %6164 = vmatpush1.bf16.msra.mxu0 %v5846
    %6165 = vmatprep.mubr.bf16.mxu0 %v3160
    %6166 = vmatmul.mubr.bf16.gmra.mrb[0].mxu0 %v3159
    %v6167 = vpop.f32.mrb[0].mxu0
    %v6168 = vadd.f32 %v6079, %v6167
    %v6169 = vpop.f32.mrb[0].mxu0
    %v6170 = vadd.f32 %v6081, %v6169
    %v6171 = vpop.f32.mrb[0].mxu0
    %v6172 = vadd.f32 %v6083, %v6171
    %v6173 = vpop.f32.mrb[0].mxu0
    %v6174 = vadd.f32 %v6085, %v6173
    %6175 = vmatprep.mubr.bf16.mxu0 %v3164
    %6176 = vmatmul.mubr.bf16.gmra.mrb[0].mxu0 %v3163
    %v6177 = vpop.f32.mrb[0].mxu0
    %v6178 = vadd.f32 %v6089, %v6177
    %v6179 = vpop.f32.mrb[0].mxu0
    %v6180 = vadd.f32 %v6091, %v6179
    %v6181 = vpop.f32.mrb[0].mxu0
    %v6182 = vadd.f32 %v6093, %v6181
    %v6183 = vpop.f32.mrb[0].mxu0
    %v6184 = vadd.f32 %v6095, %v6183
    %6185 = vmatprep.mubr.bf16.mxu0 %v3168
    %6186 = vmatmul.mubr.bf16.gmra.mrb[0].mxu0 %v3167
    %v6187 = vpop.f32.mrb[0].mxu0
    %v6188 = vadd.f32 %v6099, %v6187
    %v6189 = vpop.f32.mrb[0].mxu0
    %v6190 = vadd.f32 %v6101, %v6189
    %v6191 = vpop.f32.mrb[0].mxu0
    %v6192 = vadd.f32 %v6103, %v6191
    %v6193 = vpop.f32.mrb[0].mxu0
    %v6194 = vadd.f32 %v6105, %v6193
    %6195 = vmatprep.mubr.bf16.mxu0 %v3172
    %6196 = vmatmul.mubr.bf16.gmra.mrb[0].mxu0 %v3171
    %v6197 = vpop.f32.mrb[0].mxu0
    %v6198 = vadd.f32 %v6109, %v6197
    %v6199 = vpop.f32.mrb[0].mxu0
    %v6200 = vadd.f32 %v6111, %v6199
    %v6201 = vpop.f32.mrb[0].mxu0
    %v6202 = vadd.f32 %v6113, %v6201
    %v6203 = vpop.f32.mrb[0].mxu0
    %v6204 = vadd.f32 %v6115, %v6203
    %6205 = vmatprep.mubr.bf16.mxu0 %v3176
    %6206 = vmatmul.mubr.bf16.gmra.mrb[0].mxu0 %v3175
    %v6207 = vpop.f32.mrb[0].mxu0
    %v6208 = vadd.f32 %v6119, %v6207
    %v6209 = vpop.f32.mrb[0].mxu0
    %v6210 = vadd.f32 %v6121, %v6209
    %v6211 = vpop.f32.mrb[0].mxu0
    %v6212 = vadd.f32 %v6123, %v6211
    %v6213 = vpop.f32.mrb[0].mxu0
    %v6214 = vadd.f32 %v6125, %v6213
    %6215 = vmatprep.mubr.bf16.mxu0 %v3180
    %6216 = vmatmul.mubr.bf16.gmra.mrb[0].mxu0 %v3179
    %v6217 = vpop.f32.mrb[0].mxu0
    %v6218 = vpop.f32.mrb[0].mxu0
    %v6219 = vpop.f32.mrb[0].mxu0
    %v6220 = vpop.f32.mrb[0].mxu0
    %6221 = vdwg.mxu0
    %6222 = vmatprep.subr.bf16.mxu0 %v5663
    %6223 = vmatpush1.bf16.msra.mxu0 %v5662
    %6224 = vmatprep.subr.bf16.mxu0 %v5669
    %6225 = vmatpush1.bf16.msra.mxu0 %v5668
    %6226 = vmatprep.subr.bf16.mxu0 %v5675
    %6227 = vmatpush1.bf16.msra.mxu0 %v5674
    %6228 = vmatprep.subr.bf16.mxu0 %v5681
    %6229 = vmatpush1.bf16.msra.mxu0 %v5680
    %6230 = vmatprep.subr.bf16.mxu0 %v5687
    %6231 = vmatpush1.bf16.msra.mxu0 %v5686
    %6232 = vmatprep.subr.bf16.mxu0 %v5693
    %6233 = vmatpush1.bf16.msra.mxu0 %v5692
    %6234 = vmatprep.subr.bf16.mxu0 %v5699
    %6235 = vmatpush1.bf16.msra.mxu0 %v5698
    %6236 = vmatprep.subr.bf16.mxu0 %v5705
    %6237 = vmatpush1.bf16.msra.mxu0 %v5704
    %6238 = vmatprep.subr.bf16.mxu0 %v5711
    %6239 = vmatpush1.bf16.msra.mxu0 %v5710
    %6240 = vmatprep.subr.bf16.mxu0 %v5717
    %6241 = vmatpush1.bf16.msra.mxu0 %v5716
    %6242 = vmatprep.subr.bf16.mxu0 %v5723
    %6243 = vmatpush1.bf16.msra.mxu0 %v5722
    %6244 = vmatprep.subr.bf16.mxu0 %v5729
    %6245 = vmatpush1.bf16.msra.mxu0 %v5728
    %6246 = vmatprep.subr.bf16.mxu0 %v5735
    %6247 = vmatpush1.bf16.msra.mxu0 %v5734
    %6248 = vmatprep.subr.bf16.mxu0 %v5741
    %6249 = vmatpush1.bf16.msra.mxu0 %v5740
    %6250 = vmatprep.subr.bf16.mxu0 %v5747
    %6251 = vmatpush1.bf16.msra.mxu0 %v5746
    %6252 = vmatprep.subr.bf16.mxu0 %v5753
    %6253 = vmatpush1.bf16.msra.mxu0 %v5752
    %6254 = vmatprep.mubr.bf16.mxu0 %v3158
    %6255 = vmatmul.mubr.bf16.gmra.mrb[0].mxu0 %v3157
    %v6256 = vpop.f32.mrb[0].mxu0
    %v6257 = vadd.f32 %v4852, %v6256
    %v6258 = vpop.f32.mrb[0].mxu0
    %v6259 = vadd.f32 %v4854, %v6258
    %v6260 = vpop.f32.mrb[0].mxu0
    %v6261 = vadd.f32 %v4856, %v6260
    %v6262 = vpop.f32.mrb[0].mxu0
    %v6263 = vadd.f32 %v4858, %v6262
    %6264 = vmatprep.mubr.bf16.mxu0 %v3162
    %6265 = vmatmul.mubr.bf16.gmra.mrb[0].mxu0 %v3161
    %v6266 = vpop.f32.mrb[0].mxu0
    %v6267 = vadd.f32 %v4862, %v6266
    %v6268 = vpop.f32.mrb[0].mxu0
    %v6269 = vadd.f32 %v4864, %v6268
    %v6270 = vpop.f32.mrb[0].mxu0
    %v6271 = vadd.f32 %v4866, %v6270
    %v6272 = vpop.f32.mrb[0].mxu0
    %v6273 = vadd.f32 %v4868, %v6272
    %6274 = vmatprep.mubr.bf16.mxu0 %v3166
    %6275 = vmatmul.mubr.bf16.gmra.mrb[0].mxu0 %v3165
    %v6276 = vpop.f32.mrb[0].mxu0
    %v6277 = vadd.f32 %v4872, %v6276
    %v6278 = vpop.f32.mrb[0].mxu0
    %v6279 = vadd.f32 %v4874, %v6278
    %v6280 = vpop.f32.mrb[0].mxu0
    %v6281 = vadd.f32 %v4876, %v6280
    %v6282 = vpop.f32.mrb[0].mxu0
    %v6283 = vadd.f32 %v4878, %v6282
    %6284 = vmatprep.mubr.bf16.mxu0 %v3170
    %6285 = vmatmul.mubr.bf16.gmra.mrb[0].mxu0 %v3169
    %v6286 = vpop.f32.mrb[0].mxu0
    %v6287 = vadd.f32 %v4882, %v6286
    %v6288 = vpop.f32.mrb[0].mxu0
    %v6289 = vadd.f32 %v4884, %v6288
    %v6290 = vpop.f32.mrb[0].mxu0
    %v6291 = vadd.f32 %v4886, %v6290
    %v6292 = vpop.f32.mrb[0].mxu0
    %v6293 = vadd.f32 %v4888, %v6292
    %6294 = vmatprep.mubr.bf16.mxu0 %v3174
    %6295 = vmatmul.mubr.bf16.gmra.mrb[0].mxu0 %v3173
    %v6296 = vpop.f32.mrb[0].mxu0
    %v6297 = vadd.f32 %v4892, %v6296
    %v6298 = vpop.f32.mrb[0].mxu0
    %v6299 = vadd.f32 %v4894, %v6298
    %v6300 = vpop.f32.mrb[0].mxu0
    %v6301 = vadd.f32 %v4896, %v6300
    %v6302 = vpop.f32.mrb[0].mxu0
    %v6303 = vadd.f32 %v4898, %v6302
    %6304 = vmatprep.mubr.bf16.mxu0 %v3178
    %6305 = vmatmul.mubr.bf16.gmra.mrb[0].mxu0 %v3177
    %v6306 = vpop.f32.mrb[0].mxu0
    %v6307 = vpop.f32.mrb[0].mxu0
    %v6308 = vpop.f32.mrb[0].mxu0
    %v6309 = vpop.f32.mrb[0].mxu0
    %6310 = vdwg.mxu0
    %6311 = vmatprep.subr.bf16.mxu0 %v5759
    %6312 = vmatpush1.bf16.msra.mxu0 %v5758
    %6313 = vmatprep.subr.bf16.mxu0 %v5765
    %6314 = vmatpush1.bf16.msra.mxu0 %v5764
    %6315 = vmatprep.subr.bf16.mxu0 %v5771
    %6316 = vmatpush1.bf16.msra.mxu0 %v5770
    %6317 = vmatprep.subr.bf16.mxu0 %v5777
    %6318 = vmatpush1.bf16.msra.mxu0 %v5776
    %6319 = vmatprep.subr.bf16.mxu0 %v5783
    %6320 = vmatpush1.bf16.msra.mxu0 %v5782
    %6321 = vmatprep.subr.bf16.mxu0 %v5789
    %6322 = vmatpush1.bf16.msra.mxu0 %v5788
    %6323 = vmatprep.subr.bf16.mxu0 %v5795
    %6324 = vmatpush1.bf16.msra.mxu0 %v5794
    %6325 = vmatprep.subr.bf16.mxu0 %v5801
    %6326 = vmatpush1.bf16.msra.mxu0 %v5800
    %6327 = vmatprep.subr.bf16.mxu0 %v5807
    %6328 = vmatpush1.bf16.msra.mxu0 %v5806
    %6329 = vmatprep.subr.bf16.mxu0 %v5813
    %6330 = vmatpush1.bf16.msra.mxu0 %v5812
    %6331 = vmatprep.subr.bf16.mxu0 %v5819
    %6332 = vmatpush1.bf16.msra.mxu0 %v5818
    %6333 = vmatprep.subr.bf16.mxu0 %v5825
    %6334 = vmatpush1.bf16.msra.mxu0 %v5824
    %6335 = vmatprep.subr.bf16.mxu0 %v5831
    %6336 = vmatpush1.bf16.msra.mxu0 %v5830
    %6337 = vmatprep.subr.bf16.mxu0 %v5837
    %6338 = vmatpush1.bf16.msra.mxu0 %v5836
    %6339 = vmatprep.subr.bf16.mxu0 %v5843
    %6340 = vmatpush1.bf16.msra.mxu0 %v5842
    %6341 = vmatprep.subr.bf16.mxu0 %v5849
    %6342 = vmatpush1.bf16.msra.mxu0 %v5848
    %6343 = vmatprep.mubr.bf16.mxu0 %v3160
    %6344 = vmatmul.mubr.bf16.gmra.mrb[0].mxu0 %v3159
    %v6345 = vpop.f32.mrb[0].mxu0
    %v6346 = vadd.f32 %v6257, %v6345
    %v6347 = vpop.f32.mrb[0].mxu0
    %v6348 = vadd.f32 %v6259, %v6347
    %v6349 = vpop.f32.mrb[0].mxu0
    %v6350 = vadd.f32 %v6261, %v6349
    %v6351 = vpop.f32.mrb[0].mxu0
    %v6352 = vadd.f32 %v6263, %v6351
    %6353 = vmatprep.mubr.bf16.mxu0 %v3164
    %6354 = vmatmul.mubr.bf16.gmra.mrb[0].mxu0 %v3163
    %v6355 = vpop.f32.mrb[0].mxu0
    %v6356 = vadd.f32 %v6267, %v6355
    %v6357 = vpop.f32.mrb[0].mxu0
    %v6358 = vadd.f32 %v6269, %v6357
    %v6359 = vpop.f32.mrb[0].mxu0
    %v6360 = vadd.f32 %v6271, %v6359
    %v6361 = vpop.f32.mrb[0].mxu0
    %v6362 = vadd.f32 %v6273, %v6361
    %6363 = vmatprep.mubr.bf16.mxu0 %v3168
    %6364 = vmatmul.mubr.bf16.gmra.mrb[0].mxu0 %v3167
    %v6365 = vpop.f32.mrb[0].mxu0
    %v6366 = vadd.f32 %v6277, %v6365
    %v6367 = vpop.f32.mrb[0].mxu0
    %v6368 = vadd.f32 %v6279, %v6367
    %v6369 = vpop.f32.mrb[0].mxu0
    %v6370 = vadd.f32 %v6281, %v6369
    %v6371 = vpop.f32.mrb[0].mxu0
    %v6372 = vadd.f32 %v6283, %v6371
    %6373 = vmatprep.mubr.bf16.mxu0 %v3172
    %6374 = vmatmul.mubr.bf16.gmra.mrb[0].mxu0 %v3171
    %v6375 = vpop.f32.mrb[0].mxu0
    %v6376 = vadd.f32 %v6287, %v6375
    %v6377 = vpop.f32.mrb[0].mxu0
    %v6378 = vadd.f32 %v6289, %v6377
    %v6379 = vpop.f32.mrb[0].mxu0
    %v6380 = vadd.f32 %v6291, %v6379
    %v6381 = vpop.f32.mrb[0].mxu0
    %v6382 = vadd.f32 %v6293, %v6381
    %6383 = vmatprep.mubr.bf16.mxu0 %v3176
    %6384 = vmatmul.mubr.bf16.gmra.mrb[0].mxu0 %v3175
    %v6385 = vpop.f32.mrb[0].mxu0
    %v6386 = vadd.f32 %v6297, %v6385
    %v6387 = vpop.f32.mrb[0].mxu0
    %v6388 = vadd.f32 %v6299, %v6387
    %v6389 = vpop.f32.mrb[0].mxu0
    %v6390 = vadd.f32 %v6301, %v6389
    %v6391 = vpop.f32.mrb[0].mxu0
    %v6392 = vadd.f32 %v6303, %v6391
    %6393 = vmatprep.mubr.bf16.mxu0 %v3180
    %6394 = vmatmul.mubr.bf16.gmra.mrb[0].mxu0 %v3179
    %v6395 = vpop.f32.mrb[0].mxu0
    %v6396 = vpop.f32.mrb[0].mxu0
    %v6397 = vpop.f32.mrb[0].mxu0
    %v6398 = vpop.f32.mrb[0].mxu0
    %6399 = vdwg.mxu0
    %6400 = vmatprep.subr.bf16.mxu0 %v5665
    %6401 = vmatpush1.bf16.msra.mxu0 %v5664
    %6402 = vmatprep.subr.bf16.mxu0 %v5671
    %6403 = vmatpush1.bf16.msra.mxu0 %v5670
    %6404 = vmatprep.subr.bf16.mxu0 %v5677
    %6405 = vmatpush1.bf16.msra.mxu0 %v5676
    %6406 = vmatprep.subr.bf16.mxu0 %v5683
    %6407 = vmatpush1.bf16.msra.mxu0 %v5682
    %6408 = vmatprep.subr.bf16.mxu0 %v5689
    %6409 = vmatpush1.bf16.msra.mxu0 %v5688
    %6410 = vmatprep.subr.bf16.mxu0 %v5695
    %6411 = vmatpush1.bf16.msra.mxu0 %v5694
    %6412 = vmatprep.subr.bf16.mxu0 %v5701
    %6413 = vmatpush1.bf16.msra.mxu0 %v5700
    %6414 = vmatprep.subr.bf16.mxu0 %v5707
    %6415 = vmatpush1.bf16.msra.mxu0 %v5706
    %6416 = vmatprep.subr.bf16.mxu0 %v5713
    %6417 = vmatpush1.bf16.msra.mxu0 %v5712
    %6418 = vmatprep.subr.bf16.mxu0 %v5719
    %6419 = vmatpush1.bf16.msra.mxu0 %v5718
    %6420 = vmatprep.subr.bf16.mxu0 %v5725
    %6421 = vmatpush1.bf16.msra.mxu0 %v5724
    %6422 = vmatprep.subr.bf16.mxu0 %v5731
    %6423 = vmatpush1.bf16.msra.mxu0 %v5730
    %6424 = vmatprep.subr.bf16.mxu0 %v5737
    %6425 = vmatpush1.bf16.msra.mxu0 %v5736
    %6426 = vmatprep.subr.bf16.mxu0 %v5743
    %6427 = vmatpush1.bf16.msra.mxu0 %v5742
    %6428 = vmatprep.subr.bf16.mxu0 %v5749
    %6429 = vmatpush1.bf16.msra.mxu0 %v5748
    %6430 = vmatprep.subr.bf16.mxu0 %v5755
    %6431 = vmatpush1.bf16.msra.mxu0 %v5754
    %6432 = vmatprep.mubr.bf16.mxu0 %v3158
    %6433 = vmatmul.mubr.bf16.gmra.mrb[0].mxu0 %v3157
    %v6434 = vpop.f32.mrb[0].mxu0
    %v6435 = vadd.f32 %v5030, %v6434
    %v6436 = vpop.f32.mrb[0].mxu0
    %v6437 = vadd.f32 %v5032, %v6436
    %v6438 = vpop.f32.mrb[0].mxu0
    %v6439 = vadd.f32 %v5034, %v6438
    %v6440 = vpop.f32.mrb[0].mxu0
    %v6441 = vadd.f32 %v5036, %v6440
    %6442 = vmatprep.mubr.bf16.mxu0 %v3162
    %6443 = vmatmul.mubr.bf16.gmra.mrb[0].mxu0 %v3161
    %v6444 = vpop.f32.mrb[0].mxu0
    %v6445 = vadd.f32 %v5040, %v6444
    %v6446 = vpop.f32.mrb[0].mxu0
    %v6447 = vadd.f32 %v5042, %v6446
    %v6448 = vpop.f32.mrb[0].mxu0
    %v6449 = vadd.f32 %v5044, %v6448
    %v6450 = vpop.f32.mrb[0].mxu0
    %v6451 = vadd.f32 %v5046, %v6450
    %6452 = vmatprep.mubr.bf16.mxu0 %v3166
    %6453 = vmatmul.mubr.bf16.gmra.mrb[0].mxu0 %v3165
    %v6454 = vpop.f32.mrb[0].mxu0
    %v6455 = vadd.f32 %v5050, %v6454
    %v6456 = vpop.f32.mrb[0].mxu0
    %v6457 = vadd.f32 %v5052, %v6456
    %v6458 = vpop.f32.mrb[0].mxu0
    %v6459 = vadd.f32 %v5054, %v6458
    %v6460 = vpop.f32.mrb[0].mxu0
    %v6461 = vadd.f32 %v5056, %v6460
    %6462 = vmatprep.mubr.bf16.mxu0 %v3170
    %6463 = vmatmul.mubr.bf16.gmra.mrb[0].mxu0 %v3169
    %v6464 = vpop.f32.mrb[0].mxu0
    %v6465 = vadd.f32 %v5060, %v6464
    %v6466 = vpop.f32.mrb[0].mxu0
    %v6467 = vadd.f32 %v5062, %v6466
    %v6468 = vpop.f32.mrb[0].mxu0
    %v6469 = vadd.f32 %v5064, %v6468
    %v6470 = vpop.f32.mrb[0].mxu0
    %v6471 = vadd.f32 %v5066, %v6470
    %6472 = vmatprep.mubr.bf16.mxu0 %v3174
    %6473 = vmatmul.mubr.bf16.gmra.mrb[0].mxu0 %v3173
    %v6474 = vpop.f32.mrb[0].mxu0
    %v6475 = vadd.f32 %v5070, %v6474
    %v6476 = vpop.f32.mrb[0].mxu0
    %v6477 = vadd.f32 %v5072, %v6476
    %v6478 = vpop.f32.mrb[0].mxu0
    %v6479 = vadd.f32 %v5074, %v6478
    %v6480 = vpop.f32.mrb[0].mxu0
    %v6481 = vadd.f32 %v5076, %v6480
    %6482 = vmatprep.mubr.bf16.mxu0 %v3178
    %6483 = vmatmul.mubr.bf16.gmra.mrb[0].mxu0 %v3177
    %v6484 = vpop.f32.mrb[0].mxu0
    %v6485 = vpop.f32.mrb[0].mxu0
    %v6486 = vpop.f32.mrb[0].mxu0
    %v6487 = vpop.f32.mrb[0].mxu0
    %6488 = vdwg.mxu0
    %6489 = vmatprep.subr.bf16.mxu0 %v5761
    %6490 = vmatpush1.bf16.msra.mxu0 %v5760
    %6491 = vmatprep.subr.bf16.mxu0 %v5767
    %6492 = vmatpush1.bf16.msra.mxu0 %v5766
    %6493 = vmatprep.subr.bf16.mxu0 %v5773
    %6494 = vmatpush1.bf16.msra.mxu0 %v5772
    %6495 = vmatprep.subr.bf16.mxu0 %v5779
    %6496 = vmatpush1.bf16.msra.mxu0 %v5778
    %6497 = vmatprep.subr.bf16.mxu0 %v5785
    %6498 = vmatpush1.bf16.msra.mxu0 %v5784
    %6499 = vmatprep.subr.bf16.mxu0 %v5791
    %6500 = vmatpush1.bf16.msra.mxu0 %v5790
    %6501 = vmatprep.subr.bf16.mxu0 %v5797
    %6502 = vmatpush1.bf16.msra.mxu0 %v5796
    %6503 = vmatprep.subr.bf16.mxu0 %v5803
    %6504 = vmatpush1.bf16.msra.mxu0 %v5802
    %6505 = vmatprep.subr.bf16.mxu0 %v5809
    %6506 = vmatpush1.bf16.msra.mxu0 %v5808
    %6507 = vmatprep.subr.bf16.mxu0 %v5815
    %6508 = vmatpush1.bf16.msra.mxu0 %v5814
    %6509 = vmatprep.subr.bf16.mxu0 %v5821
    %6510 = vmatpush1.bf16.msra.mxu0 %v5820
    %6511 = vmatprep.subr.bf16.mxu0 %v5827
    %6512 = vmatpush1.bf16.msra.mxu0 %v5826
    %6513 = vmatprep.subr.bf16.mxu0 %v5833
    %6514 = vmatpush1.bf16.msra.mxu0 %v5832
    %6515 = vmatprep.subr.bf16.mxu0 %v5839
    %6516 = vmatpush1.bf16.msra.mxu0 %v5838
    %6517 = vmatprep.subr.bf16.mxu0 %v5845
    %6518 = vmatpush1.bf16.msra.mxu0 %v5844
    %6519 = vmatprep.subr.bf16.mxu0 %v5851
    %6520 = vmatpush1.bf16.msra.mxu0 %v5850
    %6521 = vmatprep.mubr.bf16.mxu0 %v3160
    %6522 = vmatmul.mubr.bf16.gmra.mrb[0].mxu0 %v3159
    %v6523 = vpop.f32.mrb[0].mxu0
    %v6524 = vadd.f32 %v6435, %v6523
    %v6525 = vpop.f32.mrb[0].mxu0
    %v6526 = vadd.f32 %v6437, %v6525
    %v6527 = vpop.f32.mrb[0].mxu0
    %v6528 = vadd.f32 %v6439, %v6527
    %v6529 = vpop.f32.mrb[0].mxu0
    %v6530 = vadd.f32 %v6441, %v6529
    %6531 = vmatprep.mubr.bf16.mxu0 %v3164
    %6532 = vmatmul.mubr.bf16.gmra.mrb[0].mxu0 %v3163
    %v6533 = vpop.f32.mrb[0].mxu0
    %v6534 = vadd.f32 %v6445, %v6533
    %v6535 = vpop.f32.mrb[0].mxu0
    %v6536 = vadd.f32 %v6447, %v6535
    %v6537 = vpop.f32.mrb[0].mxu0
    %v6538 = vadd.f32 %v6449, %v6537
    %v6539 = vpop.f32.mrb[0].mxu0
    %v6540 = vadd.f32 %v6451, %v6539
    %6541 = vmatprep.mubr.bf16.mxu0 %v3168
    %6542 = vmatmul.mubr.bf16.gmra.mrb[0].mxu0 %v3167
    %v6543 = vpop.f32.mrb[0].mxu0
    %v6544 = vadd.f32 %v6455, %v6543
    %v6545 = vpop.f32.mrb[0].mxu0
    %v6546 = vadd.f32 %v6457, %v6545
    %v6547 = vpop.f32.mrb[0].mxu0
    %v6548 = vadd.f32 %v6459, %v6547
    %v6549 = vpop.f32.mrb[0].mxu0
    %v6550 = vadd.f32 %v6461, %v6549
    %6551 = vmatprep.mubr.bf16.mxu0 %v3172
    %6552 = vmatmul.mubr.bf16.gmra.mrb[0].mxu0 %v3171
    %v6553 = vpop.f32.mrb[0].mxu0
    %v6554 = vadd.f32 %v6465, %v6553
    %v6555 = vpop.f32.mrb[0].mxu0
    %v6556 = vadd.f32 %v6467, %v6555
    %v6557 = vpop.f32.mrb[0].mxu0
    %v6558 = vadd.f32 %v6469, %v6557
    %v6559 = vpop.f32.mrb[0].mxu0
    %v6560 = vadd.f32 %v6471, %v6559
    %6561 = vmatprep.mubr.bf16.mxu0 %v3176
    %6562 = vmatmul.mubr.bf16.gmra.mrb[0].mxu0 %v3175
    %v6563 = vpop.f32.mrb[0].mxu0
    %v6564 = vadd.f32 %v6475, %v6563
    %v6565 = vpop.f32.mrb[0].mxu0
    %v6566 = vadd.f32 %v6477, %v6565
    %v6567 = vpop.f32.mrb[0].mxu0
    %v6568 = vadd.f32 %v6479, %v6567
    %v6569 = vpop.f32.mrb[0].mxu0
    %v6570 = vadd.f32 %v6481, %v6569
    %6571 = vmatprep.mubr.bf16.mxu0 %v3180
    %6572 = vmatmul.mubr.bf16.gmra.mrb[0].mxu0 %v3179
    %v6573 = vpop.f32.mrb[0].mxu0
    %v6574 = vpop.f32.mrb[0].mxu0
    %v6575 = vpop.f32.mrb[0].mxu0
    %v6576 = vpop.f32.mrb[0].mxu0
    %6577 = vdwg.mxu0
    %v6578 = vpack.c.bf16 %v3149, %v3145
    %v6579 = vpack.c.bf16 %v3150, %v3146
    %v6580 = vpack.c.bf16 %v3151, %v3147
    %v6581 = vpack.c.bf16 %v3152, %v3148
    %v6582 = vpack.c.bf16 %v3153, %v3153
    %v6583 = vpack.c.bf16 %v3154, %v3154
    %v6584 = vpack.c.bf16 %v3155, %v3155
    %v6585 = vpack.c.bf16 %v3156, %v3156
    %s6586 = scalar_lea.vmem [#allocation7], 3072
    %v6587 = vld [vmem:[%s6586] sm:$0xff]
    %v6588 = vld [vmem:[%s6586 + $0x8] sm:$0xff]
    %v6589 = vld [vmem:[%s6586 + $0x10] sm:$0xff]
    %v6590 = vld [vmem:[%s6586 + $0x18] sm:$0xff]
    %v6591 = vld [vmem:[%s6586 + $0x20] sm:$0xff]
    %v6592 = vld [vmem:[%s6586 + $0x28] sm:$0xff]
    %v6593 = vld [vmem:[%s6586 + $0x30] sm:$0xff]
    %v6594 = vld [vmem:[%s6586 + $0x38] sm:$0xff]
    %v6595 = vld [vmem:[%s6586 + $0x40] sm:$0xff]
    %v6596 = vld [vmem:[%s6586 + $0x48] sm:$0xff]
    %v6597 = vld [vmem:[%s6586 + $0x50] sm:$0xff]
    %v6598 = vld [vmem:[%s6586 + $0x58] sm:$0xff]
    %v6599 = vld [vmem:[%s6586 + $0x60] sm:$0xff]
    %v6600 = vld [vmem:[%s6586 + $0x68] sm:$0xff]
    %v6601 = vld [vmem:[%s6586 + $0x70] sm:$0xff]
    %v6602 = vld [vmem:[%s6586 + $0x78] sm:$0xff]
    %v6603 = vld [vmem:[%s6586 + $0x80] sm:$0xff]
    %v6604 = vld [vmem:[%s6586 + $0x88] sm:$0xff]
    %v6605 = vld [vmem:[%s6586 + $0x90] sm:$0xff]
    %v6606 = vld [vmem:[%s6586 + $0x98] sm:$0xff]
    %v6607 = vld [vmem:[%s6586 + $0xa0] sm:$0xff]
    %v6608 = vld [vmem:[%s6586 + $0xa8] sm:$0xff]
    %v6609 = vld [vmem:[%s6586 + $0xb0] sm:$0xff]
    %v6610 = vld [vmem:[%s6586 + $0xb8] sm:$0xff]
    %v6611 = vld [vmem:[%s6586 + $0xc0] sm:$0xff]
    %v6612 = vld [vmem:[%s6586 + $0xc8] sm:$0xff]
    %v6613 = vld [vmem:[%s6586 + $0xd0] sm:$0xff]
    %v6614 = vld [vmem:[%s6586 + $0xd8] sm:$0xff]
    %v6615 = vld [vmem:[%s6586 + $0xe0] sm:$0xff]
    %v6616 = vld [vmem:[%s6586 + $0xe8] sm:$0xff]
    %v6617 = vld [vmem:[%s6586 + $0xf0] sm:$0xff]
    %v6618 = vld [vmem:[%s6586 + $0xf8] sm:$0xff]
    %v6619 = vld [vmem:[%s6586 + $0x100] sm:$0xff]
    %v6620 = vld [vmem:[%s6586 + $0x108] sm:$0xff]
    %v6621 = vld [vmem:[%s6586 + $0x110] sm:$0xff]
    %v6622 = vld [vmem:[%s6586 + $0x118] sm:$0xff]
    %v6623 = vld [vmem:[%s6586 + $0x120] sm:$0xff]
    %v6624 = vld [vmem:[%s6586 + $0x128] sm:$0xff]
    %v6625 = vld [vmem:[%s6586 + $0x130] sm:$0xff]
    %v6626 = vld [vmem:[%s6586 + $0x138] sm:$0xff]
    %v6627 = vld [vmem:[%s6586 + $0x140] sm:$0xff]
    %v6628 = vld [vmem:[%s6586 + $0x148] sm:$0xff]
    %v6629 = vld [vmem:[%s6586 + $0x150] sm:$0xff]
    %v6630 = vld [vmem:[%s6586 + $0x158] sm:$0xff]
    %v6631 = vld [vmem:[%s6586 + $0x160] sm:$0xff]
    %v6632 = vld [vmem:[%s6586 + $0x168] sm:$0xff]
    %v6633 = vld [vmem:[%s6586 + $0x170] sm:$0xff]
    %v6634 = vld [vmem:[%s6586 + $0x178] sm:$0xff]
    %v6635 = vld [vmem:[%s6586 + $0x180] sm:$0xff]
    %v6636 = vld [vmem:[%s6586 + $0x188] sm:$0xff]
    %v6637 = vld [vmem:[%s6586 + $0x190] sm:$0xff]
    %v6638 = vld [vmem:[%s6586 + $0x198] sm:$0xff]
    %v6639 = vld [vmem:[%s6586 + $0x1a0] sm:$0xff]
    %v6640 = vld [vmem:[%s6586 + $0x1a8] sm:$0xff]
    %v6641 = vld [vmem:[%s6586 + $0x1b0] sm:$0xff]
    %v6642 = vld [vmem:[%s6586 + $0x1b8] sm:$0xff]
    %v6643 = vld [vmem:[%s6586 + $0x1c0] sm:$0xff]
    %v6644 = vld [vmem:[%s6586 + $0x1c8] sm:$0xff]
    %v6645 = vld [vmem:[%s6586 + $0x1d0] sm:$0xff]
    %v6646 = vld [vmem:[%s6586 + $0x1d8] sm:$0xff]
    %v6647 = vld [vmem:[%s6586 + $0x1e0] sm:$0xff]
    %v6648 = vld [vmem:[%s6586 + $0x1e8] sm:$0xff]
    %v6649 = vld [vmem:[%s6586 + $0x1f0] sm:$0xff]
    %v6650 = vld [vmem:[%s6586 + $0x1f8] sm:$0xff]
    %v6651 = vld [vmem:[%s6586 + $0x200] sm:$0xff]
    %v6652 = vld [vmem:[%s6586 + $0x208] sm:$0xff]
    %v6653 = vld [vmem:[%s6586 + $0x210] sm:$0xff]
    %v6654 = vld [vmem:[%s6586 + $0x218] sm:$0xff]
    %v6655 = vld [vmem:[%s6586 + $0x220] sm:$0xff]
    %v6656 = vld [vmem:[%s6586 + $0x228] sm:$0xff]
    %v6657 = vld [vmem:[%s6586 + $0x230] sm:$0xff]
    %v6658 = vld [vmem:[%s6586 + $0x238] sm:$0xff]
    %v6659 = vld [vmem:[%s6586 + $0x240] sm:$0xff]
    %v6660 = vld [vmem:[%s6586 + $0x248] sm:$0xff]
    %v6661 = vld [vmem:[%s6586 + $0x250] sm:$0xff]
    %v6662 = vld [vmem:[%s6586 + $0x258] sm:$0xff]
    %v6663 = vld [vmem:[%s6586 + $0x260] sm:$0xff]
    %v6664 = vld [vmem:[%s6586 + $0x268] sm:$0xff]
    %v6665 = vld [vmem:[%s6586 + $0x270] sm:$0xff]
    %v6666 = vld [vmem:[%s6586 + $0x278] sm:$0xff]
    %v6667 = vld [vmem:[%s6586 + $0x280] sm:$0xff]
    %v6668 = vld [vmem:[%s6586 + $0x288] sm:$0xff]
    %v6669 = vld [vmem:[%s6586 + $0x290] sm:$0xff]
    %v6670 = vld [vmem:[%s6586 + $0x298] sm:$0xff]
    %v6671 = vld [vmem:[%s6586 + $0x2a0] sm:$0xff]
    %v6672 = vld [vmem:[%s6586 + $0x2a8] sm:$0xff]
    %v6673 = vld [vmem:[%s6586 + $0x2b0] sm:$0xff]
    %v6674 = vld [vmem:[%s6586 + $0x2b8] sm:$0xff]
    %v6675 = vld [vmem:[%s6586 + $0x2c0] sm:$0xff]
    %v6676 = vld [vmem:[%s6586 + $0x2c8] sm:$0xff]
    %v6677 = vld [vmem:[%s6586 + $0x2d0] sm:$0xff]
    %v6678 = vld [vmem:[%s6586 + $0x2d8] sm:$0xff]
    %v6679 = vld [vmem:[%s6586 + $0x2e0] sm:$0xff]
    %v6680 = vld [vmem:[%s6586 + $0x2e8] sm:$0xff]
    %v6681 = vld [vmem:[%s6586 + $0x2f0] sm:$0xff]
    %v6682 = vld [vmem:[%s6586 + $0x2f8] sm:$0xff]
    %v6683 = vld [vmem:[%s6586 + $0x300] sm:$0xff]
    %v6684 = vld [vmem:[%s6586 + $0x308] sm:$0xff]
    %v6685 = vld [vmem:[%s6586 + $0x310] sm:$0xff]
    %v6686 = vld [vmem:[%s6586 + $0x318] sm:$0xff]
    %v6687 = vld [vmem:[%s6586 + $0x320] sm:$0xff]
    %v6688 = vld [vmem:[%s6586 + $0x328] sm:$0xff]
    %v6689 = vld [vmem:[%s6586 + $0x330] sm:$0xff]
    %v6690 = vld [vmem:[%s6586 + $0x338] sm:$0xff]
    %v6691 = vld [vmem:[%s6586 + $0x340] sm:$0xff]
    %v6692 = vld [vmem:[%s6586 + $0x348] sm:$0xff]
    %v6693 = vld [vmem:[%s6586 + $0x350] sm:$0xff]
    %v6694 = vld [vmem:[%s6586 + $0x358] sm:$0xff]
    %v6695 = vld [vmem:[%s6586 + $0x360] sm:$0xff]
    %v6696 = vld [vmem:[%s6586 + $0x368] sm:$0xff]
    %v6697 = vld [vmem:[%s6586 + $0x370] sm:$0xff]
    %v6698 = vld [vmem:[%s6586 + $0x378] sm:$0xff]
    %v6699 = vld [vmem:[%s6586 + $0x380] sm:$0xff]
    %v6700 = vld [vmem:[%s6586 + $0x388] sm:$0xff]
    %v6701 = vld [vmem:[%s6586 + $0x390] sm:$0xff]
    %v6702 = vld [vmem:[%s6586 + $0x398] sm:$0xff]
    %v6703 = vld [vmem:[%s6586 + $0x3a0] sm:$0xff]
    %v6704 = vld [vmem:[%s6586 + $0x3a8] sm:$0xff]
    %v6705 = vld [vmem:[%s6586 + $0x3b0] sm:$0xff]
    %v6706 = vld [vmem:[%s6586 + $0x3b8] sm:$0xff]
    %v6707 = vld [vmem:[%s6586 + $0x3c0] sm:$0xff]
    %v6708 = vld [vmem:[%s6586 + $0x3c8] sm:$0xff]
    %v6709 = vld [vmem:[%s6586 + $0x3d0] sm:$0xff]
    %v6710 = vld [vmem:[%s6586 + $0x3d8] sm:$0xff]
    %v6711 = vld [vmem:[%s6586 + $0x3e0] sm:$0xff]
    %v6712 = vld [vmem:[%s6586 + $0x3e8] sm:$0xff]
    %v6713 = vld [vmem:[%s6586 + $0x3f0] sm:$0xff]
    %v6714 = vld [vmem:[%s6586 + $0x3f8] sm:$0xff]
    %v6715 = vld [vmem:[%s6586 + $0x400] sm:$0xff]
    %v6716 = vld [vmem:[%s6586 + $0x408] sm:$0xff]
    %v6717 = vld [vmem:[%s6586 + $0x410] sm:$0xff]
    %v6718 = vld [vmem:[%s6586 + $0x418] sm:$0xff]
    %v6719 = vld [vmem:[%s6586 + $0x420] sm:$0xff]
    %v6720 = vld [vmem:[%s6586 + $0x428] sm:$0xff]
    %v6721 = vld [vmem:[%s6586 + $0x430] sm:$0xff]
    %v6722 = vld [vmem:[%s6586 + $0x438] sm:$0xff]
    %v6723 = vld [vmem:[%s6586 + $0x440] sm:$0xff]
    %v6724 = vld [vmem:[%s6586 + $0x448] sm:$0xff]
    %v6725 = vld [vmem:[%s6586 + $0x450] sm:$0xff]
    %v6726 = vld [vmem:[%s6586 + $0x458] sm:$0xff]
    %v6727 = vld [vmem:[%s6586 + $0x460] sm:$0xff]
    %v6728 = vld [vmem:[%s6586 + $0x468] sm:$0xff]
    %v6729 = vld [vmem:[%s6586 + $0x470] sm:$0xff]
    %v6730 = vld [vmem:[%s6586 + $0x478] sm:$0xff]
    %v6731 = vld [vmem:[%s6586 + $0x480] sm:$0xff]
    %v6732 = vld [vmem:[%s6586 + $0x488] sm:$0xff]
    %v6733 = vld [vmem:[%s6586 + $0x490] sm:$0xff]
    %v6734 = vld [vmem:[%s6586 + $0x498] sm:$0xff]
    %v6735 = vld [vmem:[%s6586 + $0x4a0] sm:$0xff]
    %v6736 = vld [vmem:[%s6586 + $0x4a8] sm:$0xff]
    %v6737 = vld [vmem:[%s6586 + $0x4b0] sm:$0xff]
    %v6738 = vld [vmem:[%s6586 + $0x4b8] sm:$0xff]
    %v6739 = vld [vmem:[%s6586 + $0x4c0] sm:$0xff]
    %v6740 = vld [vmem:[%s6586 + $0x4c8] sm:$0xff]
    %v6741 = vld [vmem:[%s6586 + $0x4d0] sm:$0xff]
    %v6742 = vld [vmem:[%s6586 + $0x4d8] sm:$0xff]
    %v6743 = vld [vmem:[%s6586 + $0x4e0] sm:$0xff]
    %v6744 = vld [vmem:[%s6586 + $0x4e8] sm:$0xff]
    %v6745 = vld [vmem:[%s6586 + $0x4f0] sm:$0xff]
    %v6746 = vld [vmem:[%s6586 + $0x4f8] sm:$0xff]
    %v6747 = vld [vmem:[%s6586 + $0x500] sm:$0xff]
    %v6748 = vld [vmem:[%s6586 + $0x508] sm:$0xff]
    %v6749 = vld [vmem:[%s6586 + $0x510] sm:$0xff]
    %v6750 = vld [vmem:[%s6586 + $0x518] sm:$0xff]
    %v6751 = vld [vmem:[%s6586 + $0x520] sm:$0xff]
    %v6752 = vld [vmem:[%s6586 + $0x528] sm:$0xff]
    %v6753 = vld [vmem:[%s6586 + $0x530] sm:$0xff]
    %v6754 = vld [vmem:[%s6586 + $0x538] sm:$0xff]
    %v6755 = vld [vmem:[%s6586 + $0x540] sm:$0xff]
    %v6756 = vld [vmem:[%s6586 + $0x548] sm:$0xff]
    %v6757 = vld [vmem:[%s6586 + $0x550] sm:$0xff]
    %v6758 = vld [vmem:[%s6586 + $0x558] sm:$0xff]
    %v6759 = vld [vmem:[%s6586 + $0x560] sm:$0xff]
    %v6760 = vld [vmem:[%s6586 + $0x568] sm:$0xff]
    %v6761 = vld [vmem:[%s6586 + $0x570] sm:$0xff]
    %v6762 = vld [vmem:[%s6586 + $0x578] sm:$0xff]
    %v6763 = vld [vmem:[%s6586 + $0x580] sm:$0xff]
    %v6764 = vld [vmem:[%s6586 + $0x588] sm:$0xff]
    %v6765 = vld [vmem:[%s6586 + $0x590] sm:$0xff]
    %v6766 = vld [vmem:[%s6586 + $0x598] sm:$0xff]
    %v6767 = vld [vmem:[%s6586 + $0x5a0] sm:$0xff]
    %v6768 = vld [vmem:[%s6586 + $0x5a8] sm:$0xff]
    %v6769 = vld [vmem:[%s6586 + $0x5b0] sm:$0xff]
    %v6770 = vld [vmem:[%s6586 + $0x5b8] sm:$0xff]
    %v6771 = vld [vmem:[%s6586 + $0x5c0] sm:$0xff]
    %v6772 = vld [vmem:[%s6586 + $0x5c8] sm:$0xff]
    %v6773 = vld [vmem:[%s6586 + $0x5d0] sm:$0xff]
    %v6774 = vld [vmem:[%s6586 + $0x5d8] sm:$0xff]
    %v6775 = vld [vmem:[%s6586 + $0x5e0] sm:$0xff]
    %v6776 = vld [vmem:[%s6586 + $0x5e8] sm:$0xff]
    %v6777 = vld [vmem:[%s6586 + $0x5f0] sm:$0xff]
    %v6778 = vld [vmem:[%s6586 + $0x5f8] sm:$0xff]
    %v6971 = vunpack.c.l.b16 %v6587
    %v6972 = vunpack.c.h.b16 %v6587
    %v6973 = vunpack.c.l.b16 %v6588
    %v6974 = vunpack.c.h.b16 %v6588
    %v6975 = vunpack.c.l.b16 %v6589
    %v6976 = vunpack.c.h.b16 %v6589
    %v6977 = vunpack.c.l.b16 %v6590
    %v6978 = vunpack.c.h.b16 %v6590
    %v6979 = vunpack.c.l.b16 %v6591
    %v6980 = vunpack.c.h.b16 %v6591
    %v6981 = vunpack.c.l.b16 %v6592
    %v6982 = vunpack.c.h.b16 %v6592
    %v6983 = vunpack.c.l.b16 %v6593
    %v6984 = vunpack.c.h.b16 %v6593
    %v6985 = vunpack.c.l.b16 %v6594
    %v6986 = vunpack.c.h.b16 %v6594
    %v6987 = vunpack.c.l.b16 %v6595
    %v6988 = vunpack.c.h.b16 %v6595
    %v6989 = vunpack.c.l.b16 %v6596
    %v6990 = vunpack.c.h.b16 %v6596
    %v6991 = vunpack.c.l.b16 %v6597
    %v6992 = vunpack.c.h.b16 %v6597
    %v6993 = vunpack.c.l.b16 %v6598
    %v6994 = vunpack.c.h.b16 %v6598
    %v6995 = vunpack.c.l.b16 %v6599
    %v6996 = vunpack.c.h.b16 %v6599
    %v6997 = vunpack.c.l.b16 %v6600
    %v6998 = vunpack.c.h.b16 %v6600
    %v6999 = vunpack.c.l.b16 %v6601
    %v7000 = vunpack.c.h.b16 %v6601
    %v7001 = vunpack.c.l.b16 %v6602
    %v7002 = vunpack.c.h.b16 %v6602
    %v7003 = vunpack.c.l.b16 %v6603
    %v7004 = vunpack.c.h.b16 %v6603
    %v7005 = vunpack.c.l.b16 %v6604
    %v7006 = vunpack.c.h.b16 %v6604
    %v7007 = vunpack.c.l.b16 %v6605
    %v7008 = vunpack.c.h.b16 %v6605
    %v7009 = vunpack.c.l.b16 %v6606
    %v7010 = vunpack.c.h.b16 %v6606
    %v7011 = vunpack.c.l.b16 %v6607
    %v7012 = vunpack.c.h.b16 %v6607
    %v7013 = vunpack.c.l.b16 %v6608
    %v7014 = vunpack.c.h.b16 %v6608
    %v7015 = vunpack.c.l.b16 %v6609
    %v7016 = vunpack.c.h.b16 %v6609
    %v7017 = vunpack.c.l.b16 %v6610
    %v7018 = vunpack.c.h.b16 %v6610
    %v7019 = vunpack.c.l.b16 %v6611
    %v7020 = vunpack.c.h.b16 %v6611
    %v7021 = vunpack.c.l.b16 %v6612
    %v7022 = vunpack.c.h.b16 %v6612
    %v7023 = vunpack.c.l.b16 %v6613
    %v7024 = vunpack.c.h.b16 %v6613
    %v7025 = vunpack.c.l.b16 %v6614
    %v7026 = vunpack.c.h.b16 %v6614
    %v7027 = vunpack.c.l.b16 %v6615
    %v7028 = vunpack.c.h.b16 %v6615
    %v7029 = vunpack.c.l.b16 %v6616
    %v7030 = vunpack.c.h.b16 %v6616
    %v7031 = vunpack.c.l.b16 %v6617
    %v7032 = vunpack.c.h.b16 %v6617
    %v7033 = vunpack.c.l.b16 %v6618
    %v7034 = vunpack.c.h.b16 %v6618
    %v7035 = vunpack.c.l.b16 %v6619
    %v7036 = vunpack.c.h.b16 %v6619
    %v7037 = vunpack.c.l.b16 %v6620
    %v7038 = vunpack.c.h.b16 %v6620
    %v7039 = vunpack.c.l.b16 %v6621
    %v7040 = vunpack.c.h.b16 %v6621
    %v7041 = vunpack.c.l.b16 %v6622
    %v7042 = vunpack.c.h.b16 %v6622
    %v7043 = vunpack.c.l.b16 %v6623
    %v7044 = vunpack.c.h.b16 %v6623
    %v7045 = vunpack.c.l.b16 %v6624
    %v7046 = vunpack.c.h.b16 %v6624
    %v7047 = vunpack.c.l.b16 %v6625
    %v7048 = vunpack.c.h.b16 %v6625
    %v7049 = vunpack.c.l.b16 %v6626
    %v7050 = vunpack.c.h.b16 %v6626
    %v7051 = vunpack.c.l.b16 %v6627
    %v7052 = vunpack.c.h.b16 %v6627
    %v7053 = vunpack.c.l.b16 %v6628
    %v7054 = vunpack.c.h.b16 %v6628
    %v7055 = vunpack.c.l.b16 %v6629
    %v7056 = vunpack.c.h.b16 %v6629
    %v7057 = vunpack.c.l.b16 %v6630
    %v7058 = vunpack.c.h.b16 %v6630
    %v7059 = vunpack.c.l.b16 %v6631
    %v7060 = vunpack.c.h.b16 %v6631
    %v7061 = vunpack.c.l.b16 %v6632
    %v7062 = vunpack.c.h.b16 %v6632
    %v7063 = vunpack.c.l.b16 %v6633
    %v7064 = vunpack.c.h.b16 %v6633
    %v7065 = vunpack.c.l.b16 %v6634
    %v7066 = vunpack.c.h.b16 %v6634
    %v7067 = vunpack.c.l.b16 %v6635
    %v7068 = vunpack.c.h.b16 %v6635
    %v7069 = vunpack.c.l.b16 %v6636
    %v7070 = vunpack.c.h.b16 %v6636
    %v7071 = vunpack.c.l.b16 %v6637
    %v7072 = vunpack.c.h.b16 %v6637
    %v7073 = vunpack.c.l.b16 %v6638
    %v7074 = vunpack.c.h.b16 %v6638
    %v7075 = vunpack.c.l.b16 %v6639
    %v7076 = vunpack.c.h.b16 %v6639
    %v7077 = vunpack.c.l.b16 %v6640
    %v7078 = vunpack.c.h.b16 %v6640
    %v7079 = vunpack.c.l.b16 %v6641
    %v7080 = vunpack.c.h.b16 %v6641
    %v7081 = vunpack.c.l.b16 %v6642
    %v7082 = vunpack.c.h.b16 %v6642
    %v7083 = vunpack.c.l.b16 %v6643
    %v7084 = vunpack.c.h.b16 %v6643
    %v7085 = vunpack.c.l.b16 %v6644
    %v7086 = vunpack.c.h.b16 %v6644
    %v7087 = vunpack.c.l.b16 %v6645
    %v7088 = vunpack.c.h.b16 %v6645
    %v7089 = vunpack.c.l.b16 %v6646
    %v7090 = vunpack.c.h.b16 %v6646
    %v7091 = vunpack.c.l.b16 %v6647
    %v7092 = vunpack.c.h.b16 %v6647
    %v7093 = vunpack.c.l.b16 %v6648
    %v7094 = vunpack.c.h.b16 %v6648
    %v7095 = vunpack.c.l.b16 %v6649
    %v7096 = vunpack.c.h.b16 %v6649
    %v7097 = vunpack.c.l.b16 %v6650
    %v7098 = vunpack.c.h.b16 %v6650
    %v7099 = vunpack.c.l.b16 %v6651
    %v7100 = vunpack.c.h.b16 %v6651
    %v7101 = vunpack.c.l.b16 %v6652
    %v7102 = vunpack.c.h.b16 %v6652
    %v7103 = vunpack.c.l.b16 %v6653
    %v7104 = vunpack.c.h.b16 %v6653
    %v7105 = vunpack.c.l.b16 %v6654
    %v7106 = vunpack.c.h.b16 %v6654
    %v7107 = vunpack.c.l.b16 %v6655
    %v7108 = vunpack.c.h.b16 %v6655
    %v7109 = vunpack.c.l.b16 %v6656
    %v7110 = vunpack.c.h.b16 %v6656
    %v7111 = vunpack.c.l.b16 %v6657
    %v7112 = vunpack.c.h.b16 %v6657
    %v7113 = vunpack.c.l.b16 %v6658
    %v7114 = vunpack.c.h.b16 %v6658
    %v7115 = vunpack.c.l.b16 %v6659
    %v7116 = vunpack.c.h.b16 %v6659
    %v7117 = vunpack.c.l.b16 %v6660
    %v7118 = vunpack.c.h.b16 %v6660
    %v7119 = vunpack.c.l.b16 %v6661
    %v7120 = vunpack.c.h.b16 %v6661
    %v7121 = vunpack.c.l.b16 %v6662
    %v7122 = vunpack.c.h.b16 %v6662
    %v7123 = vunpack.c.l.b16 %v6663
    %v7124 = vunpack.c.h.b16 %v6663
    %v7125 = vunpack.c.l.b16 %v6664
    %v7126 = vunpack.c.h.b16 %v6664
    %v7127 = vunpack.c.l.b16 %v6665
    %v7128 = vunpack.c.h.b16 %v6665
    %v7129 = vunpack.c.l.b16 %v6666
    %v7130 = vunpack.c.h.b16 %v6666
    %v7131 = vunpack.c.l.b16 %v6667
    %v7132 = vunpack.c.h.b16 %v6667
    %v7133 = vunpack.c.l.b16 %v6668
    %v7134 = vunpack.c.h.b16 %v6668
    %v7135 = vunpack.c.l.b16 %v6669
    %v7136 = vunpack.c.h.b16 %v6669
    %v7137 = vunpack.c.l.b16 %v6670
    %v7138 = vunpack.c.h.b16 %v6670
    %v7139 = vunpack.c.l.b16 %v6671
    %v7140 = vunpack.c.h.b16 %v6671
    %v7141 = vunpack.c.l.b16 %v6672
    %v7142 = vunpack.c.h.b16 %v6672
    %v7143 = vunpack.c.l.b16 %v6673
    %v7144 = vunpack.c.h.b16 %v6673
    %v7145 = vunpack.c.l.b16 %v6674
    %v7146 = vunpack.c.h.b16 %v6674
    %v7147 = vunpack.c.l.b16 %v6675
    %v7148 = vunpack.c.h.b16 %v6675
    %v7149 = vunpack.c.l.b16 %v6676
    %v7150 = vunpack.c.h.b16 %v6676
    %v7151 = vunpack.c.l.b16 %v6677
    %v7152 = vunpack.c.h.b16 %v6677
    %v7153 = vunpack.c.l.b16 %v6678
    %v7154 = vunpack.c.h.b16 %v6678
    %v7155 = vunpack.c.l.b16 %v6679
    %v7156 = vunpack.c.h.b16 %v6679
    %v7157 = vunpack.c.l.b16 %v6680
    %v7158 = vunpack.c.h.b16 %v6680
    %v7159 = vunpack.c.l.b16 %v6681
    %v7160 = vunpack.c.h.b16 %v6681
    %v7161 = vunpack.c.l.b16 %v6682
    %v7162 = vunpack.c.h.b16 %v6682
    %v7163 = vunpack.c.l.b16 %v6683
    %v7164 = vunpack.c.h.b16 %v6683
    %v7165 = vunpack.c.l.b16 %v6684
    %v7166 = vunpack.c.h.b16 %v6684
    %v7167 = vunpack.c.l.b16 %v6685
    %v7168 = vunpack.c.h.b16 %v6685
    %v7169 = vunpack.c.l.b16 %v6686
    %v7170 = vunpack.c.h.b16 %v6686
    %v7171 = vunpack.c.l.b16 %v6687
    %v7172 = vunpack.c.h.b16 %v6687
    %v7173 = vunpack.c.l.b16 %v6688
    %v7174 = vunpack.c.h.b16 %v6688
    %v7175 = vunpack.c.l.b16 %v6689
    %v7176 = vunpack.c.h.b16 %v6689
    %v7177 = vunpack.c.l.b16 %v6690
    %v7178 = vunpack.c.h.b16 %v6690
    %v7179 = vunpack.c.l.b16 %v6691
    %v7180 = vunpack.c.h.b16 %v6691
    %v7181 = vunpack.c.l.b16 %v6692
    %v7182 = vunpack.c.h.b16 %v6692
    %v7183 = vunpack.c.l.b16 %v6693
    %v7184 = vunpack.c.h.b16 %v6693
    %v7185 = vunpack.c.l.b16 %v6694
    %v7186 = vunpack.c.h.b16 %v6694
    %v7187 = vunpack.c.l.b16 %v6695
    %v7188 = vunpack.c.h.b16 %v6695
    %v7189 = vunpack.c.l.b16 %v6696
    %v7190 = vunpack.c.h.b16 %v6696
    %v7191 = vunpack.c.l.b16 %v6697
    %v7192 = vunpack.c.h.b16 %v6697
    %v7193 = vunpack.c.l.b16 %v6698
    %v7194 = vunpack.c.h.b16 %v6698
    %v7195 = vunpack.c.l.b16 %v6699
    %v7196 = vunpack.c.h.b16 %v6699
    %v7197 = vunpack.c.l.b16 %v6700
    %v7198 = vunpack.c.h.b16 %v6700
    %v7199 = vunpack.c.l.b16 %v6701
    %v7200 = vunpack.c.h.b16 %v6701
    %v7201 = vunpack.c.l.b16 %v6702
    %v7202 = vunpack.c.h.b16 %v6702
    %v7203 = vunpack.c.l.b16 %v6703
    %v7204 = vunpack.c.h.b16 %v6703
    %v7205 = vunpack.c.l.b16 %v6704
    %v7206 = vunpack.c.h.b16 %v6704
    %v7207 = vunpack.c.l.b16 %v6705
    %v7208 = vunpack.c.h.b16 %v6705
    %v7209 = vunpack.c.l.b16 %v6706
    %v7210 = vunpack.c.h.b16 %v6706
    %v7211 = vunpack.c.l.b16 %v6707
    %v7212 = vunpack.c.h.b16 %v6707
    %v7213 = vunpack.c.l.b16 %v6708
    %v7214 = vunpack.c.h.b16 %v6708
    %v7215 = vunpack.c.l.b16 %v6709
    %v7216 = vunpack.c.h.b16 %v6709
    %v7217 = vunpack.c.l.b16 %v6710
    %v7218 = vunpack.c.h.b16 %v6710
    %v7219 = vunpack.c.l.b16 %v6711
    %v7220 = vunpack.c.h.b16 %v6711
    %v7221 = vunpack.c.l.b16 %v6712
    %v7222 = vunpack.c.h.b16 %v6712
    %v7223 = vunpack.c.l.b16 %v6713
    %v7224 = vunpack.c.h.b16 %v6713
    %v7225 = vunpack.c.l.b16 %v6714
    %v7226 = vunpack.c.h.b16 %v6714
    %v7227 = vunpack.c.l.b16 %v6715
    %v7228 = vunpack.c.h.b16 %v6715
    %v7229 = vunpack.c.l.b16 %v6716
    %v7230 = vunpack.c.h.b16 %v6716
    %v7231 = vunpack.c.l.b16 %v6717
    %v7232 = vunpack.c.h.b16 %v6717
    %v7233 = vunpack.c.l.b16 %v6718
    %v7234 = vunpack.c.h.b16 %v6718
    %v7235 = vunpack.c.l.b16 %v6719
    %v7236 = vunpack.c.h.b16 %v6719
    %v7237 = vunpack.c.l.b16 %v6720
    %v7238 = vunpack.c.h.b16 %v6720
    %v7239 = vunpack.c.l.b16 %v6721
    %v7240 = vunpack.c.h.b16 %v6721
    %v7241 = vunpack.c.l.b16 %v6722
    %v7242 = vunpack.c.h.b16 %v6722
    %v7243 = vunpack.c.l.b16 %v6723
    %v7244 = vunpack.c.h.b16 %v6723
    %v7245 = vunpack.c.l.b16 %v6724
    %v7246 = vunpack.c.h.b16 %v6724
    %v7247 = vunpack.c.l.b16 %v6725
    %v7248 = vunpack.c.h.b16 %v6725
    %v7249 = vunpack.c.l.b16 %v6726
    %v7250 = vunpack.c.h.b16 %v6726
    %v7251 = vunpack.c.l.b16 %v6727
    %v7252 = vunpack.c.h.b16 %v6727
    %v7253 = vunpack.c.l.b16 %v6728
    %v7254 = vunpack.c.h.b16 %v6728
    %v7255 = vunpack.c.l.b16 %v6729
    %v7256 = vunpack.c.h.b16 %v6729
    %v7257 = vunpack.c.l.b16 %v6730
    %v7258 = vunpack.c.h.b16 %v6730
    %v7259 = vunpack.c.l.b16 %v6731
    %v7260 = vunpack.c.h.b16 %v6731
    %v7261 = vunpack.c.l.b16 %v6732
    %v7262 = vunpack.c.h.b16 %v6732
    %v7263 = vunpack.c.l.b16 %v6733
    %v7264 = vunpack.c.h.b16 %v6733
    %v7265 = vunpack.c.l.b16 %v6734
    %v7266 = vunpack.c.h.b16 %v6734
    %v7267 = vunpack.c.l.b16 %v6735
    %v7268 = vunpack.c.h.b16 %v6735
    %v7269 = vunpack.c.l.b16 %v6736
    %v7270 = vunpack.c.h.b16 %v6736
    %v7271 = vunpack.c.l.b16 %v6737
    %v7272 = vunpack.c.h.b16 %v6737
    %v7273 = vunpack.c.l.b16 %v6738
    %v7274 = vunpack.c.h.b16 %v6738
    %v7275 = vunpack.c.l.b16 %v6739
    %v7276 = vunpack.c.h.b16 %v6739
    %v7277 = vunpack.c.l.b16 %v6740
    %v7278 = vunpack.c.h.b16 %v6740
    %v7279 = vunpack.c.l.b16 %v6741
    %v7280 = vunpack.c.h.b16 %v6741
    %v7281 = vunpack.c.l.b16 %v6742
    %v7282 = vunpack.c.h.b16 %v6742
    %v7283 = vunpack.c.l.b16 %v6743
    %v7284 = vunpack.c.h.b16 %v6743
    %v7285 = vunpack.c.l.b16 %v6744
    %v7286 = vunpack.c.h.b16 %v6744
    %v7287 = vunpack.c.l.b16 %v6745
    %v7288 = vunpack.c.h.b16 %v6745
    %v7289 = vunpack.c.l.b16 %v6746
    %v7290 = vunpack.c.h.b16 %v6746
    %v7291 = vunpack.c.l.b16 %v6747
    %v7292 = vunpack.c.h.b16 %v6747
    %v7293 = vunpack.c.l.b16 %v6748
    %v7294 = vunpack.c.h.b16 %v6748
    %v7295 = vunpack.c.l.b16 %v6749
    %v7296 = vunpack.c.h.b16 %v6749
    %v7297 = vunpack.c.l.b16 %v6750
    %v7298 = vunpack.c.h.b16 %v6750
    %v7299 = vunpack.c.l.b16 %v6751
    %v7300 = vunpack.c.h.b16 %v6751
    %v7301 = vunpack.c.l.b16 %v6752
    %v7302 = vunpack.c.h.b16 %v6752
    %v7303 = vunpack.c.l.b16 %v6753
    %v7304 = vunpack.c.h.b16 %v6753
    %v7305 = vunpack.c.l.b16 %v6754
    %v7306 = vunpack.c.h.b16 %v6754
    %v7307 = vunpack.c.l.b16 %v6755
    %v7308 = vunpack.c.h.b16 %v6755
    %v7309 = vunpack.c.l.b16 %v6756
    %v7310 = vunpack.c.h.b16 %v6756
    %v7311 = vunpack.c.l.b16 %v6757
    %v7312 = vunpack.c.h.b16 %v6757
    %v7313 = vunpack.c.l.b16 %v6758
    %v7314 = vunpack.c.h.b16 %v6758
    %v7315 = vunpack.c.l.b16 %v6759
    %v7316 = vunpack.c.h.b16 %v6759
    %v7317 = vunpack.c.l.b16 %v6760
    %v7318 = vunpack.c.h.b16 %v6760
    %v7319 = vunpack.c.l.b16 %v6761
    %v7320 = vunpack.c.h.b16 %v6761
    %v7321 = vunpack.c.l.b16 %v6762
    %v7322 = vunpack.c.h.b16 %v6762
    %v7323 = vunpack.c.l.b16 %v6763
    %v7324 = vunpack.c.h.b16 %v6763
    %v7325 = vunpack.c.l.b16 %v6764
    %v7326 = vunpack.c.h.b16 %v6764
    %v7327 = vunpack.c.l.b16 %v6765
    %v7328 = vunpack.c.h.b16 %v6765
    %v7329 = vunpack.c.l.b16 %v6766
    %v7330 = vunpack.c.h.b16 %v6766
    %v7331 = vunpack.c.l.b16 %v6767
    %v7332 = vunpack.c.h.b16 %v6767
    %v7333 = vunpack.c.l.b16 %v6768
    %v7334 = vunpack.c.h.b16 %v6768
    %v7335 = vunpack.c.l.b16 %v6769
    %v7336 = vunpack.c.h.b16 %v6769
    %v7337 = vunpack.c.l.b16 %v6770
    %v7338 = vunpack.c.h.b16 %v6770
    %v7339 = vunpack.c.l.b16 %v6771
    %v7340 = vunpack.c.h.b16 %v6771
    %v7341 = vunpack.c.l.b16 %v6772
    %v7342 = vunpack.c.h.b16 %v6772
    %v7343 = vunpack.c.l.b16 %v6773
    %v7344 = vunpack.c.h.b16 %v6773
    %v7345 = vunpack.c.l.b16 %v6774
    %v7346 = vunpack.c.h.b16 %v6774
    %v7347 = vunpack.c.l.b16 %v6775
    %v7348 = vunpack.c.h.b16 %v6775
    %v7349 = vunpack.c.l.b16 %v6776
    %v7350 = vunpack.c.h.b16 %v6776
    %v7351 = vunpack.c.l.b16 %v6777
    %v7352 = vunpack.c.h.b16 %v6777
    %v7353 = vunpack.c.l.b16 %v6778
    %v7354 = vunpack.c.h.b16 %v6778
    %v7355 = vpack.c.b16 %v6977, %v6971
    %v7356 = vpack.c.b16 %v6978, %v6972
    %v7357 = vpack.c.b16 %v6979, %v6973
    %v7358 = vpack.c.b16 %v6980, %v6974
    %v7359 = vpack.c.b16 %v6981, %v6975
    %v7360 = vpack.c.b16 %v6982, %v6976
    %v7361 = vpack.c.b16 %v6989, %v6983
    %v7362 = vpack.c.b16 %v6990, %v6984
    %v7363 = vpack.c.b16 %v6991, %v6985
    %v7364 = vpack.c.b16 %v6992, %v6986
    %v7365 = vpack.c.b16 %v6993, %v6987
    %v7366 = vpack.c.b16 %v6994, %v6988
    %v7367 = vpack.c.b16 %v7001, %v6995
    %v7368 = vpack.c.b16 %v7002, %v6996
    %v7369 = vpack.c.b16 %v7003, %v6997
    %v7370 = vpack.c.b16 %v7004, %v6998
    %v7371 = vpack.c.b16 %v7005, %v6999
    %v7372 = vpack.c.b16 %v7006, %v7000
    %v7373 = vpack.c.b16 %v7013, %v7007
    %v7374 = vpack.c.b16 %v7014, %v7008
    %v7375 = vpack.c.b16 %v7015, %v7009
    %v7376 = vpack.c.b16 %v7016, %v7010
    %v7377 = vpack.c.b16 %v7017, %v7011
    %v7378 = vpack.c.b16 %v7018, %v7012
    %v7379 = vpack.c.b16 %v7025, %v7019
    %v7380 = vpack.c.b16 %v7026, %v7020
    %v7381 = vpack.c.b16 %v7027, %v7021
    %v7382 = vpack.c.b16 %v7028, %v7022
    %v7383 = vpack.c.b16 %v7029, %v7023
    %v7384 = vpack.c.b16 %v7030, %v7024
    %v7385 = vpack.c.b16 %v7037, %v7031
    %v7386 = vpack.c.b16 %v7038, %v7032
    %v7387 = vpack.c.b16 %v7039, %v7033
    %v7388 = vpack.c.b16 %v7040, %v7034
    %v7389 = vpack.c.b16 %v7041, %v7035
    %v7390 = vpack.c.b16 %v7042, %v7036
    %v7391 = vpack.c.b16 %v7049, %v7043
    %v7392 = vpack.c.b16 %v7050, %v7044
    %v7393 = vpack.c.b16 %v7051, %v7045
    %v7394 = vpack.c.b16 %v7052, %v7046
    %v7395 = vpack.c.b16 %v7053, %v7047
    %v7396 = vpack.c.b16 %v7054, %v7048
    %v7397 = vpack.c.b16 %v7061, %v7055
    %v7398 = vpack.c.b16 %v7062, %v7056
    %v7399 = vpack.c.b16 %v7063, %v7057
    %v7400 = vpack.c.b16 %v7064, %v7058
    %v7401 = vpack.c.b16 %v7065, %v7059
    %v7402 = vpack.c.b16 %v7066, %v7060
    %v7403 = vpack.c.b16 %v7073, %v7067
    %v7404 = vpack.c.b16 %v7074, %v7068
    %v7405 = vpack.c.b16 %v7075, %v7069
    %v7406 = vpack.c.b16 %v7076, %v7070
    %v7407 = vpack.c.b16 %v7077, %v7071
    %v7408 = vpack.c.b16 %v7078, %v7072
    %v7409 = vpack.c.b16 %v7085, %v7079
    %v7410 = vpack.c.b16 %v7086, %v7080
    %v7411 = vpack.c.b16 %v7087, %v7081
    %v7412 = vpack.c.b16 %v7088, %v7082
    %v7413 = vpack.c.b16 %v7089, %v7083
    %v7414 = vpack.c.b16 %v7090, %v7084
    %v7415 = vpack.c.b16 %v7097, %v7091
    %v7416 = vpack.c.b16 %v7098, %v7092
    %v7417 = vpack.c.b16 %v7099, %v7093
    %v7418 = vpack.c.b16 %v7100, %v7094
    %v7419 = vpack.c.b16 %v7101, %v7095
    %v7420 = vpack.c.b16 %v7102, %v7096
    %v7421 = vpack.c.b16 %v7109, %v7103
    %v7422 = vpack.c.b16 %v7110, %v7104
    %v7423 = vpack.c.b16 %v7111, %v7105
    %v7424 = vpack.c.b16 %v7112, %v7106
    %v7425 = vpack.c.b16 %v7113, %v7107
    %v7426 = vpack.c.b16 %v7114, %v7108
    %v7427 = vpack.c.b16 %v7121, %v7115
    %v7428 = vpack.c.b16 %v7122, %v7116
    %v7429 = vpack.c.b16 %v7123, %v7117
    %v7430 = vpack.c.b16 %v7124, %v7118
    %v7431 = vpack.c.b16 %v7125, %v7119
    %v7432 = vpack.c.b16 %v7126, %v7120
    %v7433 = vpack.c.b16 %v7133, %v7127
    %v7434 = vpack.c.b16 %v7134, %v7128
    %v7435 = vpack.c.b16 %v7135, %v7129
    %v7436 = vpack.c.b16 %v7136, %v7130
    %v7437 = vpack.c.b16 %v7137, %v7131
    %v7438 = vpack.c.b16 %v7138, %v7132
    %v7439 = vpack.c.b16 %v7145, %v7139
    %v7440 = vpack.c.b16 %v7146, %v7140
    %v7441 = vpack.c.b16 %v7147, %v7141
    %v7442 = vpack.c.b16 %v7148, %v7142
    %v7443 = vpack.c.b16 %v7149, %v7143
    %v7444 = vpack.c.b16 %v7150, %v7144
    %v7445 = vpack.c.b16 %v7157, %v7151
    %v7446 = vpack.c.b16 %v7158, %v7152
    %v7447 = vpack.c.b16 %v7159, %v7153
    %v7448 = vpack.c.b16 %v7160, %v7154
    %v7449 = vpack.c.b16 %v7161, %v7155
    %v7450 = vpack.c.b16 %v7162, %v7156
    %v7451 = vpack.c.b16 %v7169, %v7163
    %v7452 = vpack.c.b16 %v7170, %v7164
    %v7453 = vpack.c.b16 %v7171, %v7165
    %v7454 = vpack.c.b16 %v7172, %v7166
    %v7455 = vpack.c.b16 %v7173, %v7167
    %v7456 = vpack.c.b16 %v7174, %v7168
    %v7457 = vpack.c.b16 %v7181, %v7175
    %v7458 = vpack.c.b16 %v7182, %v7176
    %v7459 = vpack.c.b16 %v7183, %v7177
    %v7460 = vpack.c.b16 %v7184, %v7178
    %v7461 = vpack.c.b16 %v7185, %v7179
    %v7462 = vpack.c.b16 %v7186, %v7180
    %v7463 = vpack.c.b16 %v7193, %v7187
    %v7464 = vpack.c.b16 %v7194, %v7188
    %v7465 = vpack.c.b16 %v7195, %v7189
    %v7466 = vpack.c.b16 %v7196, %v7190
    %v7467 = vpack.c.b16 %v7197, %v7191
    %v7468 = vpack.c.b16 %v7198, %v7192
    %v7469 = vpack.c.b16 %v7205, %v7199
    %v7470 = vpack.c.b16 %v7206, %v7200
    %v7471 = vpack.c.b16 %v7207, %v7201
    %v7472 = vpack.c.b16 %v7208, %v7202
    %v7473 = vpack.c.b16 %v7209, %v7203
    %v7474 = vpack.c.b16 %v7210, %v7204
    %v7475 = vpack.c.b16 %v7217, %v7211
    %v7476 = vpack.c.b16 %v7218, %v7212
    %v7477 = vpack.c.b16 %v7219, %v7213
    %v7478 = vpack.c.b16 %v7220, %v7214
    %v7479 = vpack.c.b16 %v7221, %v7215
    %v7480 = vpack.c.b16 %v7222, %v7216
    %v7481 = vpack.c.b16 %v7229, %v7223
    %v7482 = vpack.c.b16 %v7230, %v7224
    %v7483 = vpack.c.b16 %v7231, %v7225
    %v7484 = vpack.c.b16 %v7232, %v7226
    %v7485 = vpack.c.b16 %v7233, %v7227
    %v7486 = vpack.c.b16 %v7234, %v7228
    %v7487 = vpack.c.b16 %v7241, %v7235
    %v7488 = vpack.c.b16 %v7242, %v7236
    %v7489 = vpack.c.b16 %v7243, %v7237
    %v7490 = vpack.c.b16 %v7244, %v7238
    %v7491 = vpack.c.b16 %v7245, %v7239
    %v7492 = vpack.c.b16 %v7246, %v7240
    %v7493 = vpack.c.b16 %v7253, %v7247
    %v7494 = vpack.c.b16 %v7254, %v7248
    %v7495 = vpack.c.b16 %v7255, %v7249
    %v7496 = vpack.c.b16 %v7256, %v7250
    %v7497 = vpack.c.b16 %v7257, %v7251
    %v7498 = vpack.c.b16 %v7258, %v7252
    %v7499 = vpack.c.b16 %v7265, %v7259
    %v7500 = vpack.c.b16 %v7266, %v7260
    %v7501 = vpack.c.b16 %v7267, %v7261
    %v7502 = vpack.c.b16 %v7268, %v7262
    %v7503 = vpack.c.b16 %v7269, %v7263
    %v7504 = vpack.c.b16 %v7270, %v7264
    %v7505 = vpack.c.b16 %v7277, %v7271
    %v7506 = vpack.c.b16 %v7278, %v7272
    %v7507 = vpack.c.b16 %v7279, %v7273
    %v7508 = vpack.c.b16 %v7280, %v7274
    %v7509 = vpack.c.b16 %v7281, %v7275
    %v7510 = vpack.c.b16 %v7282, %v7276
    %v7511 = vpack.c.b16 %v7289, %v7283
    %v7512 = vpack.c.b16 %v7290, %v7284
    %v7513 = vpack.c.b16 %v7291, %v7285
    %v7514 = vpack.c.b16 %v7292, %v7286
    %v7515 = vpack.c.b16 %v7293, %v7287
    %v7516 = vpack.c.b16 %v7294, %v7288
    %v7517 = vpack.c.b16 %v7301, %v7295
    %v7518 = vpack.c.b16 %v7302, %v7296
    %v7519 = vpack.c.b16 %v7303, %v7297
    %v7520 = vpack.c.b16 %v7304, %v7298
    %v7521 = vpack.c.b16 %v7305, %v7299
    %v7522 = vpack.c.b16 %v7306, %v7300
    %v7523 = vpack.c.b16 %v7313, %v7307
    %v7524 = vpack.c.b16 %v7314, %v7308
    %v7525 = vpack.c.b16 %v7315, %v7309
    %v7526 = vpack.c.b16 %v7316, %v7310
    %v7527 = vpack.c.b16 %v7317, %v7311
    %v7528 = vpack.c.b16 %v7318, %v7312
    %v7529 = vpack.c.b16 %v7325, %v7319
    %v7530 = vpack.c.b16 %v7326, %v7320
    %v7531 = vpack.c.b16 %v7327, %v7321
    %v7532 = vpack.c.b16 %v7328, %v7322
    %v7533 = vpack.c.b16 %v7329, %v7323
    %v7534 = vpack.c.b16 %v7330, %v7324
    %v7535 = vpack.c.b16 %v7337, %v7331
    %v7536 = vpack.c.b16 %v7338, %v7332
    %v7537 = vpack.c.b16 %v7339, %v7333
    %v7538 = vpack.c.b16 %v7340, %v7334
    %v7539 = vpack.c.b16 %v7341, %v7335
    %v7540 = vpack.c.b16 %v7342, %v7336
    %v7541 = vpack.c.b16 %v7349, %v7343
    %v7542 = vpack.c.b16 %v7350, %v7344
    %v7543 = vpack.c.b16 %v7351, %v7345
    %v7544 = vpack.c.b16 %v7352, %v7346
    %v7545 = vpack.c.b16 %v7353, %v7347
    %v7546 = vpack.c.b16 %v7354, %v7348
    %7739 = vmatprep.subr.bf16.mxu0 %v7356
    %7740 = vmatpush1.bf16.msra.mxu0 %v7355
    %7741 = vmatprep.subr.bf16.mxu0 %v7362
    %7742 = vmatpush1.bf16.msra.mxu0 %v7361
    %7743 = vmatprep.subr.bf16.mxu0 %v7368
    %7744 = vmatpush1.bf16.msra.mxu0 %v7367
    %7745 = vmatprep.subr.bf16.mxu0 %v7374
    %7746 = vmatpush1.bf16.msra.mxu0 %v7373
    %7747 = vmatprep.subr.bf16.mxu0 %v7380
    %7748 = vmatpush1.bf16.msra.mxu0 %v7379
    %7749 = vmatprep.subr.bf16.mxu0 %v7386
    %7750 = vmatpush1.bf16.msra.mxu0 %v7385
    %7751 = vmatprep.subr.bf16.mxu0 %v7392
    %7752 = vmatpush1.bf16.msra.mxu0 %v7391
    %7753 = vmatprep.subr.bf16.mxu0 %v7398
    %7754 = vmatpush1.bf16.msra.mxu0 %v7397
    %7755 = vmatprep.subr.bf16.mxu0 %v7404
    %7756 = vmatpush1.bf16.msra.mxu0 %v7403
    %7757 = vmatprep.subr.bf16.mxu0 %v7410
    %7758 = vmatpush1.bf16.msra.mxu0 %v7409
    %7759 = vmatprep.subr.bf16.mxu0 %v7416
    %7760 = vmatpush1.bf16.msra.mxu0 %v7415
    %7761 = vmatprep.subr.bf16.mxu0 %v7422
    %7762 = vmatpush1.bf16.msra.mxu0 %v7421
    %7763 = vmatprep.subr.bf16.mxu0 %v7428
    %7764 = vmatpush1.bf16.msra.mxu0 %v7427
    %7765 = vmatprep.subr.bf16.mxu0 %v7434
    %7766 = vmatpush1.bf16.msra.mxu0 %v7433
    %7767 = vmatprep.subr.bf16.mxu0 %v7440
    %7768 = vmatpush1.bf16.msra.mxu0 %v7439
    %7769 = vmatprep.subr.bf16.mxu0 %v7446
    %7770 = vmatpush1.bf16.msra.mxu0 %v7445
    %7771 = vmatprep.mubr.bf16.mxu0 %v3162
    %7772 = vmatmul.mubr.bf16.gmra.mrb[0].mxu0 %v3161
    %v7773 = vpop.f32.mrb[0].mxu0
    %v7774 = vadd.f32 0.0, %v7773
    %v7775 = vpop.f32.mrb[0].mxu0
    %v7776 = vadd.f32 0.0, %v7775
    %v7777 = vpop.f32.mrb[0].mxu0
    %v7778 = vadd.f32 0.0, %v7777
    %v7779 = vpop.f32.mrb[0].mxu0
    %v7780 = vadd.f32 0.0, %v7779
    %7781 = vmatprep.mubr.bf16.mxu0 %v3166
    %7782 = vmatmul.mubr.bf16.gmra.mrb[0].mxu0 %v3165
    %v7783 = vpop.f32.mrb[0].mxu0
    %v7784 = vadd.f32 0.0, %v7783
    %v7785 = vpop.f32.mrb[0].mxu0
    %v7786 = vadd.f32 0.0, %v7785
    %v7787 = vpop.f32.mrb[0].mxu0
    %v7788 = vadd.f32 0.0, %v7787
    %v7789 = vpop.f32.mrb[0].mxu0
    %v7790 = vadd.f32 0.0, %v7789
    %7791 = vmatprep.mubr.bf16.mxu0 %v3170
    %7792 = vmatmul.mubr.bf16.gmra.mrb[0].mxu0 %v3169
    %v7793 = vpop.f32.mrb[0].mxu0
    %v7794 = vadd.f32 0.0, %v7793
    %v7795 = vpop.f32.mrb[0].mxu0
    %v7796 = vadd.f32 0.0, %v7795
    %v7797 = vpop.f32.mrb[0].mxu0
    %v7798 = vadd.f32 0.0, %v7797
    %v7799 = vpop.f32.mrb[0].mxu0
    %v7800 = vadd.f32 0.0, %v7799
    %7801 = vmatprep.mubr.bf16.mxu0 %v3174
    %7802 = vmatmul.mubr.bf16.gmra.mrb[0].mxu0 %v3173
    %v7803 = vpop.f32.mrb[0].mxu0
    %v7804 = vadd.f32 0.0, %v7803
    %v7805 = vpop.f32.mrb[0].mxu0
    %v7806 = vadd.f32 0.0, %v7805
    %v7807 = vpop.f32.mrb[0].mxu0
    %v7808 = vadd.f32 0.0, %v7807
    %v7809 = vpop.f32.mrb[0].mxu0
    %v7810 = vadd.f32 0.0, %v7809
    %7811 = vmatprep.mubr.bf16.mxu0 %v6579
    %7812 = vmatmul.mubr.bf16.gmra.mrb[0].mxu0 %v6578
    %v7813 = vpop.f32.mrb[0].mxu0
    %v7814 = vadd.f32 0.0, %v7813
    %v7815 = vpop.f32.mrb[0].mxu0
    %v7816 = vadd.f32 0.0, %v7815
    %v7817 = vpop.f32.mrb[0].mxu0
    %v7818 = vadd.f32 0.0, %v7817
    %v7819 = vpop.f32.mrb[0].mxu0
    %v7820 = vadd.f32 0.0, %v7819
    %7821 = vmatprep.mubr.bf16.mxu0 %v6583
    %7822 = vmatmul.mubr.bf16.gmra.mrb[0].mxu0 %v6582
    %v7823 = vpop.f32.mrb[0].mxu0
    %v7824 = vpop.f32.mrb[0].mxu0
    %v7825 = vpop.f32.mrb[0].mxu0
    %v7826 = vpop.f32.mrb[0].mxu0
    %7827 = vdwg.mxu0
    %7828 = vmatprep.subr.bf16.mxu0 %v7452
    %7829 = vmatpush1.bf16.msra.mxu0 %v7451
    %7830 = vmatprep.subr.bf16.mxu0 %v7458
    %7831 = vmatpush1.bf16.msra.mxu0 %v7457
    %7832 = vmatprep.subr.bf16.mxu0 %v7464
    %7833 = vmatpush1.bf16.msra.mxu0 %v7463
    %7834 = vmatprep.subr.bf16.mxu0 %v7470
    %7835 = vmatpush1.bf16.msra.mxu0 %v7469
    %7836 = vmatprep.subr.bf16.mxu0 %v7476
    %7837 = vmatpush1.bf16.msra.mxu0 %v7475
    %7838 = vmatprep.subr.bf16.mxu0 %v7482
    %7839 = vmatpush1.bf16.msra.mxu0 %v7481
    %7840 = vmatprep.subr.bf16.mxu0 %v7488
    %7841 = vmatpush1.bf16.msra.mxu0 %v7487
    %7842 = vmatprep.subr.bf16.mxu0 %v7494
    %7843 = vmatpush1.bf16.msra.mxu0 %v7493
    %7844 = vmatprep.subr.bf16.mxu0 %v7500
    %7845 = vmatpush1.bf16.msra.mxu0 %v7499
    %7846 = vmatprep.subr.bf16.mxu0 %v7506
    %7847 = vmatpush1.bf16.msra.mxu0 %v7505
    %7848 = vmatprep.subr.bf16.mxu0 %v7512
    %7849 = vmatpush1.bf16.msra.mxu0 %v7511
    %7850 = vmatprep.subr.bf16.mxu0 %v7518
    %7851 = vmatpush1.bf16.msra.mxu0 %v7517
    %7852 = vmatprep.subr.bf16.mxu0 %v7524
    %7853 = vmatpush1.bf16.msra.mxu0 %v7523
    %7854 = vmatprep.subr.bf16.mxu0 %v7530
    %7855 = vmatpush1.bf16.msra.mxu0 %v7529
    %7856 = vmatprep.subr.bf16.mxu0 %v7536
    %7857 = vmatpush1.bf16.msra.mxu0 %v7535
    %7858 = vmatprep.subr.bf16.mxu0 %v7542
    %7859 = vmatpush1.bf16.msra.mxu0 %v7541
    %7860 = vmatprep.mubr.bf16.mxu0 %v3164
    %7861 = vmatmul.mubr.bf16.gmra.mrb[0].mxu0 %v3163
    %v7862 = vpop.f32.mrb[0].mxu0
    %v7863 = vadd.f32 %v7774, %v7862
    %v7864 = vpop.f32.mrb[0].mxu0
    %v7865 = vadd.f32 %v7776, %v7864
    %v7866 = vpop.f32.mrb[0].mxu0
    %v7867 = vadd.f32 %v7778, %v7866
    %v7868 = vpop.f32.mrb[0].mxu0
    %v7869 = vadd.f32 %v7780, %v7868
    %7870 = vmatprep.mubr.bf16.mxu0 %v3168
    %7871 = vmatmul.mubr.bf16.gmra.mrb[0].mxu0 %v3167
    %v7872 = vpop.f32.mrb[0].mxu0
    %v7873 = vadd.f32 %v7784, %v7872
    %v7874 = vpop.f32.mrb[0].mxu0
    %v7875 = vadd.f32 %v7786, %v7874
    %v7876 = vpop.f32.mrb[0].mxu0
    %v7877 = vadd.f32 %v7788, %v7876
    %v7878 = vpop.f32.mrb[0].mxu0
    %v7879 = vadd.f32 %v7790, %v7878
    %7880 = vmatprep.mubr.bf16.mxu0 %v3172
    %7881 = vmatmul.mubr.bf16.gmra.mrb[0].mxu0 %v3171
    %v7882 = vpop.f32.mrb[0].mxu0
    %v7883 = vadd.f32 %v7794, %v7882
    %v7884 = vpop.f32.mrb[0].mxu0
    %v7885 = vadd.f32 %v7796, %v7884
    %v7886 = vpop.f32.mrb[0].mxu0
    %v7887 = vadd.f32 %v7798, %v7886
    %v7888 = vpop.f32.mrb[0].mxu0
    %v7889 = vadd.f32 %v7800, %v7888
    %7890 = vmatprep.mubr.bf16.mxu0 %v3176
    %7891 = vmatmul.mubr.bf16.gmra.mrb[0].mxu0 %v3175
    %v7892 = vpop.f32.mrb[0].mxu0
    %v7893 = vadd.f32 %v7804, %v7892
    %v7894 = vpop.f32.mrb[0].mxu0
    %v7895 = vadd.f32 %v7806, %v7894
    %v7896 = vpop.f32.mrb[0].mxu0
    %v7897 = vadd.f32 %v7808, %v7896
    %v7898 = vpop.f32.mrb[0].mxu0
    %v7899 = vadd.f32 %v7810, %v7898
    %7900 = vmatprep.mubr.bf16.mxu0 %v6581
    %7901 = vmatmul.mubr.bf16.gmra.mrb[0].mxu0 %v6580
    %v7902 = vpop.f32.mrb[0].mxu0
    %v7903 = vadd.f32 %v7814, %v7902
    %v7904 = vpop.f32.mrb[0].mxu0
    %v7905 = vadd.f32 %v7816, %v7904
    %v7906 = vpop.f32.mrb[0].mxu0
    %v7907 = vadd.f32 %v7818, %v7906
    %v7908 = vpop.f32.mrb[0].mxu0
    %v7909 = vadd.f32 %v7820, %v7908
    %7910 = vmatprep.mubr.bf16.mxu0 %v6585
    %7911 = vmatmul.mubr.bf16.gmra.mrb[0].mxu0 %v6584
    %v7912 = vpop.f32.mrb[0].mxu0
    %v7913 = vpop.f32.mrb[0].mxu0
    %v7914 = vpop.f32.mrb[0].mxu0
    %v7915 = vpop.f32.mrb[0].mxu0
    %7916 = vdwg.mxu0
    %7917 = vmatprep.subr.bf16.mxu0 %v7358
    %7918 = vmatpush1.bf16.msra.mxu0 %v7357
    %7919 = vmatprep.subr.bf16.mxu0 %v7364
    %7920 = vmatpush1.bf16.msra.mxu0 %v7363
    %7921 = vmatprep.subr.bf16.mxu0 %v7370
    %7922 = vmatpush1.bf16.msra.mxu0 %v7369
    %7923 = vmatprep.subr.bf16.mxu0 %v7376
    %7924 = vmatpush1.bf16.msra.mxu0 %v7375
    %7925 = vmatprep.subr.bf16.mxu0 %v7382
    %7926 = vmatpush1.bf16.msra.mxu0 %v7381
    %7927 = vmatprep.subr.bf16.mxu0 %v7388
    %7928 = vmatpush1.bf16.msra.mxu0 %v7387
    %7929 = vmatprep.subr.bf16.mxu0 %v7394
    %7930 = vmatpush1.bf16.msra.mxu0 %v7393
    %7931 = vmatprep.subr.bf16.mxu0 %v7400
    %7932 = vmatpush1.bf16.msra.mxu0 %v7399
    %7933 = vmatprep.subr.bf16.mxu0 %v7406
    %7934 = vmatpush1.bf16.msra.mxu0 %v7405
    %7935 = vmatprep.subr.bf16.mxu0 %v7412
    %7936 = vmatpush1.bf16.msra.mxu0 %v7411
    %7937 = vmatprep.subr.bf16.mxu0 %v7418
    %7938 = vmatpush1.bf16.msra.mxu0 %v7417
    %7939 = vmatprep.subr.bf16.mxu0 %v7424
    %7940 = vmatpush1.bf16.msra.mxu0 %v7423
    %7941 = vmatprep.subr.bf16.mxu0 %v7430
    %7942 = vmatpush1.bf16.msra.mxu0 %v7429
    %7943 = vmatprep.subr.bf16.mxu0 %v7436
    %7944 = vmatpush1.bf16.msra.mxu0 %v7435
    %7945 = vmatprep.subr.bf16.mxu0 %v7442
    %7946 = vmatpush1.bf16.msra.mxu0 %v7441
    %7947 = vmatprep.subr.bf16.mxu0 %v7448
    %7948 = vmatpush1.bf16.msra.mxu0 %v7447
    %7949 = vmatprep.mubr.bf16.mxu0 %v3162
    %7950 = vmatmul.mubr.bf16.gmra.mrb[0].mxu0 %v3161
    %v7951 = vpop.f32.mrb[0].mxu0
    %v7952 = vadd.f32 0.0, %v7951
    %v7953 = vpop.f32.mrb[0].mxu0
    %v7954 = vadd.f32 0.0, %v7953
    %v7955 = vpop.f32.mrb[0].mxu0
    %v7956 = vadd.f32 0.0, %v7955
    %v7957 = vpop.f32.mrb[0].mxu0
    %v7958 = vadd.f32 0.0, %v7957
    %7959 = vmatprep.mubr.bf16.mxu0 %v3166
    %7960 = vmatmul.mubr.bf16.gmra.mrb[0].mxu0 %v3165
    %v7961 = vpop.f32.mrb[0].mxu0
    %v7962 = vadd.f32 0.0, %v7961
    %v7963 = vpop.f32.mrb[0].mxu0
    %v7964 = vadd.f32 0.0, %v7963
    %v7965 = vpop.f32.mrb[0].mxu0
    %v7966 = vadd.f32 0.0, %v7965
    %v7967 = vpop.f32.mrb[0].mxu0
    %v7968 = vadd.f32 0.0, %v7967
    %7969 = vmatprep.mubr.bf16.mxu0 %v3170
    %7970 = vmatmul.mubr.bf16.gmra.mrb[0].mxu0 %v3169
    %v7971 = vpop.f32.mrb[0].mxu0
    %v7972 = vadd.f32 0.0, %v7971
    %v7973 = vpop.f32.mrb[0].mxu0
    %v7974 = vadd.f32 0.0, %v7973
    %v7975 = vpop.f32.mrb[0].mxu0
    %v7976 = vadd.f32 0.0, %v7975
    %v7977 = vpop.f32.mrb[0].mxu0
    %v7978 = vadd.f32 0.0, %v7977
    %7979 = vmatprep.mubr.bf16.mxu0 %v3174
    %7980 = vmatmul.mubr.bf16.gmra.mrb[0].mxu0 %v3173
    %v7981 = vpop.f32.mrb[0].mxu0
    %v7982 = vadd.f32 0.0, %v7981
    %v7983 = vpop.f32.mrb[0].mxu0
    %v7984 = vadd.f32 0.0, %v7983
    %v7985 = vpop.f32.mrb[0].mxu0
    %v7986 = vadd.f32 0.0, %v7985
    %v7987 = vpop.f32.mrb[0].mxu0
    %v7988 = vadd.f32 0.0, %v7987
    %7989 = vmatprep.mubr.bf16.mxu0 %v6579
    %7990 = vmatmul.mubr.bf16.gmra.mrb[0].mxu0 %v6578
    %v7991 = vpop.f32.mrb[0].mxu0
    %v7992 = vadd.f32 0.0, %v7991
    %v7993 = vpop.f32.mrb[0].mxu0
    %v7994 = vadd.f32 0.0, %v7993
    %v7995 = vpop.f32.mrb[0].mxu0
    %v7996 = vadd.f32 0.0, %v7995
    %v7997 = vpop.f32.mrb[0].mxu0
    %v7998 = vadd.f32 0.0, %v7997
    %7999 = vmatprep.mubr.bf16.mxu0 %v6583
    %8000 = vmatmul.mubr.bf16.gmra.mrb[0].mxu0 %v6582
    %v8001 = vpop.f32.mrb[0].mxu0
    %v8002 = vpop.f32.mrb[0].mxu0
    %v8003 = vpop.f32.mrb[0].mxu0
    %v8004 = vpop.f32.mrb[0].mxu0
    %8005 = vdwg.mxu0
    %8006 = vmatprep.subr.bf16.mxu0 %v7454
    %8007 = vmatpush1.bf16.msra.mxu0 %v7453
    %8008 = vmatprep.subr.bf16.mxu0 %v7460
    %8009 = vmatpush1.bf16.msra.mxu0 %v7459
    %8010 = vmatprep.subr.bf16.mxu0 %v7466
    %8011 = vmatpush1.bf16.msra.mxu0 %v7465
    %8012 = vmatprep.subr.bf16.mxu0 %v7472
    %8013 = vmatpush1.bf16.msra.mxu0 %v7471
    %8014 = vmatprep.subr.bf16.mxu0 %v7478
    %8015 = vmatpush1.bf16.msra.mxu0 %v7477
    %8016 = vmatprep.subr.bf16.mxu0 %v7484
    %8017 = vmatpush1.bf16.msra.mxu0 %v7483
    %8018 = vmatprep.subr.bf16.mxu0 %v7490
    %8019 = vmatpush1.bf16.msra.mxu0 %v7489
    %8020 = vmatprep.subr.bf16.mxu0 %v7496
    %8021 = vmatpush1.bf16.msra.mxu0 %v7495
    %8022 = vmatprep.subr.bf16.mxu0 %v7502
    %8023 = vmatpush1.bf16.msra.mxu0 %v7501
    %8024 = vmatprep.subr.bf16.mxu0 %v7508
    %8025 = vmatpush1.bf16.msra.mxu0 %v7507
    %8026 = vmatprep.subr.bf16.mxu0 %v7514
    %8027 = vmatpush1.bf16.msra.mxu0 %v7513
    %8028 = vmatprep.subr.bf16.mxu0 %v7520
    %8029 = vmatpush1.bf16.msra.mxu0 %v7519
    %8030 = vmatprep.subr.bf16.mxu0 %v7526
    %8031 = vmatpush1.bf16.msra.mxu0 %v7525
    %8032 = vmatprep.subr.bf16.mxu0 %v7532
    %8033 = vmatpush1.bf16.msra.mxu0 %v7531
    %8034 = vmatprep.subr.bf16.mxu0 %v7538
    %8035 = vmatpush1.bf16.msra.mxu0 %v7537
    %8036 = vmatprep.subr.bf16.mxu0 %v7544
    %8037 = vmatpush1.bf16.msra.mxu0 %v7543
    %8038 = vmatprep.mubr.bf16.mxu0 %v3164
    %8039 = vmatmul.mubr.bf16.gmra.mrb[0].mxu0 %v3163
    %v8040 = vpop.f32.mrb[0].mxu0
    %v8041 = vadd.f32 %v7952, %v8040
    %v8042 = vpop.f32.mrb[0].mxu0
    %v8043 = vadd.f32 %v7954, %v8042
    %v8044 = vpop.f32.mrb[0].mxu0
    %v8045 = vadd.f32 %v7956, %v8044
    %v8046 = vpop.f32.mrb[0].mxu0
    %v8047 = vadd.f32 %v7958, %v8046
    %8048 = vmatprep.mubr.bf16.mxu0 %v3168
    %8049 = vmatmul.mubr.bf16.gmra.mrb[0].mxu0 %v3167
    %v8050 = vpop.f32.mrb[0].mxu0
    %v8051 = vadd.f32 %v7962, %v8050
    %v8052 = vpop.f32.mrb[0].mxu0
    %v8053 = vadd.f32 %v7964, %v8052
    %v8054 = vpop.f32.mrb[0].mxu0
    %v8055 = vadd.f32 %v7966, %v8054
    %v8056 = vpop.f32.mrb[0].mxu0
    %v8057 = vadd.f32 %v7968, %v8056
    %8058 = vmatprep.mubr.bf16.mxu0 %v3172
    %8059 = vmatmul.mubr.bf16.gmra.mrb[0].mxu0 %v3171
    %v8060 = vpop.f32.mrb[0].mxu0
    %v8061 = vadd.f32 %v7972, %v8060
    %v8062 = vpop.f32.mrb[0].mxu0
    %v8063 = vadd.f32 %v7974, %v8062
    %v8064 = vpop.f32.mrb[0].mxu0
    %v8065 = vadd.f32 %v7976, %v8064
    %v8066 = vpop.f32.mrb[0].mxu0
    %v8067 = vadd.f32 %v7978, %v8066
    %8068 = vmatprep.mubr.bf16.mxu0 %v3176
    %8069 = vmatmul.mubr.bf16.gmra.mrb[0].mxu0 %v3175
    %v8070 = vpop.f32.mrb[0].mxu0
    %v8071 = vadd.f32 %v7982, %v8070
    %v8072 = vpop.f32.mrb[0].mxu0
    %v8073 = vadd.f32 %v7984, %v8072
    %v8074 = vpop.f32.mrb[0].mxu0
    %v8075 = vadd.f32 %v7986, %v8074
    %v8076 = vpop.f32.mrb[0].mxu0
    %v8077 = vadd.f32 %v7988, %v8076
    %8078 = vmatprep.mubr.bf16.mxu0 %v6581
    %8079 = vmatmul.mubr.bf16.gmra.mrb[0].mxu0 %v6580
    %v8080 = vpop.f32.mrb[0].mxu0
    %v8081 = vadd.f32 %v7992, %v8080
    %v8082 = vpop.f32.mrb[0].mxu0
    %v8083 = vadd.f32 %v7994, %v8082
    %v8084 = vpop.f32.mrb[0].mxu0
    %v8085 = vadd.f32 %v7996, %v8084
    %v8086 = vpop.f32.mrb[0].mxu0
    %v8087 = vadd.f32 %v7998, %v8086
    %8088 = vmatprep.mubr.bf16.mxu0 %v6585
    %8089 = vmatmul.mubr.bf16.gmra.mrb[0].mxu0 %v6584
    %v8090 = vpop.f32.mrb[0].mxu0
    %v8091 = vpop.f32.mrb[0].mxu0
    %v8092 = vpop.f32.mrb[0].mxu0
    %v8093 = vpop.f32.mrb[0].mxu0
    %8094 = vdwg.mxu0
    %8095 = vmatprep.subr.bf16.mxu0 %v7360
    %8096 = vmatpush1.bf16.msra.mxu0 %v7359
    %8097 = vmatprep.subr.bf16.mxu0 %v7366
    %8098 = vmatpush1.bf16.msra.mxu0 %v7365
    %8099 = vmatprep.subr.bf16.mxu0 %v7372
    %8100 = vmatpush1.bf16.msra.mxu0 %v7371
    %8101 = vmatprep.subr.bf16.mxu0 %v7378
    %8102 = vmatpush1.bf16.msra.mxu0 %v7377
    %8103 = vmatprep.subr.bf16.mxu0 %v7384
    %8104 = vmatpush1.bf16.msra.mxu0 %v7383
    %8105 = vmatprep.subr.bf16.mxu0 %v7390
    %8106 = vmatpush1.bf16.msra.mxu0 %v7389
    %8107 = vmatprep.subr.bf16.mxu0 %v7396
    %8108 = vmatpush1.bf16.msra.mxu0 %v7395
    %8109 = vmatprep.subr.bf16.mxu0 %v7402
    %8110 = vmatpush1.bf16.msra.mxu0 %v7401
    %8111 = vmatprep.subr.bf16.mxu0 %v7408
    %8112 = vmatpush1.bf16.msra.mxu0 %v7407
    %8113 = vmatprep.subr.bf16.mxu0 %v7414
    %8114 = vmatpush1.bf16.msra.mxu0 %v7413
    %8115 = vmatprep.subr.bf16.mxu0 %v7420
    %8116 = vmatpush1.bf16.msra.mxu0 %v7419
    %8117 = vmatprep.subr.bf16.mxu0 %v7426
    %8118 = vmatpush1.bf16.msra.mxu0 %v7425
    %8119 = vmatprep.subr.bf16.mxu0 %v7432
    %8120 = vmatpush1.bf16.msra.mxu0 %v7431
    %8121 = vmatprep.subr.bf16.mxu0 %v7438
    %8122 = vmatpush1.bf16.msra.mxu0 %v7437
    %8123 = vmatprep.subr.bf16.mxu0 %v7444
    %8124 = vmatpush1.bf16.msra.mxu0 %v7443
    %8125 = vmatprep.subr.bf16.mxu0 %v7450
    %8126 = vmatpush1.bf16.msra.mxu0 %v7449
    %8127 = vmatprep.mubr.bf16.mxu0 %v3162
    %8128 = vmatmul.mubr.bf16.gmra.mrb[0].mxu0 %v3161
    %v8129 = vpop.f32.mrb[0].mxu0
    %v8130 = vadd.f32 0.0, %v8129
    %v8131 = vpop.f32.mrb[0].mxu0
    %v8132 = vadd.f32 0.0, %v8131
    %v8133 = vpop.f32.mrb[0].mxu0
    %v8134 = vadd.f32 0.0, %v8133
    %v8135 = vpop.f32.mrb[0].mxu0
    %v8136 = vadd.f32 0.0, %v8135
    %8137 = vmatprep.mubr.bf16.mxu0 %v3166
    %8138 = vmatmul.mubr.bf16.gmra.mrb[0].mxu0 %v3165
    %v8139 = vpop.f32.mrb[0].mxu0
    %v8140 = vadd.f32 0.0, %v8139
    %v8141 = vpop.f32.mrb[0].mxu0
    %v8142 = vadd.f32 0.0, %v8141
    %v8143 = vpop.f32.mrb[0].mxu0
    %v8144 = vadd.f32 0.0, %v8143
    %v8145 = vpop.f32.mrb[0].mxu0
    %v8146 = vadd.f32 0.0, %v8145
    %8147 = vmatprep.mubr.bf16.mxu0 %v3170
    %8148 = vmatmul.mubr.bf16.gmra.mrb[0].mxu0 %v3169
    %v8149 = vpop.f32.mrb[0].mxu0
    %v8150 = vadd.f32 0.0, %v8149
    %v8151 = vpop.f32.mrb[0].mxu0
    %v8152 = vadd.f32 0.0, %v8151
    %v8153 = vpop.f32.mrb[0].mxu0
    %v8154 = vadd.f32 0.0, %v8153
    %v8155 = vpop.f32.mrb[0].mxu0
    %v8156 = vadd.f32 0.0, %v8155
    %8157 = vmatprep.mubr.bf16.mxu0 %v3174
    %8158 = vmatmul.mubr.bf16.gmra.mrb[0].mxu0 %v3173
    %v8159 = vpop.f32.mrb[0].mxu0
    %v8160 = vadd.f32 0.0, %v8159
    %v8161 = vpop.f32.mrb[0].mxu0
    %v8162 = vadd.f32 0.0, %v8161
    %v8163 = vpop.f32.mrb[0].mxu0
    %v8164 = vadd.f32 0.0, %v8163
    %v8165 = vpop.f32.mrb[0].mxu0
    %v8166 = vadd.f32 0.0, %v8165
    %8167 = vmatprep.mubr.bf16.mxu0 %v6579
    %8168 = vmatmul.mubr.bf16.gmra.mrb[0].mxu0 %v6578
    %v8169 = vpop.f32.mrb[0].mxu0
    %v8170 = vadd.f32 0.0, %v8169
    %v8171 = vpop.f32.mrb[0].mxu0
    %v8172 = vadd.f32 0.0, %v8171
    %v8173 = vpop.f32.mrb[0].mxu0
    %v8174 = vadd.f32 0.0, %v8173
    %v8175 = vpop.f32.mrb[0].mxu0
    %v8176 = vadd.f32 0.0, %v8175
    %8177 = vmatprep.mubr.bf16.mxu0 %v6583
    %8178 = vmatmul.mubr.bf16.gmra.mrb[0].mxu0 %v6582
    %v8179 = vpop.f32.mrb[0].mxu0
    %v8180 = vpop.f32.mrb[0].mxu0
    %v8181 = vpop.f32.mrb[0].mxu0
    %v8182 = vpop.f32.mrb[0].mxu0
    %8183 = vdwg.mxu0
    %8184 = vmatprep.subr.bf16.mxu0 %v7456
    %8185 = vmatpush1.bf16.msra.mxu0 %v7455
    %8186 = vmatprep.subr.bf16.mxu0 %v7462
    %8187 = vmatpush1.bf16.msra.mxu0 %v7461
    %8188 = vmatprep.subr.bf16.mxu0 %v7468
    %8189 = vmatpush1.bf16.msra.mxu0 %v7467
    %8190 = vmatprep.subr.bf16.mxu0 %v7474
    %8191 = vmatpush1.bf16.msra.mxu0 %v7473
    %8192 = vmatprep.subr.bf16.mxu0 %v7480
    %8193 = vmatpush1.bf16.msra.mxu0 %v7479
    %8194 = vmatprep.subr.bf16.mxu0 %v7486
    %8195 = vmatpush1.bf16.msra.mxu0 %v7485
    %8196 = vmatprep.subr.bf16.mxu0 %v7492
    %8197 = vmatpush1.bf16.msra.mxu0 %v7491
    %8198 = vmatprep.subr.bf16.mxu0 %v7498
    %8199 = vmatpush1.bf16.msra.mxu0 %v7497
    %8200 = vmatprep.subr.bf16.mxu0 %v7504
    %8201 = vmatpush1.bf16.msra.mxu0 %v7503
    %8202 = vmatprep.subr.bf16.mxu0 %v7510
    %8203 = vmatpush1.bf16.msra.mxu0 %v7509
    %8204 = vmatprep.subr.bf16.mxu0 %v7516
    %8205 = vmatpush1.bf16.msra.mxu0 %v7515
    %8206 = vmatprep.subr.bf16.mxu0 %v7522
    %8207 = vmatpush1.bf16.msra.mxu0 %v7521
    %8208 = vmatprep.subr.bf16.mxu0 %v7528
    %8209 = vmatpush1.bf16.msra.mxu0 %v7527
    %8210 = vmatprep.subr.bf16.mxu0 %v7534
    %8211 = vmatpush1.bf16.msra.mxu0 %v7533
    %8212 = vmatprep.subr.bf16.mxu0 %v7540
    %8213 = vmatpush1.bf16.msra.mxu0 %v7539
    %8214 = vmatprep.subr.bf16.mxu0 %v7546
    %8215 = vmatpush1.bf16.msra.mxu0 %v7545
    %8216 = vmatprep.mubr.bf16.mxu0 %v3164
    %8217 = vmatmul.mubr.bf16.gmra.mrb[0].mxu0 %v3163
    %v8218 = vpop.f32.mrb[0].mxu0
    %v8219 = vadd.f32 %v8130, %v8218
    %v8220 = vpop.f32.mrb[0].mxu0
    %v8221 = vadd.f32 %v8132, %v8220
    %v8222 = vpop.f32.mrb[0].mxu0
    %v8223 = vadd.f32 %v8134, %v8222
    %v8224 = vpop.f32.mrb[0].mxu0
    %v8225 = vadd.f32 %v8136, %v8224
    %8226 = vmatprep.mubr.bf16.mxu0 %v3168
    %8227 = vmatmul.mubr.bf16.gmra.mrb[0].mxu0 %v3167
    %v8228 = vpop.f32.mrb[0].mxu0
    %v8229 = vadd.f32 %v8140, %v8228
    %v8230 = vpop.f32.mrb[0].mxu0
    %v8231 = vadd.f32 %v8142, %v8230
    %v8232 = vpop.f32.mrb[0].mxu0
    %v8233 = vadd.f32 %v8144, %v8232
    %v8234 = vpop.f32.mrb[0].mxu0
    %v8235 = vadd.f32 %v8146, %v8234
    %8236 = vmatprep.mubr.bf16.mxu0 %v3172
    %8237 = vmatmul.mubr.bf16.gmra.mrb[0].mxu0 %v3171
    %v8238 = vpop.f32.mrb[0].mxu0
    %v8239 = vadd.f32 %v8150, %v8238
    %v8240 = vpop.f32.mrb[0].mxu0
    %v8241 = vadd.f32 %v8152, %v8240
    %v8242 = vpop.f32.mrb[0].mxu0
    %v8243 = vadd.f32 %v8154, %v8242
    %v8244 = vpop.f32.mrb[0].mxu0
    %v8245 = vadd.f32 %v8156, %v8244
    %8246 = vmatprep.mubr.bf16.mxu0 %v3176
    %8247 = vmatmul.mubr.bf16.gmra.mrb[0].mxu0 %v3175
    %v8248 = vpop.f32.mrb[0].mxu0
    %v8249 = vadd.f32 %v8160, %v8248
    %v8250 = vpop.f32.mrb[0].mxu0
    %v8251 = vadd.f32 %v8162, %v8250
    %v8252 = vpop.f32.mrb[0].mxu0
    %v8253 = vadd.f32 %v8164, %v8252
    %v8254 = vpop.f32.mrb[0].mxu0
    %v8255 = vadd.f32 %v8166, %v8254
    %8256 = vmatprep.mubr.bf16.mxu0 %v6581
    %8257 = vmatmul.mubr.bf16.gmra.mrb[0].mxu0 %v6580
    %v8258 = vpop.f32.mrb[0].mxu0
    %v8259 = vadd.f32 %v8170, %v8258
    %v8260 = vpop.f32.mrb[0].mxu0
    %v8261 = vadd.f32 %v8172, %v8260
    %v8262 = vpop.f32.mrb[0].mxu0
    %v8263 = vadd.f32 %v8174, %v8262
    %v8264 = vpop.f32.mrb[0].mxu0
    %v8265 = vadd.f32 %v8176, %v8264
    %8266 = vmatprep.mubr.bf16.mxu0 %v6585
    %8267 = vmatmul.mubr.bf16.gmra.mrb[0].mxu0 %v6584
    %v8268 = vpop.f32.mrb[0].mxu0
    %v8269 = vpop.f32.mrb[0].mxu0
    %v8270 = vpop.f32.mrb[0].mxu0
    %v8271 = vpop.f32.mrb[0].mxu0
    %8272 = vdwg.mxu0
    %v8273 = vadd.f32 %v6168, %v7863
    %v8274 = vadd.f32 %v6170, %v7865
    %v8275 = vadd.f32 %v6346, %v8041
    %v8276 = vadd.f32 %v6348, %v8043
    %v8277 = vadd.f32 %v6524, %v8219
    %v8278 = vadd.f32 %v6526, %v8221
    %v8279 = vadd.f32 %v6172, %v7867
    %v8280 = vadd.f32 %v6174, %v7869
    %v8281 = vadd.f32 %v6350, %v8045
    %v8282 = vadd.f32 %v6352, %v8047
    %v8283 = vadd.f32 %v6528, %v8223
    %v8284 = vadd.f32 %v6530, %v8225
    %v8285 = vadd.f32 %v6178, %v7873
    %v8286 = vadd.f32 %v6180, %v7875
    %v8287 = vadd.f32 %v6356, %v8051
    %v8288 = vadd.f32 %v6358, %v8053
    %v8289 = vadd.f32 %v6534, %v8229
    %v8290 = vadd.f32 %v6536, %v8231
    %v8291 = vadd.f32 %v6182, %v7877
    %v8292 = vadd.f32 %v6184, %v7879
    %v8293 = vadd.f32 %v6360, %v8055
    %v8294 = vadd.f32 %v6362, %v8057
    %v8295 = vadd.f32 %v6538, %v8233
    %v8296 = vadd.f32 %v6540, %v8235
    %v8297 = vadd.f32 %v6188, %v7883
    %v8298 = vadd.f32 %v6190, %v7885
    %v8299 = vadd.f32 %v6366, %v8061
    %v8300 = vadd.f32 %v6368, %v8063
    %v8301 = vadd.f32 %v6544, %v8239
    %v8302 = vadd.f32 %v6546, %v8241
    %v8303 = vadd.f32 %v6192, %v7887
    %v8304 = vadd.f32 %v6194, %v7889
    %v8305 = vadd.f32 %v6370, %v8065
    %v8306 = vadd.f32 %v6372, %v8067
    %v8307 = vadd.f32 %v6548, %v8243
    %v8308 = vadd.f32 %v6550, %v8245
    %v8309 = vadd.f32 %v6198, %v7893
    %v8310 = vadd.f32 %v6200, %v7895
    %v8311 = vadd.f32 %v6376, %v8071
    %v8312 = vadd.f32 %v6378, %v8073
    %v8313 = vadd.f32 %v6554, %v8249
    %v8314 = vadd.f32 %v6556, %v8251
    %v8315 = vadd.f32 %v6202, %v7897
    %v8316 = vadd.f32 %v6204, %v7899
    %v8317 = vadd.f32 %v6380, %v8075
    %v8318 = vadd.f32 %v6382, %v8077
    %v8319 = vadd.f32 %v6558, %v8253
    %v8320 = vadd.f32 %v6560, %v8255
    %v8321 = vadd.f32 %v6208, %v7903
    %v8322 = vadd.f32 %v6210, %v7905
    %v8323 = vadd.f32 %v6386, %v8081
    %v8324 = vadd.f32 %v6388, %v8083
    %v8325 = vadd.f32 %v6564, %v8259
    %v8326 = vadd.f32 %v6566, %v8261
    %v8327 = vadd.f32 %v6212, %v7907
    %v8328 = vadd.f32 %v6214, %v7909
    %v8329 = vadd.f32 %v6390, %v8085
    %v8330 = vadd.f32 %v6392, %v8087
    %v8331 = vadd.f32 %v6568, %v8263
    %v8332 = vadd.f32 %v6570, %v8265
    %v8333 = vmax.f32 %v8273, %v8276
    %v8334 = vmax.f32 %v8274, %v8277
    %v8335 = vmax.f32 %v8275, %v8278
    %v8336 = vmax.f32 %v8279, %v8282
    %v8337 = vmax.f32 %v8280, %v8283
    %v8338 = vmax.f32 %v8281, %v8284
    %v8339 = vmax.f32 %v8285, %v8288
    %v8340 = vmax.f32 %v8286, %v8289
    %v8341 = vmax.f32 %v8287, %v8290
    %v8342 = vmax.f32 %v8291, %v8294
    %v8343 = vmax.f32 %v8292, %v8295
    %v8344 = vmax.f32 %v8293, %v8296
    %v8345 = vmax.f32 %v8297, %v8300
    %v8346 = vmax.f32 %v8298, %v8301
    %v8347 = vmax.f32 %v8299, %v8302
    %v8348 = vmax.f32 %v8303, %v8306
    %v8349 = vmax.f32 %v8304, %v8307
    %v8350 = vmax.f32 %v8305, %v8308
    %v8351 = vmax.f32 %v8309, %v8312
    %v8352 = vmax.f32 %v8310, %v8313
    %v8353 = vmax.f32 %v8311, %v8314
    %v8354 = vmax.f32 %v8315, %v8318
    %v8355 = vmax.f32 %v8316, %v8319
    %v8356 = vmax.f32 %v8317, %v8320
    %v8357 = vmax.f32 %v8321, %v8324
    %v8358 = vmax.f32 %v8322, %v8325
    %v8359 = vmax.f32 %v8323, %v8326
    %v8360 = vmax.f32 %v8327, %v8330
    %v8361 = vmax.f32 %v8328, %v8331
    %v8362 = vmax.f32 %v8329, %v8332
    %v8363 = vmax.f32 %v8333, %v8336
    %v8364 = vmax.f32 %v8334, %v8337
    %v8365 = vmax.f32 %v8335, %v8338
    %v8366 = vmax.f32 %v8339, %v8342
    %v8367 = vmax.f32 %v8340, %v8343
    %v8368 = vmax.f32 %v8341, %v8344
    %v8369 = vmax.f32 %v8345, %v8348
    %v8370 = vmax.f32 %v8346, %v8349
    %v8371 = vmax.f32 %v8347, %v8350
    %v8372 = vmax.f32 %v8351, %v8354
    %v8373 = vmax.f32 %v8352, %v8355
    %v8374 = vmax.f32 %v8353, %v8356
    %v8375 = vmax.f32 %v8357, %v8360
    %v8376 = vmax.f32 %v8358, %v8361
    %v8377 = vmax.f32 %v8359, %v8362
    %v8378 = vld [vmem:[#allocation8] sm:$0x7]
    %v8380 = vlaneseq
    %v8381 = vshrl.u32 %v8380, 7
    %v8382 = vsub.s32 0, %v8381
    %v8383 = vrot.slane %v8378, %v8382
    %v8384 = vlaneseq
    %v8385 = vshrl.u32 %v8384, 7
    %v8386 = vsub.s32 1, %v8385
    %v8387 = vrot.slane %v8378, %v8386
    %v8388 = vlaneseq
    %v8389 = vshrl.u32 %v8388, 7
    %v8390 = vsub.s32 2, %v8389
    %v8391 = vrot.slane %v8378, %v8390
    %v8395 = vadd.f32 %v8363, %v8383
    %v8396 = vadd.f32 %v8364, %v8387
    %v8397 = vadd.f32 %v8365, %v8391
    %v8398 = vadd.f32 %v8366, %v8383
    %v8399 = vadd.f32 %v8367, %v8387
    %v8400 = vadd.f32 %v8368, %v8391
    %v8401 = vadd.f32 %v8369, %v8383
    %v8402 = vadd.f32 %v8370, %v8387
    %v8403 = vadd.f32 %v8371, %v8391
    %v8404 = vadd.f32 %v8372, %v8383
    %v8405 = vadd.f32 %v8373, %v8387
    %v8406 = vadd.f32 %v8374, %v8391
    %v8407 = vadd.f32 %v8375, %v8383
    %v8408 = vadd.f32 %v8376, %v8387
    %v8409 = vadd.f32 %v8377, %v8391
    %v8410 = vmax.f32 %v8395, 0.0
    %v8411 = vmax.f32 %v8396, 0.0
    %v8412 = vmax.f32 %v8397, 0.0
    %v8413 = vmax.f32 %v8398, 0.0
    %v8414 = vmax.f32 %v8399, 0.0
    %v8415 = vmax.f32 %v8400, 0.0
    %v8416 = vmax.f32 %v8401, 0.0
    %v8417 = vmax.f32 %v8402, 0.0
    %v8418 = vmax.f32 %v8403, 0.0
    %v8419 = vmax.f32 %v8404, 0.0
    %v8420 = vmax.f32 %v8405, 0.0
    %v8421 = vmax.f32 %v8406, 0.0
    %v8422 = vmax.f32 %v8407, 0.0
    %v8423 = vmax.f32 %v8408, 0.0
    %v8424 = vmax.f32 %v8409, 0.0
    %v8425 = vld [vmem:[#allocation11] sm:$0x1]
    %v8426 = vpack.c.bf16 %v8410, %v8410
    %v8427 = vpack.c.bf16 %v8411, %v8411
    %v8428 = vpack.c.bf16 %v8412, %v8412
    %v8429 = vld [vmem:[#allocation10] sm:$0xf]
    %v8430 = vld [vmem:[#allocation10 + $0x4] sm:$0xf]
    %v8431 = vld [vmem:[#allocation10 + $0x8] sm:$0xf]
    %v8432 = vld [vmem:[#allocation10 + $0xc] sm:$0xf]
    %v8433 = vld [vmem:[#allocation10 + $0x10] sm:$0xf]
    %v8434 = vld [vmem:[#allocation10 + $0x14] sm:$0xf]
    %v8435 = vld [vmem:[#allocation10 + $0x18] sm:$0xf]
    %v8436 = vld [vmem:[#allocation10 + $0x1c] sm:$0xf]
    %v8437 = vld [vmem:[#allocation10 + $0x20] sm:$0xf]
    %v8438 = vld [vmem:[#allocation10 + $0x24] sm:$0xf]
    %v8439 = vld [vmem:[#allocation10 + $0x28] sm:$0xf]
    %v8440 = vld [vmem:[#allocation10 + $0x2c] sm:$0xf]
    %v8441 = vld [vmem:[#allocation10 + $0x30] sm:$0xf]
    %v8442 = vld [vmem:[#allocation10 + $0x34] sm:$0xf]
    %v8443 = vld [vmem:[#allocation10 + $0x38] sm:$0xf]
    %v8444 = vld [vmem:[#allocation10 + $0x3c] sm:$0xf]
    %v8445 = vld [vmem:[#allocation10 + $0x40] sm:$0xf]
    %v8446 = vld [vmem:[#allocation10 + $0x44] sm:$0xf]
    %v8447 = vld [vmem:[#allocation10 + $0x48] sm:$0xf]
    %v8448 = vld [vmem:[#allocation10 + $0x4c] sm:$0xf]
    %v8449 = vld [vmem:[#allocation10 + $0x50] sm:$0xf]
    %v8450 = vld [vmem:[#allocation10 + $0x54] sm:$0xf]
    %v8451 = vld [vmem:[#allocation10 + $0x58] sm:$0xf]
    %v8452 = vld [vmem:[#allocation10 + $0x5c] sm:$0xf]
    %v8453 = vld [vmem:[#allocation10 + $0x60] sm:$0xf]
    %v8454 = vld [vmem:[#allocation10 + $0x64] sm:$0xf]
    %v8455 = vld [vmem:[#allocation10 + $0x68] sm:$0xf]
    %v8456 = vld [vmem:[#allocation10 + $0x6c] sm:$0xf]
    %v8457 = vld [vmem:[#allocation10 + $0x70] sm:$0xf]
    %v8458 = vld [vmem:[#allocation10 + $0x74] sm:$0xf]
    %v8459 = vld [vmem:[#allocation10 + $0x78] sm:$0xf]
    %v8460 = vld [vmem:[#allocation10 + $0x7c] sm:$0xf]
    %v8461 = vld [vmem:[#allocation10 + $0x80] sm:$0xf]
    %v8462 = vld [vmem:[#allocation10 + $0x84] sm:$0xf]
    %v8463 = vld [vmem:[#allocation10 + $0x88] sm:$0xf]
    %v8464 = vld [vmem:[#allocation10 + $0x8c] sm:$0xf]
    %v8465 = vld [vmem:[#allocation10 + $0x90] sm:$0xf]
    %v8466 = vld [vmem:[#allocation10 + $0x94] sm:$0xf]
    %v8467 = vld [vmem:[#allocation10 + $0x98] sm:$0xf]
    %v8468 = vld [vmem:[#allocation10 + $0x9c] sm:$0xf]
    %v8469 = vld [vmem:[#allocation10 + $0xa0] sm:$0xf]
    %v8470 = vld [vmem:[#allocation10 + $0xa4] sm:$0xf]
    %v8471 = vld [vmem:[#allocation10 + $0xa8] sm:$0xf]
    %v8472 = vld [vmem:[#allocation10 + $0xac] sm:$0xf]
    %v8473 = vld [vmem:[#allocation10 + $0xb0] sm:$0xf]
    %v8474 = vld [vmem:[#allocation10 + $0xb4] sm:$0xf]
    %v8475 = vld [vmem:[#allocation10 + $0xb8] sm:$0xf]
    %v8476 = vld [vmem:[#allocation10 + $0xbc] sm:$0xf]
    %v8525 = vunpack.c.l.b16 %v8429
    %v8526 = vunpack.c.l.b16 %v8430
    %v8527 = vunpack.c.l.b16 %v8431
    %v8528 = vunpack.c.l.b16 %v8432
    %v8529 = vunpack.c.l.b16 %v8433
    %v8530 = vunpack.c.l.b16 %v8434
    %v8531 = vunpack.c.l.b16 %v8435
    %v8532 = vunpack.c.l.b16 %v8436
    %v8533 = vunpack.c.l.b16 %v8437
    %v8534 = vunpack.c.l.b16 %v8438
    %v8535 = vunpack.c.l.b16 %v8439
    %v8536 = vunpack.c.l.b16 %v8440
    %v8537 = vunpack.c.l.b16 %v8441
    %v8538 = vunpack.c.l.b16 %v8442
    %v8539 = vunpack.c.l.b16 %v8443
    %v8540 = vunpack.c.l.b16 %v8444
    %v8541 = vunpack.c.l.b16 %v8445
    %v8542 = vunpack.c.l.b16 %v8446
    %v8543 = vunpack.c.l.b16 %v8447
    %v8544 = vunpack.c.l.b16 %v8448
    %v8545 = vunpack.c.l.b16 %v8449
    %v8546 = vunpack.c.l.b16 %v8450
    %v8547 = vunpack.c.l.b16 %v8451
    %v8548 = vunpack.c.l.b16 %v8452
    %v8549 = vunpack.c.l.b16 %v8453
    %v8550 = vunpack.c.l.b16 %v8454
    %v8551 = vunpack.c.l.b16 %v8455
    %v8552 = vunpack.c.l.b16 %v8456
    %v8553 = vunpack.c.l.b16 %v8457
    %v8554 = vunpack.c.l.b16 %v8458
    %v8555 = vunpack.c.l.b16 %v8459
    %v8556 = vunpack.c.l.b16 %v8460
    %v8557 = vunpack.c.l.b16 %v8461
    %v8558 = vunpack.c.l.b16 %v8462
    %v8559 = vunpack.c.l.b16 %v8463
    %v8560 = vunpack.c.l.b16 %v8464
    %v8561 = vunpack.c.l.b16 %v8465
    %v8562 = vunpack.c.l.b16 %v8466
    %v8563 = vunpack.c.l.b16 %v8467
    %v8564 = vunpack.c.l.b16 %v8468
    %v8565 = vunpack.c.l.b16 %v8469
    %v8566 = vunpack.c.l.b16 %v8470
    %v8567 = vunpack.c.l.b16 %v8471
    %v8568 = vunpack.c.l.b16 %v8472
    %v8569 = vunpack.c.l.b16 %v8473
    %v8570 = vunpack.c.l.b16 %v8474
    %v8571 = vunpack.c.l.b16 %v8475
    %v8572 = vunpack.c.l.b16 %v8476
    %v8573 = vpack.c.b16 %v8526, %v8525
    %v8574 = vpack.c.b16 %v8528, %v8527
    %v8575 = vpack.c.b16 %v8530, %v8529
    %v8576 = vpack.c.b16 %v8532, %v8531
    %v8577 = vpack.c.b16 %v8534, %v8533
    %v8578 = vpack.c.b16 %v8536, %v8535
    %v8579 = vpack.c.b16 %v8538, %v8537
    %v8580 = vpack.c.b16 %v8540, %v8539
    %v8581 = vpack.c.b16 %v8542, %v8541
    %v8582 = vpack.c.b16 %v8544, %v8543
    %v8583 = vpack.c.b16 %v8546, %v8545
    %v8584 = vpack.c.b16 %v8548, %v8547
    %v8585 = vpack.c.b16 %v8550, %v8549
    %v8586 = vpack.c.b16 %v8552, %v8551
    %v8587 = vpack.c.b16 %v8554, %v8553
    %v8588 = vpack.c.b16 %v8556, %v8555
    %v8589 = vpack.c.b16 %v8558, %v8557
    %v8590 = vpack.c.b16 %v8560, %v8559
    %v8591 = vpack.c.b16 %v8562, %v8561
    %v8592 = vpack.c.b16 %v8564, %v8563
    %v8593 = vpack.c.b16 %v8566, %v8565
    %v8594 = vpack.c.b16 %v8568, %v8567
    %v8595 = vpack.c.b16 %v8570, %v8569
    %v8596 = vpack.c.b16 %v8572, %v8571
    %8621 = vmatprep.subr.bf16.mxu0 0
    %8622 = vmatpush1.bf16.msra.mxu0 %v8573
    %8623 = vmatprep.subr.bf16.mxu0 0
    %8624 = vmatpush1.bf16.msra.mxu0 %v8574
    %8625 = vmatprep.subr.bf16.mxu0 0
    %8626 = vmatpush1.bf16.msra.mxu0 %v8575
    %8627 = vmatprep.subr.bf16.mxu0 0
    %8628 = vmatpush1.bf16.msra.mxu0 %v8576
    %8629 = vmatprep.subr.bf16.mxu0 0
    %8630 = vmatpush1.bf16.msra.mxu0 %v8577
    %8631 = vmatprep.subr.bf16.mxu0 0
    %8632 = vmatpush1.bf16.msra.mxu0 %v8578
    %8633 = vmatprep.subr.bf16.mxu0 0
    %8634 = vmatpush1.bf16.msra.mxu0 %v8579
    %8635 = vmatprep.subr.bf16.mxu0 0
    %8636 = vmatpush1.bf16.msra.mxu0 %v8580
    %8637 = vmatprep.subr.bf16.mxu0 0
    %8638 = vmatpush1.bf16.msra.mxu0 %v8581
    %8639 = vmatprep.subr.bf16.mxu0 0
    %8640 = vmatpush1.bf16.msra.mxu0 %v8582
    %8641 = vmatprep.subr.bf16.mxu0 0
    %8642 = vmatpush1.bf16.msra.mxu0 %v8583
    %8643 = vmatprep.subr.bf16.mxu0 0
    %8644 = vmatpush1.bf16.msra.mxu0 %v8584
    %8645 = vmatprep.subr.bf16.mxu0 0
    %8646 = vmatpush1.bf16.msra.mxu0 %v8585
    %8647 = vmatprep.subr.bf16.mxu0 0
    %8648 = vmatpush1.bf16.msra.mxu0 %v8586
    %8649 = vmatprep.subr.bf16.mxu0 0
    %8650 = vmatpush1.bf16.msra.mxu0 %v8587
    %8651 = vmatprep.subr.bf16.mxu0 0
    %8652 = vmatpush1.bf16.msra.mxu0 %v8588
    %8653 = vmatprep.mubr.bf16.mxu0 %v8427
    %8654 = vmatmul.mubr.bf16.gmra.mrb[0].mxu0 %v8426
    %v8655 = vpop.f32.mrb[0].mxu0
    %v8656 = vadd.f32 0.0, %v8655
    %v8657 = vpop.f32.mrb[0].mxu0
    %v8658 = vpop.f32.mrb[0].mxu0
    %v8659 = vpop.f32.mrb[0].mxu0
    %8660 = vdwg.mxu0
    %8661 = vmatprep.subr.bf16.mxu0 0
    %8662 = vmatpush1.bf16.msra.mxu0 %v8589
    %8663 = vmatprep.subr.bf16.mxu0 0
    %8664 = vmatpush1.bf16.msra.mxu0 %v8590
    %8665 = vmatprep.subr.bf16.mxu0 0
    %8666 = vmatpush1.bf16.msra.mxu0 %v8591
    %8667 = vmatprep.subr.bf16.mxu0 0
    %8668 = vmatpush1.bf16.msra.mxu0 %v8592
    %8669 = vmatprep.subr.bf16.mxu0 0
    %8670 = vmatpush1.bf16.msra.mxu0 %v8593
    %8671 = vmatprep.subr.bf16.mxu0 0
    %8672 = vmatpush1.bf16.msra.mxu0 %v8594
    %8673 = vmatprep.subr.bf16.mxu0 0
    %8674 = vmatpush1.bf16.msra.mxu0 %v8595
    %8675 = vmatprep.subr.bf16.mxu0 0
    %8676 = vmatpush1.bf16.msra.mxu0 %v8596
    %8677 = vmatprep.subr.bf16.mxu0 0
    %8678 = vmatpush1.bf16.msra.mxu0 0
    %8679 = vmatprep.subr.bf16.mxu0 0
    %8680 = vmatpush1.bf16.msra.mxu0 0
    %8681 = vmatprep.subr.bf16.mxu0 0
    %8682 = vmatpush1.bf16.msra.mxu0 0
    %8683 = vmatprep.subr.bf16.mxu0 0
    %8684 = vmatpush1.bf16.msra.mxu0 0
    %8685 = vmatprep.subr.bf16.mxu0 0
    %8686 = vmatpush1.bf16.msra.mxu0 0
    %8687 = vmatprep.subr.bf16.mxu0 0
    %8688 = vmatpush1.bf16.msra.mxu0 0
    %8689 = vmatprep.subr.bf16.mxu0 0
    %8690 = vmatpush1.bf16.msra.mxu0 0
    %8691 = vmatprep.subr.bf16.mxu0 0
    %8692 = vmatpush1.bf16.msra.mxu0 0
    %8693 = vmatprep.mubr.bf16.mxu0 0
    %8694 = vmatmul.mubr.bf16.gmra.mrb[0].mxu0 %v8428
    %v8695 = vpop.f32.mrb[0].mxu0
    %v8696 = vadd.f32 %v8656, %v8695
    %v8697 = vpop.f32.mrb[0].mxu0
    %v8698 = vpop.f32.mrb[0].mxu0
    %v8699 = vpop.f32.mrb[0].mxu0
    %8700 = vdwg.mxu0
    %v8702 = vlaneseq
    %v8703 = vshrl.u32 %v8702, 7
    %v8704 = vsub.s32 0, %v8703
    %v8705 = vrot.slane %v8425, %v8704
    %v8707 = vadd.f32 %v8705, %v8696
    %v8708 = vpack.c.bf16 %v8413, %v8413
    %v8709 = vpack.c.bf16 %v8414, %v8414
    %v8710 = vpack.c.bf16 %v8415, %v8415
    %s8711 = scalar_lea.vmem [#allocation10], 192
    %v8712 = vld [vmem:[%s8711] sm:$0xf]
    %v8713 = vld [vmem:[%s8711 + $0x4] sm:$0xf]
    %v8714 = vld [vmem:[%s8711 + $0x8] sm:$0xf]
    %v8715 = vld [vmem:[%s8711 + $0xc] sm:$0xf]
    %v8716 = vld [vmem:[%s8711 + $0x10] sm:$0xf]
    %v8717 = vld [vmem:[%s8711 + $0x14] sm:$0xf]
    %v8718 = vld [vmem:[%s8711 + $0x18] sm:$0xf]
    %v8719 = vld [vmem:[%s8711 + $0x1c] sm:$0xf]
    %v8720 = vld [vmem:[%s8711 + $0x20] sm:$0xf]
    %v8721 = vld [vmem:[%s8711 + $0x24] sm:$0xf]
    %v8722 = vld [vmem:[%s8711 + $0x28] sm:$0xf]
    %v8723 = vld [vmem:[%s8711 + $0x2c] sm:$0xf]
    %v8724 = vld [vmem:[%s8711 + $0x30] sm:$0xf]
    %v8725 = vld [vmem:[%s8711 + $0x34] sm:$0xf]
    %v8726 = vld [vmem:[%s8711 + $0x38] sm:$0xf]
    %v8727 = vld [vmem:[%s8711 + $0x3c] sm:$0xf]
    %v8728 = vld [vmem:[%s8711 + $0x40] sm:$0xf]
    %v8729 = vld [vmem:[%s8711 + $0x44] sm:$0xf]
    %v8730 = vld [vmem:[%s8711 + $0x48] sm:$0xf]
    %v8731 = vld [vmem:[%s8711 + $0x4c] sm:$0xf]
    %v8732 = vld [vmem:[%s8711 + $0x50] sm:$0xf]
    %v8733 = vld [vmem:[%s8711 + $0x54] sm:$0xf]
    %v8734 = vld [vmem:[%s8711 + $0x58] sm:$0xf]
    %v8735 = vld [vmem:[%s8711 + $0x5c] sm:$0xf]
    %v8736 = vld [vmem:[%s8711 + $0x60] sm:$0xf]
    %v8737 = vld [vmem:[%s8711 + $0x64] sm:$0xf]
    %v8738 = vld [vmem:[%s8711 + $0x68] sm:$0xf]
    %v8739 = vld [vmem:[%s8711 + $0x6c] sm:$0xf]
    %v8740 = vld [vmem:[%s8711 + $0x70] sm:$0xf]
    %v8741 = vld [vmem:[%s8711 + $0x74] sm:$0xf]
    %v8742 = vld [vmem:[%s8711 + $0x78] sm:$0xf]
    %v8743 = vld [vmem:[%s8711 + $0x7c] sm:$0xf]
    %v8744 = vld [vmem:[%s8711 + $0x80] sm:$0xf]
    %v8745 = vld [vmem:[%s8711 + $0x84] sm:$0xf]
    %v8746 = vld [vmem:[%s8711 + $0x88] sm:$0xf]
    %v8747 = vld [vmem:[%s8711 + $0x8c] sm:$0xf]
    %v8748 = vld [vmem:[%s8711 + $0x90] sm:$0xf]
    %v8749 = vld [vmem:[%s8711 + $0x94] sm:$0xf]
    %v8750 = vld [vmem:[%s8711 + $0x98] sm:$0xf]
    %v8751 = vld [vmem:[%s8711 + $0x9c] sm:$0xf]
    %v8752 = vld [vmem:[%s8711 + $0xa0] sm:$0xf]
    %v8753 = vld [vmem:[%s8711 + $0xa4] sm:$0xf]
    %v8754 = vld [vmem:[%s8711 + $0xa8] sm:$0xf]
    %v8755 = vld [vmem:[%s8711 + $0xac] sm:$0xf]
    %v8756 = vld [vmem:[%s8711 + $0xb0] sm:$0xf]
    %v8757 = vld [vmem:[%s8711 + $0xb4] sm:$0xf]
    %v8758 = vld [vmem:[%s8711 + $0xb8] sm:$0xf]
    %v8759 = vld [vmem:[%s8711 + $0xbc] sm:$0xf]
    %v8808 = vunpack.c.l.b16 %v8712
    %v8809 = vunpack.c.l.b16 %v8713
    %v8810 = vunpack.c.l.b16 %v8714
    %v8811 = vunpack.c.l.b16 %v8715
    %v8812 = vunpack.c.l.b16 %v8716
    %v8813 = vunpack.c.l.b16 %v8717
    %v8814 = vunpack.c.l.b16 %v8718
    %v8815 = vunpack.c.l.b16 %v8719
    %v8816 = vunpack.c.l.b16 %v8720
    %v8817 = vunpack.c.l.b16 %v8721
    %v8818 = vunpack.c.l.b16 %v8722
    %v8819 = vunpack.c.l.b16 %v8723
    %v8820 = vunpack.c.l.b16 %v8724
    %v8821 = vunpack.c.l.b16 %v8725
    %v8822 = vunpack.c.l.b16 %v8726
    %v8823 = vunpack.c.l.b16 %v8727
    %v8824 = vunpack.c.l.b16 %v8728
    %v8825 = vunpack.c.l.b16 %v8729
    %v8826 = vunpack.c.l.b16 %v8730
    %v8827 = vunpack.c.l.b16 %v8731
    %v8828 = vunpack.c.l.b16 %v8732
    %v8829 = vunpack.c.l.b16 %v8733
    %v8830 = vunpack.c.l.b16 %v8734
    %v8831 = vunpack.c.l.b16 %v8735
    %v8832 = vunpack.c.l.b16 %v8736
    %v8833 = vunpack.c.l.b16 %v8737
    %v8834 = vunpack.c.l.b16 %v8738
    %v8835 = vunpack.c.l.b16 %v8739
    %v8836 = vunpack.c.l.b16 %v8740
    %v8837 = vunpack.c.l.b16 %v8741
    %v8838 = vunpack.c.l.b16 %v8742
    %v8839 = vunpack.c.l.b16 %v8743
    %v8840 = vunpack.c.l.b16 %v8744
    %v8841 = vunpack.c.l.b16 %v8745
    %v8842 = vunpack.c.l.b16 %v8746
    %v8843 = vunpack.c.l.b16 %v8747
    %v8844 = vunpack.c.l.b16 %v8748
    %v8845 = vunpack.c.l.b16 %v8749
    %v8846 = vunpack.c.l.b16 %v8750
    %v8847 = vunpack.c.l.b16 %v8751
    %v8848 = vunpack.c.l.b16 %v8752
    %v8849 = vunpack.c.l.b16 %v8753
    %v8850 = vunpack.c.l.b16 %v8754
    %v8851 = vunpack.c.l.b16 %v8755
    %v8852 = vunpack.c.l.b16 %v8756
    %v8853 = vunpack.c.l.b16 %v8757
    %v8854 = vunpack.c.l.b16 %v8758
    %v8855 = vunpack.c.l.b16 %v8759
    %v8856 = vpack.c.b16 %v8809, %v8808
    %v8857 = vpack.c.b16 %v8811, %v8810
    %v8858 = vpack.c.b16 %v8813, %v8812
    %v8859 = vpack.c.b16 %v8815, %v8814
    %v8860 = vpack.c.b16 %v8817, %v8816
    %v8861 = vpack.c.b16 %v8819, %v8818
    %v8862 = vpack.c.b16 %v8821, %v8820
    %v8863 = vpack.c.b16 %v8823, %v8822
    %v8864 = vpack.c.b16 %v8825, %v8824
    %v8865 = vpack.c.b16 %v8827, %v8826
    %v8866 = vpack.c.b16 %v8829, %v8828
    %v8867 = vpack.c.b16 %v8831, %v8830
    %v8868 = vpack.c.b16 %v8833, %v8832
    %v8869 = vpack.c.b16 %v8835, %v8834
    %v8870 = vpack.c.b16 %v8837, %v8836
    %v8871 = vpack.c.b16 %v8839, %v8838
    %v8872 = vpack.c.b16 %v8841, %v8840
    %v8873 = vpack.c.b16 %v8843, %v8842
    %v8874 = vpack.c.b16 %v8845, %v8844
    %v8875 = vpack.c.b16 %v8847, %v8846
    %v8876 = vpack.c.b16 %v8849, %v8848
    %v8877 = vpack.c.b16 %v8851, %v8850
    %v8878 = vpack.c.b16 %v8853, %v8852
    %v8879 = vpack.c.b16 %v8855, %v8854
    %8904 = vmatprep.subr.bf16.mxu0 0
    %8905 = vmatpush1.bf16.msra.mxu0 %v8856
    %8906 = vmatprep.subr.bf16.mxu0 0
    %8907 = vmatpush1.bf16.msra.mxu0 %v8857
    %8908 = vmatprep.subr.bf16.mxu0 0
    %8909 = vmatpush1.bf16.msra.mxu0 %v8858
    %8910 = vmatprep.subr.bf16.mxu0 0
    %8911 = vmatpush1.bf16.msra.mxu0 %v8859
    %8912 = vmatprep.subr.bf16.mxu0 0
    %8913 = vmatpush1.bf16.msra.mxu0 %v8860
    %8914 = vmatprep.subr.bf16.mxu0 0
    %8915 = vmatpush1.bf16.msra.mxu0 %v8861
    %8916 = vmatprep.subr.bf16.mxu0 0
    %8917 = vmatpush1.bf16.msra.mxu0 %v8862
    %8918 = vmatprep.subr.bf16.mxu0 0
    %8919 = vmatpush1.bf16.msra.mxu0 %v8863
    %8920 = vmatprep.subr.bf16.mxu0 0
    %8921 = vmatpush1.bf16.msra.mxu0 %v8864
    %8922 = vmatprep.subr.bf16.mxu0 0
    %8923 = vmatpush1.bf16.msra.mxu0 %v8865
    %8924 = vmatprep.subr.bf16.mxu0 0
    %8925 = vmatpush1.bf16.msra.mxu0 %v8866
    %8926 = vmatprep.subr.bf16.mxu0 0
    %8927 = vmatpush1.bf16.msra.mxu0 %v8867
    %8928 = vmatprep.subr.bf16.mxu0 0
    %8929 = vmatpush1.bf16.msra.mxu0 %v8868
    %8930 = vmatprep.subr.bf16.mxu0 0
    %8931 = vmatpush1.bf16.msra.mxu0 %v8869
    %8932 = vmatprep.subr.bf16.mxu0 0
    %8933 = vmatpush1.bf16.msra.mxu0 %v8870
    %8934 = vmatprep.subr.bf16.mxu0 0
    %8935 = vmatpush1.bf16.msra.mxu0 %v8871
    %8936 = vmatprep.mubr.bf16.mxu0 %v8709
    %8937 = vmatmul.mubr.bf16.gmra.mrb[0].mxu0 %v8708
    %v8938 = vpop.f32.mrb[0].mxu0
    %v8939 = vadd.f32 0.0, %v8938
    %v8940 = vpop.f32.mrb[0].mxu0
    %v8941 = vpop.f32.mrb[0].mxu0
    %v8942 = vpop.f32.mrb[0].mxu0
    %8943 = vdwg.mxu0
    %8944 = vmatprep.subr.bf16.mxu0 0
    %8945 = vmatpush1.bf16.msra.mxu0 %v8872
    %8946 = vmatprep.subr.bf16.mxu0 0
    %8947 = vmatpush1.bf16.msra.mxu0 %v8873
    %8948 = vmatprep.subr.bf16.mxu0 0
    %8949 = vmatpush1.bf16.msra.mxu0 %v8874
    %8950 = vmatprep.subr.bf16.mxu0 0
    %8951 = vmatpush1.bf16.msra.mxu0 %v8875
    %8952 = vmatprep.subr.bf16.mxu0 0
    %8953 = vmatpush1.bf16.msra.mxu0 %v8876
    %8954 = vmatprep.subr.bf16.mxu0 0
    %8955 = vmatpush1.bf16.msra.mxu0 %v8877
    %8956 = vmatprep.subr.bf16.mxu0 0
    %8957 = vmatpush1.bf16.msra.mxu0 %v8878
    %8958 = vmatprep.subr.bf16.mxu0 0
    %8959 = vmatpush1.bf16.msra.mxu0 %v8879
    %8960 = vmatprep.subr.bf16.mxu0 0
    %8961 = vmatpush1.bf16.msra.mxu0 0
    %8962 = vmatprep.subr.bf16.mxu0 0
    %8963 = vmatpush1.bf16.msra.mxu0 0
    %8964 = vmatprep.subr.bf16.mxu0 0
    %8965 = vmatpush1.bf16.msra.mxu0 0
    %8966 = vmatprep.subr.bf16.mxu0 0
    %8967 = vmatpush1.bf16.msra.mxu0 0
    %8968 = vmatprep.subr.bf16.mxu0 0
    %8969 = vmatpush1.bf16.msra.mxu0 0
    %8970 = vmatprep.subr.bf16.mxu0 0
    %8971 = vmatpush1.bf16.msra.mxu0 0
    %8972 = vmatprep.subr.bf16.mxu0 0
    %8973 = vmatpush1.bf16.msra.mxu0 0
    %8974 = vmatprep.subr.bf16.mxu0 0
    %8975 = vmatpush1.bf16.msra.mxu0 0
    %8976 = vmatprep.mubr.bf16.mxu0 0
    %8977 = vmatmul.mubr.bf16.gmra.mrb[0].mxu0 %v8710
    %v8978 = vpop.f32.mrb[0].mxu0
    %v8979 = vadd.f32 %v8939, %v8978
    %v8980 = vpop.f32.mrb[0].mxu0
    %v8981 = vpop.f32.mrb[0].mxu0
    %v8982 = vpop.f32.mrb[0].mxu0
    %8983 = vdwg.mxu0
    %v8984 = vadd.f32 %v8707, %v8979
    %v8985 = vpack.c.bf16 %v8416, %v8416
    %v8986 = vpack.c.bf16 %v8417, %v8417
    %v8987 = vpack.c.bf16 %v8418, %v8418
    %s8988 = scalar_lea.vmem [#allocation10], 384
    %v8989 = vld [vmem:[%s8988] sm:$0xf]
    %v8990 = vld [vmem:[%s8988 + $0x4] sm:$0xf]
    %v8991 = vld [vmem:[%s8988 + $0x8] sm:$0xf]
    %v8992 = vld [vmem:[%s8988 + $0xc] sm:$0xf]
    %v8993 = vld [vmem:[%s8988 + $0x10] sm:$0xf]
    %v8994 = vld [vmem:[%s8988 + $0x14] sm:$0xf]
    %v8995 = vld [vmem:[%s8988 + $0x18] sm:$0xf]
    %v8996 = vld [vmem:[%s8988 + $0x1c] sm:$0xf]
    %v8997 = vld [vmem:[%s8988 + $0x20] sm:$0xf]
    %v8998 = vld [vmem:[%s8988 + $0x24] sm:$0xf]
    %v8999 = vld [vmem:[%s8988 + $0x28] sm:$0xf]
    %v9000 = vld [vmem:[%s8988 + $0x2c] sm:$0xf]
    %v9001 = vld [vmem:[%s8988 + $0x30] sm:$0xf]
    %v9002 = vld [vmem:[%s8988 + $0x34] sm:$0xf]
    %v9003 = vld [vmem:[%s8988 + $0x38] sm:$0xf]
    %v9004 = vld [vmem:[%s8988 + $0x3c] sm:$0xf]
    %v9005 = vld [vmem:[%s8988 + $0x40] sm:$0xf]
    %v9006 = vld [vmem:[%s8988 + $0x44] sm:$0xf]
    %v9007 = vld [vmem:[%s8988 + $0x48] sm:$0xf]
    %v9008 = vld [vmem:[%s8988 + $0x4c] sm:$0xf]
    %v9009 = vld [vmem:[%s8988 + $0x50] sm:$0xf]
    %v9010 = vld [vmem:[%s8988 + $0x54] sm:$0xf]
    %v9011 = vld [vmem:[%s8988 + $0x58] sm:$0xf]
    %v9012 = vld [vmem:[%s8988 + $0x5c] sm:$0xf]
    %v9013 = vld [vmem:[%s8988 + $0x60] sm:$0xf]
    %v9014 = vld [vmem:[%s8988 + $0x64] sm:$0xf]
    %v9015 = vld [vmem:[%s8988 + $0x68] sm:$0xf]
    %v9016 = vld [vmem:[%s8988 + $0x6c] sm:$0xf]
    %v9017 = vld [vmem:[%s8988 + $0x70] sm:$0xf]
    %v9018 = vld [vmem:[%s8988 + $0x74] sm:$0xf]
    %v9019 = vld [vmem:[%s8988 + $0x78] sm:$0xf]
    %v9020 = vld [vmem:[%s8988 + $0x7c] sm:$0xf]
    %v9021 = vld [vmem:[%s8988 + $0x80] sm:$0xf]
    %v9022 = vld [vmem:[%s8988 + $0x84] sm:$0xf]
    %v9023 = vld [vmem:[%s8988 + $0x88] sm:$0xf]
    %v9024 = vld [vmem:[%s8988 + $0x8c] sm:$0xf]
    %v9025 = vld [vmem:[%s8988 + $0x90] sm:$0xf]
    %v9026 = vld [vmem:[%s8988 + $0x94] sm:$0xf]
    %v9027 = vld [vmem:[%s8988 + $0x98] sm:$0xf]
    %v9028 = vld [vmem:[%s8988 + $0x9c] sm:$0xf]
    %v9029 = vld [vmem:[%s8988 + $0xa0] sm:$0xf]
    %v9030 = vld [vmem:[%s8988 + $0xa4] sm:$0xf]
    %v9031 = vld [vmem:[%s8988 + $0xa8] sm:$0xf]
    %v9032 = vld [vmem:[%s8988 + $0xac] sm:$0xf]
    %v9033 = vld [vmem:[%s8988 + $0xb0] sm:$0xf]
    %v9034 = vld [vmem:[%s8988 + $0xb4] sm:$0xf]
    %v9035 = vld [vmem:[%s8988 + $0xb8] sm:$0xf]
    %v9036 = vld [vmem:[%s8988 + $0xbc] sm:$0xf]
    %v9085 = vunpack.c.l.b16 %v8989
    %v9086 = vunpack.c.l.b16 %v8990
    %v9087 = vunpack.c.l.b16 %v8991
    %v9088 = vunpack.c.l.b16 %v8992
    %v9089 = vunpack.c.l.b16 %v8993
    %v9090 = vunpack.c.l.b16 %v8994
    %v9091 = vunpack.c.l.b16 %v8995
    %v9092 = vunpack.c.l.b16 %v8996
    %v9093 = vunpack.c.l.b16 %v8997
    %v9094 = vunpack.c.l.b16 %v8998
    %v9095 = vunpack.c.l.b16 %v8999
    %v9096 = vunpack.c.l.b16 %v9000
    %v9097 = vunpack.c.l.b16 %v9001
    %v9098 = vunpack.c.l.b16 %v9002
    %v9099 = vunpack.c.l.b16 %v9003
    %v9100 = vunpack.c.l.b16 %v9004
    %v9101 = vunpack.c.l.b16 %v9005
    %v9102 = vunpack.c.l.b16 %v9006
    %v9103 = vunpack.c.l.b16 %v9007
    %v9104 = vunpack.c.l.b16 %v9008
    %v9105 = vunpack.c.l.b16 %v9009
    %v9106 = vunpack.c.l.b16 %v9010
    %v9107 = vunpack.c.l.b16 %v9011
    %v9108 = vunpack.c.l.b16 %v9012
    %v9109 = vunpack.c.l.b16 %v9013
    %v9110 = vunpack.c.l.b16 %v9014
    %v9111 = vunpack.c.l.b16 %v9015
    %v9112 = vunpack.c.l.b16 %v9016
    %v9113 = vunpack.c.l.b16 %v9017
    %v9114 = vunpack.c.l.b16 %v9018
    %v9115 = vunpack.c.l.b16 %v9019
    %v9116 = vunpack.c.l.b16 %v9020
    %v9117 = vunpack.c.l.b16 %v9021
    %v9118 = vunpack.c.l.b16 %v9022
    %v9119 = vunpack.c.l.b16 %v9023
    %v9120 = vunpack.c.l.b16 %v9024
    %v9121 = vunpack.c.l.b16 %v9025
    %v9122 = vunpack.c.l.b16 %v9026
    %v9123 = vunpack.c.l.b16 %v9027
    %v9124 = vunpack.c.l.b16 %v9028
    %v9125 = vunpack.c.l.b16 %v9029
    %v9126 = vunpack.c.l.b16 %v9030
    %v9127 = vunpack.c.l.b16 %v9031
    %v9128 = vunpack.c.l.b16 %v9032
    %v9129 = vunpack.c.l.b16 %v9033
    %v9130 = vunpack.c.l.b16 %v9034
    %v9131 = vunpack.c.l.b16 %v9035
    %v9132 = vunpack.c.l.b16 %v9036
    %v9133 = vpack.c.b16 %v9086, %v9085
    %v9134 = vpack.c.b16 %v9088, %v9087
    %v9135 = vpack.c.b16 %v9090, %v9089
    %v9136 = vpack.c.b16 %v9092, %v9091
    %v9137 = vpack.c.b16 %v9094, %v9093
    %v9138 = vpack.c.b16 %v9096, %v9095
    %v9139 = vpack.c.b16 %v9098, %v9097
    %v9140 = vpack.c.b16 %v9100, %v9099
    %v9141 = vpack.c.b16 %v9102, %v9101
    %v9142 = vpack.c.b16 %v9104, %v9103
    %v9143 = vpack.c.b16 %v9106, %v9105
    %v9144 = vpack.c.b16 %v9108, %v9107
    %v9145 = vpack.c.b16 %v9110, %v9109
    %v9146 = vpack.c.b16 %v9112, %v9111
    %v9147 = vpack.c.b16 %v9114, %v9113
    %v9148 = vpack.c.b16 %v9116, %v9115
    %v9149 = vpack.c.b16 %v9118, %v9117
    %v9150 = vpack.c.b16 %v9120, %v9119
    %v9151 = vpack.c.b16 %v9122, %v9121
    %v9152 = vpack.c.b16 %v9124, %v9123
    %v9153 = vpack.c.b16 %v9126, %v9125
    %v9154 = vpack.c.b16 %v9128, %v9127
    %v9155 = vpack.c.b16 %v9130, %v9129
    %v9156 = vpack.c.b16 %v9132, %v9131
    %9181 = vmatprep.subr.bf16.mxu0 0
    %9182 = vmatpush1.bf16.msra.mxu0 %v9133
    %9183 = vmatprep.subr.bf16.mxu0 0
    %9184 = vmatpush1.bf16.msra.mxu0 %v9134
    %9185 = vmatprep.subr.bf16.mxu0 0
    %9186 = vmatpush1.bf16.msra.mxu0 %v9135
    %9187 = vmatprep.subr.bf16.mxu0 0
    %9188 = vmatpush1.bf16.msra.mxu0 %v9136
    %9189 = vmatprep.subr.bf16.mxu0 0
    %9190 = vmatpush1.bf16.msra.mxu0 %v9137
    %9191 = vmatprep.subr.bf16.mxu0 0
    %9192 = vmatpush1.bf16.msra.mxu0 %v9138
    %9193 = vmatprep.subr.bf16.mxu0 0
    %9194 = vmatpush1.bf16.msra.mxu0 %v9139
    %9195 = vmatprep.subr.bf16.mxu0 0
    %9196 = vmatpush1.bf16.msra.mxu0 %v9140
    %9197 = vmatprep.subr.bf16.mxu0 0
    %9198 = vmatpush1.bf16.msra.mxu0 %v9141
    %9199 = vmatprep.subr.bf16.mxu0 0
    %9200 = vmatpush1.bf16.msra.mxu0 %v9142
    %9201 = vmatprep.subr.bf16.mxu0 0
    %9202 = vmatpush1.bf16.msra.mxu0 %v9143
    %9203 = vmatprep.subr.bf16.mxu0 0
    %9204 = vmatpush1.bf16.msra.mxu0 %v9144
    %9205 = vmatprep.subr.bf16.mxu0 0
    %9206 = vmatpush1.bf16.msra.mxu0 %v9145
    %9207 = vmatprep.subr.bf16.mxu0 0
    %9208 = vmatpush1.bf16.msra.mxu0 %v9146
    %9209 = vmatprep.subr.bf16.mxu0 0
    %9210 = vmatpush1.bf16.msra.mxu0 %v9147
    %9211 = vmatprep.subr.bf16.mxu0 0
    %9212 = vmatpush1.bf16.msra.mxu0 %v9148
    %9213 = vmatprep.mubr.bf16.mxu0 %v8986
    %9214 = vmatmul.mubr.bf16.gmra.mrb[0].mxu0 %v8985
    %v9215 = vpop.f32.mrb[0].mxu0
    %v9216 = vadd.f32 0.0, %v9215
    %v9217 = vpop.f32.mrb[0].mxu0
    %v9218 = vpop.f32.mrb[0].mxu0
    %v9219 = vpop.f32.mrb[0].mxu0
    %9220 = vdwg.mxu0
    %9221 = vmatprep.subr.bf16.mxu0 0
    %9222 = vmatpush1.bf16.msra.mxu0 %v9149
    %9223 = vmatprep.subr.bf16.mxu0 0
    %9224 = vmatpush1.bf16.msra.mxu0 %v9150
    %9225 = vmatprep.subr.bf16.mxu0 0
    %9226 = vmatpush1.bf16.msra.mxu0 %v9151
    %9227 = vmatprep.subr.bf16.mxu0 0
    %9228 = vmatpush1.bf16.msra.mxu0 %v9152
    %9229 = vmatprep.subr.bf16.mxu0 0
    %9230 = vmatpush1.bf16.msra.mxu0 %v9153
    %9231 = vmatprep.subr.bf16.mxu0 0
    %9232 = vmatpush1.bf16.msra.mxu0 %v9154
    %9233 = vmatprep.subr.bf16.mxu0 0
    %9234 = vmatpush1.bf16.msra.mxu0 %v9155
    %9235 = vmatprep.subr.bf16.mxu0 0
    %9236 = vmatpush1.bf16.msra.mxu0 %v9156
    %9237 = vmatprep.subr.bf16.mxu0 0
    %9238 = vmatpush1.bf16.msra.mxu0 0
    %9239 = vmatprep.subr.bf16.mxu0 0
    %9240 = vmatpush1.bf16.msra.mxu0 0
    %9241 = vmatprep.subr.bf16.mxu0 0
    %9242 = vmatpush1.bf16.msra.mxu0 0
    %9243 = vmatprep.subr.bf16.mxu0 0
    %9244 = vmatpush1.bf16.msra.mxu0 0
    %9245 = vmatprep.subr.bf16.mxu0 0
    %9246 = vmatpush1.bf16.msra.mxu0 0
    %9247 = vmatprep.subr.bf16.mxu0 0
    %9248 = vmatpush1.bf16.msra.mxu0 0
    %9249 = vmatprep.subr.bf16.mxu0 0
    %9250 = vmatpush1.bf16.msra.mxu0 0
    %9251 = vmatprep.subr.bf16.mxu0 0
    %9252 = vmatpush1.bf16.msra.mxu0 0
    %9253 = vmatprep.mubr.bf16.mxu0 0
    %9254 = vmatmul.mubr.bf16.gmra.mrb[0].mxu0 %v8987
    %v9255 = vpop.f32.mrb[0].mxu0
    %v9256 = vadd.f32 %v9216, %v9255
    %v9257 = vpop.f32.mrb[0].mxu0
    %v9258 = vpop.f32.mrb[0].mxu0
    %v9259 = vpop.f32.mrb[0].mxu0
    %9260 = vdwg.mxu0
    %v9261 = vadd.f32 %v8984, %v9256
    %v9262 = vpack.c.bf16 %v8419, %v8419
    %v9263 = vpack.c.bf16 %v8420, %v8420
    %v9264 = vpack.c.bf16 %v8421, %v8421
    %s9265 = scalar_lea.vmem [#allocation10], 576
    %v9266 = vld [vmem:[%s9265] sm:$0xf]
    %v9267 = vld [vmem:[%s9265 + $0x4] sm:$0xf]
    %v9268 = vld [vmem:[%s9265 + $0x8] sm:$0xf]
    %v9269 = vld [vmem:[%s9265 + $0xc] sm:$0xf]
    %v9270 = vld [vmem:[%s9265 + $0x10] sm:$0xf]
    %v9271 = vld [vmem:[%s9265 + $0x14] sm:$0xf]
    %v9272 = vld [vmem:[%s9265 + $0x18] sm:$0xf]
    %v9273 = vld [vmem:[%s9265 + $0x1c] sm:$0xf]
    %v9274 = vld [vmem:[%s9265 + $0x20] sm:$0xf]
    %v9275 = vld [vmem:[%s9265 + $0x24] sm:$0xf]
    %v9276 = vld [vmem:[%s9265 + $0x28] sm:$0xf]
    %v9277 = vld [vmem:[%s9265 + $0x2c] sm:$0xf]
    %v9278 = vld [vmem:[%s9265 + $0x30] sm:$0xf]
    %v9279 = vld [vmem:[%s9265 + $0x34] sm:$0xf]
    %v9280 = vld [vmem:[%s9265 + $0x38] sm:$0xf]
    %v9281 = vld [vmem:[%s9265 + $0x3c] sm:$0xf]
    %v9282 = vld [vmem:[%s9265 + $0x40] sm:$0xf]
    %v9283 = vld [vmem:[%s9265 + $0x44] sm:$0xf]
    %v9284 = vld [vmem:[%s9265 + $0x48] sm:$0xf]
    %v9285 = vld [vmem:[%s9265 + $0x4c] sm:$0xf]
    %v9286 = vld [vmem:[%s9265 + $0x50] sm:$0xf]
    %v9287 = vld [vmem:[%s9265 + $0x54] sm:$0xf]
    %v9288 = vld [vmem:[%s9265 + $0x58] sm:$0xf]
    %v9289 = vld [vmem:[%s9265 + $0x5c] sm:$0xf]
    %v9290 = vld [vmem:[%s9265 + $0x60] sm:$0xf]
    %v9291 = vld [vmem:[%s9265 + $0x64] sm:$0xf]
    %v9292 = vld [vmem:[%s9265 + $0x68] sm:$0xf]
    %v9293 = vld [vmem:[%s9265 + $0x6c] sm:$0xf]
    %v9294 = vld [vmem:[%s9265 + $0x70] sm:$0xf]
    %v9295 = vld [vmem:[%s9265 + $0x74] sm:$0xf]
    %v9296 = vld [vmem:[%s9265 + $0x78] sm:$0xf]
    %v9297 = vld [vmem:[%s9265 + $0x7c] sm:$0xf]
    %v9298 = vld [vmem:[%s9265 + $0x80] sm:$0xf]
    %v9299 = vld [vmem:[%s9265 + $0x84] sm:$0xf]
    %v9300 = vld [vmem:[%s9265 + $0x88] sm:$0xf]
    %v9301 = vld [vmem:[%s9265 + $0x8c] sm:$0xf]
    %v9302 = vld [vmem:[%s9265 + $0x90] sm:$0xf]
    %v9303 = vld [vmem:[%s9265 + $0x94] sm:$0xf]
    %v9304 = vld [vmem:[%s9265 + $0x98] sm:$0xf]
    %v9305 = vld [vmem:[%s9265 + $0x9c] sm:$0xf]
    %v9306 = vld [vmem:[%s9265 + $0xa0] sm:$0xf]
    %v9307 = vld [vmem:[%s9265 + $0xa4] sm:$0xf]
    %v9308 = vld [vmem:[%s9265 + $0xa8] sm:$0xf]
    %v9309 = vld [vmem:[%s9265 + $0xac] sm:$0xf]
    %v9310 = vld [vmem:[%s9265 + $0xb0] sm:$0xf]
    %v9311 = vld [vmem:[%s9265 + $0xb4] sm:$0xf]
    %v9312 = vld [vmem:[%s9265 + $0xb8] sm:$0xf]
    %v9313 = vld [vmem:[%s9265 + $0xbc] sm:$0xf]
    %v9362 = vunpack.c.l.b16 %v9266
    %v9363 = vunpack.c.l.b16 %v9267
    %v9364 = vunpack.c.l.b16 %v9268
    %v9365 = vunpack.c.l.b16 %v9269
    %v9366 = vunpack.c.l.b16 %v9270
    %v9367 = vunpack.c.l.b16 %v9271
    %v9368 = vunpack.c.l.b16 %v9272
    %v9369 = vunpack.c.l.b16 %v9273
    %v9370 = vunpack.c.l.b16 %v9274
    %v9371 = vunpack.c.l.b16 %v9275
    %v9372 = vunpack.c.l.b16 %v9276
    %v9373 = vunpack.c.l.b16 %v9277
    %v9374 = vunpack.c.l.b16 %v9278
    %v9375 = vunpack.c.l.b16 %v9279
    %v9376 = vunpack.c.l.b16 %v9280
    %v9377 = vunpack.c.l.b16 %v9281
    %v9378 = vunpack.c.l.b16 %v9282
    %v9379 = vunpack.c.l.b16 %v9283
    %v9380 = vunpack.c.l.b16 %v9284
    %v9381 = vunpack.c.l.b16 %v9285
    %v9382 = vunpack.c.l.b16 %v9286
    %v9383 = vunpack.c.l.b16 %v9287
    %v9384 = vunpack.c.l.b16 %v9288
    %v9385 = vunpack.c.l.b16 %v9289
    %v9386 = vunpack.c.l.b16 %v9290
    %v9387 = vunpack.c.l.b16 %v9291
    %v9388 = vunpack.c.l.b16 %v9292
    %v9389 = vunpack.c.l.b16 %v9293
    %v9390 = vunpack.c.l.b16 %v9294
    %v9391 = vunpack.c.l.b16 %v9295
    %v9392 = vunpack.c.l.b16 %v9296
    %v9393 = vunpack.c.l.b16 %v9297
    %v9394 = vunpack.c.l.b16 %v9298
    %v9395 = vunpack.c.l.b16 %v9299
    %v9396 = vunpack.c.l.b16 %v9300
    %v9397 = vunpack.c.l.b16 %v9301
    %v9398 = vunpack.c.l.b16 %v9302
    %v9399 = vunpack.c.l.b16 %v9303
    %v9400 = vunpack.c.l.b16 %v9304
    %v9401 = vunpack.c.l.b16 %v9305
    %v9402 = vunpack.c.l.b16 %v9306
    %v9403 = vunpack.c.l.b16 %v9307
    %v9404 = vunpack.c.l.b16 %v9308
    %v9405 = vunpack.c.l.b16 %v9309
    %v9406 = vunpack.c.l.b16 %v9310
    %v9407 = vunpack.c.l.b16 %v9311
    %v9408 = vunpack.c.l.b16 %v9312
    %v9409 = vunpack.c.l.b16 %v9313
    %v9410 = vpack.c.b16 %v9363, %v9362
    %v9411 = vpack.c.b16 %v9365, %v9364
    %v9412 = vpack.c.b16 %v9367, %v9366
    %v9413 = vpack.c.b16 %v9369, %v9368
    %v9414 = vpack.c.b16 %v9371, %v9370
    %v9415 = vpack.c.b16 %v9373, %v9372
    %v9416 = vpack.c.b16 %v9375, %v9374
    %v9417 = vpack.c.b16 %v9377, %v9376
    %v9418 = vpack.c.b16 %v9379, %v9378
    %v9419 = vpack.c.b16 %v9381, %v9380
    %v9420 = vpack.c.b16 %v9383, %v9382
    %v9421 = vpack.c.b16 %v9385, %v9384
    %v9422 = vpack.c.b16 %v9387, %v9386
    %v9423 = vpack.c.b16 %v9389, %v9388
    %v9424 = vpack.c.b16 %v9391, %v9390
    %v9425 = vpack.c.b16 %v9393, %v9392
    %v9426 = vpack.c.b16 %v9395, %v9394
    %v9427 = vpack.c.b16 %v9397, %v9396
    %v9428 = vpack.c.b16 %v9399, %v9398
    %v9429 = vpack.c.b16 %v9401, %v9400
    %v9430 = vpack.c.b16 %v9403, %v9402
    %v9431 = vpack.c.b16 %v9405, %v9404
    %v9432 = vpack.c.b16 %v9407, %v9406
    %v9433 = vpack.c.b16 %v9409, %v9408
    %9458 = vmatprep.subr.bf16.mxu0 0
    %9459 = vmatpush1.bf16.msra.mxu0 %v9410
    %9460 = vmatprep.subr.bf16.mxu0 0
    %9461 = vmatpush1.bf16.msra.mxu0 %v9411
    %9462 = vmatprep.subr.bf16.mxu0 0
    %9463 = vmatpush1.bf16.msra.mxu0 %v9412
    %9464 = vmatprep.subr.bf16.mxu0 0
    %9465 = vmatpush1.bf16.msra.mxu0 %v9413
    %9466 = vmatprep.subr.bf16.mxu0 0
    %9467 = vmatpush1.bf16.msra.mxu0 %v9414
    %9468 = vmatprep.subr.bf16.mxu0 0
    %9469 = vmatpush1.bf16.msra.mxu0 %v9415
    %9470 = vmatprep.subr.bf16.mxu0 0
    %9471 = vmatpush1.bf16.msra.mxu0 %v9416
    %9472 = vmatprep.subr.bf16.mxu0 0
    %9473 = vmatpush1.bf16.msra.mxu0 %v9417
    %9474 = vmatprep.subr.bf16.mxu0 0
    %9475 = vmatpush1.bf16.msra.mxu0 %v9418
    %9476 = vmatprep.subr.bf16.mxu0 0
    %9477 = vmatpush1.bf16.msra.mxu0 %v9419
    %9478 = vmatprep.subr.bf16.mxu0 0
    %9479 = vmatpush1.bf16.msra.mxu0 %v9420
    %9480 = vmatprep.subr.bf16.mxu0 0
    %9481 = vmatpush1.bf16.msra.mxu0 %v9421
    %9482 = vmatprep.subr.bf16.mxu0 0
    %9483 = vmatpush1.bf16.msra.mxu0 %v9422
    %9484 = vmatprep.subr.bf16.mxu0 0
    %9485 = vmatpush1.bf16.msra.mxu0 %v9423
    %9486 = vmatprep.subr.bf16.mxu0 0
    %9487 = vmatpush1.bf16.msra.mxu0 %v9424
    %9488 = vmatprep.subr.bf16.mxu0 0
    %9489 = vmatpush1.bf16.msra.mxu0 %v9425
    %9490 = vmatprep.mubr.bf16.mxu0 %v9263
    %9491 = vmatmul.mubr.bf16.gmra.mrb[0].mxu0 %v9262
    %v9492 = vpop.f32.mrb[0].mxu0
    %v9493 = vadd.f32 0.0, %v9492
    %v9494 = vpop.f32.mrb[0].mxu0
    %v9495 = vpop.f32.mrb[0].mxu0
    %v9496 = vpop.f32.mrb[0].mxu0
    %9497 = vdwg.mxu0
    %9498 = vmatprep.subr.bf16.mxu0 0
    %9499 = vmatpush1.bf16.msra.mxu0 %v9426
    %9500 = vmatprep.subr.bf16.mxu0 0
    %9501 = vmatpush1.bf16.msra.mxu0 %v9427
    %9502 = vmatprep.subr.bf16.mxu0 0
    %9503 = vmatpush1.bf16.msra.mxu0 %v9428
    %9504 = vmatprep.subr.bf16.mxu0 0
    %9505 = vmatpush1.bf16.msra.mxu0 %v9429
    %9506 = vmatprep.subr.bf16.mxu0 0
    %9507 = vmatpush1.bf16.msra.mxu0 %v9430
    %9508 = vmatprep.subr.bf16.mxu0 0
    %9509 = vmatpush1.bf16.msra.mxu0 %v9431
    %9510 = vmatprep.subr.bf16.mxu0 0
    %9511 = vmatpush1.bf16.msra.mxu0 %v9432
    %9512 = vmatprep.subr.bf16.mxu0 0
    %9513 = vmatpush1.bf16.msra.mxu0 %v9433
    %9514 = vmatprep.subr.bf16.mxu0 0
    %9515 = vmatpush1.bf16.msra.mxu0 0
    %9516 = vmatprep.subr.bf16.mxu0 0
    %9517 = vmatpush1.bf16.msra.mxu0 0
    %9518 = vmatprep.subr.bf16.mxu0 0
    %9519 = vmatpush1.bf16.msra.mxu0 0
    %9520 = vmatprep.subr.bf16.mxu0 0
    %9521 = vmatpush1.bf16.msra.mxu0 0
    %9522 = vmatprep.subr.bf16.mxu0 0
    %9523 = vmatpush1.bf16.msra.mxu0 0
    %9524 = vmatprep.subr.bf16.mxu0 0
    %9525 = vmatpush1.bf16.msra.mxu0 0
    %9526 = vmatprep.subr.bf16.mxu0 0
    %9527 = vmatpush1.bf16.msra.mxu0 0
    %9528 = vmatprep.subr.bf16.mxu0 0
    %9529 = vmatpush1.bf16.msra.mxu0 0
    %9530 = vmatprep.mubr.bf16.mxu0 0
    %9531 = vmatmul.mubr.bf16.gmra.mrb[0].mxu0 %v9264
    %v9532 = vpop.f32.mrb[0].mxu0
    %v9533 = vadd.f32 %v9493, %v9532
    %v9534 = vpop.f32.mrb[0].mxu0
    %v9535 = vpop.f32.mrb[0].mxu0
    %v9536 = vpop.f32.mrb[0].mxu0
    %9537 = vdwg.mxu0
    %v9538 = vadd.f32 %v9261, %v9533
    %v9539 = vpack.c.bf16 %v8422, %v8422
    %v9540 = vpack.c.bf16 %v8423, %v8423
    %v9541 = vpack.c.bf16 %v8424, %v8424
    %s9542 = scalar_lea.vmem [#allocation10], 768
    %v9543 = vld [vmem:[%s9542] sm:$0xf]
    %v9544 = vld [vmem:[%s9542 + $0x4] sm:$0xf]
    %v9545 = vld [vmem:[%s9542 + $0x8] sm:$0xf]
    %v9546 = vld [vmem:[%s9542 + $0xc] sm:$0xf]
    %v9547 = vld [vmem:[%s9542 + $0x10] sm:$0xf]
    %v9548 = vld [vmem:[%s9542 + $0x14] sm:$0xf]
    %v9549 = vld [vmem:[%s9542 + $0x18] sm:$0xf]
    %v9550 = vld [vmem:[%s9542 + $0x1c] sm:$0xf]
    %v9551 = vld [vmem:[%s9542 + $0x20] sm:$0xf]
    %v9552 = vld [vmem:[%s9542 + $0x24] sm:$0xf]
    %v9553 = vld [vmem:[%s9542 + $0x28] sm:$0xf]
    %v9554 = vld [vmem:[%s9542 + $0x2c] sm:$0xf]
    %v9555 = vld [vmem:[%s9542 + $0x30] sm:$0xf]
    %v9556 = vld [vmem:[%s9542 + $0x34] sm:$0xf]
    %v9557 = vld [vmem:[%s9542 + $0x38] sm:$0xf]
    %v9558 = vld [vmem:[%s9542 + $0x3c] sm:$0xf]
    %v9559 = vld [vmem:[%s9542 + $0x40] sm:$0xf]
    %v9560 = vld [vmem:[%s9542 + $0x44] sm:$0xf]
    %v9561 = vld [vmem:[%s9542 + $0x48] sm:$0xf]
    %v9562 = vld [vmem:[%s9542 + $0x4c] sm:$0xf]
    %v9563 = vld [vmem:[%s9542 + $0x50] sm:$0xf]
    %v9564 = vld [vmem:[%s9542 + $0x54] sm:$0xf]
    %v9565 = vld [vmem:[%s9542 + $0x58] sm:$0xf]
    %v9566 = vld [vmem:[%s9542 + $0x5c] sm:$0xf]
    %v9567 = vld [vmem:[%s9542 + $0x60] sm:$0xf]
    %v9568 = vld [vmem:[%s9542 + $0x64] sm:$0xf]
    %v9569 = vld [vmem:[%s9542 + $0x68] sm:$0xf]
    %v9570 = vld [vmem:[%s9542 + $0x6c] sm:$0xf]
    %v9571 = vld [vmem:[%s9542 + $0x70] sm:$0xf]
    %v9572 = vld [vmem:[%s9542 + $0x74] sm:$0xf]
    %v9573 = vld [vmem:[%s9542 + $0x78] sm:$0xf]
    %v9574 = vld [vmem:[%s9542 + $0x7c] sm:$0xf]
    %v9575 = vld [vmem:[%s9542 + $0x80] sm:$0xf]
    %v9576 = vld [vmem:[%s9542 + $0x84] sm:$0xf]
    %v9577 = vld [vmem:[%s9542 + $0x88] sm:$0xf]
    %v9578 = vld [vmem:[%s9542 + $0x8c] sm:$0xf]
    %v9579 = vld [vmem:[%s9542 + $0x90] sm:$0xf]
    %v9580 = vld [vmem:[%s9542 + $0x94] sm:$0xf]
    %v9581 = vld [vmem:[%s9542 + $0x98] sm:$0xf]
    %v9582 = vld [vmem:[%s9542 + $0x9c] sm:$0xf]
    %v9583 = vld [vmem:[%s9542 + $0xa0] sm:$0xf]
    %v9584 = vld [vmem:[%s9542 + $0xa4] sm:$0xf]
    %v9585 = vld [vmem:[%s9542 + $0xa8] sm:$0xf]
    %v9586 = vld [vmem:[%s9542 + $0xac] sm:$0xf]
    %v9587 = vld [vmem:[%s9542 + $0xb0] sm:$0xf]
    %v9588 = vld [vmem:[%s9542 + $0xb4] sm:$0xf]
    %v9589 = vld [vmem:[%s9542 + $0xb8] sm:$0xf]
    %v9590 = vld [vmem:[%s9542 + $0xbc] sm:$0xf]
    %v9639 = vunpack.c.l.b16 %v9543
    %v9640 = vunpack.c.l.b16 %v9544
    %v9641 = vunpack.c.l.b16 %v9545
    %v9642 = vunpack.c.l.b16 %v9546
    %v9643 = vunpack.c.l.b16 %v9547
    %v9644 = vunpack.c.l.b16 %v9548
    %v9645 = vunpack.c.l.b16 %v9549
    %v9646 = vunpack.c.l.b16 %v9550
    %v9647 = vunpack.c.l.b16 %v9551
    %v9648 = vunpack.c.l.b16 %v9552
    %v9649 = vunpack.c.l.b16 %v9553
    %v9650 = vunpack.c.l.b16 %v9554
    %v9651 = vunpack.c.l.b16 %v9555
    %v9652 = vunpack.c.l.b16 %v9556
    %v9653 = vunpack.c.l.b16 %v9557
    %v9654 = vunpack.c.l.b16 %v9558
    %v9655 = vunpack.c.l.b16 %v9559
    %v9656 = vunpack.c.l.b16 %v9560
    %v9657 = vunpack.c.l.b16 %v9561
    %v9658 = vunpack.c.l.b16 %v9562
    %v9659 = vunpack.c.l.b16 %v9563
    %v9660 = vunpack.c.l.b16 %v9564
    %v9661 = vunpack.c.l.b16 %v9565
    %v9662 = vunpack.c.l.b16 %v9566
    %v9663 = vunpack.c.l.b16 %v9567
    %v9664 = vunpack.c.l.b16 %v9568
    %v9665 = vunpack.c.l.b16 %v9569
    %v9666 = vunpack.c.l.b16 %v9570
    %v9667 = vunpack.c.l.b16 %v9571
    %v9668 = vunpack.c.l.b16 %v9572
    %v9669 = vunpack.c.l.b16 %v9573
    %v9670 = vunpack.c.l.b16 %v9574
    %v9671 = vunpack.c.l.b16 %v9575
    %v9672 = vunpack.c.l.b16 %v9576
    %v9673 = vunpack.c.l.b16 %v9577
    %v9674 = vunpack.c.l.b16 %v9578
    %v9675 = vunpack.c.l.b16 %v9579
    %v9676 = vunpack.c.l.b16 %v9580
    %v9677 = vunpack.c.l.b16 %v9581
    %v9678 = vunpack.c.l.b16 %v9582
    %v9679 = vunpack.c.l.b16 %v9583
    %v9680 = vunpack.c.l.b16 %v9584
    %v9681 = vunpack.c.l.b16 %v9585
    %v9682 = vunpack.c.l.b16 %v9586
    %v9683 = vunpack.c.l.b16 %v9587
    %v9684 = vunpack.c.l.b16 %v9588
    %v9685 = vunpack.c.l.b16 %v9589
    %v9686 = vunpack.c.l.b16 %v9590
    %v9687 = vpack.c.b16 %v9640, %v9639
    %v9688 = vpack.c.b16 %v9642, %v9641
    %v9689 = vpack.c.b16 %v9644, %v9643
    %v9690 = vpack.c.b16 %v9646, %v9645
    %v9691 = vpack.c.b16 %v9648, %v9647
    %v9692 = vpack.c.b16 %v9650, %v9649
    %v9693 = vpack.c.b16 %v9652, %v9651
    %v9694 = vpack.c.b16 %v9654, %v9653
    %v9695 = vpack.c.b16 %v9656, %v9655
    %v9696 = vpack.c.b16 %v9658, %v9657
    %v9697 = vpack.c.b16 %v9660, %v9659
    %v9698 = vpack.c.b16 %v9662, %v9661
    %v9699 = vpack.c.b16 %v9664, %v9663
    %v9700 = vpack.c.b16 %v9666, %v9665
    %v9701 = vpack.c.b16 %v9668, %v9667
    %v9702 = vpack.c.b16 %v9670, %v9669
    %v9703 = vpack.c.b16 %v9672, %v9671
    %v9704 = vpack.c.b16 %v9674, %v9673
    %v9705 = vpack.c.b16 %v9676, %v9675
    %v9706 = vpack.c.b16 %v9678, %v9677
    %v9707 = vpack.c.b16 %v9680, %v9679
    %v9708 = vpack.c.b16 %v9682, %v9681
    %v9709 = vpack.c.b16 %v9684, %v9683
    %v9710 = vpack.c.b16 %v9686, %v9685
    %9735 = vmatprep.subr.bf16.mxu0 0
    %9736 = vmatpush1.bf16.msra.mxu0 %v9687
    %9737 = vmatprep.subr.bf16.mxu0 0
    %9738 = vmatpush1.bf16.msra.mxu0 %v9688
    %9739 = vmatprep.subr.bf16.mxu0 0
    %9740 = vmatpush1.bf16.msra.mxu0 %v9689
    %9741 = vmatprep.subr.bf16.mxu0 0
    %9742 = vmatpush1.bf16.msra.mxu0 %v9690
    %9743 = vmatprep.subr.bf16.mxu0 0
    %9744 = vmatpush1.bf16.msra.mxu0 %v9691
    %9745 = vmatprep.subr.bf16.mxu0 0
    %9746 = vmatpush1.bf16.msra.mxu0 %v9692
    %9747 = vmatprep.subr.bf16.mxu0 0
    %9748 = vmatpush1.bf16.msra.mxu0 %v9693
    %9749 = vmatprep.subr.bf16.mxu0 0
    %9750 = vmatpush1.bf16.msra.mxu0 %v9694
    %9751 = vmatprep.subr.bf16.mxu0 0
    %9752 = vmatpush1.bf16.msra.mxu0 %v9695
    %9753 = vmatprep.subr.bf16.mxu0 0
    %9754 = vmatpush1.bf16.msra.mxu0 %v9696
    %9755 = vmatprep.subr.bf16.mxu0 0
    %9756 = vmatpush1.bf16.msra.mxu0 %v9697
    %9757 = vmatprep.subr.bf16.mxu0 0
    %9758 = vmatpush1.bf16.msra.mxu0 %v9698
    %9759 = vmatprep.subr.bf16.mxu0 0
    %9760 = vmatpush1.bf16.msra.mxu0 %v9699
    %9761 = vmatprep.subr.bf16.mxu0 0
    %9762 = vmatpush1.bf16.msra.mxu0 %v9700
    %9763 = vmatprep.subr.bf16.mxu0 0
    %9764 = vmatpush1.bf16.msra.mxu0 %v9701
    %9765 = vmatprep.subr.bf16.mxu0 0
    %9766 = vmatpush1.bf16.msra.mxu0 %v9702
    %9767 = vmatprep.mubr.bf16.mxu0 %v9540
    %9768 = vmatmul.mubr.bf16.gmra.mrb[0].mxu0 %v9539
    %v9769 = vpop.f32.mrb[0].mxu0
    %v9770 = vadd.f32 0.0, %v9769
    %v9771 = vpop.f32.mrb[0].mxu0
    %v9772 = vpop.f32.mrb[0].mxu0
    %v9773 = vpop.f32.mrb[0].mxu0
    %9774 = vdwg.mxu0
    %9775 = vmatprep.subr.bf16.mxu0 0
    %9776 = vmatpush1.bf16.msra.mxu0 %v9703
    %9777 = vmatprep.subr.bf16.mxu0 0
    %9778 = vmatpush1.bf16.msra.mxu0 %v9704
    %9779 = vmatprep.subr.bf16.mxu0 0
    %9780 = vmatpush1.bf16.msra.mxu0 %v9705
    %9781 = vmatprep.subr.bf16.mxu0 0
    %9782 = vmatpush1.bf16.msra.mxu0 %v9706
    %9783 = vmatprep.subr.bf16.mxu0 0
    %9784 = vmatpush1.bf16.msra.mxu0 %v9707
    %9785 = vmatprep.subr.bf16.mxu0 0
    %9786 = vmatpush1.bf16.msra.mxu0 %v9708
    %9787 = vmatprep.subr.bf16.mxu0 0
    %9788 = vmatpush1.bf16.msra.mxu0 %v9709
    %9789 = vmatprep.subr.bf16.mxu0 0
    %9790 = vmatpush1.bf16.msra.mxu0 %v9710
    %9791 = vmatprep.subr.bf16.mxu0 0
    %9792 = vmatpush1.bf16.msra.mxu0 0
    %9793 = vmatprep.subr.bf16.mxu0 0
    %9794 = vmatpush1.bf16.msra.mxu0 0
    %9795 = vmatprep.subr.bf16.mxu0 0
    %9796 = vmatpush1.bf16.msra.mxu0 0
    %9797 = vmatprep.subr.bf16.mxu0 0
    %9798 = vmatpush1.bf16.msra.mxu0 0
    %9799 = vmatprep.subr.bf16.mxu0 0
    %9800 = vmatpush1.bf16.msra.mxu0 0
    %9801 = vmatprep.subr.bf16.mxu0 0
    %9802 = vmatpush1.bf16.msra.mxu0 0
    %9803 = vmatprep.subr.bf16.mxu0 0
    %9804 = vmatpush1.bf16.msra.mxu0 0
    %9805 = vmatprep.subr.bf16.mxu0 0
    %9806 = vmatpush1.bf16.msra.mxu0 0
    %9807 = vmatprep.mubr.bf16.mxu0 0
    %9808 = vmatmul.mubr.bf16.gmra.mrb[0].mxu0 %v9541
    %v9809 = vpop.f32.mrb[0].mxu0
    %v9810 = vadd.f32 %v9770, %v9809
    %v9811 = vpop.f32.mrb[0].mxu0
    %v9812 = vpop.f32.mrb[0].mxu0
    %v9813 = vpop.f32.mrb[0].mxu0
    %9814 = vdwg.mxu0
    %v9815 = vadd.f32 %v9538, %v9810
    %v9816 = vmax.f32 %v9815, 0.0
    %v9817 = vpack.c.bf16 %v9816, %v9816
    %v9818 = vld [vmem:[#allocation13] sm:$0xf]
    %v9819 = vld [vmem:[#allocation13 + $0x4] sm:$0xf]
    %v9820 = vld [vmem:[#allocation13 + $0x8] sm:$0xf]
    %v9821 = vld [vmem:[#allocation13 + $0xc] sm:$0xf]
    %v9822 = vld [vmem:[#allocation13 + $0x10] sm:$0xf]
    %v9823 = vld [vmem:[#allocation13 + $0x14] sm:$0xf]
    %v9824 = vld [vmem:[#allocation13 + $0x18] sm:$0xf]
    %v9825 = vld [vmem:[#allocation13 + $0x1c] sm:$0xf]
    %v9826 = vld [vmem:[#allocation13 + $0x20] sm:$0xf]
    %v9827 = vld [vmem:[#allocation13 + $0x24] sm:$0xf]
    %v9828 = vld [vmem:[#allocation13 + $0x28] sm:$0xf]
    %v9829 = vld [vmem:[#allocation13 + $0x2c] sm:$0xf]
    %v9830 = vld [vmem:[#allocation13 + $0x30] sm:$0xf]
    %v9831 = vld [vmem:[#allocation13 + $0x34] sm:$0xf]
    %v9832 = vld [vmem:[#allocation13 + $0x38] sm:$0xf]
    %v9833 = vld [vmem:[#allocation13 + $0x3c] sm:$0xf]
    %v9834 = vld [vmem:[#allocation14] sm:$0x1]
    %v9836 = vlaneseq
    %v9837 = vshrl.u32 %v9836, 7
    %v9838 = vsub.s32 0, %v9837
    %v9839 = vrot.slane %v9834, %v9838
    %v9857 = vunpack.c.l.b16 %v9818
    %v9858 = vunpack.c.l.b16 %v9819
    %v9859 = vunpack.c.l.b16 %v9820
    %v9860 = vunpack.c.l.b16 %v9821
    %v9861 = vunpack.c.l.b16 %v9822
    %v9862 = vunpack.c.l.b16 %v9823
    %v9863 = vunpack.c.l.b16 %v9824
    %v9864 = vunpack.c.l.b16 %v9825
    %v9865 = vunpack.c.l.b16 %v9826
    %v9866 = vunpack.c.l.b16 %v9827
    %v9867 = vunpack.c.l.b16 %v9828
    %v9868 = vunpack.c.l.b16 %v9829
    %v9869 = vunpack.c.l.b16 %v9830
    %v9870 = vunpack.c.l.b16 %v9831
    %v9871 = vunpack.c.l.b16 %v9832
    %v9872 = vunpack.c.l.b16 %v9833
    %v9873 = vpack.c.b16 %v9858, %v9857
    %v9874 = vpack.c.b16 %v9860, %v9859
    %v9875 = vpack.c.b16 %v9862, %v9861
    %v9876 = vpack.c.b16 %v9864, %v9863
    %v9877 = vpack.c.b16 %v9866, %v9865
    %v9878 = vpack.c.b16 %v9868, %v9867
    %v9879 = vpack.c.b16 %v9870, %v9869
    %v9880 = vpack.c.b16 %v9872, %v9871
    %9889 = vmatprep.subr.bf16.mxu0 0
    %9890 = vmatpush1.bf16.msra.mxu0 %v9873
    %9891 = vmatprep.subr.bf16.mxu0 0
    %9892 = vmatpush1.bf16.msra.mxu0 %v9874
    %9893 = vmatprep.subr.bf16.mxu0 0
    %9894 = vmatpush1.bf16.msra.mxu0 %v9875
    %9895 = vmatprep.subr.bf16.mxu0 0
    %9896 = vmatpush1.bf16.msra.mxu0 %v9876
    %9897 = vmatprep.subr.bf16.mxu0 0
    %9898 = vmatpush1.bf16.msra.mxu0 %v9877
    %9899 = vmatprep.subr.bf16.mxu0 0
    %9900 = vmatpush1.bf16.msra.mxu0 %v9878
    %9901 = vmatprep.subr.bf16.mxu0 0
    %9902 = vmatpush1.bf16.msra.mxu0 %v9879
    %9903 = vmatprep.subr.bf16.mxu0 0
    %9904 = vmatpush1.bf16.msra.mxu0 %v9880
    %9905 = vmatprep.subr.bf16.mxu0 0
    %9906 = vmatpush1.bf16.msra.mxu0 0
    %9907 = vmatprep.subr.bf16.mxu0 0
    %9908 = vmatpush1.bf16.msra.mxu0 0
    %9909 = vmatprep.subr.bf16.mxu0 0
    %9910 = vmatpush1.bf16.msra.mxu0 0
    %9911 = vmatprep.subr.bf16.mxu0 0
    %9912 = vmatpush1.bf16.msra.mxu0 0
    %9913 = vmatprep.subr.bf16.mxu0 0
    %9914 = vmatpush1.bf16.msra.mxu0 0
    %9915 = vmatprep.subr.bf16.mxu0 0
    %9916 = vmatpush1.bf16.msra.mxu0 0
    %9917 = vmatprep.subr.bf16.mxu0 0
    %9918 = vmatpush1.bf16.msra.mxu0 0
    %9919 = vmatprep.subr.bf16.mxu0 0
    %9920 = vmatpush1.bf16.msra.mxu0 0
    %9921 = vmatprep.mubr.bf16.mxu0 0
    %9922 = vmatmul.mubr.bf16.gmra.mrb[0].mxu0 %v9817
    %v9923 = vpop.f32.mrb[0].mxu0
    %v9924 = vadd.f32 %v9839, %v9923
    %v9925 = vpop.f32.mrb[0].mxu0
    %v9926 = vpop.f32.mrb[0].mxu0
    %v9927 = vpop.f32.mrb[0].mxu0
    %9928 = vdwg.mxu0
    %9929 = vst [vmem:[#allocation16] sm:$0xff] %v9924
    // Predicated region
    $region70: #{_forward_padded.1} parent=1 // pred_check
      _
    $region71: #{_forward_padded.1} parent=1 // pred_check_branch
      %9931 = sbr.rel (0) target = $region73
    $region72: #{_forward_padded.1} parent=1 // pred_region
      %s9933 = ssub.s32 128, 128
      %9934 = vsyncadd [#allocation4], %s9933
      %s9936 = sshll.u32 [#allocation16], 4
      %s9937 = int_to_ptr.vmem [resolvable:$true] %s9936
      %9939 = dma.vmem_to_hbm [thread:$0]  %s9937, 128, %s9, [#allocation4]
    $region73: #{_forward_padded.1} parent=1 // pred_fallthru
      _
    // Predicated region
    $region74: #{_forward_padded.1} parent=1 // pred_check
      _
    $region75: #{_forward_padded.1} parent=1 // pred_check_branch
      %9941 = sbr.rel (0) target = $region77
    $region76: #{_forward_padded.1} parent=1 // pred_region
      %9942 = dma.done [#allocation4], 128
    $region77: #{_forward_padded.1} parent=1 // pred_fallthru
      _
    %9943 = vsyncpa [#allocation3], 1
    %9944 = vsyncpa [#allocation6], 1
    %9945 = vsyncpa [#allocation9], 1
    %9946 = vsyncpa [#allocation12], 1
    %9947 = vsyncpa [#allocation15], 1
    %9948 = vsyncpa [#allocation4], 1

</llo_original>
